<compile_context>
chip_gen: v6e
topology: v6e:2x2x1
jax: 0.10.0
libtpu: 0.0.40
codegen_flags: <defaults>
</compile_context>

<pallas_src>
import functools

import jax
import jax.numpy as jnp
from jax.experimental import pallas as pl
from jax.experimental.pallas import tpu as pltpu


def _round_up(x, m):
    return ((x + m - 1) // m) * m


def _conv_bn_relu_kernel(x_ref, w_ref, scale_ref, bias_ref, o_ref, *,
                         kh, kw, stride, oh, ow):
    """Direct conv for a tile of NB images: sum of KH*KW shifted MXU matmuls,
    fused folded-BN + ReLU epilogue.

    x_ref:     (NB, Hp, Wp, Cin_p)     bf16  padded NHWC image tile
    w_ref:     (KH*KW, Cin_p, Cout_p)  bf16  per-tap weight matrices
    scale_ref: (1, Cout_p)             f32   folded BN scale
    bias_ref:  (1, Cout_p)             f32   folded BN bias
    o_ref:     (NB, OH*OW, Cout_p)            flattened NHWC output rows
    """
    nb = x_ref.shape[0]
    cin_p = x_ref.shape[-1]
    cout_p = o_ref.shape[-1]
    rows = nb * oh * ow

    if stride != 1:
        xv = x_ref[...]  # load once; strided value slices per tap below

    acc = jnp.zeros((rows, cout_p), jnp.float32)
    for i in range(kh):
        for j in range(kw):
            if stride == 1:
                win = x_ref[:, i:i + oh, j:j + ow, :]      # (NB, OH, OW, Cin_p)
            else:
                win = jax.lax.slice(
                    xv,
                    (0, i, j, 0),
                    (nb, i + (oh - 1) * stride + 1,
                     j + (ow - 1) * stride + 1, cin_p),
                    (1, stride, stride, 1))
            # MXU matmul, bf16 operands, f32 accumulation.
            acc = acc + jnp.dot(win.reshape(rows, cin_p),
                                w_ref[i * kw + j],
                                preferred_element_type=jnp.float32)

    # Folded BatchNorm affine (broadcast over rows) + ReLU, in f32.
    y = jnp.maximum(acc * scale_ref[...] + bias_ref[...], 0.0)
    o_ref[...] = y.reshape(nb, oh * ow, cout_p).astype(o_ref.dtype)


@functools.partial(jax.jit, static_argnames=("kernel_size", "padding", "stride"))
def convlayer_forward(x, weight, gamma, beta, running_mean, running_var,
                      kernel_size=3, padding=0, stride=1, eps=1e-5):
    """x: (N, Cin, H, W), weight: (Cout, Cin, KH, KW). Returns (N, Cout, OH, OW)."""
    n, cin, h, w = x.shape
    cout = weight.shape[0]
    kh = kw = kernel_size
    oh = (h + 2 * padding - kh) // stride + 1
    ow = (w + 2 * padding - kw) // stride + 1
    hp = h + 2 * padding
    wp = w + 2 * padding

    # Lane-dense channel padding (last dim maps to the 128-wide lane axis).
    cin_p = _round_up(cin, 128)
    cout_p = _round_up(cout, 128)

    # Batch tile per grid step: bigger matmul M-dim, bounded VMEM footprint.
    per_img_bytes = hp * wp * cin_p * 2 + oh * ow * cout_p * 4
    nb = max(1, min(n, 8, (8 * 1024 * 1024) // max(per_img_bytes, 1)))
    n_pad = _round_up(n, nb)

    # --- host-side glue (single layout pass each way) ---
    # NCHW -> NHWC, batch pad, spatial zero-pad, channel (lane) zero-pad, bf16.
    x_nhwc = jnp.transpose(x, (0, 2, 3, 1))
    x_pad = jnp.pad(x_nhwc, ((0, n_pad - n),
                             (padding, padding),
                             (padding, padding),
                             (0, cin_p - cin))).astype(jnp.bfloat16)

    # (Cout, Cin, KH, KW) -> (KH*KW, Cin_p, Cout_p): per-tap (Cin, Cout) matrices.
    w_r = jnp.transpose(weight, (2, 3, 1, 0)).reshape(kh * kw, cin, cout)
    w_r = jnp.pad(w_r, ((0, 0),
                        (0, cin_p - cin),
                        (0, cout_p - cout))).astype(jnp.bfloat16)

    # Fold BatchNorm (inference mode) into per-channel scale / bias, f32.
    scale = gamma / jnp.sqrt(running_var + eps)
    bias = beta - running_mean * scale
    scale = jnp.pad(scale, (0, cout_p - cout)).reshape(1, cout_p).astype(jnp.float32)
    bias = jnp.pad(bias, (0, cout_p - cout)).reshape(1, cout_p).astype(jnp.float32)

    kernel = functools.partial(_conv_bn_relu_kernel,
                               kh=kh, kw=kw, stride=stride, oh=oh, ow=ow)

    # --- hot path: direct conv + BN + ReLU, grid over batch tiles ---
    out_flat = pl.pallas_call(
        kernel,
        out_shape=jax.ShapeDtypeStruct((n_pad, oh * ow, cout_p), x.dtype),
        grid_spec=pltpu.PrefetchScalarGridSpec(
            num_scalar_prefetch=0,
            grid=(n_pad // nb,),
            in_specs=[
                # NB whole padded images per grid step (lane-dense Cin_p).
                pl.BlockSpec((nb, hp, wp, cin_p), lambda b: (b, 0, 0, 0)),
                # Weights / BN params are grid-invariant (constant index maps).
                pl.BlockSpec((kh * kw, cin_p, cout_p), lambda b: (0, 0, 0)),
                pl.BlockSpec((1, cout_p), lambda b: (0, 0)),
                pl.BlockSpec((1, cout_p), lambda b: (0, 0)),
            ],
            out_specs=pl.BlockSpec((nb, oh * ow, cout_p), lambda b: (b, 0, 0)),
        ),
        compiler_params=pltpu.CompilerParams(
            dimension_semantics=("parallel",),
            # Double-buffered image tiles + output + weights stay well under
            # this; 32 MiB is within every generation's physical VMEM.
            vmem_limit_bytes=32 * 1024 * 1024),
    )(x_pad, w_r, scale, bias)

    # Drop batch/channel padding, restore NCHW for module-equivalent output.
    out = out_flat[:n, :, :cout].reshape(n, oh, ow, cout)
    return jnp.transpose(out, (0, 3, 1, 2))


if __name__ == "__main__":
    key = jax.random.PRNGKey(0)
    k_x, k_w, k_g, k_b, k_m, k_v = jax.random.split(key, 6)

    # Small shapes consistent with the module: N=2, Cin=4, H=W=16, Cout=8, k=3, pad=1.
    N, CIN, H, W = 2, 4, 16, 16
    COUT, KSIZE, PAD, STRIDE = 8, 3, 1, 1

    x = jax.random.normal(k_x, (N, CIN, H, W), dtype=jnp.float32)
    weight = jax.random.normal(k_w, (COUT, CIN, KSIZE, KSIZE), dtype=jnp.float32) * 0.1
    gamma = jax.random.uniform(k_g, (COUT,), minval=0.5, maxval=1.5, dtype=jnp.float32)
    beta = jax.random.normal(k_b, (COUT,), dtype=jnp.float32) * 0.1
    running_mean = jax.random.normal(k_m, (COUT,), dtype=jnp.float32) * 0.1
    running_var = jax.random.uniform(k_v, (COUT,), minval=0.5, maxval=1.5, dtype=jnp.float32)

    out = convlayer_forward(x, weight, gamma, beta, running_mean, running_var,
                            kernel_size=KSIZE, padding=PAD, stride=STRIDE)
    jax.block_until_ready(out)

    # Sanity check against a pure-JAX reference (match the kernel's bf16
    # operand rounding; accumulation is f32 on both sides).
    xq = x.astype(jnp.bfloat16).astype(jnp.float32)
    wq = weight.astype(jnp.bfloat16).astype(jnp.float32)
    ref_conv = jax.lax.conv_general_dilated(
        xq, wq, window_strides=(STRIDE, STRIDE),
        padding=((PAD, PAD), (PAD, PAD)),
        dimension_numbers=("NCHW", "OIHW", "NCHW"),
        precision=jax.lax.Precision.HIGHEST)
    s = gamma / jnp.sqrt(running_var + 1e-5)
    ref = jnp.maximum(ref_conv * s[None, :, None, None]
                      + (beta - running_mean * s)[None, :, None, None], 0.0)

    assert out.shape == (N, COUT, H, W), out.shape
    assert jnp.allclose(out, ref, atol=2e-3, rtol=2e-3), float(jnp.max(jnp.abs(out - ref)))

    print("KERNEL_OK")
</pallas_src>

<mosaic_0001>
module attributes {stable_mosaic.version = 11 : i64} {
  func.func @_conv_bn_relu_kernel(%arg0: i32, %arg1: memref<2x18x18x128xbf16, #tpu.memory_space<vmem>>, %arg2: memref<9x128x128xbf16, #tpu.memory_space<vmem>>, %arg3: memref<1x128xf32, #tpu.memory_space<vmem>>, %arg4: memref<1x128xf32, #tpu.memory_space<vmem>>, %arg5: memref<2x256x128xf32, #tpu.memory_space<vmem>>) attributes {dimension_semantics = [#tpu.dimension_semantics<parallel>], iteration_bounds = array<i64: 1>, scalar_prefetch = 0 : i64, scratch_operands = 0 : i64, tpu.core_type = #tpu.core_type<tc>, window_params = [{transform_indices = @transform_0, window_bounds = array<i64: 2, 18, 18, 128>}, {pipeline_mode = #tpu.pipeline_mode<synchronous>, transform_indices = @transform_1, window_bounds = array<i64: 9, 128, 128>}, {pipeline_mode = #tpu.pipeline_mode<synchronous>, transform_indices = @transform_2, window_bounds = array<i64: 1, 128>}, {pipeline_mode = #tpu.pipeline_mode<synchronous>, transform_indices = @transform_3, window_bounds = array<i64: 1, 128>}, {transform_indices = @transform_4, window_bounds = array<i64: 2, 256, 128>}]} {
    %cst = arith.constant 0.000000e+00 : f32
    %0 = vector.broadcast %cst : f32 to vector<512x128xf32>
    %c0 = arith.constant 0 : index
    %c0_0 = arith.constant 0 : index
    %c0_1 = arith.constant 0 : index
    %c0_2 = arith.constant 0 : index
    %1 = vector.load %arg1[%c0, %c0_0, %c0_1, %c0_2] : memref<2x18x18x128xbf16, #tpu.memory_space<vmem>>, vector<2x16x16x128xbf16>
    %2 = vector.shape_cast %1 : vector<2x16x16x128xbf16> to vector<512x128xbf16>
    %c0_3 = arith.constant 0 : index
    %c0_4 = arith.constant 0 : index
    %c0_5 = arith.constant 0 : index
    %3 = vector.load %arg2[%c0_3, %c0_4, %c0_5] : memref<9x128x128xbf16, #tpu.memory_space<vmem>>, vector<1x128x128xbf16>
    %4 = vector.shape_cast %3 : vector<1x128x128xbf16> to vector<128x128xbf16>
    %cst_6 = arith.constant dense<0.000000e+00> : vector<512x128xf32>
    %5 = tpu.matmul %2, %4, %cst_6 {dimension_numbers = #tpu.dot_dimension_numbers<[1], [0], [0], [1], [0, 0, 1, 1], [], []>} : vector<512x128xbf16>, vector<128x128xbf16>, vector<512x128xf32> -> vector<512x128xf32>
    %6 = arith.addf %0, %5 : vector<512x128xf32>
    %c0_7 = arith.constant 0 : index
    %c0_8 = arith.constant 0 : index
    %c1 = arith.constant 1 : index
    %c0_9 = arith.constant 0 : index
    %7 = vector.load %arg1[%c0_7, %c0_8, %c1, %c0_9] : memref<2x18x18x128xbf16, #tpu.memory_space<vmem>>, vector<2x16x16x128xbf16>
    %8 = vector.shape_cast %7 : vector<2x16x16x128xbf16> to vector<512x128xbf16>
    %c1_10 = arith.constant 1 : index
    %c0_11 = arith.constant 0 : index
    %c0_12 = arith.constant 0 : index
    %9 = vector.load %arg2[%c1_10, %c0_11, %c0_12] : memref<9x128x128xbf16, #tpu.memory_space<vmem>>, vector<1x128x128xbf16>
    %10 = vector.shape_cast %9 : vector<1x128x128xbf16> to vector<128x128xbf16>
    %cst_13 = arith.constant dense<0.000000e+00> : vector<512x128xf32>
    %11 = tpu.matmul %8, %10, %cst_13 {dimension_numbers = #tpu.dot_dimension_numbers<[1], [0], [0], [1], [0, 0, 1, 1], [], []>} : vector<512x128xbf16>, vector<128x128xbf16>, vector<512x128xf32> -> vector<512x128xf32>
    %12 = arith.addf %6, %11 : vector<512x128xf32>
    %c0_14 = arith.constant 0 : index
    %c0_15 = arith.constant 0 : index
    %c2 = arith.constant 2 : index
    %c0_16 = arith.constant 0 : index
    %13 = vector.load %arg1[%c0_14, %c0_15, %c2, %c0_16] : memref<2x18x18x128xbf16, #tpu.memory_space<vmem>>, vector<2x16x16x128xbf16>
    %14 = vector.shape_cast %13 : vector<2x16x16x128xbf16> to vector<512x128xbf16>
    %c2_17 = arith.constant 2 : index
    %c0_18 = arith.constant 0 : index
    %c0_19 = arith.constant 0 : index
    %15 = vector.load %arg2[%c2_17, %c0_18, %c0_19] : memref<9x128x128xbf16, #tpu.memory_space<vmem>>, vector<1x128x128xbf16>
    %16 = vector.shape_cast %15 : vector<1x128x128xbf16> to vector<128x128xbf16>
    %cst_20 = arith.constant dense<0.000000e+00> : vector<512x128xf32>
    %17 = tpu.matmul %14, %16, %cst_20 {dimension_numbers = #tpu.dot_dimension_numbers<[1], [0], [0], [1], [0, 0, 1, 1], [], []>} : vector<512x128xbf16>, vector<128x128xbf16>, vector<512x128xf32> -> vector<512x128xf32>
    %18 = arith.addf %12, %17 : vector<512x128xf32>
    %c0_21 = arith.constant 0 : index
    %c1_22 = arith.constant 1 : index
    %c0_23 = arith.constant 0 : index
    %c0_24 = arith.constant 0 : index
    %19 = vector.load %arg1[%c0_21, %c1_22, %c0_23, %c0_24] : memref<2x18x18x128xbf16, #tpu.memory_space<vmem>>, vector<2x16x16x128xbf16>
    %20 = vector.shape_cast %19 : vector<2x16x16x128xbf16> to vector<512x128xbf16>
    %c3 = arith.constant 3 : index
    %c0_25 = arith.constant 0 : index
    %c0_26 = arith.constant 0 : index
    %21 = vector.load %arg2[%c3, %c0_25, %c0_26] : memref<9x128x128xbf16, #tpu.memory_space<vmem>>, vector<1x128x128xbf16>
    %22 = vector.shape_cast %21 : vector<1x128x128xbf16> to vector<128x128xbf16>
    %cst_27 = arith.constant dense<0.000000e+00> : vector<512x128xf32>
    %23 = tpu.matmul %20, %22, %cst_27 {dimension_numbers = #tpu.dot_dimension_numbers<[1], [0], [0], [1], [0, 0, 1, 1], [], []>} : vector<512x128xbf16>, vector<128x128xbf16>, vector<512x128xf32> -> vector<512x128xf32>
    %24 = arith.addf %18, %23 : vector<512x128xf32>
    %c0_28 = arith.constant 0 : index
    %c1_29 = arith.constant 1 : index
    %c1_30 = arith.constant 1 : index
    %c0_31 = arith.constant 0 : index
    %25 = vector.load %arg1[%c0_28, %c1_29, %c1_30, %c0_31] : memref<2x18x18x128xbf16, #tpu.memory_space<vmem>>, vector<2x16x16x128xbf16>
    %26 = vector.shape_cast %25 : vector<2x16x16x128xbf16> to vector<512x128xbf16>
    %c4 = arith.constant 4 : index
    %c0_32 = arith.constant 0 : index
    %c0_33 = arith.constant 0 : index
    %27 = vector.load %arg2[%c4, %c0_32, %c0_33] : memref<9x128x128xbf16, #tpu.memory_space<vmem>>, vector<1x128x128xbf16>
    %28 = vector.shape_cast %27 : vector<1x128x128xbf16> to vector<128x128xbf16>
    %cst_34 = arith.constant dense<0.000000e+00> : vector<512x128xf32>
    %29 = tpu.matmul %26, %28, %cst_34 {dimension_numbers = #tpu.dot_dimension_numbers<[1], [0], [0], [1], [0, 0, 1, 1], [], []>} : vector<512x128xbf16>, vector<128x128xbf16>, vector<512x128xf32> -> vector<512x128xf32>
    %30 = arith.addf %24, %29 : vector<512x128xf32>
    %c0_35 = arith.constant 0 : index
    %c1_36 = arith.constant 1 : index
    %c2_37 = arith.constant 2 : index
    %c0_38 = arith.constant 0 : index
    %31 = vector.load %arg1[%c0_35, %c1_36, %c2_37, %c0_38] : memref<2x18x18x128xbf16, #tpu.memory_space<vmem>>, vector<2x16x16x128xbf16>
    %32 = vector.shape_cast %31 : vector<2x16x16x128xbf16> to vector<512x128xbf16>
    %c5 = arith.constant 5 : index
    %c0_39 = arith.constant 0 : index
    %c0_40 = arith.constant 0 : index
    %33 = vector.load %arg2[%c5, %c0_39, %c0_40] : memref<9x128x128xbf16, #tpu.memory_space<vmem>>, vector<1x128x128xbf16>
    %34 = vector.shape_cast %33 : vector<1x128x128xbf16> to vector<128x128xbf16>
    %cst_41 = arith.constant dense<0.000000e+00> : vector<512x128xf32>
    %35 = tpu.matmul %32, %34, %cst_41 {dimension_numbers = #tpu.dot_dimension_numbers<[1], [0], [0], [1], [0, 0, 1, 1], [], []>} : vector<512x128xbf16>, vector<128x128xbf16>, vector<512x128xf32> -> vector<512x128xf32>
    %36 = arith.addf %30, %35 : vector<512x128xf32>
    %c0_42 = arith.constant 0 : index
    %c2_43 = arith.constant 2 : index
    %c0_44 = arith.constant 0 : index
    %c0_45 = arith.constant 0 : index
    %37 = vector.load %arg1[%c0_42, %c2_43, %c0_44, %c0_45] : memref<2x18x18x128xbf16, #tpu.memory_space<vmem>>, vector<2x16x16x128xbf16>
    %38 = vector.shape_cast %37 : vector<2x16x16x128xbf16> to vector<512x128xbf16>
    %c6 = arith.constant 6 : index
    %c0_46 = arith.constant 0 : index
    %c0_47 = arith.constant 0 : index
    %39 = vector.load %arg2[%c6, %c0_46, %c0_47] : memref<9x128x128xbf16, #tpu.memory_space<vmem>>, vector<1x128x128xbf16>
    %40 = vector.shape_cast %39 : vector<1x128x128xbf16> to vector<128x128xbf16>
    %cst_48 = arith.constant dense<0.000000e+00> : vector<512x128xf32>
    %41 = tpu.matmul %38, %40, %cst_48 {dimension_numbers = #tpu.dot_dimension_numbers<[1], [0], [0], [1], [0, 0, 1, 1], [], []>} : vector<512x128xbf16>, vector<128x128xbf16>, vector<512x128xf32> -> vector<512x128xf32>
    %42 = arith.addf %36, %41 : vector<512x128xf32>
    %c0_49 = arith.constant 0 : index
    %c2_50 = arith.constant 2 : index
    %c1_51 = arith.constant 1 : index
    %c0_52 = arith.constant 0 : index
    %43 = vector.load %arg1[%c0_49, %c2_50, %c1_51, %c0_52] : memref<2x18x18x128xbf16, #tpu.memory_space<vmem>>, vector<2x16x16x128xbf16>
    %44 = vector.shape_cast %43 : vector<2x16x16x128xbf16> to vector<512x128xbf16>
    %c7 = arith.constant 7 : index
    %c0_53 = arith.constant 0 : index
    %c0_54 = arith.constant 0 : index
    %45 = vector.load %arg2[%c7, %c0_53, %c0_54] : memref<9x128x128xbf16, #tpu.memory_space<vmem>>, vector<1x128x128xbf16>
    %46 = vector.shape_cast %45 : vector<1x128x128xbf16> to vector<128x128xbf16>
    %cst_55 = arith.constant dense<0.000000e+00> : vector<512x128xf32>
    %47 = tpu.matmul %44, %46, %cst_55 {dimension_numbers = #tpu.dot_dimension_numbers<[1], [0], [0], [1], [0, 0, 1, 1], [], []>} : vector<512x128xbf16>, vector<128x128xbf16>, vector<512x128xf32> -> vector<512x128xf32>
    %48 = arith.addf %42, %47 : vector<512x128xf32>
    %c0_56 = arith.constant 0 : index
    %c2_57 = arith.constant 2 : index
    %c2_58 = arith.constant 2 : index
    %c0_59 = arith.constant 0 : index
    %49 = vector.load %arg1[%c0_56, %c2_57, %c2_58, %c0_59] : memref<2x18x18x128xbf16, #tpu.memory_space<vmem>>, vector<2x16x16x128xbf16>
    %50 = vector.shape_cast %49 : vector<2x16x16x128xbf16> to vector<512x128xbf16>
    %c8 = arith.constant 8 : index
    %c0_60 = arith.constant 0 : index
    %c0_61 = arith.constant 0 : index
    %51 = vector.load %arg2[%c8, %c0_60, %c0_61] : memref<9x128x128xbf16, #tpu.memory_space<vmem>>, vector<1x128x128xbf16>
    %52 = vector.shape_cast %51 : vector<1x128x128xbf16> to vector<128x128xbf16>
    %cst_62 = arith.constant dense<0.000000e+00> : vector<512x128xf32>
    %53 = tpu.matmul %50, %52, %cst_62 {dimension_numbers = #tpu.dot_dimension_numbers<[1], [0], [0], [1], [0, 0, 1, 1], [], []>} : vector<512x128xbf16>, vector<128x128xbf16>, vector<512x128xf32> -> vector<512x128xf32>
    %54 = arith.addf %48, %53 : vector<512x128xf32>
    %c0_63 = arith.constant 0 : index
    %c0_64 = arith.constant 0 : index
    %55 = vector.load %arg3[%c0_63, %c0_64] : memref<1x128xf32, #tpu.memory_space<vmem>>, vector<1x128xf32>
    %56 = vector.broadcast %55 : vector<1x128xf32> to vector<512x128xf32>
    %57 = arith.mulf %54, %56 : vector<512x128xf32>
    %c0_65 = arith.constant 0 : index
    %c0_66 = arith.constant 0 : index
    %58 = vector.load %arg4[%c0_65, %c0_66] : memref<1x128xf32, #tpu.memory_space<vmem>>, vector<1x128xf32>
    %59 = vector.broadcast %58 : vector<1x128xf32> to vector<512x128xf32>
    %60 = arith.addf %57, %59 : vector<512x128xf32>
    %cst_67 = arith.constant 0.000000e+00 : f32
    %61 = vector.broadcast %cst_67 : f32 to vector<512x128xf32>
    %62 = arith.maximumf %60, %61 : vector<512x128xf32>
    %63 = vector.shape_cast %62 : vector<512x128xf32> to vector<2x256x128xf32>
    %c0_68 = arith.constant 0 : index
    %c0_69 = arith.constant 0 : index
    %c0_70 = arith.constant 0 : index
    %64 = vector.load %arg5[%c0_68, %c0_69, %c0_70] : memref<2x256x128xf32, #tpu.memory_space<vmem>>, vector<2x256x128xf32>
    tpu.vector_store %arg5[%c0_68, %c0_69, %c0_70], %63 {strides = array<i32>} : memref<2x256x128xf32, #tpu.memory_space<vmem>>, vector<2x256x128xf32>,
    return
  }
  func.func @transform_0(%arg0: i32) -> (i32, i32, i32, i32) {
    %c0_i32 = arith.constant 0 : i32
    %c0_i32_0 = arith.constant 0 : i32
    %c0_i32_1 = arith.constant 0 : i32
    %c0_i32_2 = arith.constant 0 : i32
    return %arg0, %c0_i32, %c0_i32_0, %c0_i32_1 : i32, i32, i32, i32
  }
  func.func @transform_1(%arg0: i32) -> (i32, i32, i32) {
    %c0_i32 = arith.constant 0 : i32
    %c0_i32_0 = arith.constant 0 : i32
    %c0_i32_1 = arith.constant 0 : i32
    %c0_i32_2 = arith.constant 0 : i32
    return %c0_i32, %c0_i32_0, %c0_i32_1 : i32, i32, i32
  }
  func.func @transform_2(%arg0: i32) -> (i32, i32) {
    %c0_i32 = arith.constant 0 : i32
    %c0_i32_0 = arith.constant 0 : i32
    %c0_i32_1 = arith.constant 0 : i32
    return %c0_i32, %c0_i32_0 : i32, i32
  }
  func.func @transform_3(%arg0: i32) -> (i32, i32) {
    %c0_i32 = arith.constant 0 : i32
    %c0_i32_0 = arith.constant 0 : i32
    %c0_i32_1 = arith.constant 0 : i32
    return %c0_i32, %c0_i32_0 : i32, i32
  }
  func.func @transform_4(%arg0: i32) -> (i32, i32, i32) {
    %c0_i32 = arith.constant 0 : i32
    %c0_i32_0 = arith.constant 0 : i32
    %c0_i32_1 = arith.constant 0 : i32
    return %arg0, %c0_i32, %c0_i32_0 : i32, i32, i32
  }
}

</mosaic_0001>

<llo_original>
// kernel: convlayer_forward.1
$region0: #{convlayer_forward.1}
  #allocation0 [shape = 'u32[]', space=smem, size = 0x4, offset = 0x4, fixed_abs, tag = 'smem constant byte address 0x4 - core index']
  #allocation1 [shape = 'u32[144,128]{1,0:T(1,128)}', space=vmem, size = 0x12000, scoped, tag = 'internal scratch']
  %s0 = inlined_call_operand.vmem [shape: bf16[2,18,18,128], index: 0, kind: input, shape index: {}]
  %s1 = inlined_call_operand.vmem [shape: bf16[9,128,128], index: 1, kind: input, shape index: {}]
  %s2 = inlined_call_operand.vmem [shape: f32[1,128], index: 2, kind: input, shape index: {}]
  %s3 = inlined_call_operand.vmem [shape: f32[1,128], index: 3, kind: input, shape index: {}]
  %s4 = inlined_call_operand.vmem [shape: f32[2,256,128], index: 4, kind: output, shape index: {}]
  %s5 = sld [smem:[#allocation0]]
  $region26: #{convlayer_forward.1} parent=0
    _
  %s7 = ssub.s32 1, %s5
  %s8 = scalar_select 0, %s7, %s5
  // Predicated region
  $region2: #{convlayer_forward.1} parent=0 // pred_check
    _
  $region3: #{convlayer_forward.1} parent=0 // pred_check_branch
    %10 = sbr.rel (0) target = $region5
  $region4: #{convlayer_forward.1} parent=0 // pred_region
    _
  $region5: #{convlayer_forward.1} parent=0 // pred_fallthru
    _
  // Predicated region
  $region6: #{convlayer_forward.1} parent=0 // pred_check
    _
  $region7: #{convlayer_forward.1} parent=0 // pred_check_branch
    %12 = sbr.rel (0) target = $region9
  $region8: #{convlayer_forward.1} parent=0 // pred_region
    _
  $region9: #{convlayer_forward.1} parent=0 // pred_fallthru
    _
  // Predicated region
  $region10: #{convlayer_forward.1} parent=0 // pred_check
    _
  $region11: #{convlayer_forward.1} parent=0 // pred_check_branch
    %14 = sbr.rel (0) target = $region13
  $region12: #{convlayer_forward.1} parent=0 // pred_region
    _
  $region13: #{convlayer_forward.1} parent=0 // pred_fallthru
    _
  // Predicated region
  $region14: #{convlayer_forward.1} parent=0 // pred_check
    _
  $region15: #{convlayer_forward.1} parent=0 // pred_check_branch
    %16 = sbr.rel (0) target = $region17
  $region16: #{convlayer_forward.1} parent=0 // pred_region
    _
  $region17: #{convlayer_forward.1} parent=0 // pred_fallthru
    _
  %v18 = vld [vmem:[%s0] sm:$0xf]
  %v19 = vld [vmem:[%s0 + $0x4] sm:$0xf]
  %v20 = vld [vmem:[%s0 + $0xc] sm:$0xf]
  %v21 = vld [vmem:[%s0 + $0x10] sm:$0xf]
  %v22 = vld [vmem:[%s0 + $0x18] sm:$0xf]
  %v23 = vld [vmem:[%s0 + $0x1c] sm:$0xf]
  %v24 = vld [vmem:[%s0 + $0x24] sm:$0xf]
  %v25 = vld [vmem:[%s0 + $0x28] sm:$0xf]
  %v26 = vld [vmem:[%s0 + $0x30] sm:$0xf]
  %v27 = vld [vmem:[%s0 + $0x34] sm:$0xf]
  %v28 = vld [vmem:[%s0 + $0x3c] sm:$0xf]
  %v29 = vld [vmem:[%s0 + $0x40] sm:$0xf]
  %v30 = vld [vmem:[%s0 + $0x48] sm:$0xf]
  %v31 = vld [vmem:[%s0 + $0x4c] sm:$0xf]
  %v32 = vld [vmem:[%s0 + $0x54] sm:$0xf]
  %v33 = vld [vmem:[%s0 + $0x58] sm:$0xf]
  %v34 = vld [vmem:[%s0 + $0x60] sm:$0xf]
  %v35 = vld [vmem:[%s0 + $0x64] sm:$0xf]
  %v36 = vld [vmem:[%s0 + $0x6c] sm:$0xf]
  %v37 = vld [vmem:[%s0 + $0x70] sm:$0xf]
  %v38 = vld [vmem:[%s0 + $0x78] sm:$0xf]
  %v39 = vld [vmem:[%s0 + $0x7c] sm:$0xf]
  %v40 = vld [vmem:[%s0 + $0x84] sm:$0xf]
  %v41 = vld [vmem:[%s0 + $0x88] sm:$0xf]
  %v42 = vld [vmem:[%s0 + $0x90] sm:$0xf]
  %v43 = vld [vmem:[%s0 + $0x94] sm:$0xf]
  %v44 = vld [vmem:[%s0 + $0x9c] sm:$0xf]
  %v45 = vld [vmem:[%s0 + $0xa0] sm:$0xf]
  %v46 = vld [vmem:[%s0 + $0xa8] sm:$0xf]
  %v47 = vld [vmem:[%s0 + $0xac] sm:$0xf]
  %v48 = vld [vmem:[%s0 + $0xb4] sm:$0xf]
  %v49 = vld [vmem:[%s0 + $0xb8] sm:$0xf]
  %v50 = vld [vmem:[%s0 + $0xd8] sm:$0xf]
  %v51 = vld [vmem:[%s0 + $0xdc] sm:$0xf]
  %v52 = vld [vmem:[%s0 + $0xe4] sm:$0xf]
  %v53 = vld [vmem:[%s0 + $0xe8] sm:$0xf]
  %v54 = vld [vmem:[%s0 + $0xf0] sm:$0xf]
  %v55 = vld [vmem:[%s0 + $0xf4] sm:$0xf]
  %v56 = vld [vmem:[%s0 + $0xfc] sm:$0xf]
  %v57 = vld [vmem:[%s0 + $0x100] sm:$0xf]
  %v58 = vld [vmem:[%s0 + $0x108] sm:$0xf]
  %v59 = vld [vmem:[%s0 + $0x10c] sm:$0xf]
  %v60 = vld [vmem:[%s0 + $0x114] sm:$0xf]
  %v61 = vld [vmem:[%s0 + $0x118] sm:$0xf]
  %v62 = vld [vmem:[%s0 + $0x120] sm:$0xf]
  %v63 = vld [vmem:[%s0 + $0x124] sm:$0xf]
  %v64 = vld [vmem:[%s0 + $0x12c] sm:$0xf]
  %v65 = vld [vmem:[%s0 + $0x130] sm:$0xf]
  %v66 = vld [vmem:[%s0 + $0x138] sm:$0xf]
  %v67 = vld [vmem:[%s0 + $0x13c] sm:$0xf]
  %v68 = vld [vmem:[%s0 + $0x144] sm:$0xf]
  %v69 = vld [vmem:[%s0 + $0x148] sm:$0xf]
  %v70 = vld [vmem:[%s0 + $0x150] sm:$0xf]
  %v71 = vld [vmem:[%s0 + $0x154] sm:$0xf]
  %v72 = vld [vmem:[%s0 + $0x15c] sm:$0xf]
  %v73 = vld [vmem:[%s0 + $0x160] sm:$0xf]
  %v74 = vld [vmem:[%s0 + $0x168] sm:$0xf]
  %v75 = vld [vmem:[%s0 + $0x16c] sm:$0xf]
  %v76 = vld [vmem:[%s0 + $0x174] sm:$0xf]
  %v77 = vld [vmem:[%s0 + $0x178] sm:$0xf]
  %v78 = vld [vmem:[%s0 + $0x180] sm:$0xf]
  %v79 = vld [vmem:[%s0 + $0x184] sm:$0xf]
  %v80 = vld [vmem:[%s0 + $0x18c] sm:$0xf]
  %v81 = vld [vmem:[%s0 + $0x190] sm:$0xf]
  %v82 = vld [vmem:[%s1] sm:$0xf]
  %v83 = vld [vmem:[%s1 + $0x4] sm:$0xf]
  %v84 = vld [vmem:[%s1 + $0x8] sm:$0xf]
  %v85 = vld [vmem:[%s1 + $0xc] sm:$0xf]
  %v86 = vld [vmem:[%s1 + $0x10] sm:$0xf]
  %v87 = vld [vmem:[%s1 + $0x14] sm:$0xf]
  %v88 = vld [vmem:[%s1 + $0x18] sm:$0xf]
  %v89 = vld [vmem:[%s1 + $0x1c] sm:$0xf]
  %v90 = vld [vmem:[%s1 + $0x20] sm:$0xf]
  %v91 = vld [vmem:[%s1 + $0x24] sm:$0xf]
  %v92 = vld [vmem:[%s1 + $0x28] sm:$0xf]
  %v93 = vld [vmem:[%s1 + $0x2c] sm:$0xf]
  %v94 = vld [vmem:[%s1 + $0x30] sm:$0xf]
  %v95 = vld [vmem:[%s1 + $0x34] sm:$0xf]
  %v96 = vld [vmem:[%s1 + $0x38] sm:$0xf]
  %v97 = vld [vmem:[%s1 + $0x3c] sm:$0xf]
  %v98 = vld [vmem:[%s0 + $0x8] sm:$0x1]
  %v99 = vld [vmem:[%s0 + $0x14] sm:$0x1]
  %v100 = vld [vmem:[%s0 + $0x20] sm:$0x1]
  %v101 = vld [vmem:[%s0 + $0x2c] sm:$0x1]
  %v102 = vld [vmem:[%s0 + $0x38] sm:$0x1]
  %v103 = vld [vmem:[%s0 + $0x44] sm:$0x1]
  %v104 = vld [vmem:[%s0 + $0x50] sm:$0x1]
  %v105 = vld [vmem:[%s0 + $0x5c] sm:$0x1]
  %v106 = vld [vmem:[%s0 + $0x68] sm:$0x1]
  %v107 = vld [vmem:[%s0 + $0x74] sm:$0x1]
  %v108 = vld [vmem:[%s0 + $0x80] sm:$0x1]
  %v109 = vld [vmem:[%s0 + $0x8c] sm:$0x1]
  %v110 = vld [vmem:[%s0 + $0x98] sm:$0x1]
  %v111 = vld [vmem:[%s0 + $0xa4] sm:$0x1]
  %v112 = vld [vmem:[%s0 + $0xb0] sm:$0x1]
  %v113 = vld [vmem:[%s0 + $0xbc] sm:$0x1]
  %v114 = vld [vmem:[%s0 + $0xe0] sm:$0x1]
  %v115 = vld [vmem:[%s0 + $0xec] sm:$0x1]
  %v116 = vld [vmem:[%s0 + $0xf8] sm:$0x1]
  %v117 = vld [vmem:[%s0 + $0x104] sm:$0x1]
  %v118 = vld [vmem:[%s0 + $0x110] sm:$0x1]
  %v119 = vld [vmem:[%s0 + $0x11c] sm:$0x1]
  %v120 = vld [vmem:[%s0 + $0x128] sm:$0x1]
  %v121 = vld [vmem:[%s0 + $0x134] sm:$0x1]
  %v122 = vld [vmem:[%s0 + $0x140] sm:$0x1]
  %v123 = vld [vmem:[%s0 + $0x14c] sm:$0x1]
  %v124 = vld [vmem:[%s0 + $0x158] sm:$0x1]
  %v125 = vld [vmem:[%s0 + $0x164] sm:$0x1]
  %v126 = vld [vmem:[%s0 + $0x170] sm:$0x1]
  %v127 = vld [vmem:[%s0 + $0x17c] sm:$0x1]
  %v128 = vld [vmem:[%s0 + $0x188] sm:$0x1]
  %v129 = vld [vmem:[%s0 + $0x194] sm:$0x1]
  %vm130 = vsmask.f32 3328
  %vm131 = vsmask.f32 7440
  %vm132 = vmor %vm130, %vm131
  %v134 = vshrl.u32 %v18, 16
  %v136 = vrot.slane %v134, 4
  %v137 = vshll.u32 %v18, 16
  %v139 = vrot.slane %v137, 5
  %v140 = vor.u32 %v136, %v139
  %v141 = vrot.slane %v140, 4
  %v143 = vshll.u32 %v19, 16
  %v145 = vrot.slane %v143, 5
  %v146 = vsel %vm132, %v141, %v145
  %v147 = vshrl.u32 %v19, 16
  %v149 = vrot.slane %v147, 4
  %v150 = vor.u32 %v149, %v145
  %v151 = vrot.slane %v150, 4
  %v153 = vshll.u32 %v98, 16
  %v155 = vrot.slane %v153, 5
  %v156 = vsel %vm132, %v151, %v155
  %v158 = vshrl.u32 %v20, 16
  %v160 = vrot.slane %v158, 4
  %v161 = vshll.u32 %v20, 16
  %v163 = vrot.slane %v161, 5
  %v164 = vor.u32 %v160, %v163
  %v165 = vrot.slane %v164, 4
  %v167 = vshll.u32 %v21, 16
  %v169 = vrot.slane %v167, 5
  %v170 = vsel %vm132, %v165, %v169
  %v171 = vshrl.u32 %v21, 16
  %v173 = vrot.slane %v171, 4
  %v174 = vor.u32 %v173, %v169
  %v175 = vrot.slane %v174, 4
  %v177 = vshll.u32 %v99, 16
  %v179 = vrot.slane %v177, 5
  %v180 = vsel %vm132, %v175, %v179
  %v182 = vshrl.u32 %v22, 16
  %v184 = vrot.slane %v182, 4
  %v185 = vshll.u32 %v22, 16
  %v187 = vrot.slane %v185, 5
  %v188 = vor.u32 %v184, %v187
  %v189 = vrot.slane %v188, 4
  %v191 = vshll.u32 %v23, 16
  %v193 = vrot.slane %v191, 5
  %v194 = vsel %vm132, %v189, %v193
  %v195 = vshrl.u32 %v23, 16
  %v197 = vrot.slane %v195, 4
  %v198 = vor.u32 %v197, %v193
  %v199 = vrot.slane %v198, 4
  %v201 = vshll.u32 %v100, 16
  %v203 = vrot.slane %v201, 5
  %v204 = vsel %vm132, %v199, %v203
  %v206 = vshrl.u32 %v24, 16
  %v208 = vrot.slane %v206, 4
  %v209 = vshll.u32 %v24, 16
  %v211 = vrot.slane %v209, 5
  %v212 = vor.u32 %v208, %v211
  %v213 = vrot.slane %v212, 4
  %v215 = vshll.u32 %v25, 16
  %v217 = vrot.slane %v215, 5
  %v218 = vsel %vm132, %v213, %v217
  %v219 = vshrl.u32 %v25, 16
  %v221 = vrot.slane %v219, 4
  %v222 = vor.u32 %v221, %v217
  %v223 = vrot.slane %v222, 4
  %v225 = vshll.u32 %v101, 16
  %v227 = vrot.slane %v225, 5
  %v228 = vsel %vm132, %v223, %v227
  %v230 = vshrl.u32 %v26, 16
  %v232 = vrot.slane %v230, 4
  %v233 = vshll.u32 %v26, 16
  %v235 = vrot.slane %v233, 5
  %v236 = vor.u32 %v232, %v235
  %v237 = vrot.slane %v236, 4
  %v239 = vshll.u32 %v27, 16
  %v241 = vrot.slane %v239, 5
  %v242 = vsel %vm132, %v237, %v241
  %v243 = vshrl.u32 %v27, 16
  %v245 = vrot.slane %v243, 4
  %v246 = vor.u32 %v245, %v241
  %v247 = vrot.slane %v246, 4
  %v249 = vshll.u32 %v102, 16
  %v251 = vrot.slane %v249, 5
  %v252 = vsel %vm132, %v247, %v251
  %v254 = vshrl.u32 %v28, 16
  %v256 = vrot.slane %v254, 4
  %v257 = vshll.u32 %v28, 16
  %v259 = vrot.slane %v257, 5
  %v260 = vor.u32 %v256, %v259
  %v261 = vrot.slane %v260, 4
  %v263 = vshll.u32 %v29, 16
  %v265 = vrot.slane %v263, 5
  %v266 = vsel %vm132, %v261, %v265
  %v267 = vshrl.u32 %v29, 16
  %v269 = vrot.slane %v267, 4
  %v270 = vor.u32 %v269, %v265
  %v271 = vrot.slane %v270, 4
  %v273 = vshll.u32 %v103, 16
  %v275 = vrot.slane %v273, 5
  %v276 = vsel %vm132, %v271, %v275
  %v278 = vshrl.u32 %v30, 16
  %v280 = vrot.slane %v278, 4
  %v281 = vshll.u32 %v30, 16
  %v283 = vrot.slane %v281, 5
  %v284 = vor.u32 %v280, %v283
  %v285 = vrot.slane %v284, 4
  %v287 = vshll.u32 %v31, 16
  %v289 = vrot.slane %v287, 5
  %v290 = vsel %vm132, %v285, %v289
  %v291 = vshrl.u32 %v31, 16
  %v293 = vrot.slane %v291, 4
  %v294 = vor.u32 %v293, %v289
  %v295 = vrot.slane %v294, 4
  %v297 = vshll.u32 %v104, 16
  %v299 = vrot.slane %v297, 5
  %v300 = vsel %vm132, %v295, %v299
  %v302 = vshrl.u32 %v32, 16
  %v304 = vrot.slane %v302, 4
  %v305 = vshll.u32 %v32, 16
  %v307 = vrot.slane %v305, 5
  %v308 = vor.u32 %v304, %v307
  %v309 = vrot.slane %v308, 4
  %v311 = vshll.u32 %v33, 16
  %v313 = vrot.slane %v311, 5
  %v314 = vsel %vm132, %v309, %v313
  %v315 = vshrl.u32 %v33, 16
  %v317 = vrot.slane %v315, 4
  %v318 = vor.u32 %v317, %v313
  %v319 = vrot.slane %v318, 4
  %v321 = vshll.u32 %v105, 16
  %v323 = vrot.slane %v321, 5
  %v324 = vsel %vm132, %v319, %v323
  %v326 = vshrl.u32 %v34, 16
  %v328 = vrot.slane %v326, 4
  %v329 = vshll.u32 %v34, 16
  %v331 = vrot.slane %v329, 5
  %v332 = vor.u32 %v328, %v331
  %v333 = vrot.slane %v332, 4
  %v335 = vshll.u32 %v35, 16
  %v337 = vrot.slane %v335, 5
  %v338 = vsel %vm132, %v333, %v337
  %v339 = vshrl.u32 %v35, 16
  %v341 = vrot.slane %v339, 4
  %v342 = vor.u32 %v341, %v337
  %v343 = vrot.slane %v342, 4
  %v345 = vshll.u32 %v106, 16
  %v347 = vrot.slane %v345, 5
  %v348 = vsel %vm132, %v343, %v347
  %v350 = vshrl.u32 %v36, 16
  %v352 = vrot.slane %v350, 4
  %v353 = vshll.u32 %v36, 16
  %v355 = vrot.slane %v353, 5
  %v356 = vor.u32 %v352, %v355
  %v357 = vrot.slane %v356, 4
  %v359 = vshll.u32 %v37, 16
  %v361 = vrot.slane %v359, 5
  %v362 = vsel %vm132, %v357, %v361
  %v363 = vshrl.u32 %v37, 16
  %v365 = vrot.slane %v363, 4
  %v366 = vor.u32 %v365, %v361
  %v367 = vrot.slane %v366, 4
  %v369 = vshll.u32 %v107, 16
  %v371 = vrot.slane %v369, 5
  %v372 = vsel %vm132, %v367, %v371
  %v374 = vshrl.u32 %v38, 16
  %v376 = vrot.slane %v374, 4
  %v377 = vshll.u32 %v38, 16
  %v379 = vrot.slane %v377, 5
  %v380 = vor.u32 %v376, %v379
  %v381 = vrot.slane %v380, 4
  %v383 = vshll.u32 %v39, 16
  %v385 = vrot.slane %v383, 5
  %v386 = vsel %vm132, %v381, %v385
  %v387 = vshrl.u32 %v39, 16
  %v389 = vrot.slane %v387, 4
  %v390 = vor.u32 %v389, %v385
  %v391 = vrot.slane %v390, 4
  %v393 = vshll.u32 %v108, 16
  %v395 = vrot.slane %v393, 5
  %v396 = vsel %vm132, %v391, %v395
  %v398 = vshrl.u32 %v40, 16
  %v400 = vrot.slane %v398, 4
  %v401 = vshll.u32 %v40, 16
  %v403 = vrot.slane %v401, 5
  %v404 = vor.u32 %v400, %v403
  %v405 = vrot.slane %v404, 4
  %v407 = vshll.u32 %v41, 16
  %v409 = vrot.slane %v407, 5
  %v410 = vsel %vm132, %v405, %v409
  %v411 = vshrl.u32 %v41, 16
  %v413 = vrot.slane %v411, 4
  %v414 = vor.u32 %v413, %v409
  %v415 = vrot.slane %v414, 4
  %v417 = vshll.u32 %v109, 16
  %v419 = vrot.slane %v417, 5
  %v420 = vsel %vm132, %v415, %v419
  %v422 = vshrl.u32 %v42, 16
  %v424 = vrot.slane %v422, 4
  %v425 = vshll.u32 %v42, 16
  %v427 = vrot.slane %v425, 5
  %v428 = vor.u32 %v424, %v427
  %v429 = vrot.slane %v428, 4
  %v431 = vshll.u32 %v43, 16
  %v433 = vrot.slane %v431, 5
  %v434 = vsel %vm132, %v429, %v433
  %v435 = vshrl.u32 %v43, 16
  %v437 = vrot.slane %v435, 4
  %v438 = vor.u32 %v437, %v433
  %v439 = vrot.slane %v438, 4
  %v441 = vshll.u32 %v110, 16
  %v443 = vrot.slane %v441, 5
  %v444 = vsel %vm132, %v439, %v443
  %v446 = vshrl.u32 %v44, 16
  %v448 = vrot.slane %v446, 4
  %v449 = vshll.u32 %v44, 16
  %v451 = vrot.slane %v449, 5
  %v452 = vor.u32 %v448, %v451
  %v453 = vrot.slane %v452, 4
  %v455 = vshll.u32 %v45, 16
  %v457 = vrot.slane %v455, 5
  %v458 = vsel %vm132, %v453, %v457
  %v459 = vshrl.u32 %v45, 16
  %v461 = vrot.slane %v459, 4
  %v462 = vor.u32 %v461, %v457
  %v463 = vrot.slane %v462, 4
  %v465 = vshll.u32 %v111, 16
  %v467 = vrot.slane %v465, 5
  %v468 = vsel %vm132, %v463, %v467
  %v470 = vshrl.u32 %v46, 16
  %v472 = vrot.slane %v470, 4
  %v473 = vshll.u32 %v46, 16
  %v475 = vrot.slane %v473, 5
  %v476 = vor.u32 %v472, %v475
  %v477 = vrot.slane %v476, 4
  %v479 = vshll.u32 %v47, 16
  %v481 = vrot.slane %v479, 5
  %v482 = vsel %vm132, %v477, %v481
  %v483 = vshrl.u32 %v47, 16
  %v485 = vrot.slane %v483, 4
  %v486 = vor.u32 %v485, %v481
  %v487 = vrot.slane %v486, 4
  %v489 = vshll.u32 %v112, 16
  %v491 = vrot.slane %v489, 5
  %v492 = vsel %vm132, %v487, %v491
  %v494 = vshrl.u32 %v48, 16
  %v496 = vrot.slane %v494, 4
  %v497 = vshll.u32 %v48, 16
  %v499 = vrot.slane %v497, 5
  %v500 = vor.u32 %v496, %v499
  %v501 = vrot.slane %v500, 4
  %v503 = vshll.u32 %v49, 16
  %v505 = vrot.slane %v503, 5
  %v506 = vsel %vm132, %v501, %v505
  %v507 = vshrl.u32 %v49, 16
  %v509 = vrot.slane %v507, 4
  %v510 = vor.u32 %v509, %v505
  %v511 = vrot.slane %v510, 4
  %v513 = vshll.u32 %v113, 16
  %v515 = vrot.slane %v513, 5
  %v516 = vsel %vm132, %v511, %v515
  %v518 = vshrl.u32 %v50, 16
  %v520 = vrot.slane %v518, 4
  %v521 = vshll.u32 %v50, 16
  %v523 = vrot.slane %v521, 5
  %v524 = vor.u32 %v520, %v523
  %v525 = vrot.slane %v524, 4
  %v527 = vshll.u32 %v51, 16
  %v529 = vrot.slane %v527, 5
  %v530 = vsel %vm132, %v525, %v529
  %v531 = vshrl.u32 %v51, 16
  %v533 = vrot.slane %v531, 4
  %v534 = vor.u32 %v533, %v529
  %v535 = vrot.slane %v534, 4
  %v537 = vshll.u32 %v114, 16
  %v539 = vrot.slane %v537, 5
  %v540 = vsel %vm132, %v535, %v539
  %v542 = vshrl.u32 %v52, 16
  %v544 = vrot.slane %v542, 4
  %v545 = vshll.u32 %v52, 16
  %v547 = vrot.slane %v545, 5
  %v548 = vor.u32 %v544, %v547
  %v549 = vrot.slane %v548, 4
  %v551 = vshll.u32 %v53, 16
  %v553 = vrot.slane %v551, 5
  %v554 = vsel %vm132, %v549, %v553
  %v555 = vshrl.u32 %v53, 16
  %v557 = vrot.slane %v555, 4
  %v558 = vor.u32 %v557, %v553
  %v559 = vrot.slane %v558, 4
  %v561 = vshll.u32 %v115, 16
  %v563 = vrot.slane %v561, 5
  %v564 = vsel %vm132, %v559, %v563
  %v566 = vshrl.u32 %v54, 16
  %v568 = vrot.slane %v566, 4
  %v569 = vshll.u32 %v54, 16
  %v571 = vrot.slane %v569, 5
  %v572 = vor.u32 %v568, %v571
  %v573 = vrot.slane %v572, 4
  %v575 = vshll.u32 %v55, 16
  %v577 = vrot.slane %v575, 5
  %v578 = vsel %vm132, %v573, %v577
  %v579 = vshrl.u32 %v55, 16
  %v581 = vrot.slane %v579, 4
  %v582 = vor.u32 %v581, %v577
  %v583 = vrot.slane %v582, 4
  %v585 = vshll.u32 %v116, 16
  %v587 = vrot.slane %v585, 5
  %v588 = vsel %vm132, %v583, %v587
  %v590 = vshrl.u32 %v56, 16
  %v592 = vrot.slane %v590, 4
  %v593 = vshll.u32 %v56, 16
  %v595 = vrot.slane %v593, 5
  %v596 = vor.u32 %v592, %v595
  %v597 = vrot.slane %v596, 4
  %v599 = vshll.u32 %v57, 16
  %v601 = vrot.slane %v599, 5
  %v602 = vsel %vm132, %v597, %v601
  %v603 = vshrl.u32 %v57, 16
  %v605 = vrot.slane %v603, 4
  %v606 = vor.u32 %v605, %v601
  %v607 = vrot.slane %v606, 4
  %v609 = vshll.u32 %v117, 16
  %v611 = vrot.slane %v609, 5
  %v612 = vsel %vm132, %v607, %v611
  %v614 = vshrl.u32 %v58, 16
  %v616 = vrot.slane %v614, 4
  %v617 = vshll.u32 %v58, 16
  %v619 = vrot.slane %v617, 5
  %v620 = vor.u32 %v616, %v619
  %v621 = vrot.slane %v620, 4
  %v623 = vshll.u32 %v59, 16
  %v625 = vrot.slane %v623, 5
  %v626 = vsel %vm132, %v621, %v625
  %v627 = vshrl.u32 %v59, 16
  %v629 = vrot.slane %v627, 4
  %v630 = vor.u32 %v629, %v625
  %v631 = vrot.slane %v630, 4
  %v633 = vshll.u32 %v118, 16
  %v635 = vrot.slane %v633, 5
  %v636 = vsel %vm132, %v631, %v635
  %v638 = vshrl.u32 %v60, 16
  %v640 = vrot.slane %v638, 4
  %v641 = vshll.u32 %v60, 16
  %v643 = vrot.slane %v641, 5
  %v644 = vor.u32 %v640, %v643
  %v645 = vrot.slane %v644, 4
  %v647 = vshll.u32 %v61, 16
  %v649 = vrot.slane %v647, 5
  %v650 = vsel %vm132, %v645, %v649
  %v651 = vshrl.u32 %v61, 16
  %v653 = vrot.slane %v651, 4
  %v654 = vor.u32 %v653, %v649
  %v655 = vrot.slane %v654, 4
  %v657 = vshll.u32 %v119, 16
  %v659 = vrot.slane %v657, 5
  %v660 = vsel %vm132, %v655, %v659
  %v662 = vshrl.u32 %v62, 16
  %v664 = vrot.slane %v662, 4
  %v665 = vshll.u32 %v62, 16
  %v667 = vrot.slane %v665, 5
  %v668 = vor.u32 %v664, %v667
  %v669 = vrot.slane %v668, 4
  %v671 = vshll.u32 %v63, 16
  %v673 = vrot.slane %v671, 5
  %v674 = vsel %vm132, %v669, %v673
  %v675 = vshrl.u32 %v63, 16
  %v677 = vrot.slane %v675, 4
  %v678 = vor.u32 %v677, %v673
  %v679 = vrot.slane %v678, 4
  %v681 = vshll.u32 %v120, 16
  %v683 = vrot.slane %v681, 5
  %v684 = vsel %vm132, %v679, %v683
  %v686 = vshrl.u32 %v64, 16
  %v688 = vrot.slane %v686, 4
  %v689 = vshll.u32 %v64, 16
  %v691 = vrot.slane %v689, 5
  %v692 = vor.u32 %v688, %v691
  %v693 = vrot.slane %v692, 4
  %v695 = vshll.u32 %v65, 16
  %v697 = vrot.slane %v695, 5
  %v698 = vsel %vm132, %v693, %v697
  %v699 = vshrl.u32 %v65, 16
  %v701 = vrot.slane %v699, 4
  %v702 = vor.u32 %v701, %v697
  %v703 = vrot.slane %v702, 4
  %v705 = vshll.u32 %v121, 16
  %v707 = vrot.slane %v705, 5
  %v708 = vsel %vm132, %v703, %v707
  %v710 = vshrl.u32 %v66, 16
  %v712 = vrot.slane %v710, 4
  %v713 = vshll.u32 %v66, 16
  %v715 = vrot.slane %v713, 5
  %v716 = vor.u32 %v712, %v715
  %v717 = vrot.slane %v716, 4
  %v719 = vshll.u32 %v67, 16
  %v721 = vrot.slane %v719, 5
  %v722 = vsel %vm132, %v717, %v721
  %v723 = vshrl.u32 %v67, 16
  %v725 = vrot.slane %v723, 4
  %v726 = vor.u32 %v725, %v721
  %v727 = vrot.slane %v726, 4
  %v729 = vshll.u32 %v122, 16
  %v731 = vrot.slane %v729, 5
  %v732 = vsel %vm132, %v727, %v731
  %v734 = vshrl.u32 %v68, 16
  %v736 = vrot.slane %v734, 4
  %v737 = vshll.u32 %v68, 16
  %v739 = vrot.slane %v737, 5
  %v740 = vor.u32 %v736, %v739
  %v741 = vrot.slane %v740, 4
  %v743 = vshll.u32 %v69, 16
  %v745 = vrot.slane %v743, 5
  %v746 = vsel %vm132, %v741, %v745
  %v747 = vshrl.u32 %v69, 16
  %v749 = vrot.slane %v747, 4
  %v750 = vor.u32 %v749, %v745
  %v751 = vrot.slane %v750, 4
  %v753 = vshll.u32 %v123, 16
  %v755 = vrot.slane %v753, 5
  %v756 = vsel %vm132, %v751, %v755
  %v758 = vshrl.u32 %v70, 16
  %v760 = vrot.slane %v758, 4
  %v761 = vshll.u32 %v70, 16
  %v763 = vrot.slane %v761, 5
  %v764 = vor.u32 %v760, %v763
  %v765 = vrot.slane %v764, 4
  %v767 = vshll.u32 %v71, 16
  %v769 = vrot.slane %v767, 5
  %v770 = vsel %vm132, %v765, %v769
  %v771 = vshrl.u32 %v71, 16
  %v773 = vrot.slane %v771, 4
  %v774 = vor.u32 %v773, %v769
  %v775 = vrot.slane %v774, 4
  %v777 = vshll.u32 %v124, 16
  %v779 = vrot.slane %v777, 5
  %v780 = vsel %vm132, %v775, %v779
  %v782 = vshrl.u32 %v72, 16
  %v784 = vrot.slane %v782, 4
  %v785 = vshll.u32 %v72, 16
  %v787 = vrot.slane %v785, 5
  %v788 = vor.u32 %v784, %v787
  %v789 = vrot.slane %v788, 4
  %v791 = vshll.u32 %v73, 16
  %v793 = vrot.slane %v791, 5
  %v794 = vsel %vm132, %v789, %v793
  %v795 = vshrl.u32 %v73, 16
  %v797 = vrot.slane %v795, 4
  %v798 = vor.u32 %v797, %v793
  %v799 = vrot.slane %v798, 4
  %v801 = vshll.u32 %v125, 16
  %v803 = vrot.slane %v801, 5
  %v804 = vsel %vm132, %v799, %v803
  %v806 = vshrl.u32 %v74, 16
  %v808 = vrot.slane %v806, 4
  %v809 = vshll.u32 %v74, 16
  %v811 = vrot.slane %v809, 5
  %v812 = vor.u32 %v808, %v811
  %v813 = vrot.slane %v812, 4
  %v815 = vshll.u32 %v75, 16
  %v817 = vrot.slane %v815, 5
  %v818 = vsel %vm132, %v813, %v817
  %v819 = vshrl.u32 %v75, 16
  %v821 = vrot.slane %v819, 4
  %v822 = vor.u32 %v821, %v817
  %v823 = vrot.slane %v822, 4
  %v825 = vshll.u32 %v126, 16
  %v827 = vrot.slane %v825, 5
  %v828 = vsel %vm132, %v823, %v827
  %v830 = vshrl.u32 %v76, 16
  %v832 = vrot.slane %v830, 4
  %v833 = vshll.u32 %v76, 16
  %v835 = vrot.slane %v833, 5
  %v836 = vor.u32 %v832, %v835
  %v837 = vrot.slane %v836, 4
  %v839 = vshll.u32 %v77, 16
  %v841 = vrot.slane %v839, 5
  %v842 = vsel %vm132, %v837, %v841
  %v843 = vshrl.u32 %v77, 16
  %v845 = vrot.slane %v843, 4
  %v846 = vor.u32 %v845, %v841
  %v847 = vrot.slane %v846, 4
  %v849 = vshll.u32 %v127, 16
  %v851 = vrot.slane %v849, 5
  %v852 = vsel %vm132, %v847, %v851
  %v854 = vshrl.u32 %v78, 16
  %v856 = vrot.slane %v854, 4
  %v857 = vshll.u32 %v78, 16
  %v859 = vrot.slane %v857, 5
  %v860 = vor.u32 %v856, %v859
  %v861 = vrot.slane %v860, 4
  %v863 = vshll.u32 %v79, 16
  %v865 = vrot.slane %v863, 5
  %v866 = vsel %vm132, %v861, %v865
  %v867 = vshrl.u32 %v79, 16
  %v869 = vrot.slane %v867, 4
  %v870 = vor.u32 %v869, %v865
  %v871 = vrot.slane %v870, 4
  %v873 = vshll.u32 %v128, 16
  %v875 = vrot.slane %v873, 5
  %v876 = vsel %vm132, %v871, %v875
  %v878 = vshrl.u32 %v80, 16
  %v880 = vrot.slane %v878, 4
  %v881 = vshll.u32 %v80, 16
  %v883 = vrot.slane %v881, 5
  %v884 = vor.u32 %v880, %v883
  %v885 = vrot.slane %v884, 4
  %v887 = vshll.u32 %v81, 16
  %v889 = vrot.slane %v887, 5
  %v890 = vsel %vm132, %v885, %v889
  %v891 = vshrl.u32 %v81, 16
  %v893 = vrot.slane %v891, 4
  %v894 = vor.u32 %v893, %v889
  %v895 = vrot.slane %v894, 4
  %v897 = vshll.u32 %v129, 16
  %v899 = vrot.slane %v897, 5
  %v900 = vsel %vm132, %v895, %v899
  %s901 = scalar_lea.vmem %s1, 64
  %v902 = vld [vmem:[%s901] sm:$0xf]
  %v903 = vld [vmem:[%s901 + $0x4] sm:$0xf]
  %v904 = vld [vmem:[%s901 + $0x8] sm:$0xf]
  %v905 = vld [vmem:[%s901 + $0xc] sm:$0xf]
  %v906 = vld [vmem:[%s901 + $0x10] sm:$0xf]
  %v907 = vld [vmem:[%s901 + $0x14] sm:$0xf]
  %v908 = vld [vmem:[%s901 + $0x18] sm:$0xf]
  %v909 = vld [vmem:[%s901 + $0x1c] sm:$0xf]
  %v910 = vld [vmem:[%s901 + $0x20] sm:$0xf]
  %v911 = vld [vmem:[%s901 + $0x24] sm:$0xf]
  %v912 = vld [vmem:[%s901 + $0x28] sm:$0xf]
  %v913 = vld [vmem:[%s901 + $0x2c] sm:$0xf]
  %v914 = vld [vmem:[%s901 + $0x30] sm:$0xf]
  %v915 = vld [vmem:[%s901 + $0x34] sm:$0xf]
  %v916 = vld [vmem:[%s901 + $0x38] sm:$0xf]
  %v917 = vld [vmem:[%s901 + $0x3c] sm:$0xf]
  %v918 = vunpack.c.l.b16 %v146
  %v919 = vunpack.c.l.b16 %v156
  %v920 = vunpack.c.l.b16 %v170
  %v921 = vunpack.c.l.b16 %v180
  %v922 = vunpack.c.l.b16 %v194
  %v923 = vunpack.c.l.b16 %v204
  %v924 = vunpack.c.l.b16 %v218
  %v925 = vunpack.c.l.b16 %v228
  %v926 = vunpack.c.l.b16 %v242
  %v927 = vunpack.c.l.b16 %v252
  %v928 = vunpack.c.l.b16 %v266
  %v929 = vunpack.c.l.b16 %v276
  %v930 = vunpack.c.l.b16 %v290
  %v931 = vunpack.c.l.b16 %v300
  %v932 = vunpack.c.l.b16 %v314
  %v933 = vunpack.c.l.b16 %v324
  %v934 = vunpack.c.l.b16 %v338
  %v935 = vunpack.c.l.b16 %v348
  %v936 = vunpack.c.l.b16 %v362
  %v937 = vunpack.c.l.b16 %v372
  %v938 = vunpack.c.l.b16 %v386
  %v939 = vunpack.c.l.b16 %v396
  %v940 = vunpack.c.l.b16 %v410
  %v941 = vunpack.c.l.b16 %v420
  %v942 = vunpack.c.l.b16 %v434
  %v943 = vunpack.c.l.b16 %v444
  %v944 = vunpack.c.l.b16 %v458
  %v945 = vunpack.c.l.b16 %v468
  %v946 = vunpack.c.l.b16 %v482
  %v947 = vunpack.c.l.b16 %v492
  %v948 = vunpack.c.l.b16 %v506
  %v949 = vunpack.c.l.b16 %v516
  %v950 = vunpack.c.l.b16 %v530
  %v951 = vunpack.c.l.b16 %v540
  %v952 = vunpack.c.l.b16 %v554
  %v953 = vunpack.c.l.b16 %v564
  %v954 = vunpack.c.l.b16 %v578
  %v955 = vunpack.c.l.b16 %v588
  %v956 = vunpack.c.l.b16 %v602
  %v957 = vunpack.c.l.b16 %v612
  %v958 = vunpack.c.l.b16 %v626
  %v959 = vunpack.c.l.b16 %v636
  %v960 = vunpack.c.l.b16 %v650
  %v961 = vunpack.c.l.b16 %v660
  %v962 = vunpack.c.l.b16 %v674
  %v963 = vunpack.c.l.b16 %v684
  %v964 = vunpack.c.l.b16 %v698
  %v965 = vunpack.c.l.b16 %v708
  %v966 = vunpack.c.l.b16 %v722
  %v967 = vunpack.c.l.b16 %v732
  %v968 = vunpack.c.l.b16 %v746
  %v969 = vunpack.c.l.b16 %v756
  %v970 = vunpack.c.l.b16 %v770
  %v971 = vunpack.c.l.b16 %v780
  %v972 = vunpack.c.l.b16 %v794
  %v973 = vunpack.c.l.b16 %v804
  %v974 = vunpack.c.l.b16 %v818
  %v975 = vunpack.c.l.b16 %v828
  %v976 = vunpack.c.l.b16 %v842
  %v977 = vunpack.c.l.b16 %v852
  %v978 = vunpack.c.l.b16 %v866
  %v979 = vunpack.c.l.b16 %v876
  %v980 = vunpack.c.l.b16 %v890
  %v981 = vunpack.c.l.b16 %v900
  %v982 = vpack.c.b16 %v919, %v918
  %v983 = vpack.c.b16 %v921, %v920
  %v984 = vpack.c.b16 %v923, %v922
  %v985 = vpack.c.b16 %v925, %v924
  %v986 = vpack.c.b16 %v927, %v926
  %v987 = vpack.c.b16 %v929, %v928
  %v988 = vpack.c.b16 %v931, %v930
  %v989 = vpack.c.b16 %v933, %v932
  %v990 = vpack.c.b16 %v935, %v934
  %v991 = vpack.c.b16 %v937, %v936
  %v992 = vpack.c.b16 %v939, %v938
  %v993 = vpack.c.b16 %v941, %v940
  %v994 = vpack.c.b16 %v943, %v942
  %v995 = vpack.c.b16 %v945, %v944
  %v996 = vpack.c.b16 %v947, %v946
  %v997 = vpack.c.b16 %v949, %v948
  %v998 = vpack.c.b16 %v951, %v950
  %v999 = vpack.c.b16 %v953, %v952
  %v1000 = vpack.c.b16 %v955, %v954
  %v1001 = vpack.c.b16 %v957, %v956
  %v1002 = vpack.c.b16 %v959, %v958
  %v1003 = vpack.c.b16 %v961, %v960
  %v1004 = vpack.c.b16 %v963, %v962
  %v1005 = vpack.c.b16 %v965, %v964
  %v1006 = vpack.c.b16 %v967, %v966
  %v1007 = vpack.c.b16 %v969, %v968
  %v1008 = vpack.c.b16 %v971, %v970
  %v1009 = vpack.c.b16 %v973, %v972
  %v1010 = vpack.c.b16 %v975, %v974
  %v1011 = vpack.c.b16 %v977, %v976
  %v1012 = vpack.c.b16 %v979, %v978
  %v1013 = vpack.c.b16 %v981, %v980
  %v1062 = vunpack.c.l.b16 %v902
  %v1063 = vunpack.c.l.b16 %v903
  %v1064 = vunpack.c.l.b16 %v904
  %v1065 = vunpack.c.l.b16 %v905
  %v1066 = vunpack.c.l.b16 %v906
  %v1067 = vunpack.c.l.b16 %v907
  %v1068 = vunpack.c.l.b16 %v908
  %v1069 = vunpack.c.l.b16 %v909
  %v1070 = vunpack.c.l.b16 %v910
  %v1071 = vunpack.c.l.b16 %v911
  %v1072 = vunpack.c.l.b16 %v912
  %v1073 = vunpack.c.l.b16 %v913
  %v1074 = vunpack.c.l.b16 %v914
  %v1075 = vunpack.c.l.b16 %v915
  %v1076 = vunpack.c.l.b16 %v916
  %v1077 = vunpack.c.l.b16 %v917
  %v1078 = vpack.c.b16 %v1063, %v1062
  %v1079 = vpack.c.b16 %v1065, %v1064
  %v1080 = vpack.c.b16 %v1067, %v1066
  %v1081 = vpack.c.b16 %v1069, %v1068
  %v1082 = vpack.c.b16 %v1071, %v1070
  %v1083 = vpack.c.b16 %v1073, %v1072
  %v1084 = vpack.c.b16 %v1075, %v1074
  %v1085 = vpack.c.b16 %v1077, %v1076
  %1094 = vmatprep.subr.bf16.mxu0 0
  %1095 = vmatpush1.bf16.msra.mxu0 %v1085
  %1096 = vmatprep.subr.bf16.mxu0 0
  %1097 = vmatpush1.bf16.msra.mxu0 %v1084
  %1098 = vmatprep.subr.bf16.mxu0 0
  %1099 = vmatpush1.bf16.msra.mxu0 %v1083
  %1100 = vmatprep.subr.bf16.mxu0 0
  %1101 = vmatpush1.bf16.msra.mxu0 %v1082
  %1102 = vmatprep.subr.bf16.mxu0 0
  %1103 = vmatpush1.bf16.msra.mxu0 %v1081
  %1104 = vmatprep.subr.bf16.mxu0 0
  %1105 = vmatpush1.bf16.msra.mxu0 %v1080
  %1106 = vmatprep.subr.bf16.mxu0 0
  %1107 = vmatpush1.bf16.msra.mxu0 %v1079
  %1108 = vmatprep.subr.bf16.mxu0 0
  %1109 = vmatpush1.bf16.msra.mxu0 %v1078
  %1110 = vmatprep.subr.bf16.mxu0 0
  %1111 = vmatpush2.bf16.msra.mxu0 0
  %1112 = vmatprep.subr.bf16.mxu0 0
  %1113 = vmatpush2.bf16.msra.mxu0 0
  %1114 = vmatprep.subr.bf16.mxu0 0
  %1115 = vmatpush2.bf16.msra.mxu0 0
  %1116 = vmatprep.subr.bf16.mxu0 0
  %1117 = vmatpush2.bf16.msra.mxu0 0
  %1118 = vmatprep.subr.bf16.mxu0 0
  %1119 = vmatpush2.bf16.msra.mxu0 0
  %1120 = vmatprep.subr.bf16.mxu0 0
  %1121 = vmatpush2.bf16.msra.mxu0 0
  %1122 = vmatprep.subr.bf16.mxu0 0
  %1123 = vmatpush2.bf16.msra.mxu0 0
  %1124 = vmatprep.subr.bf16.mxu0 0
  %1125 = vmatpush2.bf16.msra.mxu0 0
  %1126 = vmatprep.mubr.bf16.mxu0 0
  %1127 = vmatmul.mubr.bf16.gmra.mxu0 %v982
  %v1128 = vpop.f32.mrf.mxu0
  %v1129 = vadd.f32 0.0, %v1128
  %v1130 = vpop.f32.mrf.mxu0
  %v1131 = vpop.f32.mrf.mxu0
  %v1132 = vadd.f32 0.0, %v1131
  %v1133 = vpop.f32.mrf.mxu0
  %1134 = vmatprep.mubr.bf16.mxu0 0
  %1135 = vmatmul.mubr.bf16.gmra.mxu0 %v983
  %v1136 = vpop.f32.mrf.mxu0
  %v1137 = vadd.f32 0.0, %v1136
  %v1138 = vpop.f32.mrf.mxu0
  %v1139 = vpop.f32.mrf.mxu0
  %v1140 = vadd.f32 0.0, %v1139
  %v1141 = vpop.f32.mrf.mxu0
  %1142 = vmatprep.mubr.bf16.mxu0 0
  %1143 = vmatmul.mubr.bf16.gmra.mxu0 %v984
  %v1144 = vpop.f32.mrf.mxu0
  %v1145 = vadd.f32 0.0, %v1144
  %v1146 = vpop.f32.mrf.mxu0
  %v1147 = vpop.f32.mrf.mxu0
  %v1148 = vadd.f32 0.0, %v1147
  %v1149 = vpop.f32.mrf.mxu0
  %1150 = vmatprep.mubr.bf16.mxu0 0
  %1151 = vmatmul.mubr.bf16.gmra.mxu0 %v985
  %v1152 = vpop.f32.mrf.mxu0
  %v1153 = vadd.f32 0.0, %v1152
  %v1154 = vpop.f32.mrf.mxu0
  %v1155 = vpop.f32.mrf.mxu0
  %v1156 = vadd.f32 0.0, %v1155
  %v1157 = vpop.f32.mrf.mxu0
  %1158 = vmatprep.mubr.bf16.mxu0 0
  %1159 = vmatmul.mubr.bf16.gmra.mxu0 %v986
  %v1160 = vpop.f32.mrf.mxu0
  %v1161 = vadd.f32 0.0, %v1160
  %v1162 = vpop.f32.mrf.mxu0
  %v1163 = vpop.f32.mrf.mxu0
  %v1164 = vadd.f32 0.0, %v1163
  %v1165 = vpop.f32.mrf.mxu0
  %1166 = vmatprep.mubr.bf16.mxu0 0
  %1167 = vmatmul.mubr.bf16.gmra.mxu0 %v987
  %v1168 = vpop.f32.mrf.mxu0
  %v1169 = vadd.f32 0.0, %v1168
  %v1170 = vpop.f32.mrf.mxu0
  %v1171 = vpop.f32.mrf.mxu0
  %v1172 = vadd.f32 0.0, %v1171
  %v1173 = vpop.f32.mrf.mxu0
  %1174 = vmatprep.mubr.bf16.mxu0 0
  %1175 = vmatmul.mubr.bf16.gmra.mxu0 %v988
  %v1176 = vpop.f32.mrf.mxu0
  %v1177 = vadd.f32 0.0, %v1176
  %v1178 = vpop.f32.mrf.mxu0
  %v1179 = vpop.f32.mrf.mxu0
  %v1180 = vadd.f32 0.0, %v1179
  %v1181 = vpop.f32.mrf.mxu0
  %1182 = vmatprep.mubr.bf16.mxu0 0
  %1183 = vmatmul.mubr.bf16.gmra.mxu0 %v989
  %v1184 = vpop.f32.mrf.mxu0
  %v1185 = vadd.f32 0.0, %v1184
  %v1186 = vpop.f32.mrf.mxu0
  %v1187 = vpop.f32.mrf.mxu0
  %v1188 = vadd.f32 0.0, %v1187
  %v1189 = vpop.f32.mrf.mxu0
  %1190 = vmatprep.mubr.bf16.mxu0 0
  %1191 = vmatmul.mubr.bf16.gmra.mxu0 %v990
  %v1192 = vpop.f32.mrf.mxu0
  %v1193 = vadd.f32 0.0, %v1192
  %v1194 = vpop.f32.mrf.mxu0
  %v1195 = vpop.f32.mrf.mxu0
  %v1196 = vadd.f32 0.0, %v1195
  %v1197 = vpop.f32.mrf.mxu0
  %1198 = vmatprep.mubr.bf16.mxu0 0
  %1199 = vmatmul.mubr.bf16.gmra.mxu0 %v991
  %v1200 = vpop.f32.mrf.mxu0
  %v1201 = vadd.f32 0.0, %v1200
  %v1202 = vpop.f32.mrf.mxu0
  %v1203 = vpop.f32.mrf.mxu0
  %v1204 = vadd.f32 0.0, %v1203
  %v1205 = vpop.f32.mrf.mxu0
  %1206 = vmatprep.mubr.bf16.mxu0 0
  %1207 = vmatmul.mubr.bf16.gmra.mxu0 %v992
  %v1208 = vpop.f32.mrf.mxu0
  %v1209 = vadd.f32 0.0, %v1208
  %v1210 = vpop.f32.mrf.mxu0
  %v1211 = vpop.f32.mrf.mxu0
  %v1212 = vadd.f32 0.0, %v1211
  %v1213 = vpop.f32.mrf.mxu0
  %1214 = vmatprep.mubr.bf16.mxu0 0
  %1215 = vmatmul.mubr.bf16.gmra.mxu0 %v993
  %v1216 = vpop.f32.mrf.mxu0
  %v1217 = vadd.f32 0.0, %v1216
  %v1218 = vpop.f32.mrf.mxu0
  %v1219 = vpop.f32.mrf.mxu0
  %v1220 = vadd.f32 0.0, %v1219
  %v1221 = vpop.f32.mrf.mxu0
  %1222 = vmatprep.mubr.bf16.mxu0 0
  %1223 = vmatmul.mubr.bf16.gmra.mxu0 %v994
  %v1224 = vpop.f32.mrf.mxu0
  %v1225 = vadd.f32 0.0, %v1224
  %v1226 = vpop.f32.mrf.mxu0
  %v1227 = vpop.f32.mrf.mxu0
  %v1228 = vadd.f32 0.0, %v1227
  %v1229 = vpop.f32.mrf.mxu0
  %1230 = vmatprep.mubr.bf16.mxu0 0
  %1231 = vmatmul.mubr.bf16.gmra.mxu0 %v995
  %v1232 = vpop.f32.mrf.mxu0
  %v1233 = vadd.f32 0.0, %v1232
  %v1234 = vpop.f32.mrf.mxu0
  %v1235 = vpop.f32.mrf.mxu0
  %v1236 = vadd.f32 0.0, %v1235
  %v1237 = vpop.f32.mrf.mxu0
  %1238 = vmatprep.mubr.bf16.mxu0 0
  %1239 = vmatmul.mubr.bf16.gmra.mxu0 %v996
  %v1240 = vpop.f32.mrf.mxu0
  %v1241 = vadd.f32 0.0, %v1240
  %v1242 = vpop.f32.mrf.mxu0
  %v1243 = vpop.f32.mrf.mxu0
  %v1244 = vadd.f32 0.0, %v1243
  %v1245 = vpop.f32.mrf.mxu0
  %1246 = vmatprep.mubr.bf16.mxu0 0
  %1247 = vmatmul.mubr.bf16.gmra.mxu0 %v997
  %v1248 = vpop.f32.mrf.mxu0
  %v1249 = vadd.f32 0.0, %v1248
  %v1250 = vpop.f32.mrf.mxu0
  %v1251 = vpop.f32.mrf.mxu0
  %v1252 = vadd.f32 0.0, %v1251
  %v1253 = vpop.f32.mrf.mxu0
  %1254 = vmatprep.mubr.bf16.mxu0 0
  %1255 = vmatmul.mubr.bf16.gmra.mxu0 %v998
  %v1256 = vpop.f32.mrf.mxu0
  %v1257 = vadd.f32 0.0, %v1256
  %v1258 = vpop.f32.mrf.mxu0
  %v1259 = vpop.f32.mrf.mxu0
  %v1260 = vadd.f32 0.0, %v1259
  %v1261 = vpop.f32.mrf.mxu0
  %1262 = vmatprep.mubr.bf16.mxu0 0
  %1263 = vmatmul.mubr.bf16.gmra.mxu0 %v999
  %v1264 = vpop.f32.mrf.mxu0
  %v1265 = vadd.f32 0.0, %v1264
  %v1266 = vpop.f32.mrf.mxu0
  %v1267 = vpop.f32.mrf.mxu0
  %v1268 = vadd.f32 0.0, %v1267
  %v1269 = vpop.f32.mrf.mxu0
  %1270 = vmatprep.mubr.bf16.mxu0 0
  %1271 = vmatmul.mubr.bf16.gmra.mxu0 %v1000
  %v1272 = vpop.f32.mrf.mxu0
  %v1273 = vadd.f32 0.0, %v1272
  %v1274 = vpop.f32.mrf.mxu0
  %v1275 = vpop.f32.mrf.mxu0
  %v1276 = vadd.f32 0.0, %v1275
  %v1277 = vpop.f32.mrf.mxu0
  %1278 = vmatprep.mubr.bf16.mxu0 0
  %1279 = vmatmul.mubr.bf16.gmra.mxu0 %v1001
  %v1280 = vpop.f32.mrf.mxu0
  %v1281 = vadd.f32 0.0, %v1280
  %v1282 = vpop.f32.mrf.mxu0
  %v1283 = vpop.f32.mrf.mxu0
  %v1284 = vadd.f32 0.0, %v1283
  %v1285 = vpop.f32.mrf.mxu0
  %1286 = vmatprep.mubr.bf16.mxu0 0
  %1287 = vmatmul.mubr.bf16.gmra.mxu0 %v1002
  %v1288 = vpop.f32.mrf.mxu0
  %v1289 = vadd.f32 0.0, %v1288
  %v1290 = vpop.f32.mrf.mxu0
  %v1291 = vpop.f32.mrf.mxu0
  %v1292 = vadd.f32 0.0, %v1291
  %v1293 = vpop.f32.mrf.mxu0
  %1294 = vmatprep.mubr.bf16.mxu0 0
  %1295 = vmatmul.mubr.bf16.gmra.mxu0 %v1003
  %v1296 = vpop.f32.mrf.mxu0
  %v1297 = vadd.f32 0.0, %v1296
  %v1298 = vpop.f32.mrf.mxu0
  %v1299 = vpop.f32.mrf.mxu0
  %v1300 = vadd.f32 0.0, %v1299
  %v1301 = vpop.f32.mrf.mxu0
  %1302 = vmatprep.mubr.bf16.mxu0 0
  %1303 = vmatmul.mubr.bf16.gmra.mxu0 %v1004
  %v1304 = vpop.f32.mrf.mxu0
  %v1305 = vadd.f32 0.0, %v1304
  %v1306 = vpop.f32.mrf.mxu0
  %v1307 = vpop.f32.mrf.mxu0
  %v1308 = vadd.f32 0.0, %v1307
  %v1309 = vpop.f32.mrf.mxu0
  %1310 = vmatprep.mubr.bf16.mxu0 0
  %1311 = vmatmul.mubr.bf16.gmra.mxu0 %v1005
  %v1312 = vpop.f32.mrf.mxu0
  %v1313 = vadd.f32 0.0, %v1312
  %v1314 = vpop.f32.mrf.mxu0
  %v1315 = vpop.f32.mrf.mxu0
  %v1316 = vadd.f32 0.0, %v1315
  %v1317 = vpop.f32.mrf.mxu0
  %1318 = vmatprep.mubr.bf16.mxu0 0
  %1319 = vmatmul.mubr.bf16.gmra.mxu0 %v1006
  %v1320 = vpop.f32.mrf.mxu0
  %v1321 = vadd.f32 0.0, %v1320
  %v1322 = vpop.f32.mrf.mxu0
  %v1323 = vpop.f32.mrf.mxu0
  %v1324 = vadd.f32 0.0, %v1323
  %v1325 = vpop.f32.mrf.mxu0
  %1326 = vmatprep.mubr.bf16.mxu0 0
  %1327 = vmatmul.mubr.bf16.gmra.mxu0 %v1007
  %v1328 = vpop.f32.mrf.mxu0
  %v1329 = vadd.f32 0.0, %v1328
  %v1330 = vpop.f32.mrf.mxu0
  %v1331 = vpop.f32.mrf.mxu0
  %v1332 = vadd.f32 0.0, %v1331
  %v1333 = vpop.f32.mrf.mxu0
  %1334 = vmatprep.mubr.bf16.mxu0 0
  %1335 = vmatmul.mubr.bf16.gmra.mxu0 %v1008
  %v1336 = vpop.f32.mrf.mxu0
  %v1337 = vadd.f32 0.0, %v1336
  %v1338 = vpop.f32.mrf.mxu0
  %v1339 = vpop.f32.mrf.mxu0
  %v1340 = vadd.f32 0.0, %v1339
  %v1341 = vpop.f32.mrf.mxu0
  %1342 = vmatprep.mubr.bf16.mxu0 0
  %1343 = vmatmul.mubr.bf16.gmra.mxu0 %v1009
  %v1344 = vpop.f32.mrf.mxu0
  %v1345 = vadd.f32 0.0, %v1344
  %v1346 = vpop.f32.mrf.mxu0
  %v1347 = vpop.f32.mrf.mxu0
  %v1348 = vadd.f32 0.0, %v1347
  %v1349 = vpop.f32.mrf.mxu0
  %1350 = vmatprep.mubr.bf16.mxu0 0
  %1351 = vmatmul.mubr.bf16.gmra.mxu0 %v1010
  %v1352 = vpop.f32.mrf.mxu0
  %v1353 = vadd.f32 0.0, %v1352
  %v1354 = vpop.f32.mrf.mxu0
  %v1355 = vpop.f32.mrf.mxu0
  %v1356 = vadd.f32 0.0, %v1355
  %v1357 = vpop.f32.mrf.mxu0
  %1358 = vmatprep.mubr.bf16.mxu0 0
  %1359 = vmatmul.mubr.bf16.gmra.mxu0 %v1011
  %v1360 = vpop.f32.mrf.mxu0
  %v1361 = vadd.f32 0.0, %v1360
  %v1362 = vpop.f32.mrf.mxu0
  %v1363 = vpop.f32.mrf.mxu0
  %v1364 = vadd.f32 0.0, %v1363
  %v1365 = vpop.f32.mrf.mxu0
  %1366 = vmatprep.mubr.bf16.mxu0 0
  %1367 = vmatmul.mubr.bf16.gmra.mxu0 %v1012
  %v1368 = vpop.f32.mrf.mxu0
  %v1369 = vadd.f32 0.0, %v1368
  %v1370 = vpop.f32.mrf.mxu0
  %v1371 = vpop.f32.mrf.mxu0
  %v1372 = vadd.f32 0.0, %v1371
  %v1373 = vpop.f32.mrf.mxu0
  %1374 = vmatprep.mubr.bf16.mxu0 0
  %1375 = vmatmul.mubr.bf16.gmra.mxu0 %v1013
  %v1376 = vpop.f32.mrf.mxu0
  %v1377 = vadd.f32 0.0, %v1376
  %v1378 = vpop.f32.mrf.mxu0
  %v1379 = vpop.f32.mrf.mxu0
  %v1380 = vadd.f32 0.0, %v1379
  %v1381 = vpop.f32.mrf.mxu0
  %1382 = vdwg.mxu0
  %v1447 = vunpack.c.l.b16 %v18
  %v1448 = vunpack.c.l.b16 %v19
  %v1449 = vunpack.c.l.b16 %v20
  %v1450 = vunpack.c.l.b16 %v21
  %v1451 = vunpack.c.l.b16 %v22
  %v1452 = vunpack.c.l.b16 %v23
  %v1453 = vunpack.c.l.b16 %v24
  %v1454 = vunpack.c.l.b16 %v25
  %v1455 = vunpack.c.l.b16 %v26
  %v1456 = vunpack.c.l.b16 %v27
  %v1457 = vunpack.c.l.b16 %v28
  %v1458 = vunpack.c.l.b16 %v29
  %v1459 = vunpack.c.l.b16 %v30
  %v1460 = vunpack.c.l.b16 %v31
  %v1461 = vunpack.c.l.b16 %v32
  %v1462 = vunpack.c.l.b16 %v33
  %v1463 = vunpack.c.l.b16 %v34
  %v1464 = vunpack.c.l.b16 %v35
  %v1465 = vunpack.c.l.b16 %v36
  %v1466 = vunpack.c.l.b16 %v37
  %v1467 = vunpack.c.l.b16 %v38
  %v1468 = vunpack.c.l.b16 %v39
  %v1469 = vunpack.c.l.b16 %v40
  %v1470 = vunpack.c.l.b16 %v41
  %v1471 = vunpack.c.l.b16 %v42
  %v1472 = vunpack.c.l.b16 %v43
  %v1473 = vunpack.c.l.b16 %v44
  %v1474 = vunpack.c.l.b16 %v45
  %v1475 = vunpack.c.l.b16 %v46
  %v1476 = vunpack.c.l.b16 %v47
  %v1477 = vunpack.c.l.b16 %v48
  %v1478 = vunpack.c.l.b16 %v49
  %v1479 = vunpack.c.l.b16 %v50
  %v1480 = vunpack.c.l.b16 %v51
  %v1481 = vunpack.c.l.b16 %v52
  %v1482 = vunpack.c.l.b16 %v53
  %v1483 = vunpack.c.l.b16 %v54
  %v1484 = vunpack.c.l.b16 %v55
  %v1485 = vunpack.c.l.b16 %v56
  %v1486 = vunpack.c.l.b16 %v57
  %v1487 = vunpack.c.l.b16 %v58
  %v1488 = vunpack.c.l.b16 %v59
  %v1489 = vunpack.c.l.b16 %v60
  %v1490 = vunpack.c.l.b16 %v61
  %v1491 = vunpack.c.l.b16 %v62
  %v1492 = vunpack.c.l.b16 %v63
  %v1493 = vunpack.c.l.b16 %v64
  %v1494 = vunpack.c.l.b16 %v65
  %v1495 = vunpack.c.l.b16 %v66
  %v1496 = vunpack.c.l.b16 %v67
  %v1497 = vunpack.c.l.b16 %v68
  %v1498 = vunpack.c.l.b16 %v69
  %v1499 = vunpack.c.l.b16 %v70
  %v1500 = vunpack.c.l.b16 %v71
  %v1501 = vunpack.c.l.b16 %v72
  %v1502 = vunpack.c.l.b16 %v73
  %v1503 = vunpack.c.l.b16 %v74
  %v1504 = vunpack.c.l.b16 %v75
  %v1505 = vunpack.c.l.b16 %v76
  %v1506 = vunpack.c.l.b16 %v77
  %v1507 = vunpack.c.l.b16 %v78
  %v1508 = vunpack.c.l.b16 %v79
  %v1509 = vunpack.c.l.b16 %v80
  %v1510 = vunpack.c.l.b16 %v81
  %v1511 = vpack.c.b16 %v1448, %v1447
  %v1512 = vpack.c.b16 %v1450, %v1449
  %v1513 = vpack.c.b16 %v1452, %v1451
  %v1514 = vpack.c.b16 %v1454, %v1453
  %v1515 = vpack.c.b16 %v1456, %v1455
  %v1516 = vpack.c.b16 %v1458, %v1457
  %v1517 = vpack.c.b16 %v1460, %v1459
  %v1518 = vpack.c.b16 %v1462, %v1461
  %v1519 = vpack.c.b16 %v1464, %v1463
  %v1520 = vpack.c.b16 %v1466, %v1465
  %v1521 = vpack.c.b16 %v1468, %v1467
  %v1522 = vpack.c.b16 %v1470, %v1469
  %v1523 = vpack.c.b16 %v1472, %v1471
  %v1524 = vpack.c.b16 %v1474, %v1473
  %v1525 = vpack.c.b16 %v1476, %v1475
  %v1526 = vpack.c.b16 %v1478, %v1477
  %v1527 = vpack.c.b16 %v1480, %v1479
  %v1528 = vpack.c.b16 %v1482, %v1481
  %v1529 = vpack.c.b16 %v1484, %v1483
  %v1530 = vpack.c.b16 %v1486, %v1485
  %v1531 = vpack.c.b16 %v1488, %v1487
  %v1532 = vpack.c.b16 %v1490, %v1489
  %v1533 = vpack.c.b16 %v1492, %v1491
  %v1534 = vpack.c.b16 %v1494, %v1493
  %v1535 = vpack.c.b16 %v1496, %v1495
  %v1536 = vpack.c.b16 %v1498, %v1497
  %v1537 = vpack.c.b16 %v1500, %v1499
  %v1538 = vpack.c.b16 %v1502, %v1501
  %v1539 = vpack.c.b16 %v1504, %v1503
  %v1540 = vpack.c.b16 %v1506, %v1505
  %v1541 = vpack.c.b16 %v1508, %v1507
  %v1542 = vpack.c.b16 %v1510, %v1509
  %v1591 = vunpack.c.l.b16 %v82
  %v1592 = vunpack.c.l.b16 %v83
  %v1593 = vunpack.c.l.b16 %v84
  %v1594 = vunpack.c.l.b16 %v85
  %v1595 = vunpack.c.l.b16 %v86
  %v1596 = vunpack.c.l.b16 %v87
  %v1597 = vunpack.c.l.b16 %v88
  %v1598 = vunpack.c.l.b16 %v89
  %v1599 = vunpack.c.l.b16 %v90
  %v1600 = vunpack.c.l.b16 %v91
  %v1601 = vunpack.c.l.b16 %v92
  %v1602 = vunpack.c.l.b16 %v93
  %v1603 = vunpack.c.l.b16 %v94
  %v1604 = vunpack.c.l.b16 %v95
  %v1605 = vunpack.c.l.b16 %v96
  %v1606 = vunpack.c.l.b16 %v97
  %v1607 = vpack.c.b16 %v1592, %v1591
  %v1608 = vpack.c.b16 %v1594, %v1593
  %v1609 = vpack.c.b16 %v1596, %v1595
  %v1610 = vpack.c.b16 %v1598, %v1597
  %v1611 = vpack.c.b16 %v1600, %v1599
  %v1612 = vpack.c.b16 %v1602, %v1601
  %v1613 = vpack.c.b16 %v1604, %v1603
  %v1614 = vpack.c.b16 %v1606, %v1605
  %1623 = vmatprep.subr.bf16.mxu0 0
  %1624 = vmatpush1.bf16.msra.mxu0 %v1614
  %1625 = vmatprep.subr.bf16.mxu0 0
  %1626 = vmatpush1.bf16.msra.mxu0 %v1613
  %1627 = vmatprep.subr.bf16.mxu0 0
  %1628 = vmatpush1.bf16.msra.mxu0 %v1612
  %1629 = vmatprep.subr.bf16.mxu0 0
  %1630 = vmatpush1.bf16.msra.mxu0 %v1611
  %1631 = vmatprep.subr.bf16.mxu0 0
  %1632 = vmatpush1.bf16.msra.mxu0 %v1610
  %1633 = vmatprep.subr.bf16.mxu0 0
  %1634 = vmatpush1.bf16.msra.mxu0 %v1609
  %1635 = vmatprep.subr.bf16.mxu0 0
  %1636 = vmatpush1.bf16.msra.mxu0 %v1608
  %1637 = vmatprep.subr.bf16.mxu0 0
  %1638 = vmatpush1.bf16.msra.mxu0 %v1607
  %1639 = vmatprep.subr.bf16.mxu0 0
  %1640 = vmatpush2.bf16.msra.mxu0 0
  %1641 = vmatprep.subr.bf16.mxu0 0
  %1642 = vmatpush2.bf16.msra.mxu0 0
  %1643 = vmatprep.subr.bf16.mxu0 0
  %1644 = vmatpush2.bf16.msra.mxu0 0
  %1645 = vmatprep.subr.bf16.mxu0 0
  %1646 = vmatpush2.bf16.msra.mxu0 0
  %1647 = vmatprep.subr.bf16.mxu0 0
  %1648 = vmatpush2.bf16.msra.mxu0 0
  %1649 = vmatprep.subr.bf16.mxu0 0
  %1650 = vmatpush2.bf16.msra.mxu0 0
  %1651 = vmatprep.subr.bf16.mxu0 0
  %1652 = vmatpush2.bf16.msra.mxu0 0
  %1653 = vmatprep.subr.bf16.mxu0 0
  %1654 = vmatpush2.bf16.msra.mxu0 0
  %1655 = vmatprep.mubr.bf16.mxu0 0
  %1656 = vmatmul.mubr.bf16.gmra.mxu0 %v1511
  %v1657 = vpop.f32.mrf.mxu0
  %v1658 = vadd.f32 %v1129, %v1657
  %v1659 = vpop.f32.mrf.mxu0
  %v1660 = vpop.f32.mrf.mxu0
  %v1661 = vadd.f32 %v1132, %v1660
  %v1662 = vpop.f32.mrf.mxu0
  %1663 = vmatprep.mubr.bf16.mxu0 0
  %1664 = vmatmul.mubr.bf16.gmra.mxu0 %v1512
  %v1665 = vpop.f32.mrf.mxu0
  %v1666 = vadd.f32 %v1137, %v1665
  %v1667 = vpop.f32.mrf.mxu0
  %v1668 = vpop.f32.mrf.mxu0
  %v1669 = vadd.f32 %v1140, %v1668
  %v1670 = vpop.f32.mrf.mxu0
  %1671 = vmatprep.mubr.bf16.mxu0 0
  %1672 = vmatmul.mubr.bf16.gmra.mxu0 %v1513
  %v1673 = vpop.f32.mrf.mxu0
  %v1674 = vadd.f32 %v1145, %v1673
  %v1675 = vpop.f32.mrf.mxu0
  %v1676 = vpop.f32.mrf.mxu0
  %v1677 = vadd.f32 %v1148, %v1676
  %v1678 = vpop.f32.mrf.mxu0
  %1679 = vmatprep.mubr.bf16.mxu0 0
  %1680 = vmatmul.mubr.bf16.gmra.mxu0 %v1514
  %v1681 = vpop.f32.mrf.mxu0
  %v1682 = vadd.f32 %v1153, %v1681
  %v1683 = vpop.f32.mrf.mxu0
  %v1684 = vpop.f32.mrf.mxu0
  %v1685 = vadd.f32 %v1156, %v1684
  %v1686 = vpop.f32.mrf.mxu0
  %1687 = vmatprep.mubr.bf16.mxu0 0
  %1688 = vmatmul.mubr.bf16.gmra.mxu0 %v1515
  %v1689 = vpop.f32.mrf.mxu0
  %v1690 = vadd.f32 %v1161, %v1689
  %v1691 = vpop.f32.mrf.mxu0
  %v1692 = vpop.f32.mrf.mxu0
  %v1693 = vadd.f32 %v1164, %v1692
  %v1694 = vpop.f32.mrf.mxu0
  %1695 = vmatprep.mubr.bf16.mxu0 0
  %1696 = vmatmul.mubr.bf16.gmra.mxu0 %v1516
  %v1697 = vpop.f32.mrf.mxu0
  %v1698 = vadd.f32 %v1169, %v1697
  %v1699 = vpop.f32.mrf.mxu0
  %v1700 = vpop.f32.mrf.mxu0
  %v1701 = vadd.f32 %v1172, %v1700
  %v1702 = vpop.f32.mrf.mxu0
  %1703 = vmatprep.mubr.bf16.mxu0 0
  %1704 = vmatmul.mubr.bf16.gmra.mxu0 %v1517
  %v1705 = vpop.f32.mrf.mxu0
  %v1706 = vadd.f32 %v1177, %v1705
  %v1707 = vpop.f32.mrf.mxu0
  %v1708 = vpop.f32.mrf.mxu0
  %v1709 = vadd.f32 %v1180, %v1708
  %v1710 = vpop.f32.mrf.mxu0
  %1711 = vmatprep.mubr.bf16.mxu0 0
  %1712 = vmatmul.mubr.bf16.gmra.mxu0 %v1518
  %v1713 = vpop.f32.mrf.mxu0
  %v1714 = vadd.f32 %v1185, %v1713
  %v1715 = vpop.f32.mrf.mxu0
  %v1716 = vpop.f32.mrf.mxu0
  %v1717 = vadd.f32 %v1188, %v1716
  %v1718 = vpop.f32.mrf.mxu0
  %1719 = vmatprep.mubr.bf16.mxu0 0
  %1720 = vmatmul.mubr.bf16.gmra.mxu0 %v1519
  %v1721 = vpop.f32.mrf.mxu0
  %v1722 = vadd.f32 %v1193, %v1721
  %v1723 = vpop.f32.mrf.mxu0
  %v1724 = vpop.f32.mrf.mxu0
  %v1725 = vadd.f32 %v1196, %v1724
  %v1726 = vpop.f32.mrf.mxu0
  %1727 = vmatprep.mubr.bf16.mxu0 0
  %1728 = vmatmul.mubr.bf16.gmra.mxu0 %v1520
  %v1729 = vpop.f32.mrf.mxu0
  %v1730 = vadd.f32 %v1201, %v1729
  %v1731 = vpop.f32.mrf.mxu0
  %v1732 = vpop.f32.mrf.mxu0
  %v1733 = vadd.f32 %v1204, %v1732
  %v1734 = vpop.f32.mrf.mxu0
  %1735 = vmatprep.mubr.bf16.mxu0 0
  %1736 = vmatmul.mubr.bf16.gmra.mxu0 %v1521
  %v1737 = vpop.f32.mrf.mxu0
  %v1738 = vadd.f32 %v1209, %v1737
  %v1739 = vpop.f32.mrf.mxu0
  %v1740 = vpop.f32.mrf.mxu0
  %v1741 = vadd.f32 %v1212, %v1740
  %v1742 = vpop.f32.mrf.mxu0
  %1743 = vmatprep.mubr.bf16.mxu0 0
  %1744 = vmatmul.mubr.bf16.gmra.mxu0 %v1522
  %v1745 = vpop.f32.mrf.mxu0
  %v1746 = vadd.f32 %v1217, %v1745
  %v1747 = vpop.f32.mrf.mxu0
  %v1748 = vpop.f32.mrf.mxu0
  %v1749 = vadd.f32 %v1220, %v1748
  %v1750 = vpop.f32.mrf.mxu0
  %1751 = vmatprep.mubr.bf16.mxu0 0
  %1752 = vmatmul.mubr.bf16.gmra.mxu0 %v1523
  %v1753 = vpop.f32.mrf.mxu0
  %v1754 = vadd.f32 %v1225, %v1753
  %v1755 = vpop.f32.mrf.mxu0
  %v1756 = vpop.f32.mrf.mxu0
  %v1757 = vadd.f32 %v1228, %v1756
  %v1758 = vpop.f32.mrf.mxu0
  %1759 = vmatprep.mubr.bf16.mxu0 0
  %1760 = vmatmul.mubr.bf16.gmra.mxu0 %v1524
  %v1761 = vpop.f32.mrf.mxu0
  %v1762 = vadd.f32 %v1233, %v1761
  %v1763 = vpop.f32.mrf.mxu0
  %v1764 = vpop.f32.mrf.mxu0
  %v1765 = vadd.f32 %v1236, %v1764
  %v1766 = vpop.f32.mrf.mxu0
  %1767 = vmatprep.mubr.bf16.mxu0 0
  %1768 = vmatmul.mubr.bf16.gmra.mxu0 %v1525
  %v1769 = vpop.f32.mrf.mxu0
  %v1770 = vadd.f32 %v1241, %v1769
  %v1771 = vpop.f32.mrf.mxu0
  %v1772 = vpop.f32.mrf.mxu0
  %v1773 = vadd.f32 %v1244, %v1772
  %v1774 = vpop.f32.mrf.mxu0
  %1775 = vmatprep.mubr.bf16.mxu0 0
  %1776 = vmatmul.mubr.bf16.gmra.mxu0 %v1526
  %v1777 = vpop.f32.mrf.mxu0
  %v1778 = vadd.f32 %v1249, %v1777
  %v1779 = vpop.f32.mrf.mxu0
  %v1780 = vpop.f32.mrf.mxu0
  %v1781 = vadd.f32 %v1252, %v1780
  %v1782 = vpop.f32.mrf.mxu0
  %1783 = vmatprep.mubr.bf16.mxu0 0
  %1784 = vmatmul.mubr.bf16.gmra.mxu0 %v1527
  %v1785 = vpop.f32.mrf.mxu0
  %v1786 = vadd.f32 %v1257, %v1785
  %v1787 = vpop.f32.mrf.mxu0
  %v1788 = vpop.f32.mrf.mxu0
  %v1789 = vadd.f32 %v1260, %v1788
  %v1790 = vpop.f32.mrf.mxu0
  %1791 = vmatprep.mubr.bf16.mxu0 0
  %1792 = vmatmul.mubr.bf16.gmra.mxu0 %v1528
  %v1793 = vpop.f32.mrf.mxu0
  %v1794 = vadd.f32 %v1265, %v1793
  %v1795 = vpop.f32.mrf.mxu0
  %v1796 = vpop.f32.mrf.mxu0
  %v1797 = vadd.f32 %v1268, %v1796
  %v1798 = vpop.f32.mrf.mxu0
  %1799 = vmatprep.mubr.bf16.mxu0 0
  %1800 = vmatmul.mubr.bf16.gmra.mxu0 %v1529
  %v1801 = vpop.f32.mrf.mxu0
  %v1802 = vadd.f32 %v1273, %v1801
  %v1803 = vpop.f32.mrf.mxu0
  %v1804 = vpop.f32.mrf.mxu0
  %v1805 = vadd.f32 %v1276, %v1804
  %v1806 = vpop.f32.mrf.mxu0
  %1807 = vmatprep.mubr.bf16.mxu0 0
  %1808 = vmatmul.mubr.bf16.gmra.mxu0 %v1530
  %v1809 = vpop.f32.mrf.mxu0
  %v1810 = vadd.f32 %v1281, %v1809
  %v1811 = vpop.f32.mrf.mxu0
  %v1812 = vpop.f32.mrf.mxu0
  %v1813 = vadd.f32 %v1284, %v1812
  %v1814 = vpop.f32.mrf.mxu0
  %1815 = vmatprep.mubr.bf16.mxu0 0
  %1816 = vmatmul.mubr.bf16.gmra.mxu0 %v1531
  %v1817 = vpop.f32.mrf.mxu0
  %v1818 = vadd.f32 %v1289, %v1817
  %v1819 = vpop.f32.mrf.mxu0
  %v1820 = vpop.f32.mrf.mxu0
  %v1821 = vadd.f32 %v1292, %v1820
  %v1822 = vpop.f32.mrf.mxu0
  %1823 = vmatprep.mubr.bf16.mxu0 0
  %1824 = vmatmul.mubr.bf16.gmra.mxu0 %v1532
  %v1825 = vpop.f32.mrf.mxu0
  %v1826 = vadd.f32 %v1297, %v1825
  %v1827 = vpop.f32.mrf.mxu0
  %v1828 = vpop.f32.mrf.mxu0
  %v1829 = vadd.f32 %v1300, %v1828
  %v1830 = vpop.f32.mrf.mxu0
  %1831 = vmatprep.mubr.bf16.mxu0 0
  %1832 = vmatmul.mubr.bf16.gmra.mxu0 %v1533
  %v1833 = vpop.f32.mrf.mxu0
  %v1834 = vadd.f32 %v1305, %v1833
  %v1835 = vpop.f32.mrf.mxu0
  %v1836 = vpop.f32.mrf.mxu0
  %v1837 = vadd.f32 %v1308, %v1836
  %v1838 = vpop.f32.mrf.mxu0
  %1839 = vmatprep.mubr.bf16.mxu0 0
  %1840 = vmatmul.mubr.bf16.gmra.mxu0 %v1534
  %v1841 = vpop.f32.mrf.mxu0
  %v1842 = vadd.f32 %v1313, %v1841
  %v1843 = vpop.f32.mrf.mxu0
  %v1844 = vpop.f32.mrf.mxu0
  %v1845 = vadd.f32 %v1316, %v1844
  %v1846 = vpop.f32.mrf.mxu0
  %1847 = vmatprep.mubr.bf16.mxu0 0
  %1848 = vmatmul.mubr.bf16.gmra.mxu0 %v1535
  %v1849 = vpop.f32.mrf.mxu0
  %v1850 = vadd.f32 %v1321, %v1849
  %v1851 = vpop.f32.mrf.mxu0
  %v1852 = vpop.f32.mrf.mxu0
  %v1853 = vadd.f32 %v1324, %v1852
  %v1854 = vpop.f32.mrf.mxu0
  %1855 = vmatprep.mubr.bf16.mxu0 0
  %1856 = vmatmul.mubr.bf16.gmra.mxu0 %v1536
  %v1857 = vpop.f32.mrf.mxu0
  %v1858 = vadd.f32 %v1329, %v1857
  %v1859 = vpop.f32.mrf.mxu0
  %v1860 = vpop.f32.mrf.mxu0
  %v1861 = vadd.f32 %v1332, %v1860
  %v1862 = vpop.f32.mrf.mxu0
  %1863 = vmatprep.mubr.bf16.mxu0 0
  %1864 = vmatmul.mubr.bf16.gmra.mxu0 %v1537
  %v1865 = vpop.f32.mrf.mxu0
  %v1866 = vadd.f32 %v1337, %v1865
  %v1867 = vpop.f32.mrf.mxu0
  %v1868 = vpop.f32.mrf.mxu0
  %v1869 = vadd.f32 %v1340, %v1868
  %v1870 = vpop.f32.mrf.mxu0
  %1871 = vmatprep.mubr.bf16.mxu0 0
  %1872 = vmatmul.mubr.bf16.gmra.mxu0 %v1538
  %v1873 = vpop.f32.mrf.mxu0
  %v1874 = vadd.f32 %v1345, %v1873
  %v1875 = vpop.f32.mrf.mxu0
  %v1876 = vpop.f32.mrf.mxu0
  %v1877 = vadd.f32 %v1348, %v1876
  %v1878 = vpop.f32.mrf.mxu0
  %1879 = vmatprep.mubr.bf16.mxu0 0
  %1880 = vmatmul.mubr.bf16.gmra.mxu0 %v1539
  %v1881 = vpop.f32.mrf.mxu0
  %v1882 = vadd.f32 %v1353, %v1881
  %v1883 = vpop.f32.mrf.mxu0
  %v1884 = vpop.f32.mrf.mxu0
  %v1885 = vadd.f32 %v1356, %v1884
  %v1886 = vpop.f32.mrf.mxu0
  %1887 = vmatprep.mubr.bf16.mxu0 0
  %1888 = vmatmul.mubr.bf16.gmra.mxu0 %v1540
  %v1889 = vpop.f32.mrf.mxu0
  %v1890 = vadd.f32 %v1361, %v1889
  %v1891 = vpop.f32.mrf.mxu0
  %v1892 = vpop.f32.mrf.mxu0
  %v1893 = vadd.f32 %v1364, %v1892
  %v1894 = vpop.f32.mrf.mxu0
  %1895 = vmatprep.mubr.bf16.mxu0 0
  %1896 = vmatmul.mubr.bf16.gmra.mxu0 %v1541
  %v1897 = vpop.f32.mrf.mxu0
  %v1898 = vadd.f32 %v1369, %v1897
  %v1899 = vpop.f32.mrf.mxu0
  %v1900 = vpop.f32.mrf.mxu0
  %v1901 = vadd.f32 %v1372, %v1900
  %v1902 = vpop.f32.mrf.mxu0
  %1903 = vmatprep.mubr.bf16.mxu0 0
  %1904 = vmatmul.mubr.bf16.gmra.mxu0 %v1542
  %v1905 = vpop.f32.mrf.mxu0
  %v1906 = vadd.f32 %v1377, %v1905
  %v1907 = vpop.f32.mrf.mxu0
  %v1908 = vpop.f32.mrf.mxu0
  %v1909 = vadd.f32 %v1380, %v1908
  %v1910 = vpop.f32.mrf.mxu0
  %1911 = vdwg.mxu0
  %v1912 = vld [vmem:[%s0] sm:$0xe]
  %v1913 = vld [vmem:[%s0 + $0xc] sm:$0xe]
  %v1914 = vld [vmem:[%s0 + $0x18] sm:$0xe]
  %v1915 = vld [vmem:[%s0 + $0x24] sm:$0xe]
  %v1916 = vld [vmem:[%s0 + $0x30] sm:$0xe]
  %v1917 = vld [vmem:[%s0 + $0x3c] sm:$0xe]
  %v1918 = vld [vmem:[%s0 + $0x48] sm:$0xe]
  %v1919 = vld [vmem:[%s0 + $0x54] sm:$0xe]
  %v1920 = vld [vmem:[%s0 + $0x60] sm:$0xe]
  %v1921 = vld [vmem:[%s0 + $0x6c] sm:$0xe]
  %v1922 = vld [vmem:[%s0 + $0x78] sm:$0xe]
  %v1923 = vld [vmem:[%s0 + $0x84] sm:$0xe]
  %v1924 = vld [vmem:[%s0 + $0x90] sm:$0xe]
  %v1925 = vld [vmem:[%s0 + $0x9c] sm:$0xe]
  %v1926 = vld [vmem:[%s0 + $0xa8] sm:$0xe]
  %v1927 = vld [vmem:[%s0 + $0xb4] sm:$0xe]
  %v1928 = vld [vmem:[%s0 + $0xd8] sm:$0xe]
  %v1929 = vld [vmem:[%s0 + $0xe4] sm:$0xe]
  %v1930 = vld [vmem:[%s0 + $0xf0] sm:$0xe]
  %v1931 = vld [vmem:[%s0 + $0xfc] sm:$0xe]
  %v1932 = vld [vmem:[%s0 + $0x108] sm:$0xe]
  %v1933 = vld [vmem:[%s0 + $0x114] sm:$0xe]
  %v1934 = vld [vmem:[%s0 + $0x120] sm:$0xe]
  %v1935 = vld [vmem:[%s0 + $0x12c] sm:$0xe]
  %v1936 = vld [vmem:[%s0 + $0x138] sm:$0xe]
  %v1937 = vld [vmem:[%s0 + $0x144] sm:$0xe]
  %v1938 = vld [vmem:[%s0 + $0x150] sm:$0xe]
  %v1939 = vld [vmem:[%s0 + $0x15c] sm:$0xe]
  %v1940 = vld [vmem:[%s0 + $0x168] sm:$0xe]
  %v1941 = vld [vmem:[%s0 + $0x174] sm:$0xe]
  %v1942 = vld [vmem:[%s0 + $0x180] sm:$0xe]
  %v1943 = vld [vmem:[%s0 + $0x18c] sm:$0xe]
  %vm2008 = vcmask 1042432
  %vm2009 = vcmask 1046532
  %vm2010 = vmor %vm2008, %vm2009
  %v2011 = vrot.slane %v1912, 5
  %v2012 = vrot.slane %v2011, 4
  %v2013 = vrot.slane %v19, 5
  %v2014 = vsel %vm2010, %v2012, %v2013
  %v2015 = vrot.slane %v2013, 4
  %v2016 = vrot.slane %v98, 5
  %v2017 = vsel %vm2010, %v2015, %v2016
  %v2018 = vrot.slane %v1913, 5
  %v2019 = vrot.slane %v2018, 4
  %v2020 = vrot.slane %v21, 5
  %v2021 = vsel %vm2010, %v2019, %v2020
  %v2022 = vrot.slane %v2020, 4
  %v2023 = vrot.slane %v99, 5
  %v2024 = vsel %vm2010, %v2022, %v2023
  %v2025 = vrot.slane %v1914, 5
  %v2026 = vrot.slane %v2025, 4
  %v2027 = vrot.slane %v23, 5
  %v2028 = vsel %vm2010, %v2026, %v2027
  %v2029 = vrot.slane %v2027, 4
  %v2030 = vrot.slane %v100, 5
  %v2031 = vsel %vm2010, %v2029, %v2030
  %v2032 = vrot.slane %v1915, 5
  %v2033 = vrot.slane %v2032, 4
  %v2034 = vrot.slane %v25, 5
  %v2035 = vsel %vm2010, %v2033, %v2034
  %v2036 = vrot.slane %v2034, 4
  %v2037 = vrot.slane %v101, 5
  %v2038 = vsel %vm2010, %v2036, %v2037
  %v2039 = vrot.slane %v1916, 5
  %v2040 = vrot.slane %v2039, 4
  %v2041 = vrot.slane %v27, 5
  %v2042 = vsel %vm2010, %v2040, %v2041
  %v2043 = vrot.slane %v2041, 4
  %v2044 = vrot.slane %v102, 5
  %v2045 = vsel %vm2010, %v2043, %v2044
  %v2046 = vrot.slane %v1917, 5
  %v2047 = vrot.slane %v2046, 4
  %v2048 = vrot.slane %v29, 5
  %v2049 = vsel %vm2010, %v2047, %v2048
  %v2050 = vrot.slane %v2048, 4
  %v2051 = vrot.slane %v103, 5
  %v2052 = vsel %vm2010, %v2050, %v2051
  %v2053 = vrot.slane %v1918, 5
  %v2054 = vrot.slane %v2053, 4
  %v2055 = vrot.slane %v31, 5
  %v2056 = vsel %vm2010, %v2054, %v2055
  %v2057 = vrot.slane %v2055, 4
  %v2058 = vrot.slane %v104, 5
  %v2059 = vsel %vm2010, %v2057, %v2058
  %v2060 = vrot.slane %v1919, 5
  %v2061 = vrot.slane %v2060, 4
  %v2062 = vrot.slane %v33, 5
  %v2063 = vsel %vm2010, %v2061, %v2062
  %v2064 = vrot.slane %v2062, 4
  %v2065 = vrot.slane %v105, 5
  %v2066 = vsel %vm2010, %v2064, %v2065
  %v2067 = vrot.slane %v1920, 5
  %v2068 = vrot.slane %v2067, 4
  %v2069 = vrot.slane %v35, 5
  %v2070 = vsel %vm2010, %v2068, %v2069
  %v2071 = vrot.slane %v2069, 4
  %v2072 = vrot.slane %v106, 5
  %v2073 = vsel %vm2010, %v2071, %v2072
  %v2074 = vrot.slane %v1921, 5
  %v2075 = vrot.slane %v2074, 4
  %v2076 = vrot.slane %v37, 5
  %v2077 = vsel %vm2010, %v2075, %v2076
  %v2078 = vrot.slane %v2076, 4
  %v2079 = vrot.slane %v107, 5
  %v2080 = vsel %vm2010, %v2078, %v2079
  %v2081 = vrot.slane %v1922, 5
  %v2082 = vrot.slane %v2081, 4
  %v2083 = vrot.slane %v39, 5
  %v2084 = vsel %vm2010, %v2082, %v2083
  %v2085 = vrot.slane %v2083, 4
  %v2086 = vrot.slane %v108, 5
  %v2087 = vsel %vm2010, %v2085, %v2086
  %v2088 = vrot.slane %v1923, 5
  %v2089 = vrot.slane %v2088, 4
  %v2090 = vrot.slane %v41, 5
  %v2091 = vsel %vm2010, %v2089, %v2090
  %v2092 = vrot.slane %v2090, 4
  %v2093 = vrot.slane %v109, 5
  %v2094 = vsel %vm2010, %v2092, %v2093
  %v2095 = vrot.slane %v1924, 5
  %v2096 = vrot.slane %v2095, 4
  %v2097 = vrot.slane %v43, 5
  %v2098 = vsel %vm2010, %v2096, %v2097
  %v2099 = vrot.slane %v2097, 4
  %v2100 = vrot.slane %v110, 5
  %v2101 = vsel %vm2010, %v2099, %v2100
  %v2102 = vrot.slane %v1925, 5
  %v2103 = vrot.slane %v2102, 4
  %v2104 = vrot.slane %v45, 5
  %v2105 = vsel %vm2010, %v2103, %v2104
  %v2106 = vrot.slane %v2104, 4
  %v2107 = vrot.slane %v111, 5
  %v2108 = vsel %vm2010, %v2106, %v2107
  %v2109 = vrot.slane %v1926, 5
  %v2110 = vrot.slane %v2109, 4
  %v2111 = vrot.slane %v47, 5
  %v2112 = vsel %vm2010, %v2110, %v2111
  %v2113 = vrot.slane %v2111, 4
  %v2114 = vrot.slane %v112, 5
  %v2115 = vsel %vm2010, %v2113, %v2114
  %v2116 = vrot.slane %v1927, 5
  %v2117 = vrot.slane %v2116, 4
  %v2118 = vrot.slane %v49, 5
  %v2119 = vsel %vm2010, %v2117, %v2118
  %v2120 = vrot.slane %v2118, 4
  %v2121 = vrot.slane %v113, 5
  %v2122 = vsel %vm2010, %v2120, %v2121
  %v2123 = vrot.slane %v1928, 5
  %v2124 = vrot.slane %v2123, 4
  %v2125 = vrot.slane %v51, 5
  %v2126 = vsel %vm2010, %v2124, %v2125
  %v2127 = vrot.slane %v2125, 4
  %v2128 = vrot.slane %v114, 5
  %v2129 = vsel %vm2010, %v2127, %v2128
  %v2130 = vrot.slane %v1929, 5
  %v2131 = vrot.slane %v2130, 4
  %v2132 = vrot.slane %v53, 5
  %v2133 = vsel %vm2010, %v2131, %v2132
  %v2134 = vrot.slane %v2132, 4
  %v2135 = vrot.slane %v115, 5
  %v2136 = vsel %vm2010, %v2134, %v2135
  %v2137 = vrot.slane %v1930, 5
  %v2138 = vrot.slane %v2137, 4
  %v2139 = vrot.slane %v55, 5
  %v2140 = vsel %vm2010, %v2138, %v2139
  %v2141 = vrot.slane %v2139, 4
  %v2142 = vrot.slane %v116, 5
  %v2143 = vsel %vm2010, %v2141, %v2142
  %v2144 = vrot.slane %v1931, 5
  %v2145 = vrot.slane %v2144, 4
  %v2146 = vrot.slane %v57, 5
  %v2147 = vsel %vm2010, %v2145, %v2146
  %v2148 = vrot.slane %v2146, 4
  %v2149 = vrot.slane %v117, 5
  %v2150 = vsel %vm2010, %v2148, %v2149
  %v2151 = vrot.slane %v1932, 5
  %v2152 = vrot.slane %v2151, 4
  %v2153 = vrot.slane %v59, 5
  %v2154 = vsel %vm2010, %v2152, %v2153
  %v2155 = vrot.slane %v2153, 4
  %v2156 = vrot.slane %v118, 5
  %v2157 = vsel %vm2010, %v2155, %v2156
  %v2158 = vrot.slane %v1933, 5
  %v2159 = vrot.slane %v2158, 4
  %v2160 = vrot.slane %v61, 5
  %v2161 = vsel %vm2010, %v2159, %v2160
  %v2162 = vrot.slane %v2160, 4
  %v2163 = vrot.slane %v119, 5
  %v2164 = vsel %vm2010, %v2162, %v2163
  %v2165 = vrot.slane %v1934, 5
  %v2166 = vrot.slane %v2165, 4
  %v2167 = vrot.slane %v63, 5
  %v2168 = vsel %vm2010, %v2166, %v2167
  %v2169 = vrot.slane %v2167, 4
  %v2170 = vrot.slane %v120, 5
  %v2171 = vsel %vm2010, %v2169, %v2170
  %v2172 = vrot.slane %v1935, 5
  %v2173 = vrot.slane %v2172, 4
  %v2174 = vrot.slane %v65, 5
  %v2175 = vsel %vm2010, %v2173, %v2174
  %v2176 = vrot.slane %v2174, 4
  %v2177 = vrot.slane %v121, 5
  %v2178 = vsel %vm2010, %v2176, %v2177
  %v2179 = vrot.slane %v1936, 5
  %v2180 = vrot.slane %v2179, 4
  %v2181 = vrot.slane %v67, 5
  %v2182 = vsel %vm2010, %v2180, %v2181
  %v2183 = vrot.slane %v2181, 4
  %v2184 = vrot.slane %v122, 5
  %v2185 = vsel %vm2010, %v2183, %v2184
  %v2186 = vrot.slane %v1937, 5
  %v2187 = vrot.slane %v2186, 4
  %v2188 = vrot.slane %v69, 5
  %v2189 = vsel %vm2010, %v2187, %v2188
  %v2190 = vrot.slane %v2188, 4
  %v2191 = vrot.slane %v123, 5
  %v2192 = vsel %vm2010, %v2190, %v2191
  %v2193 = vrot.slane %v1938, 5
  %v2194 = vrot.slane %v2193, 4
  %v2195 = vrot.slane %v71, 5
  %v2196 = vsel %vm2010, %v2194, %v2195
  %v2197 = vrot.slane %v2195, 4
  %v2198 = vrot.slane %v124, 5
  %v2199 = vsel %vm2010, %v2197, %v2198
  %v2200 = vrot.slane %v1939, 5
  %v2201 = vrot.slane %v2200, 4
  %v2202 = vrot.slane %v73, 5
  %v2203 = vsel %vm2010, %v2201, %v2202
  %v2204 = vrot.slane %v2202, 4
  %v2205 = vrot.slane %v125, 5
  %v2206 = vsel %vm2010, %v2204, %v2205
  %v2207 = vrot.slane %v1940, 5
  %v2208 = vrot.slane %v2207, 4
  %v2209 = vrot.slane %v75, 5
  %v2210 = vsel %vm2010, %v2208, %v2209
  %v2211 = vrot.slane %v2209, 4
  %v2212 = vrot.slane %v126, 5
  %v2213 = vsel %vm2010, %v2211, %v2212
  %v2214 = vrot.slane %v1941, 5
  %v2215 = vrot.slane %v2214, 4
  %v2216 = vrot.slane %v77, 5
  %v2217 = vsel %vm2010, %v2215, %v2216
  %v2218 = vrot.slane %v2216, 4
  %v2219 = vrot.slane %v127, 5
  %v2220 = vsel %vm2010, %v2218, %v2219
  %v2221 = vrot.slane %v1942, 5
  %v2222 = vrot.slane %v2221, 4
  %v2223 = vrot.slane %v79, 5
  %v2224 = vsel %vm2010, %v2222, %v2223
  %v2225 = vrot.slane %v2223, 4
  %v2226 = vrot.slane %v128, 5
  %v2227 = vsel %vm2010, %v2225, %v2226
  %v2228 = vrot.slane %v1943, 5
  %v2229 = vrot.slane %v2228, 4
  %v2230 = vrot.slane %v81, 5
  %v2231 = vsel %vm2010, %v2229, %v2230
  %v2232 = vrot.slane %v2230, 4
  %v2233 = vrot.slane %v129, 5
  %v2234 = vsel %vm2010, %v2232, %v2233
  %s2235 = scalar_lea.vmem %s1, 128
  %v2236 = vld [vmem:[%s2235] sm:$0xf]
  %v2237 = vld [vmem:[%s2235 + $0x4] sm:$0xf]
  %v2238 = vld [vmem:[%s2235 + $0x8] sm:$0xf]
  %v2239 = vld [vmem:[%s2235 + $0xc] sm:$0xf]
  %v2240 = vld [vmem:[%s2235 + $0x10] sm:$0xf]
  %v2241 = vld [vmem:[%s2235 + $0x14] sm:$0xf]
  %v2242 = vld [vmem:[%s2235 + $0x18] sm:$0xf]
  %v2243 = vld [vmem:[%s2235 + $0x1c] sm:$0xf]
  %v2244 = vld [vmem:[%s2235 + $0x20] sm:$0xf]
  %v2245 = vld [vmem:[%s2235 + $0x24] sm:$0xf]
  %v2246 = vld [vmem:[%s2235 + $0x28] sm:$0xf]
  %v2247 = vld [vmem:[%s2235 + $0x2c] sm:$0xf]
  %v2248 = vld [vmem:[%s2235 + $0x30] sm:$0xf]
  %v2249 = vld [vmem:[%s2235 + $0x34] sm:$0xf]
  %v2250 = vld [vmem:[%s2235 + $0x38] sm:$0xf]
  %v2251 = vld [vmem:[%s2235 + $0x3c] sm:$0xf]
  %v2252 = vunpack.c.l.b16 %v2014
  %v2253 = vunpack.c.l.b16 %v2017
  %v2254 = vunpack.c.l.b16 %v2021
  %v2255 = vunpack.c.l.b16 %v2024
  %v2256 = vunpack.c.l.b16 %v2028
  %v2257 = vunpack.c.l.b16 %v2031
  %v2258 = vunpack.c.l.b16 %v2035
  %v2259 = vunpack.c.l.b16 %v2038
  %v2260 = vunpack.c.l.b16 %v2042
  %v2261 = vunpack.c.l.b16 %v2045
  %v2262 = vunpack.c.l.b16 %v2049
  %v2263 = vunpack.c.l.b16 %v2052
  %v2264 = vunpack.c.l.b16 %v2056
  %v2265 = vunpack.c.l.b16 %v2059
  %v2266 = vunpack.c.l.b16 %v2063
  %v2267 = vunpack.c.l.b16 %v2066
  %v2268 = vunpack.c.l.b16 %v2070
  %v2269 = vunpack.c.l.b16 %v2073
  %v2270 = vunpack.c.l.b16 %v2077
  %v2271 = vunpack.c.l.b16 %v2080
  %v2272 = vunpack.c.l.b16 %v2084
  %v2273 = vunpack.c.l.b16 %v2087
  %v2274 = vunpack.c.l.b16 %v2091
  %v2275 = vunpack.c.l.b16 %v2094
  %v2276 = vunpack.c.l.b16 %v2098
  %v2277 = vunpack.c.l.b16 %v2101
  %v2278 = vunpack.c.l.b16 %v2105
  %v2279 = vunpack.c.l.b16 %v2108
  %v2280 = vunpack.c.l.b16 %v2112
  %v2281 = vunpack.c.l.b16 %v2115
  %v2282 = vunpack.c.l.b16 %v2119
  %v2283 = vunpack.c.l.b16 %v2122
  %v2284 = vunpack.c.l.b16 %v2126
  %v2285 = vunpack.c.l.b16 %v2129
  %v2286 = vunpack.c.l.b16 %v2133
  %v2287 = vunpack.c.l.b16 %v2136
  %v2288 = vunpack.c.l.b16 %v2140
  %v2289 = vunpack.c.l.b16 %v2143
  %v2290 = vunpack.c.l.b16 %v2147
  %v2291 = vunpack.c.l.b16 %v2150
  %v2292 = vunpack.c.l.b16 %v2154
  %v2293 = vunpack.c.l.b16 %v2157
  %v2294 = vunpack.c.l.b16 %v2161
  %v2295 = vunpack.c.l.b16 %v2164
  %v2296 = vunpack.c.l.b16 %v2168
  %v2297 = vunpack.c.l.b16 %v2171
  %v2298 = vunpack.c.l.b16 %v2175
  %v2299 = vunpack.c.l.b16 %v2178
  %v2300 = vunpack.c.l.b16 %v2182
  %v2301 = vunpack.c.l.b16 %v2185
  %v2302 = vunpack.c.l.b16 %v2189
  %v2303 = vunpack.c.l.b16 %v2192
  %v2304 = vunpack.c.l.b16 %v2196
  %v2305 = vunpack.c.l.b16 %v2199
  %v2306 = vunpack.c.l.b16 %v2203
  %v2307 = vunpack.c.l.b16 %v2206
  %v2308 = vunpack.c.l.b16 %v2210
  %v2309 = vunpack.c.l.b16 %v2213
  %v2310 = vunpack.c.l.b16 %v2217
  %v2311 = vunpack.c.l.b16 %v2220
  %v2312 = vunpack.c.l.b16 %v2224
  %v2313 = vunpack.c.l.b16 %v2227
  %v2314 = vunpack.c.l.b16 %v2231
  %v2315 = vunpack.c.l.b16 %v2234
  %v2316 = vpack.c.b16 %v2253, %v2252
  %v2317 = vpack.c.b16 %v2255, %v2254
  %v2318 = vpack.c.b16 %v2257, %v2256
  %v2319 = vpack.c.b16 %v2259, %v2258
  %v2320 = vpack.c.b16 %v2261, %v2260
  %v2321 = vpack.c.b16 %v2263, %v2262
  %v2322 = vpack.c.b16 %v2265, %v2264
  %v2323 = vpack.c.b16 %v2267, %v2266
  %v2324 = vpack.c.b16 %v2269, %v2268
  %v2325 = vpack.c.b16 %v2271, %v2270
  %v2326 = vpack.c.b16 %v2273, %v2272
  %v2327 = vpack.c.b16 %v2275, %v2274
  %v2328 = vpack.c.b16 %v2277, %v2276
  %v2329 = vpack.c.b16 %v2279, %v2278
  %v2330 = vpack.c.b16 %v2281, %v2280
  %v2331 = vpack.c.b16 %v2283, %v2282
  %v2332 = vpack.c.b16 %v2285, %v2284
  %v2333 = vpack.c.b16 %v2287, %v2286
  %v2334 = vpack.c.b16 %v2289, %v2288
  %v2335 = vpack.c.b16 %v2291, %v2290
  %v2336 = vpack.c.b16 %v2293, %v2292
  %v2337 = vpack.c.b16 %v2295, %v2294
  %v2338 = vpack.c.b16 %v2297, %v2296
  %v2339 = vpack.c.b16 %v2299, %v2298
  %v2340 = vpack.c.b16 %v2301, %v2300
  %v2341 = vpack.c.b16 %v2303, %v2302
  %v2342 = vpack.c.b16 %v2305, %v2304
  %v2343 = vpack.c.b16 %v2307, %v2306
  %v2344 = vpack.c.b16 %v2309, %v2308
  %v2345 = vpack.c.b16 %v2311, %v2310
  %v2346 = vpack.c.b16 %v2313, %v2312
  %v2347 = vpack.c.b16 %v2315, %v2314
  %v2396 = vunpack.c.l.b16 %v2236
  %v2397 = vunpack.c.l.b16 %v2237
  %v2398 = vunpack.c.l.b16 %v2238
  %v2399 = vunpack.c.l.b16 %v2239
  %v2400 = vunpack.c.l.b16 %v2240
  %v2401 = vunpack.c.l.b16 %v2241
  %v2402 = vunpack.c.l.b16 %v2242
  %v2403 = vunpack.c.l.b16 %v2243
  %v2404 = vunpack.c.l.b16 %v2244
  %v2405 = vunpack.c.l.b16 %v2245
  %v2406 = vunpack.c.l.b16 %v2246
  %v2407 = vunpack.c.l.b16 %v2247
  %v2408 = vunpack.c.l.b16 %v2248
  %v2409 = vunpack.c.l.b16 %v2249
  %v2410 = vunpack.c.l.b16 %v2250
  %v2411 = vunpack.c.l.b16 %v2251
  %v2412 = vpack.c.b16 %v2397, %v2396
  %v2413 = vpack.c.b16 %v2399, %v2398
  %v2414 = vpack.c.b16 %v2401, %v2400
  %v2415 = vpack.c.b16 %v2403, %v2402
  %v2416 = vpack.c.b16 %v2405, %v2404
  %v2417 = vpack.c.b16 %v2407, %v2406
  %v2418 = vpack.c.b16 %v2409, %v2408
  %v2419 = vpack.c.b16 %v2411, %v2410
  %2428 = vmatprep.subr.bf16.mxu0 0
  %2429 = vmatpush1.bf16.msra.mxu0 %v2419
  %2430 = vmatprep.subr.bf16.mxu0 0
  %2431 = vmatpush1.bf16.msra.mxu0 %v2418
  %2432 = vmatprep.subr.bf16.mxu0 0
  %2433 = vmatpush1.bf16.msra.mxu0 %v2417
  %2434 = vmatprep.subr.bf16.mxu0 0
  %2435 = vmatpush1.bf16.msra.mxu0 %v2416
  %2436 = vmatprep.subr.bf16.mxu0 0
  %2437 = vmatpush1.bf16.msra.mxu0 %v2415
  %2438 = vmatprep.subr.bf16.mxu0 0
  %2439 = vmatpush1.bf16.msra.mxu0 %v2414
  %2440 = vmatprep.subr.bf16.mxu0 0
  %2441 = vmatpush1.bf16.msra.mxu0 %v2413
  %2442 = vmatprep.subr.bf16.mxu0 0
  %2443 = vmatpush1.bf16.msra.mxu0 %v2412
  %2444 = vmatprep.subr.bf16.mxu0 0
  %2445 = vmatpush2.bf16.msra.mxu0 0
  %2446 = vmatprep.subr.bf16.mxu0 0
  %2447 = vmatpush2.bf16.msra.mxu0 0
  %2448 = vmatprep.subr.bf16.mxu0 0
  %2449 = vmatpush2.bf16.msra.mxu0 0
  %2450 = vmatprep.subr.bf16.mxu0 0
  %2451 = vmatpush2.bf16.msra.mxu0 0
  %2452 = vmatprep.subr.bf16.mxu0 0
  %2453 = vmatpush2.bf16.msra.mxu0 0
  %2454 = vmatprep.subr.bf16.mxu0 0
  %2455 = vmatpush2.bf16.msra.mxu0 0
  %2456 = vmatprep.subr.bf16.mxu0 0
  %2457 = vmatpush2.bf16.msra.mxu0 0
  %2458 = vmatprep.subr.bf16.mxu0 0
  %2459 = vmatpush2.bf16.msra.mxu0 0
  %2460 = vmatprep.mubr.bf16.mxu0 0
  %2461 = vmatmul.mubr.bf16.gmra.mxu0 %v2316
  %v2462 = vpop.f32.mrf.mxu0
  %v2463 = vadd.f32 0.0, %v2462
  %v2464 = vpop.f32.mrf.mxu0
  %v2465 = vpop.f32.mrf.mxu0
  %v2466 = vadd.f32 0.0, %v2465
  %v2467 = vpop.f32.mrf.mxu0
  %2468 = vmatprep.mubr.bf16.mxu0 0
  %2469 = vmatmul.mubr.bf16.gmra.mxu0 %v2317
  %v2470 = vpop.f32.mrf.mxu0
  %v2471 = vadd.f32 0.0, %v2470
  %v2472 = vpop.f32.mrf.mxu0
  %v2473 = vpop.f32.mrf.mxu0
  %v2474 = vadd.f32 0.0, %v2473
  %v2475 = vpop.f32.mrf.mxu0
  %2476 = vmatprep.mubr.bf16.mxu0 0
  %2477 = vmatmul.mubr.bf16.gmra.mxu0 %v2318
  %v2478 = vpop.f32.mrf.mxu0
  %v2479 = vadd.f32 0.0, %v2478
  %v2480 = vpop.f32.mrf.mxu0
  %v2481 = vpop.f32.mrf.mxu0
  %v2482 = vadd.f32 0.0, %v2481
  %v2483 = vpop.f32.mrf.mxu0
  %2484 = vmatprep.mubr.bf16.mxu0 0
  %2485 = vmatmul.mubr.bf16.gmra.mxu0 %v2319
  %v2486 = vpop.f32.mrf.mxu0
  %v2487 = vadd.f32 0.0, %v2486
  %v2488 = vpop.f32.mrf.mxu0
  %v2489 = vpop.f32.mrf.mxu0
  %v2490 = vadd.f32 0.0, %v2489
  %v2491 = vpop.f32.mrf.mxu0
  %2492 = vmatprep.mubr.bf16.mxu0 0
  %2493 = vmatmul.mubr.bf16.gmra.mxu0 %v2320
  %v2494 = vpop.f32.mrf.mxu0
  %v2495 = vadd.f32 0.0, %v2494
  %v2496 = vpop.f32.mrf.mxu0
  %v2497 = vpop.f32.mrf.mxu0
  %v2498 = vadd.f32 0.0, %v2497
  %v2499 = vpop.f32.mrf.mxu0
  %2500 = vmatprep.mubr.bf16.mxu0 0
  %2501 = vmatmul.mubr.bf16.gmra.mxu0 %v2321
  %v2502 = vpop.f32.mrf.mxu0
  %v2503 = vadd.f32 0.0, %v2502
  %v2504 = vpop.f32.mrf.mxu0
  %v2505 = vpop.f32.mrf.mxu0
  %v2506 = vadd.f32 0.0, %v2505
  %v2507 = vpop.f32.mrf.mxu0
  %2508 = vmatprep.mubr.bf16.mxu0 0
  %2509 = vmatmul.mubr.bf16.gmra.mxu0 %v2322
  %v2510 = vpop.f32.mrf.mxu0
  %v2511 = vadd.f32 0.0, %v2510
  %v2512 = vpop.f32.mrf.mxu0
  %v2513 = vpop.f32.mrf.mxu0
  %v2514 = vadd.f32 0.0, %v2513
  %v2515 = vpop.f32.mrf.mxu0
  %2516 = vmatprep.mubr.bf16.mxu0 0
  %2517 = vmatmul.mubr.bf16.gmra.mxu0 %v2323
  %v2518 = vpop.f32.mrf.mxu0
  %v2519 = vadd.f32 0.0, %v2518
  %v2520 = vpop.f32.mrf.mxu0
  %v2521 = vpop.f32.mrf.mxu0
  %v2522 = vadd.f32 0.0, %v2521
  %v2523 = vpop.f32.mrf.mxu0
  %2524 = vmatprep.mubr.bf16.mxu0 0
  %2525 = vmatmul.mubr.bf16.gmra.mxu0 %v2324
  %v2526 = vpop.f32.mrf.mxu0
  %v2527 = vadd.f32 0.0, %v2526
  %v2528 = vpop.f32.mrf.mxu0
  %v2529 = vpop.f32.mrf.mxu0
  %v2530 = vadd.f32 0.0, %v2529
  %v2531 = vpop.f32.mrf.mxu0
  %2532 = vmatprep.mubr.bf16.mxu0 0
  %2533 = vmatmul.mubr.bf16.gmra.mxu0 %v2325
  %v2534 = vpop.f32.mrf.mxu0
  %v2535 = vadd.f32 0.0, %v2534
  %v2536 = vpop.f32.mrf.mxu0
  %v2537 = vpop.f32.mrf.mxu0
  %v2538 = vadd.f32 0.0, %v2537
  %v2539 = vpop.f32.mrf.mxu0
  %2540 = vmatprep.mubr.bf16.mxu0 0
  %2541 = vmatmul.mubr.bf16.gmra.mxu0 %v2326
  %v2542 = vpop.f32.mrf.mxu0
  %v2543 = vadd.f32 0.0, %v2542
  %v2544 = vpop.f32.mrf.mxu0
  %v2545 = vpop.f32.mrf.mxu0
  %v2546 = vadd.f32 0.0, %v2545
  %v2547 = vpop.f32.mrf.mxu0
  %2548 = vmatprep.mubr.bf16.mxu0 0
  %2549 = vmatmul.mubr.bf16.gmra.mxu0 %v2327
  %v2550 = vpop.f32.mrf.mxu0
  %v2551 = vadd.f32 0.0, %v2550
  %v2552 = vpop.f32.mrf.mxu0
  %v2553 = vpop.f32.mrf.mxu0
  %v2554 = vadd.f32 0.0, %v2553
  %v2555 = vpop.f32.mrf.mxu0
  %2556 = vmatprep.mubr.bf16.mxu0 0
  %2557 = vmatmul.mubr.bf16.gmra.mxu0 %v2328
  %v2558 = vpop.f32.mrf.mxu0
  %v2559 = vadd.f32 0.0, %v2558
  %v2560 = vpop.f32.mrf.mxu0
  %v2561 = vpop.f32.mrf.mxu0
  %v2562 = vadd.f32 0.0, %v2561
  %v2563 = vpop.f32.mrf.mxu0
  %2564 = vmatprep.mubr.bf16.mxu0 0
  %2565 = vmatmul.mubr.bf16.gmra.mxu0 %v2329
  %v2566 = vpop.f32.mrf.mxu0
  %v2567 = vadd.f32 0.0, %v2566
  %v2568 = vpop.f32.mrf.mxu0
  %v2569 = vpop.f32.mrf.mxu0
  %v2570 = vadd.f32 0.0, %v2569
  %v2571 = vpop.f32.mrf.mxu0
  %2572 = vmatprep.mubr.bf16.mxu0 0
  %2573 = vmatmul.mubr.bf16.gmra.mxu0 %v2330
  %v2574 = vpop.f32.mrf.mxu0
  %v2575 = vadd.f32 0.0, %v2574
  %v2576 = vpop.f32.mrf.mxu0
  %v2577 = vpop.f32.mrf.mxu0
  %v2578 = vadd.f32 0.0, %v2577
  %v2579 = vpop.f32.mrf.mxu0
  %2580 = vmatprep.mubr.bf16.mxu0 0
  %2581 = vmatmul.mubr.bf16.gmra.mxu0 %v2331
  %v2582 = vpop.f32.mrf.mxu0
  %v2583 = vadd.f32 0.0, %v2582
  %v2584 = vpop.f32.mrf.mxu0
  %v2585 = vpop.f32.mrf.mxu0
  %v2586 = vadd.f32 0.0, %v2585
  %v2587 = vpop.f32.mrf.mxu0
  %2588 = vmatprep.mubr.bf16.mxu0 0
  %2589 = vmatmul.mubr.bf16.gmra.mxu0 %v2332
  %v2590 = vpop.f32.mrf.mxu0
  %v2591 = vadd.f32 0.0, %v2590
  %v2592 = vpop.f32.mrf.mxu0
  %v2593 = vpop.f32.mrf.mxu0
  %v2594 = vadd.f32 0.0, %v2593
  %v2595 = vpop.f32.mrf.mxu0
  %2596 = vmatprep.mubr.bf16.mxu0 0
  %2597 = vmatmul.mubr.bf16.gmra.mxu0 %v2333
  %v2598 = vpop.f32.mrf.mxu0
  %v2599 = vadd.f32 0.0, %v2598
  %v2600 = vpop.f32.mrf.mxu0
  %v2601 = vpop.f32.mrf.mxu0
  %v2602 = vadd.f32 0.0, %v2601
  %v2603 = vpop.f32.mrf.mxu0
  %2604 = vmatprep.mubr.bf16.mxu0 0
  %2605 = vmatmul.mubr.bf16.gmra.mxu0 %v2334
  %v2606 = vpop.f32.mrf.mxu0
  %v2607 = vadd.f32 0.0, %v2606
  %v2608 = vpop.f32.mrf.mxu0
  %v2609 = vpop.f32.mrf.mxu0
  %v2610 = vadd.f32 0.0, %v2609
  %v2611 = vpop.f32.mrf.mxu0
  %2612 = vmatprep.mubr.bf16.mxu0 0
  %2613 = vmatmul.mubr.bf16.gmra.mxu0 %v2335
  %v2614 = vpop.f32.mrf.mxu0
  %v2615 = vadd.f32 0.0, %v2614
  %v2616 = vpop.f32.mrf.mxu0
  %v2617 = vpop.f32.mrf.mxu0
  %v2618 = vadd.f32 0.0, %v2617
  %v2619 = vpop.f32.mrf.mxu0
  %2620 = vmatprep.mubr.bf16.mxu0 0
  %2621 = vmatmul.mubr.bf16.gmra.mxu0 %v2336
  %v2622 = vpop.f32.mrf.mxu0
  %v2623 = vadd.f32 0.0, %v2622
  %v2624 = vpop.f32.mrf.mxu0
  %v2625 = vpop.f32.mrf.mxu0
  %v2626 = vadd.f32 0.0, %v2625
  %v2627 = vpop.f32.mrf.mxu0
  %2628 = vmatprep.mubr.bf16.mxu0 0
  %2629 = vmatmul.mubr.bf16.gmra.mxu0 %v2337
  %v2630 = vpop.f32.mrf.mxu0
  %v2631 = vadd.f32 0.0, %v2630
  %v2632 = vpop.f32.mrf.mxu0
  %v2633 = vpop.f32.mrf.mxu0
  %v2634 = vadd.f32 0.0, %v2633
  %v2635 = vpop.f32.mrf.mxu0
  %2636 = vmatprep.mubr.bf16.mxu0 0
  %2637 = vmatmul.mubr.bf16.gmra.mxu0 %v2338
  %v2638 = vpop.f32.mrf.mxu0
  %v2639 = vadd.f32 0.0, %v2638
  %v2640 = vpop.f32.mrf.mxu0
  %v2641 = vpop.f32.mrf.mxu0
  %v2642 = vadd.f32 0.0, %v2641
  %v2643 = vpop.f32.mrf.mxu0
  %2644 = vmatprep.mubr.bf16.mxu0 0
  %2645 = vmatmul.mubr.bf16.gmra.mxu0 %v2339
  %v2646 = vpop.f32.mrf.mxu0
  %v2647 = vadd.f32 0.0, %v2646
  %v2648 = vpop.f32.mrf.mxu0
  %v2649 = vpop.f32.mrf.mxu0
  %v2650 = vadd.f32 0.0, %v2649
  %v2651 = vpop.f32.mrf.mxu0
  %2652 = vmatprep.mubr.bf16.mxu0 0
  %2653 = vmatmul.mubr.bf16.gmra.mxu0 %v2340
  %v2654 = vpop.f32.mrf.mxu0
  %v2655 = vadd.f32 0.0, %v2654
  %v2656 = vpop.f32.mrf.mxu0
  %v2657 = vpop.f32.mrf.mxu0
  %v2658 = vadd.f32 0.0, %v2657
  %v2659 = vpop.f32.mrf.mxu0
  %2660 = vmatprep.mubr.bf16.mxu0 0
  %2661 = vmatmul.mubr.bf16.gmra.mxu0 %v2341
  %v2662 = vpop.f32.mrf.mxu0
  %v2663 = vadd.f32 0.0, %v2662
  %v2664 = vpop.f32.mrf.mxu0
  %v2665 = vpop.f32.mrf.mxu0
  %v2666 = vadd.f32 0.0, %v2665
  %v2667 = vpop.f32.mrf.mxu0
  %2668 = vmatprep.mubr.bf16.mxu0 0
  %2669 = vmatmul.mubr.bf16.gmra.mxu0 %v2342
  %v2670 = vpop.f32.mrf.mxu0
  %v2671 = vadd.f32 0.0, %v2670
  %v2672 = vpop.f32.mrf.mxu0
  %v2673 = vpop.f32.mrf.mxu0
  %v2674 = vadd.f32 0.0, %v2673
  %v2675 = vpop.f32.mrf.mxu0
  %2676 = vmatprep.mubr.bf16.mxu0 0
  %2677 = vmatmul.mubr.bf16.gmra.mxu0 %v2343
  %v2678 = vpop.f32.mrf.mxu0
  %v2679 = vadd.f32 0.0, %v2678
  %v2680 = vpop.f32.mrf.mxu0
  %v2681 = vpop.f32.mrf.mxu0
  %v2682 = vadd.f32 0.0, %v2681
  %v2683 = vpop.f32.mrf.mxu0
  %2684 = vmatprep.mubr.bf16.mxu0 0
  %2685 = vmatmul.mubr.bf16.gmra.mxu0 %v2344
  %v2686 = vpop.f32.mrf.mxu0
  %v2687 = vadd.f32 0.0, %v2686
  %v2688 = vpop.f32.mrf.mxu0
  %v2689 = vpop.f32.mrf.mxu0
  %v2690 = vadd.f32 0.0, %v2689
  %v2691 = vpop.f32.mrf.mxu0
  %2692 = vmatprep.mubr.bf16.mxu0 0
  %2693 = vmatmul.mubr.bf16.gmra.mxu0 %v2345
  %v2694 = vpop.f32.mrf.mxu0
  %v2695 = vadd.f32 0.0, %v2694
  %v2696 = vpop.f32.mrf.mxu0
  %v2697 = vpop.f32.mrf.mxu0
  %v2698 = vadd.f32 0.0, %v2697
  %v2699 = vpop.f32.mrf.mxu0
  %2700 = vmatprep.mubr.bf16.mxu0 0
  %2701 = vmatmul.mubr.bf16.gmra.mxu0 %v2346
  %v2702 = vpop.f32.mrf.mxu0
  %v2703 = vadd.f32 0.0, %v2702
  %v2704 = vpop.f32.mrf.mxu0
  %v2705 = vpop.f32.mrf.mxu0
  %v2706 = vadd.f32 0.0, %v2705
  %v2707 = vpop.f32.mrf.mxu0
  %2708 = vmatprep.mubr.bf16.mxu0 0
  %2709 = vmatmul.mubr.bf16.gmra.mxu0 %v2347
  %v2710 = vpop.f32.mrf.mxu0
  %v2711 = vadd.f32 0.0, %v2710
  %v2712 = vpop.f32.mrf.mxu0
  %v2713 = vpop.f32.mrf.mxu0
  %v2714 = vadd.f32 0.0, %v2713
  %v2715 = vpop.f32.mrf.mxu0
  %2716 = vdwg.mxu0
  %v2717 = vadd.f32 %v1658, %v2463
  %v2718 = vadd.f32 %v1661, %v2466
  %v2719 = vadd.f32 %v1666, %v2471
  %v2720 = vadd.f32 %v1669, %v2474
  %v2721 = vadd.f32 %v1674, %v2479
  %v2722 = vadd.f32 %v1677, %v2482
  %v2723 = vadd.f32 %v1682, %v2487
  %v2724 = vadd.f32 %v1685, %v2490
  %v2725 = vadd.f32 %v1690, %v2495
  %v2726 = vadd.f32 %v1693, %v2498
  %v2727 = vadd.f32 %v1698, %v2503
  %v2728 = vadd.f32 %v1701, %v2506
  %v2729 = vadd.f32 %v1706, %v2511
  %v2730 = vadd.f32 %v1709, %v2514
  %v2731 = vadd.f32 %v1714, %v2519
  %v2732 = vadd.f32 %v1717, %v2522
  %v2733 = vadd.f32 %v1722, %v2527
  %v2734 = vadd.f32 %v1725, %v2530
  %v2735 = vadd.f32 %v1730, %v2535
  %v2736 = vadd.f32 %v1733, %v2538
  %v2737 = vadd.f32 %v1738, %v2543
  %v2738 = vadd.f32 %v1741, %v2546
  %v2739 = vadd.f32 %v1746, %v2551
  %v2740 = vadd.f32 %v1749, %v2554
  %v2741 = vadd.f32 %v1754, %v2559
  %v2742 = vadd.f32 %v1757, %v2562
  %v2743 = vadd.f32 %v1762, %v2567
  %v2744 = vadd.f32 %v1765, %v2570
  %v2745 = vadd.f32 %v1770, %v2575
  %v2746 = vadd.f32 %v1773, %v2578
  %v2747 = vadd.f32 %v1778, %v2583
  %v2748 = vadd.f32 %v1781, %v2586
  %v2749 = vadd.f32 %v1786, %v2591
  %v2750 = vadd.f32 %v1789, %v2594
  %v2751 = vadd.f32 %v1794, %v2599
  %v2752 = vadd.f32 %v1797, %v2602
  %v2753 = vadd.f32 %v1802, %v2607
  %v2754 = vadd.f32 %v1805, %v2610
  %v2755 = vadd.f32 %v1810, %v2615
  %v2756 = vadd.f32 %v1813, %v2618
  %v2757 = vadd.f32 %v1818, %v2623
  %v2758 = vadd.f32 %v1821, %v2626
  %v2759 = vadd.f32 %v1826, %v2631
  %v2760 = vadd.f32 %v1829, %v2634
  %v2761 = vadd.f32 %v1834, %v2639
  %v2762 = vadd.f32 %v1837, %v2642
  %v2763 = vadd.f32 %v1842, %v2647
  %v2764 = vadd.f32 %v1845, %v2650
  %v2765 = vadd.f32 %v1850, %v2655
  %v2766 = vadd.f32 %v1853, %v2658
  %v2767 = vadd.f32 %v1858, %v2663
  %v2768 = vadd.f32 %v1861, %v2666
  %v2769 = vadd.f32 %v1866, %v2671
  %v2770 = vadd.f32 %v1869, %v2674
  %v2771 = vadd.f32 %v1874, %v2679
  %v2772 = vadd.f32 %v1877, %v2682
  %v2773 = vadd.f32 %v1882, %v2687
  %v2774 = vadd.f32 %v1885, %v2690
  %v2775 = vadd.f32 %v1890, %v2695
  %v2776 = vadd.f32 %v1893, %v2698
  %v2777 = vadd.f32 %v1898, %v2703
  %v2778 = vadd.f32 %v1901, %v2706
  %v2779 = vadd.f32 %v1906, %v2711
  %v2780 = vadd.f32 %v1909, %v2714
  %s2781 = scalar_lea.vmem %s0, 12
  %v2782 = vld [vmem:[%s2781] sm:$0xf]
  %v2783 = vld [vmem:[%s2781 + $0x4] sm:$0xf]
  %v2784 = vld [vmem:[%s2781 + $0xc] sm:$0xf]
  %v2785 = vld [vmem:[%s2781 + $0x10] sm:$0xf]
  %v2786 = vld [vmem:[%s2781 + $0x18] sm:$0xf]
  %v2787 = vld [vmem:[%s2781 + $0x1c] sm:$0xf]
  %v2788 = vld [vmem:[%s2781 + $0x24] sm:$0xf]
  %v2789 = vld [vmem:[%s2781 + $0x28] sm:$0xf]
  %v2790 = vld [vmem:[%s2781 + $0x30] sm:$0xf]
  %v2791 = vld [vmem:[%s2781 + $0x34] sm:$0xf]
  %v2792 = vld [vmem:[%s2781 + $0x3c] sm:$0xf]
  %v2793 = vld [vmem:[%s2781 + $0x40] sm:$0xf]
  %v2794 = vld [vmem:[%s2781 + $0x48] sm:$0xf]
  %v2795 = vld [vmem:[%s2781 + $0x4c] sm:$0xf]
  %v2796 = vld [vmem:[%s2781 + $0x54] sm:$0xf]
  %v2797 = vld [vmem:[%s2781 + $0x58] sm:$0xf]
  %v2798 = vld [vmem:[%s2781 + $0x60] sm:$0xf]
  %v2799 = vld [vmem:[%s2781 + $0x64] sm:$0xf]
  %v2800 = vld [vmem:[%s2781 + $0x6c] sm:$0xf]
  %v2801 = vld [vmem:[%s2781 + $0x70] sm:$0xf]
  %v2802 = vld [vmem:[%s2781 + $0x78] sm:$0xf]
  %v2803 = vld [vmem:[%s2781 + $0x7c] sm:$0xf]
  %v2804 = vld [vmem:[%s2781 + $0x84] sm:$0xf]
  %v2805 = vld [vmem:[%s2781 + $0x88] sm:$0xf]
  %v2806 = vld [vmem:[%s2781 + $0x90] sm:$0xf]
  %v2807 = vld [vmem:[%s2781 + $0x94] sm:$0xf]
  %v2808 = vld [vmem:[%s2781 + $0x9c] sm:$0xf]
  %v2809 = vld [vmem:[%s2781 + $0xa0] sm:$0xf]
  %v2810 = vld [vmem:[%s2781 + $0xa8] sm:$0xf]
  %v2811 = vld [vmem:[%s2781 + $0xac] sm:$0xf]
  %v2812 = vld [vmem:[%s2781 + $0xb4] sm:$0xf]
  %v2813 = vld [vmem:[%s2781 + $0xb8] sm:$0xf]
  %v2814 = vld [vmem:[%s2781 + $0xd8] sm:$0xf]
  %v2815 = vld [vmem:[%s2781 + $0xdc] sm:$0xf]
  %v2816 = vld [vmem:[%s2781 + $0xe4] sm:$0xf]
  %v2817 = vld [vmem:[%s2781 + $0xe8] sm:$0xf]
  %v2818 = vld [vmem:[%s2781 + $0xf0] sm:$0xf]
  %v2819 = vld [vmem:[%s2781 + $0xf4] sm:$0xf]
  %v2820 = vld [vmem:[%s2781 + $0xfc] sm:$0xf]
  %v2821 = vld [vmem:[%s2781 + $0x100] sm:$0xf]
  %v2822 = vld [vmem:[%s2781 + $0x108] sm:$0xf]
  %v2823 = vld [vmem:[%s2781 + $0x10c] sm:$0xf]
  %v2824 = vld [vmem:[%s2781 + $0x114] sm:$0xf]
  %v2825 = vld [vmem:[%s2781 + $0x118] sm:$0xf]
  %v2826 = vld [vmem:[%s2781 + $0x120] sm:$0xf]
  %v2827 = vld [vmem:[%s2781 + $0x124] sm:$0xf]
  %v2828 = vld [vmem:[%s2781 + $0x12c] sm:$0xf]
  %v2829 = vld [vmem:[%s2781 + $0x130] sm:$0xf]
  %v2830 = vld [vmem:[%s2781 + $0x138] sm:$0xf]
  %v2831 = vld [vmem:[%s2781 + $0x13c] sm:$0xf]
  %v2832 = vld [vmem:[%s2781 + $0x144] sm:$0xf]
  %v2833 = vld [vmem:[%s2781 + $0x148] sm:$0xf]
  %v2834 = vld [vmem:[%s2781 + $0x150] sm:$0xf]
  %v2835 = vld [vmem:[%s2781 + $0x154] sm:$0xf]
  %v2836 = vld [vmem:[%s2781 + $0x15c] sm:$0xf]
  %v2837 = vld [vmem:[%s2781 + $0x160] sm:$0xf]
  %v2838 = vld [vmem:[%s2781 + $0x168] sm:$0xf]
  %v2839 = vld [vmem:[%s2781 + $0x16c] sm:$0xf]
  %v2840 = vld [vmem:[%s2781 + $0x174] sm:$0xf]
  %v2841 = vld [vmem:[%s2781 + $0x178] sm:$0xf]
  %v2842 = vld [vmem:[%s2781 + $0x180] sm:$0xf]
  %v2843 = vld [vmem:[%s2781 + $0x184] sm:$0xf]
  %v2844 = vld [vmem:[%s2781 + $0x18c] sm:$0xf]
  %v2845 = vld [vmem:[%s2781 + $0x190] sm:$0xf]
  %s2846 = scalar_lea.vmem %s1, 192
  %v2847 = vld [vmem:[%s2846] sm:$0xf]
  %v2848 = vld [vmem:[%s2846 + $0x4] sm:$0xf]
  %v2849 = vld [vmem:[%s2846 + $0x8] sm:$0xf]
  %v2850 = vld [vmem:[%s2846 + $0xc] sm:$0xf]
  %v2851 = vld [vmem:[%s2846 + $0x10] sm:$0xf]
  %v2852 = vld [vmem:[%s2846 + $0x14] sm:$0xf]
  %v2853 = vld [vmem:[%s2846 + $0x18] sm:$0xf]
  %v2854 = vld [vmem:[%s2846 + $0x1c] sm:$0xf]
  %v2855 = vld [vmem:[%s2846 + $0x20] sm:$0xf]
  %v2856 = vld [vmem:[%s2846 + $0x24] sm:$0xf]
  %v2857 = vld [vmem:[%s2846 + $0x28] sm:$0xf]
  %v2858 = vld [vmem:[%s2846 + $0x2c] sm:$0xf]
  %v2859 = vld [vmem:[%s2846 + $0x30] sm:$0xf]
  %v2860 = vld [vmem:[%s2846 + $0x34] sm:$0xf]
  %v2861 = vld [vmem:[%s2846 + $0x38] sm:$0xf]
  %v2862 = vld [vmem:[%s2846 + $0x3c] sm:$0xf]
  %v2927 = vunpack.c.l.b16 %v2782
  %v2928 = vunpack.c.l.b16 %v2783
  %v2929 = vunpack.c.l.b16 %v2784
  %v2930 = vunpack.c.l.b16 %v2785
  %v2931 = vunpack.c.l.b16 %v2786
  %v2932 = vunpack.c.l.b16 %v2787
  %v2933 = vunpack.c.l.b16 %v2788
  %v2934 = vunpack.c.l.b16 %v2789
  %v2935 = vunpack.c.l.b16 %v2790
  %v2936 = vunpack.c.l.b16 %v2791
  %v2937 = vunpack.c.l.b16 %v2792
  %v2938 = vunpack.c.l.b16 %v2793
  %v2939 = vunpack.c.l.b16 %v2794
  %v2940 = vunpack.c.l.b16 %v2795
  %v2941 = vunpack.c.l.b16 %v2796
  %v2942 = vunpack.c.l.b16 %v2797
  %v2943 = vunpack.c.l.b16 %v2798
  %v2944 = vunpack.c.l.b16 %v2799
  %v2945 = vunpack.c.l.b16 %v2800
  %v2946 = vunpack.c.l.b16 %v2801
  %v2947 = vunpack.c.l.b16 %v2802
  %v2948 = vunpack.c.l.b16 %v2803
  %v2949 = vunpack.c.l.b16 %v2804
  %v2950 = vunpack.c.l.b16 %v2805
  %v2951 = vunpack.c.l.b16 %v2806
  %v2952 = vunpack.c.l.b16 %v2807
  %v2953 = vunpack.c.l.b16 %v2808
  %v2954 = vunpack.c.l.b16 %v2809
  %v2955 = vunpack.c.l.b16 %v2810
  %v2956 = vunpack.c.l.b16 %v2811
  %v2957 = vunpack.c.l.b16 %v2812
  %v2958 = vunpack.c.l.b16 %v2813
  %v2959 = vunpack.c.l.b16 %v2814
  %v2960 = vunpack.c.l.b16 %v2815
  %v2961 = vunpack.c.l.b16 %v2816
  %v2962 = vunpack.c.l.b16 %v2817
  %v2963 = vunpack.c.l.b16 %v2818
  %v2964 = vunpack.c.l.b16 %v2819
  %v2965 = vunpack.c.l.b16 %v2820
  %v2966 = vunpack.c.l.b16 %v2821
  %v2967 = vunpack.c.l.b16 %v2822
  %v2968 = vunpack.c.l.b16 %v2823
  %v2969 = vunpack.c.l.b16 %v2824
  %v2970 = vunpack.c.l.b16 %v2825
  %v2971 = vunpack.c.l.b16 %v2826
  %v2972 = vunpack.c.l.b16 %v2827
  %v2973 = vunpack.c.l.b16 %v2828
  %v2974 = vunpack.c.l.b16 %v2829
  %v2975 = vunpack.c.l.b16 %v2830
  %v2976 = vunpack.c.l.b16 %v2831
  %v2977 = vunpack.c.l.b16 %v2832
  %v2978 = vunpack.c.l.b16 %v2833
  %v2979 = vunpack.c.l.b16 %v2834
  %v2980 = vunpack.c.l.b16 %v2835
  %v2981 = vunpack.c.l.b16 %v2836
  %v2982 = vunpack.c.l.b16 %v2837
  %v2983 = vunpack.c.l.b16 %v2838
  %v2984 = vunpack.c.l.b16 %v2839
  %v2985 = vunpack.c.l.b16 %v2840
  %v2986 = vunpack.c.l.b16 %v2841
  %v2987 = vunpack.c.l.b16 %v2842
  %v2988 = vunpack.c.l.b16 %v2843
  %v2989 = vunpack.c.l.b16 %v2844
  %v2990 = vunpack.c.l.b16 %v2845
  %v2991 = vpack.c.b16 %v2928, %v2927
  %v2992 = vpack.c.b16 %v2930, %v2929
  %v2993 = vpack.c.b16 %v2932, %v2931
  %v2994 = vpack.c.b16 %v2934, %v2933
  %v2995 = vpack.c.b16 %v2936, %v2935
  %v2996 = vpack.c.b16 %v2938, %v2937
  %v2997 = vpack.c.b16 %v2940, %v2939
  %v2998 = vpack.c.b16 %v2942, %v2941
  %v2999 = vpack.c.b16 %v2944, %v2943
  %v3000 = vpack.c.b16 %v2946, %v2945
  %v3001 = vpack.c.b16 %v2948, %v2947
  %v3002 = vpack.c.b16 %v2950, %v2949
  %v3003 = vpack.c.b16 %v2952, %v2951
  %v3004 = vpack.c.b16 %v2954, %v2953
  %v3005 = vpack.c.b16 %v2956, %v2955
  %v3006 = vpack.c.b16 %v2958, %v2957
  %v3007 = vpack.c.b16 %v2960, %v2959
  %v3008 = vpack.c.b16 %v2962, %v2961
  %v3009 = vpack.c.b16 %v2964, %v2963
  %v3010 = vpack.c.b16 %v2966, %v2965
  %v3011 = vpack.c.b16 %v2968, %v2967
  %v3012 = vpack.c.b16 %v2970, %v2969
  %v3013 = vpack.c.b16 %v2972, %v2971
  %v3014 = vpack.c.b16 %v2974, %v2973
  %v3015 = vpack.c.b16 %v2976, %v2975
  %v3016 = vpack.c.b16 %v2978, %v2977
  %v3017 = vpack.c.b16 %v2980, %v2979
  %v3018 = vpack.c.b16 %v2982, %v2981
  %v3019 = vpack.c.b16 %v2984, %v2983
  %v3020 = vpack.c.b16 %v2986, %v2985
  %v3021 = vpack.c.b16 %v2988, %v2987
  %v3022 = vpack.c.b16 %v2990, %v2989
  %v3071 = vunpack.c.l.b16 %v2847
  %v3072 = vunpack.c.l.b16 %v2848
  %v3073 = vunpack.c.l.b16 %v2849
  %v3074 = vunpack.c.l.b16 %v2850
  %v3075 = vunpack.c.l.b16 %v2851
  %v3076 = vunpack.c.l.b16 %v2852
  %v3077 = vunpack.c.l.b16 %v2853
  %v3078 = vunpack.c.l.b16 %v2854
  %v3079 = vunpack.c.l.b16 %v2855
  %v3080 = vunpack.c.l.b16 %v2856
  %v3081 = vunpack.c.l.b16 %v2857
  %v3082 = vunpack.c.l.b16 %v2858
  %v3083 = vunpack.c.l.b16 %v2859
  %v3084 = vunpack.c.l.b16 %v2860
  %v3085 = vunpack.c.l.b16 %v2861
  %v3086 = vunpack.c.l.b16 %v2862
  %v3087 = vpack.c.b16 %v3072, %v3071
  %v3088 = vpack.c.b16 %v3074, %v3073
  %v3089 = vpack.c.b16 %v3076, %v3075
  %v3090 = vpack.c.b16 %v3078, %v3077
  %v3091 = vpack.c.b16 %v3080, %v3079
  %v3092 = vpack.c.b16 %v3082, %v3081
  %v3093 = vpack.c.b16 %v3084, %v3083
  %v3094 = vpack.c.b16 %v3086, %v3085
  %3103 = vmatprep.subr.bf16.mxu0 0
  %3104 = vmatpush1.bf16.msra.mxu0 %v3094
  %3105 = vmatprep.subr.bf16.mxu0 0
  %3106 = vmatpush1.bf16.msra.mxu0 %v3093
  %3107 = vmatprep.subr.bf16.mxu0 0
  %3108 = vmatpush1.bf16.msra.mxu0 %v3092
  %3109 = vmatprep.subr.bf16.mxu0 0
  %3110 = vmatpush1.bf16.msra.mxu0 %v3091
  %3111 = vmatprep.subr.bf16.mxu0 0
  %3112 = vmatpush1.bf16.msra.mxu0 %v3090
  %3113 = vmatprep.subr.bf16.mxu0 0
  %3114 = vmatpush1.bf16.msra.mxu0 %v3089
  %3115 = vmatprep.subr.bf16.mxu0 0
  %3116 = vmatpush1.bf16.msra.mxu0 %v3088
  %3117 = vmatprep.subr.bf16.mxu0 0
  %3118 = vmatpush1.bf16.msra.mxu0 %v3087
  %3119 = vmatprep.subr.bf16.mxu0 0
  %3120 = vmatpush2.bf16.msra.mxu0 0
  %3121 = vmatprep.subr.bf16.mxu0 0
  %3122 = vmatpush2.bf16.msra.mxu0 0
  %3123 = vmatprep.subr.bf16.mxu0 0
  %3124 = vmatpush2.bf16.msra.mxu0 0
  %3125 = vmatprep.subr.bf16.mxu0 0
  %3126 = vmatpush2.bf16.msra.mxu0 0
  %3127 = vmatprep.subr.bf16.mxu0 0
  %3128 = vmatpush2.bf16.msra.mxu0 0
  %3129 = vmatprep.subr.bf16.mxu0 0
  %3130 = vmatpush2.bf16.msra.mxu0 0
  %3131 = vmatprep.subr.bf16.mxu0 0
  %3132 = vmatpush2.bf16.msra.mxu0 0
  %3133 = vmatprep.subr.bf16.mxu0 0
  %3134 = vmatpush2.bf16.msra.mxu0 0
  %3135 = vmatprep.mubr.bf16.mxu0 0
  %3136 = vmatmul.mubr.bf16.gmra.mxu0 %v2991
  %v3137 = vpop.f32.mrf.mxu0
  %v3138 = vadd.f32 0.0, %v3137
  %v3139 = vpop.f32.mrf.mxu0
  %v3140 = vpop.f32.mrf.mxu0
  %v3141 = vadd.f32 0.0, %v3140
  %v3142 = vpop.f32.mrf.mxu0
  %3143 = vmatprep.mubr.bf16.mxu0 0
  %3144 = vmatmul.mubr.bf16.gmra.mxu0 %v2992
  %v3145 = vpop.f32.mrf.mxu0
  %v3146 = vadd.f32 0.0, %v3145
  %v3147 = vpop.f32.mrf.mxu0
  %v3148 = vpop.f32.mrf.mxu0
  %v3149 = vadd.f32 0.0, %v3148
  %v3150 = vpop.f32.mrf.mxu0
  %3151 = vmatprep.mubr.bf16.mxu0 0
  %3152 = vmatmul.mubr.bf16.gmra.mxu0 %v2993
  %v3153 = vpop.f32.mrf.mxu0
  %v3154 = vadd.f32 0.0, %v3153
  %v3155 = vpop.f32.mrf.mxu0
  %v3156 = vpop.f32.mrf.mxu0
  %v3157 = vadd.f32 0.0, %v3156
  %v3158 = vpop.f32.mrf.mxu0
  %3159 = vmatprep.mubr.bf16.mxu0 0
  %3160 = vmatmul.mubr.bf16.gmra.mxu0 %v2994
  %v3161 = vpop.f32.mrf.mxu0
  %v3162 = vadd.f32 0.0, %v3161
  %v3163 = vpop.f32.mrf.mxu0
  %v3164 = vpop.f32.mrf.mxu0
  %v3165 = vadd.f32 0.0, %v3164
  %v3166 = vpop.f32.mrf.mxu0
  %3167 = vmatprep.mubr.bf16.mxu0 0
  %3168 = vmatmul.mubr.bf16.gmra.mxu0 %v2995
  %v3169 = vpop.f32.mrf.mxu0
  %v3170 = vadd.f32 0.0, %v3169
  %v3171 = vpop.f32.mrf.mxu0
  %v3172 = vpop.f32.mrf.mxu0
  %v3173 = vadd.f32 0.0, %v3172
  %v3174 = vpop.f32.mrf.mxu0
  %3175 = vmatprep.mubr.bf16.mxu0 0
  %3176 = vmatmul.mubr.bf16.gmra.mxu0 %v2996
  %v3177 = vpop.f32.mrf.mxu0
  %v3178 = vadd.f32 0.0, %v3177
  %v3179 = vpop.f32.mrf.mxu0
  %v3180 = vpop.f32.mrf.mxu0
  %v3181 = vadd.f32 0.0, %v3180
  %v3182 = vpop.f32.mrf.mxu0
  %3183 = vmatprep.mubr.bf16.mxu0 0
  %3184 = vmatmul.mubr.bf16.gmra.mxu0 %v2997
  %v3185 = vpop.f32.mrf.mxu0
  %v3186 = vadd.f32 0.0, %v3185
  %v3187 = vpop.f32.mrf.mxu0
  %v3188 = vpop.f32.mrf.mxu0
  %v3189 = vadd.f32 0.0, %v3188
  %v3190 = vpop.f32.mrf.mxu0
  %3191 = vmatprep.mubr.bf16.mxu0 0
  %3192 = vmatmul.mubr.bf16.gmra.mxu0 %v2998
  %v3193 = vpop.f32.mrf.mxu0
  %v3194 = vadd.f32 0.0, %v3193
  %v3195 = vpop.f32.mrf.mxu0
  %v3196 = vpop.f32.mrf.mxu0
  %v3197 = vadd.f32 0.0, %v3196
  %v3198 = vpop.f32.mrf.mxu0
  %3199 = vmatprep.mubr.bf16.mxu0 0
  %3200 = vmatmul.mubr.bf16.gmra.mxu0 %v2999
  %v3201 = vpop.f32.mrf.mxu0
  %v3202 = vadd.f32 0.0, %v3201
  %v3203 = vpop.f32.mrf.mxu0
  %v3204 = vpop.f32.mrf.mxu0
  %v3205 = vadd.f32 0.0, %v3204
  %v3206 = vpop.f32.mrf.mxu0
  %3207 = vmatprep.mubr.bf16.mxu0 0
  %3208 = vmatmul.mubr.bf16.gmra.mxu0 %v3000
  %v3209 = vpop.f32.mrf.mxu0
  %v3210 = vadd.f32 0.0, %v3209
  %v3211 = vpop.f32.mrf.mxu0
  %v3212 = vpop.f32.mrf.mxu0
  %v3213 = vadd.f32 0.0, %v3212
  %v3214 = vpop.f32.mrf.mxu0
  %3215 = vmatprep.mubr.bf16.mxu0 0
  %3216 = vmatmul.mubr.bf16.gmra.mxu0 %v3001
  %v3217 = vpop.f32.mrf.mxu0
  %v3218 = vadd.f32 0.0, %v3217
  %v3219 = vpop.f32.mrf.mxu0
  %v3220 = vpop.f32.mrf.mxu0
  %v3221 = vadd.f32 0.0, %v3220
  %v3222 = vpop.f32.mrf.mxu0
  %3223 = vmatprep.mubr.bf16.mxu0 0
  %3224 = vmatmul.mubr.bf16.gmra.mxu0 %v3002
  %v3225 = vpop.f32.mrf.mxu0
  %v3226 = vadd.f32 0.0, %v3225
  %v3227 = vpop.f32.mrf.mxu0
  %v3228 = vpop.f32.mrf.mxu0
  %v3229 = vadd.f32 0.0, %v3228
  %v3230 = vpop.f32.mrf.mxu0
  %3231 = vmatprep.mubr.bf16.mxu0 0
  %3232 = vmatmul.mubr.bf16.gmra.mxu0 %v3003
  %v3233 = vpop.f32.mrf.mxu0
  %v3234 = vadd.f32 0.0, %v3233
  %v3235 = vpop.f32.mrf.mxu0
  %v3236 = vpop.f32.mrf.mxu0
  %v3237 = vadd.f32 0.0, %v3236
  %v3238 = vpop.f32.mrf.mxu0
  %3239 = vmatprep.mubr.bf16.mxu0 0
  %3240 = vmatmul.mubr.bf16.gmra.mxu0 %v3004
  %v3241 = vpop.f32.mrf.mxu0
  %v3242 = vadd.f32 0.0, %v3241
  %v3243 = vpop.f32.mrf.mxu0
  %v3244 = vpop.f32.mrf.mxu0
  %v3245 = vadd.f32 0.0, %v3244
  %v3246 = vpop.f32.mrf.mxu0
  %3247 = vmatprep.mubr.bf16.mxu0 0
  %3248 = vmatmul.mubr.bf16.gmra.mxu0 %v3005
  %v3249 = vpop.f32.mrf.mxu0
  %v3250 = vadd.f32 0.0, %v3249
  %v3251 = vpop.f32.mrf.mxu0
  %v3252 = vpop.f32.mrf.mxu0
  %v3253 = vadd.f32 0.0, %v3252
  %v3254 = vpop.f32.mrf.mxu0
  %3255 = vmatprep.mubr.bf16.mxu0 0
  %3256 = vmatmul.mubr.bf16.gmra.mxu0 %v3006
  %v3257 = vpop.f32.mrf.mxu0
  %v3258 = vadd.f32 0.0, %v3257
  %v3259 = vpop.f32.mrf.mxu0
  %v3260 = vpop.f32.mrf.mxu0
  %v3261 = vadd.f32 0.0, %v3260
  %v3262 = vpop.f32.mrf.mxu0
  %3263 = vmatprep.mubr.bf16.mxu0 0
  %3264 = vmatmul.mubr.bf16.gmra.mxu0 %v3007
  %v3265 = vpop.f32.mrf.mxu0
  %v3266 = vadd.f32 0.0, %v3265
  %v3267 = vpop.f32.mrf.mxu0
  %v3268 = vpop.f32.mrf.mxu0
  %v3269 = vadd.f32 0.0, %v3268
  %v3270 = vpop.f32.mrf.mxu0
  %3271 = vmatprep.mubr.bf16.mxu0 0
  %3272 = vmatmul.mubr.bf16.gmra.mxu0 %v3008
  %v3273 = vpop.f32.mrf.mxu0
  %v3274 = vadd.f32 0.0, %v3273
  %v3275 = vpop.f32.mrf.mxu0
  %v3276 = vpop.f32.mrf.mxu0
  %v3277 = vadd.f32 0.0, %v3276
  %v3278 = vpop.f32.mrf.mxu0
  %3279 = vmatprep.mubr.bf16.mxu0 0
  %3280 = vmatmul.mubr.bf16.gmra.mxu0 %v3009
  %v3281 = vpop.f32.mrf.mxu0
  %v3282 = vadd.f32 0.0, %v3281
  %v3283 = vpop.f32.mrf.mxu0
  %v3284 = vpop.f32.mrf.mxu0
  %v3285 = vadd.f32 0.0, %v3284
  %v3286 = vpop.f32.mrf.mxu0
  %3287 = vmatprep.mubr.bf16.mxu0 0
  %3288 = vmatmul.mubr.bf16.gmra.mxu0 %v3010
  %v3289 = vpop.f32.mrf.mxu0
  %v3290 = vadd.f32 0.0, %v3289
  %v3291 = vpop.f32.mrf.mxu0
  %v3292 = vpop.f32.mrf.mxu0
  %v3293 = vadd.f32 0.0, %v3292
  %v3294 = vpop.f32.mrf.mxu0
  %3295 = vmatprep.mubr.bf16.mxu0 0
  %3296 = vmatmul.mubr.bf16.gmra.mxu0 %v3011
  %v3297 = vpop.f32.mrf.mxu0
  %v3298 = vadd.f32 0.0, %v3297
  %v3299 = vpop.f32.mrf.mxu0
  %v3300 = vpop.f32.mrf.mxu0
  %v3301 = vadd.f32 0.0, %v3300
  %v3302 = vpop.f32.mrf.mxu0
  %3303 = vmatprep.mubr.bf16.mxu0 0
  %3304 = vmatmul.mubr.bf16.gmra.mxu0 %v3012
  %v3305 = vpop.f32.mrf.mxu0
  %v3306 = vadd.f32 0.0, %v3305
  %v3307 = vpop.f32.mrf.mxu0
  %v3308 = vpop.f32.mrf.mxu0
  %v3309 = vadd.f32 0.0, %v3308
  %v3310 = vpop.f32.mrf.mxu0
  %3311 = vmatprep.mubr.bf16.mxu0 0
  %3312 = vmatmul.mubr.bf16.gmra.mxu0 %v3013
  %v3313 = vpop.f32.mrf.mxu0
  %v3314 = vadd.f32 0.0, %v3313
  %v3315 = vpop.f32.mrf.mxu0
  %v3316 = vpop.f32.mrf.mxu0
  %v3317 = vadd.f32 0.0, %v3316
  %v3318 = vpop.f32.mrf.mxu0
  %3319 = vmatprep.mubr.bf16.mxu0 0
  %3320 = vmatmul.mubr.bf16.gmra.mxu0 %v3014
  %v3321 = vpop.f32.mrf.mxu0
  %v3322 = vadd.f32 0.0, %v3321
  %v3323 = vpop.f32.mrf.mxu0
  %v3324 = vpop.f32.mrf.mxu0
  %v3325 = vadd.f32 0.0, %v3324
  %v3326 = vpop.f32.mrf.mxu0
  %3327 = vmatprep.mubr.bf16.mxu0 0
  %3328 = vmatmul.mubr.bf16.gmra.mxu0 %v3015
  %v3329 = vpop.f32.mrf.mxu0
  %v3330 = vadd.f32 0.0, %v3329
  %v3331 = vpop.f32.mrf.mxu0
  %v3332 = vpop.f32.mrf.mxu0
  %v3333 = vadd.f32 0.0, %v3332
  %v3334 = vpop.f32.mrf.mxu0
  %3335 = vmatprep.mubr.bf16.mxu0 0
  %3336 = vmatmul.mubr.bf16.gmra.mxu0 %v3016
  %v3337 = vpop.f32.mrf.mxu0
  %v3338 = vadd.f32 0.0, %v3337
  %v3339 = vpop.f32.mrf.mxu0
  %v3340 = vpop.f32.mrf.mxu0
  %v3341 = vadd.f32 0.0, %v3340
  %v3342 = vpop.f32.mrf.mxu0
  %3343 = vmatprep.mubr.bf16.mxu0 0
  %3344 = vmatmul.mubr.bf16.gmra.mxu0 %v3017
  %v3345 = vpop.f32.mrf.mxu0
  %v3346 = vadd.f32 0.0, %v3345
  %v3347 = vpop.f32.mrf.mxu0
  %v3348 = vpop.f32.mrf.mxu0
  %v3349 = vadd.f32 0.0, %v3348
  %v3350 = vpop.f32.mrf.mxu0
  %3351 = vmatprep.mubr.bf16.mxu0 0
  %3352 = vmatmul.mubr.bf16.gmra.mxu0 %v3018
  %v3353 = vpop.f32.mrf.mxu0
  %v3354 = vadd.f32 0.0, %v3353
  %v3355 = vpop.f32.mrf.mxu0
  %v3356 = vpop.f32.mrf.mxu0
  %v3357 = vadd.f32 0.0, %v3356
  %v3358 = vpop.f32.mrf.mxu0
  %3359 = vmatprep.mubr.bf16.mxu0 0
  %3360 = vmatmul.mubr.bf16.gmra.mxu0 %v3019
  %v3361 = vpop.f32.mrf.mxu0
  %v3362 = vadd.f32 0.0, %v3361
  %v3363 = vpop.f32.mrf.mxu0
  %v3364 = vpop.f32.mrf.mxu0
  %v3365 = vadd.f32 0.0, %v3364
  %v3366 = vpop.f32.mrf.mxu0
  %3367 = vmatprep.mubr.bf16.mxu0 0
  %3368 = vmatmul.mubr.bf16.gmra.mxu0 %v3020
  %v3369 = vpop.f32.mrf.mxu0
  %v3370 = vadd.f32 0.0, %v3369
  %v3371 = vpop.f32.mrf.mxu0
  %v3372 = vpop.f32.mrf.mxu0
  %v3373 = vadd.f32 0.0, %v3372
  %v3374 = vpop.f32.mrf.mxu0
  %3375 = vmatprep.mubr.bf16.mxu0 0
  %3376 = vmatmul.mubr.bf16.gmra.mxu0 %v3021
  %v3377 = vpop.f32.mrf.mxu0
  %v3378 = vadd.f32 0.0, %v3377
  %v3379 = vpop.f32.mrf.mxu0
  %v3380 = vpop.f32.mrf.mxu0
  %v3381 = vadd.f32 0.0, %v3380
  %v3382 = vpop.f32.mrf.mxu0
  %3383 = vmatprep.mubr.bf16.mxu0 0
  %3384 = vmatmul.mubr.bf16.gmra.mxu0 %v3022
  %v3385 = vpop.f32.mrf.mxu0
  %v3386 = vadd.f32 0.0, %v3385
  %v3387 = vpop.f32.mrf.mxu0
  %v3388 = vpop.f32.mrf.mxu0
  %v3389 = vadd.f32 0.0, %v3388
  %v3390 = vpop.f32.mrf.mxu0
  %3391 = vdwg.mxu0
  %v3392 = vadd.f32 %v2717, %v3138
  %v3393 = vadd.f32 %v2718, %v3141
  %v3394 = vadd.f32 %v2719, %v3146
  %v3395 = vadd.f32 %v2720, %v3149
  %v3396 = vadd.f32 %v2721, %v3154
  %v3397 = vadd.f32 %v2722, %v3157
  %v3398 = vadd.f32 %v2723, %v3162
  %v3399 = vadd.f32 %v2724, %v3165
  %v3400 = vadd.f32 %v2725, %v3170
  %v3401 = vadd.f32 %v2726, %v3173
  %v3402 = vadd.f32 %v2727, %v3178
  %v3403 = vadd.f32 %v2728, %v3181
  %v3404 = vadd.f32 %v2729, %v3186
  %v3405 = vadd.f32 %v2730, %v3189
  %v3406 = vadd.f32 %v2731, %v3194
  %v3407 = vadd.f32 %v2732, %v3197
  %v3408 = vadd.f32 %v2733, %v3202
  %v3409 = vadd.f32 %v2734, %v3205
  %v3410 = vadd.f32 %v2735, %v3210
  %v3411 = vadd.f32 %v2736, %v3213
  %v3412 = vadd.f32 %v2737, %v3218
  %v3413 = vadd.f32 %v2738, %v3221
  %v3414 = vadd.f32 %v2739, %v3226
  %v3415 = vadd.f32 %v2740, %v3229
  %v3416 = vadd.f32 %v2741, %v3234
  %v3417 = vadd.f32 %v2742, %v3237
  %v3418 = vadd.f32 %v2743, %v3242
  %v3419 = vadd.f32 %v2744, %v3245
  %v3420 = vadd.f32 %v2745, %v3250
  %v3421 = vadd.f32 %v2746, %v3253
  %v3422 = vadd.f32 %v2747, %v3258
  %v3423 = vadd.f32 %v2748, %v3261
  %v3424 = vadd.f32 %v2749, %v3266
  %v3425 = vadd.f32 %v2750, %v3269
  %v3426 = vadd.f32 %v2751, %v3274
  %v3427 = vadd.f32 %v2752, %v3277
  %v3428 = vadd.f32 %v2753, %v3282
  %v3429 = vadd.f32 %v2754, %v3285
  %v3430 = vadd.f32 %v2755, %v3290
  %v3431 = vadd.f32 %v2756, %v3293
  %v3432 = vadd.f32 %v2757, %v3298
  %v3433 = vadd.f32 %v2758, %v3301
  %v3434 = vadd.f32 %v2759, %v3306
  %v3435 = vadd.f32 %v2760, %v3309
  %v3436 = vadd.f32 %v2761, %v3314
  %v3437 = vadd.f32 %v2762, %v3317
  %v3438 = vadd.f32 %v2763, %v3322
  %v3439 = vadd.f32 %v2764, %v3325
  %v3440 = vadd.f32 %v2765, %v3330
  %v3441 = vadd.f32 %v2766, %v3333
  %v3442 = vadd.f32 %v2767, %v3338
  %v3443 = vadd.f32 %v2768, %v3341
  %v3444 = vadd.f32 %v2769, %v3346
  %v3445 = vadd.f32 %v2770, %v3349
  %v3446 = vadd.f32 %v2771, %v3354
  %v3447 = vadd.f32 %v2772, %v3357
  %v3448 = vadd.f32 %v2773, %v3362
  %v3449 = vadd.f32 %v2774, %v3365
  %v3450 = vadd.f32 %v2775, %v3370
  %v3451 = vadd.f32 %v2776, %v3373
  %v3452 = vadd.f32 %v2777, %v3378
  %v3453 = vadd.f32 %v2778, %v3381
  %v3454 = vadd.f32 %v2779, %v3386
  %v3455 = vadd.f32 %v2780, %v3389
  %v3456 = vld [vmem:[%s2781] sm:$0xf]
  %v3457 = vld [vmem:[%s2781 + $0x4] sm:$0xf]
  %v3458 = vld [vmem:[%s2781 + $0x8] sm:$0x1]
  %v3459 = vld [vmem:[%s2781 + $0xc] sm:$0xf]
  %v3460 = vld [vmem:[%s2781 + $0x10] sm:$0xf]
  %v3461 = vld [vmem:[%s2781 + $0x14] sm:$0x1]
  %v3462 = vld [vmem:[%s2781 + $0x18] sm:$0xf]
  %v3463 = vld [vmem:[%s2781 + $0x1c] sm:$0xf]
  %v3464 = vld [vmem:[%s2781 + $0x20] sm:$0x1]
  %v3465 = vld [vmem:[%s2781 + $0x24] sm:$0xf]
  %v3466 = vld [vmem:[%s2781 + $0x28] sm:$0xf]
  %v3467 = vld [vmem:[%s2781 + $0x2c] sm:$0x1]
  %v3468 = vld [vmem:[%s2781 + $0x30] sm:$0xf]
  %v3469 = vld [vmem:[%s2781 + $0x34] sm:$0xf]
  %v3470 = vld [vmem:[%s2781 + $0x38] sm:$0x1]
  %v3471 = vld [vmem:[%s2781 + $0x3c] sm:$0xf]
  %v3472 = vld [vmem:[%s2781 + $0x40] sm:$0xf]
  %v3473 = vld [vmem:[%s2781 + $0x44] sm:$0x1]
  %v3474 = vld [vmem:[%s2781 + $0x48] sm:$0xf]
  %v3475 = vld [vmem:[%s2781 + $0x4c] sm:$0xf]
  %v3476 = vld [vmem:[%s2781 + $0x50] sm:$0x1]
  %v3477 = vld [vmem:[%s2781 + $0x54] sm:$0xf]
  %v3478 = vld [vmem:[%s2781 + $0x58] sm:$0xf]
  %v3479 = vld [vmem:[%s2781 + $0x5c] sm:$0x1]
  %v3480 = vld [vmem:[%s2781 + $0x60] sm:$0xf]
  %v3481 = vld [vmem:[%s2781 + $0x64] sm:$0xf]
  %v3482 = vld [vmem:[%s2781 + $0x68] sm:$0x1]
  %v3483 = vld [vmem:[%s2781 + $0x6c] sm:$0xf]
  %v3484 = vld [vmem:[%s2781 + $0x70] sm:$0xf]
  %v3485 = vld [vmem:[%s2781 + $0x74] sm:$0x1]
  %v3486 = vld [vmem:[%s2781 + $0x78] sm:$0xf]
  %v3487 = vld [vmem:[%s2781 + $0x7c] sm:$0xf]
  %v3488 = vld [vmem:[%s2781 + $0x80] sm:$0x1]
  %v3489 = vld [vmem:[%s2781 + $0x84] sm:$0xf]
  %v3490 = vld [vmem:[%s2781 + $0x88] sm:$0xf]
  %v3491 = vld [vmem:[%s2781 + $0x8c] sm:$0x1]
  %v3492 = vld [vmem:[%s2781 + $0x90] sm:$0xf]
  %v3493 = vld [vmem:[%s2781 + $0x94] sm:$0xf]
  %v3494 = vld [vmem:[%s2781 + $0x98] sm:$0x1]
  %v3495 = vld [vmem:[%s2781 + $0x9c] sm:$0xf]
  %v3496 = vld [vmem:[%s2781 + $0xa0] sm:$0xf]
  %v3497 = vld [vmem:[%s2781 + $0xa4] sm:$0x1]
  %v3498 = vld [vmem:[%s2781 + $0xa8] sm:$0xf]
  %v3499 = vld [vmem:[%s2781 + $0xac] sm:$0xf]
  %v3500 = vld [vmem:[%s2781 + $0xb0] sm:$0x1]
  %v3501 = vld [vmem:[%s2781 + $0xb4] sm:$0xf]
  %v3502 = vld [vmem:[%s2781 + $0xb8] sm:$0xf]
  %v3503 = vld [vmem:[%s2781 + $0xbc] sm:$0x1]
  %v3504 = vld [vmem:[%s2781 + $0xd8] sm:$0xf]
  %v3505 = vld [vmem:[%s2781 + $0xdc] sm:$0xf]
  %v3506 = vld [vmem:[%s2781 + $0xe0] sm:$0x1]
  %v3507 = vld [vmem:[%s2781 + $0xe4] sm:$0xf]
  %v3508 = vld [vmem:[%s2781 + $0xe8] sm:$0xf]
  %v3509 = vld [vmem:[%s2781 + $0xec] sm:$0x1]
  %v3510 = vld [vmem:[%s2781 + $0xf0] sm:$0xf]
  %v3511 = vld [vmem:[%s2781 + $0xf4] sm:$0xf]
  %v3512 = vld [vmem:[%s2781 + $0xf8] sm:$0x1]
  %v3513 = vld [vmem:[%s2781 + $0xfc] sm:$0xf]
  %v3514 = vld [vmem:[%s2781 + $0x100] sm:$0xf]
  %v3515 = vld [vmem:[%s2781 + $0x104] sm:$0x1]
  %v3516 = vld [vmem:[%s2781 + $0x108] sm:$0xf]
  %v3517 = vld [vmem:[%s2781 + $0x10c] sm:$0xf]
  %v3518 = vld [vmem:[%s2781 + $0x110] sm:$0x1]
  %v3519 = vld [vmem:[%s2781 + $0x114] sm:$0xf]
  %v3520 = vld [vmem:[%s2781 + $0x118] sm:$0xf]
  %v3521 = vld [vmem:[%s2781 + $0x11c] sm:$0x1]
  %v3522 = vld [vmem:[%s2781 + $0x120] sm:$0xf]
  %v3523 = vld [vmem:[%s2781 + $0x124] sm:$0xf]
  %v3524 = vld [vmem:[%s2781 + $0x128] sm:$0x1]
  %v3525 = vld [vmem:[%s2781 + $0x12c] sm:$0xf]
  %v3526 = vld [vmem:[%s2781 + $0x130] sm:$0xf]
  %v3527 = vld [vmem:[%s2781 + $0x134] sm:$0x1]
  %v3528 = vld [vmem:[%s2781 + $0x138] sm:$0xf]
  %v3529 = vld [vmem:[%s2781 + $0x13c] sm:$0xf]
  %v3530 = vld [vmem:[%s2781 + $0x140] sm:$0x1]
  %v3531 = vld [vmem:[%s2781 + $0x144] sm:$0xf]
  %v3532 = vld [vmem:[%s2781 + $0x148] sm:$0xf]
  %v3533 = vld [vmem:[%s2781 + $0x14c] sm:$0x1]
  %v3534 = vld [vmem:[%s2781 + $0x150] sm:$0xf]
  %v3535 = vld [vmem:[%s2781 + $0x154] sm:$0xf]
  %v3536 = vld [vmem:[%s2781 + $0x158] sm:$0x1]
  %v3537 = vld [vmem:[%s2781 + $0x15c] sm:$0xf]
  %v3538 = vld [vmem:[%s2781 + $0x160] sm:$0xf]
  %v3539 = vld [vmem:[%s2781 + $0x164] sm:$0x1]
  %v3540 = vld [vmem:[%s2781 + $0x168] sm:$0xf]
  %v3541 = vld [vmem:[%s2781 + $0x16c] sm:$0xf]
  %v3542 = vld [vmem:[%s2781 + $0x170] sm:$0x1]
  %v3543 = vld [vmem:[%s2781 + $0x174] sm:$0xf]
  %v3544 = vld [vmem:[%s2781 + $0x178] sm:$0xf]
  %v3545 = vld [vmem:[%s2781 + $0x17c] sm:$0x1]
  %v3546 = vld [vmem:[%s2781 + $0x180] sm:$0xf]
  %v3547 = vld [vmem:[%s2781 + $0x184] sm:$0xf]
  %v3548 = vld [vmem:[%s2781 + $0x188] sm:$0x1]
  %v3549 = vld [vmem:[%s2781 + $0x18c] sm:$0xf]
  %v3550 = vld [vmem:[%s2781 + $0x190] sm:$0xf]
  %v3551 = vld [vmem:[%s2781 + $0x194] sm:$0x1]
  %v3553 = vshrl.u32 %v3456, 16
  %v3555 = vrot.slane %v3553, 4
  %v3556 = vshll.u32 %v3456, 16
  %v3558 = vrot.slane %v3556, 5
  %v3559 = vor.u32 %v3555, %v3558
  %v3560 = vrot.slane %v3559, 4
  %v3562 = vshll.u32 %v3457, 16
  %v3564 = vrot.slane %v3562, 5
  %v3565 = vsel %vm132, %v3560, %v3564
  %v3566 = vshrl.u32 %v3457, 16
  %v3568 = vrot.slane %v3566, 4
  %v3569 = vor.u32 %v3568, %v3564
  %v3570 = vrot.slane %v3569, 4
  %v3572 = vshll.u32 %v3458, 16
  %v3574 = vrot.slane %v3572, 5
  %v3575 = vsel %vm132, %v3570, %v3574
  %v3577 = vshrl.u32 %v3459, 16
  %v3579 = vrot.slane %v3577, 4
  %v3580 = vshll.u32 %v3459, 16
  %v3582 = vrot.slane %v3580, 5
  %v3583 = vor.u32 %v3579, %v3582
  %v3584 = vrot.slane %v3583, 4
  %v3586 = vshll.u32 %v3460, 16
  %v3588 = vrot.slane %v3586, 5
  %v3589 = vsel %vm132, %v3584, %v3588
  %v3590 = vshrl.u32 %v3460, 16
  %v3592 = vrot.slane %v3590, 4
  %v3593 = vor.u32 %v3592, %v3588
  %v3594 = vrot.slane %v3593, 4
  %v3596 = vshll.u32 %v3461, 16
  %v3598 = vrot.slane %v3596, 5
  %v3599 = vsel %vm132, %v3594, %v3598
  %v3601 = vshrl.u32 %v3462, 16
  %v3603 = vrot.slane %v3601, 4
  %v3604 = vshll.u32 %v3462, 16
  %v3606 = vrot.slane %v3604, 5
  %v3607 = vor.u32 %v3603, %v3606
  %v3608 = vrot.slane %v3607, 4
  %v3610 = vshll.u32 %v3463, 16
  %v3612 = vrot.slane %v3610, 5
  %v3613 = vsel %vm132, %v3608, %v3612
  %v3614 = vshrl.u32 %v3463, 16
  %v3616 = vrot.slane %v3614, 4
  %v3617 = vor.u32 %v3616, %v3612
  %v3618 = vrot.slane %v3617, 4
  %v3620 = vshll.u32 %v3464, 16
  %v3622 = vrot.slane %v3620, 5
  %v3623 = vsel %vm132, %v3618, %v3622
  %v3625 = vshrl.u32 %v3465, 16
  %v3627 = vrot.slane %v3625, 4
  %v3628 = vshll.u32 %v3465, 16
  %v3630 = vrot.slane %v3628, 5
  %v3631 = vor.u32 %v3627, %v3630
  %v3632 = vrot.slane %v3631, 4
  %v3634 = vshll.u32 %v3466, 16
  %v3636 = vrot.slane %v3634, 5
  %v3637 = vsel %vm132, %v3632, %v3636
  %v3638 = vshrl.u32 %v3466, 16
  %v3640 = vrot.slane %v3638, 4
  %v3641 = vor.u32 %v3640, %v3636
  %v3642 = vrot.slane %v3641, 4
  %v3644 = vshll.u32 %v3467, 16
  %v3646 = vrot.slane %v3644, 5
  %v3647 = vsel %vm132, %v3642, %v3646
  %v3649 = vshrl.u32 %v3468, 16
  %v3651 = vrot.slane %v3649, 4
  %v3652 = vshll.u32 %v3468, 16
  %v3654 = vrot.slane %v3652, 5
  %v3655 = vor.u32 %v3651, %v3654
  %v3656 = vrot.slane %v3655, 4
  %v3658 = vshll.u32 %v3469, 16
  %v3660 = vrot.slane %v3658, 5
  %v3661 = vsel %vm132, %v3656, %v3660
  %v3662 = vshrl.u32 %v3469, 16
  %v3664 = vrot.slane %v3662, 4
  %v3665 = vor.u32 %v3664, %v3660
  %v3666 = vrot.slane %v3665, 4
  %v3668 = vshll.u32 %v3470, 16
  %v3670 = vrot.slane %v3668, 5
  %v3671 = vsel %vm132, %v3666, %v3670
  %v3673 = vshrl.u32 %v3471, 16
  %v3675 = vrot.slane %v3673, 4
  %v3676 = vshll.u32 %v3471, 16
  %v3678 = vrot.slane %v3676, 5
  %v3679 = vor.u32 %v3675, %v3678
  %v3680 = vrot.slane %v3679, 4
  %v3682 = vshll.u32 %v3472, 16
  %v3684 = vrot.slane %v3682, 5
  %v3685 = vsel %vm132, %v3680, %v3684
  %v3686 = vshrl.u32 %v3472, 16
  %v3688 = vrot.slane %v3686, 4
  %v3689 = vor.u32 %v3688, %v3684
  %v3690 = vrot.slane %v3689, 4
  %v3692 = vshll.u32 %v3473, 16
  %v3694 = vrot.slane %v3692, 5
  %v3695 = vsel %vm132, %v3690, %v3694
  %v3697 = vshrl.u32 %v3474, 16
  %v3699 = vrot.slane %v3697, 4
  %v3700 = vshll.u32 %v3474, 16
  %v3702 = vrot.slane %v3700, 5
  %v3703 = vor.u32 %v3699, %v3702
  %v3704 = vrot.slane %v3703, 4
  %v3706 = vshll.u32 %v3475, 16
  %v3708 = vrot.slane %v3706, 5
  %v3709 = vsel %vm132, %v3704, %v3708
  %v3710 = vshrl.u32 %v3475, 16
  %v3712 = vrot.slane %v3710, 4
  %v3713 = vor.u32 %v3712, %v3708
  %v3714 = vrot.slane %v3713, 4
  %v3716 = vshll.u32 %v3476, 16
  %v3718 = vrot.slane %v3716, 5
  %v3719 = vsel %vm132, %v3714, %v3718
  %v3721 = vshrl.u32 %v3477, 16
  %v3723 = vrot.slane %v3721, 4
  %v3724 = vshll.u32 %v3477, 16
  %v3726 = vrot.slane %v3724, 5
  %v3727 = vor.u32 %v3723, %v3726
  %v3728 = vrot.slane %v3727, 4
  %v3730 = vshll.u32 %v3478, 16
  %v3732 = vrot.slane %v3730, 5
  %v3733 = vsel %vm132, %v3728, %v3732
  %v3734 = vshrl.u32 %v3478, 16
  %v3736 = vrot.slane %v3734, 4
  %v3737 = vor.u32 %v3736, %v3732
  %v3738 = vrot.slane %v3737, 4
  %v3740 = vshll.u32 %v3479, 16
  %v3742 = vrot.slane %v3740, 5
  %v3743 = vsel %vm132, %v3738, %v3742
  %v3745 = vshrl.u32 %v3480, 16
  %v3747 = vrot.slane %v3745, 4
  %v3748 = vshll.u32 %v3480, 16
  %v3750 = vrot.slane %v3748, 5
  %v3751 = vor.u32 %v3747, %v3750
  %v3752 = vrot.slane %v3751, 4
  %v3754 = vshll.u32 %v3481, 16
  %v3756 = vrot.slane %v3754, 5
  %v3757 = vsel %vm132, %v3752, %v3756
  %v3758 = vshrl.u32 %v3481, 16
  %v3760 = vrot.slane %v3758, 4
  %v3761 = vor.u32 %v3760, %v3756
  %v3762 = vrot.slane %v3761, 4
  %v3764 = vshll.u32 %v3482, 16
  %v3766 = vrot.slane %v3764, 5
  %v3767 = vsel %vm132, %v3762, %v3766
  %v3769 = vshrl.u32 %v3483, 16
  %v3771 = vrot.slane %v3769, 4
  %v3772 = vshll.u32 %v3483, 16
  %v3774 = vrot.slane %v3772, 5
  %v3775 = vor.u32 %v3771, %v3774
  %v3776 = vrot.slane %v3775, 4
  %v3778 = vshll.u32 %v3484, 16
  %v3780 = vrot.slane %v3778, 5
  %v3781 = vsel %vm132, %v3776, %v3780
  %v3782 = vshrl.u32 %v3484, 16
  %v3784 = vrot.slane %v3782, 4
  %v3785 = vor.u32 %v3784, %v3780
  %v3786 = vrot.slane %v3785, 4
  %v3788 = vshll.u32 %v3485, 16
  %v3790 = vrot.slane %v3788, 5
  %v3791 = vsel %vm132, %v3786, %v3790
  %v3793 = vshrl.u32 %v3486, 16
  %v3795 = vrot.slane %v3793, 4
  %v3796 = vshll.u32 %v3486, 16
  %v3798 = vrot.slane %v3796, 5
  %v3799 = vor.u32 %v3795, %v3798
  %v3800 = vrot.slane %v3799, 4
  %v3802 = vshll.u32 %v3487, 16
  %v3804 = vrot.slane %v3802, 5
  %v3805 = vsel %vm132, %v3800, %v3804
  %v3806 = vshrl.u32 %v3487, 16
  %v3808 = vrot.slane %v3806, 4
  %v3809 = vor.u32 %v3808, %v3804
  %v3810 = vrot.slane %v3809, 4
  %v3812 = vshll.u32 %v3488, 16
  %v3814 = vrot.slane %v3812, 5
  %v3815 = vsel %vm132, %v3810, %v3814
  %v3817 = vshrl.u32 %v3489, 16
  %v3819 = vrot.slane %v3817, 4
  %v3820 = vshll.u32 %v3489, 16
  %v3822 = vrot.slane %v3820, 5
  %v3823 = vor.u32 %v3819, %v3822
  %v3824 = vrot.slane %v3823, 4
  %v3826 = vshll.u32 %v3490, 16
  %v3828 = vrot.slane %v3826, 5
  %v3829 = vsel %vm132, %v3824, %v3828
  %v3830 = vshrl.u32 %v3490, 16
  %v3832 = vrot.slane %v3830, 4
  %v3833 = vor.u32 %v3832, %v3828
  %v3834 = vrot.slane %v3833, 4
  %v3836 = vshll.u32 %v3491, 16
  %v3838 = vrot.slane %v3836, 5
  %v3839 = vsel %vm132, %v3834, %v3838
  %v3841 = vshrl.u32 %v3492, 16
  %v3843 = vrot.slane %v3841, 4
  %v3844 = vshll.u32 %v3492, 16
  %v3846 = vrot.slane %v3844, 5
  %v3847 = vor.u32 %v3843, %v3846
  %v3848 = vrot.slane %v3847, 4
  %v3850 = vshll.u32 %v3493, 16
  %v3852 = vrot.slane %v3850, 5
  %v3853 = vsel %vm132, %v3848, %v3852
  %v3854 = vshrl.u32 %v3493, 16
  %v3856 = vrot.slane %v3854, 4
  %v3857 = vor.u32 %v3856, %v3852
  %v3858 = vrot.slane %v3857, 4
  %v3860 = vshll.u32 %v3494, 16
  %v3862 = vrot.slane %v3860, 5
  %v3863 = vsel %vm132, %v3858, %v3862
  %v3865 = vshrl.u32 %v3495, 16
  %v3867 = vrot.slane %v3865, 4
  %v3868 = vshll.u32 %v3495, 16
  %v3870 = vrot.slane %v3868, 5
  %v3871 = vor.u32 %v3867, %v3870
  %v3872 = vrot.slane %v3871, 4
  %v3874 = vshll.u32 %v3496, 16
  %v3876 = vrot.slane %v3874, 5
  %v3877 = vsel %vm132, %v3872, %v3876
  %v3878 = vshrl.u32 %v3496, 16
  %v3880 = vrot.slane %v3878, 4
  %v3881 = vor.u32 %v3880, %v3876
  %v3882 = vrot.slane %v3881, 4
  %v3884 = vshll.u32 %v3497, 16
  %v3886 = vrot.slane %v3884, 5
  %v3887 = vsel %vm132, %v3882, %v3886
  %v3889 = vshrl.u32 %v3498, 16
  %v3891 = vrot.slane %v3889, 4
  %v3892 = vshll.u32 %v3498, 16
  %v3894 = vrot.slane %v3892, 5
  %v3895 = vor.u32 %v3891, %v3894
  %v3896 = vrot.slane %v3895, 4
  %v3898 = vshll.u32 %v3499, 16
  %v3900 = vrot.slane %v3898, 5
  %v3901 = vsel %vm132, %v3896, %v3900
  %v3902 = vshrl.u32 %v3499, 16
  %v3904 = vrot.slane %v3902, 4
  %v3905 = vor.u32 %v3904, %v3900
  %v3906 = vrot.slane %v3905, 4
  %v3908 = vshll.u32 %v3500, 16
  %v3910 = vrot.slane %v3908, 5
  %v3911 = vsel %vm132, %v3906, %v3910
  %v3913 = vshrl.u32 %v3501, 16
  %v3915 = vrot.slane %v3913, 4
  %v3916 = vshll.u32 %v3501, 16
  %v3918 = vrot.slane %v3916, 5
  %v3919 = vor.u32 %v3915, %v3918
  %v3920 = vrot.slane %v3919, 4
  %v3922 = vshll.u32 %v3502, 16
  %v3924 = vrot.slane %v3922, 5
  %v3925 = vsel %vm132, %v3920, %v3924
  %v3926 = vshrl.u32 %v3502, 16
  %v3928 = vrot.slane %v3926, 4
  %v3929 = vor.u32 %v3928, %v3924
  %v3930 = vrot.slane %v3929, 4
  %v3932 = vshll.u32 %v3503, 16
  %v3934 = vrot.slane %v3932, 5
  %v3935 = vsel %vm132, %v3930, %v3934
  %v3937 = vshrl.u32 %v3504, 16
  %v3939 = vrot.slane %v3937, 4
  %v3940 = vshll.u32 %v3504, 16
  %v3942 = vrot.slane %v3940, 5
  %v3943 = vor.u32 %v3939, %v3942
  %v3944 = vrot.slane %v3943, 4
  %v3946 = vshll.u32 %v3505, 16
  %v3948 = vrot.slane %v3946, 5
  %v3949 = vsel %vm132, %v3944, %v3948
  %v3950 = vshrl.u32 %v3505, 16
  %v3952 = vrot.slane %v3950, 4
  %v3953 = vor.u32 %v3952, %v3948
  %v3954 = vrot.slane %v3953, 4
  %v3956 = vshll.u32 %v3506, 16
  %v3958 = vrot.slane %v3956, 5
  %v3959 = vsel %vm132, %v3954, %v3958
  %v3961 = vshrl.u32 %v3507, 16
  %v3963 = vrot.slane %v3961, 4
  %v3964 = vshll.u32 %v3507, 16
  %v3966 = vrot.slane %v3964, 5
  %v3967 = vor.u32 %v3963, %v3966
  %v3968 = vrot.slane %v3967, 4
  %v3970 = vshll.u32 %v3508, 16
  %v3972 = vrot.slane %v3970, 5
  %v3973 = vsel %vm132, %v3968, %v3972
  %v3974 = vshrl.u32 %v3508, 16
  %v3976 = vrot.slane %v3974, 4
  %v3977 = vor.u32 %v3976, %v3972
  %v3978 = vrot.slane %v3977, 4
  %v3980 = vshll.u32 %v3509, 16
  %v3982 = vrot.slane %v3980, 5
  %v3983 = vsel %vm132, %v3978, %v3982
  %v3985 = vshrl.u32 %v3510, 16
  %v3987 = vrot.slane %v3985, 4
  %v3988 = vshll.u32 %v3510, 16
  %v3990 = vrot.slane %v3988, 5
  %v3991 = vor.u32 %v3987, %v3990
  %v3992 = vrot.slane %v3991, 4
  %v3994 = vshll.u32 %v3511, 16
  %v3996 = vrot.slane %v3994, 5
  %v3997 = vsel %vm132, %v3992, %v3996
  %v3998 = vshrl.u32 %v3511, 16
  %v4000 = vrot.slane %v3998, 4
  %v4001 = vor.u32 %v4000, %v3996
  %v4002 = vrot.slane %v4001, 4
  %v4004 = vshll.u32 %v3512, 16
  %v4006 = vrot.slane %v4004, 5
  %v4007 = vsel %vm132, %v4002, %v4006
  %v4009 = vshrl.u32 %v3513, 16
  %v4011 = vrot.slane %v4009, 4
  %v4012 = vshll.u32 %v3513, 16
  %v4014 = vrot.slane %v4012, 5
  %v4015 = vor.u32 %v4011, %v4014
  %v4016 = vrot.slane %v4015, 4
  %v4018 = vshll.u32 %v3514, 16
  %v4020 = vrot.slane %v4018, 5
  %v4021 = vsel %vm132, %v4016, %v4020
  %v4022 = vshrl.u32 %v3514, 16
  %v4024 = vrot.slane %v4022, 4
  %v4025 = vor.u32 %v4024, %v4020
  %v4026 = vrot.slane %v4025, 4
  %v4028 = vshll.u32 %v3515, 16
  %v4030 = vrot.slane %v4028, 5
  %v4031 = vsel %vm132, %v4026, %v4030
  %v4033 = vshrl.u32 %v3516, 16
  %v4035 = vrot.slane %v4033, 4
  %v4036 = vshll.u32 %v3516, 16
  %v4038 = vrot.slane %v4036, 5
  %v4039 = vor.u32 %v4035, %v4038
  %v4040 = vrot.slane %v4039, 4
  %v4042 = vshll.u32 %v3517, 16
  %v4044 = vrot.slane %v4042, 5
  %v4045 = vsel %vm132, %v4040, %v4044
  %v4046 = vshrl.u32 %v3517, 16
  %v4048 = vrot.slane %v4046, 4
  %v4049 = vor.u32 %v4048, %v4044
  %v4050 = vrot.slane %v4049, 4
  %v4052 = vshll.u32 %v3518, 16
  %v4054 = vrot.slane %v4052, 5
  %v4055 = vsel %vm132, %v4050, %v4054
  %v4057 = vshrl.u32 %v3519, 16
  %v4059 = vrot.slane %v4057, 4
  %v4060 = vshll.u32 %v3519, 16
  %v4062 = vrot.slane %v4060, 5
  %v4063 = vor.u32 %v4059, %v4062
  %v4064 = vrot.slane %v4063, 4
  %v4066 = vshll.u32 %v3520, 16
  %v4068 = vrot.slane %v4066, 5
  %v4069 = vsel %vm132, %v4064, %v4068
  %v4070 = vshrl.u32 %v3520, 16
  %v4072 = vrot.slane %v4070, 4
  %v4073 = vor.u32 %v4072, %v4068
  %v4074 = vrot.slane %v4073, 4
  %v4076 = vshll.u32 %v3521, 16
  %v4078 = vrot.slane %v4076, 5
  %v4079 = vsel %vm132, %v4074, %v4078
  %v4081 = vshrl.u32 %v3522, 16
  %v4083 = vrot.slane %v4081, 4
  %v4084 = vshll.u32 %v3522, 16
  %v4086 = vrot.slane %v4084, 5
  %v4087 = vor.u32 %v4083, %v4086
  %v4088 = vrot.slane %v4087, 4
  %v4090 = vshll.u32 %v3523, 16
  %v4092 = vrot.slane %v4090, 5
  %v4093 = vsel %vm132, %v4088, %v4092
  %v4094 = vshrl.u32 %v3523, 16
  %v4096 = vrot.slane %v4094, 4
  %v4097 = vor.u32 %v4096, %v4092
  %v4098 = vrot.slane %v4097, 4
  %v4100 = vshll.u32 %v3524, 16
  %v4102 = vrot.slane %v4100, 5
  %v4103 = vsel %vm132, %v4098, %v4102
  %v4105 = vshrl.u32 %v3525, 16
  %v4107 = vrot.slane %v4105, 4
  %v4108 = vshll.u32 %v3525, 16
  %v4110 = vrot.slane %v4108, 5
  %v4111 = vor.u32 %v4107, %v4110
  %v4112 = vrot.slane %v4111, 4
  %v4114 = vshll.u32 %v3526, 16
  %v4116 = vrot.slane %v4114, 5
  %v4117 = vsel %vm132, %v4112, %v4116
  %v4118 = vshrl.u32 %v3526, 16
  %v4120 = vrot.slane %v4118, 4
  %v4121 = vor.u32 %v4120, %v4116
  %v4122 = vrot.slane %v4121, 4
  %v4124 = vshll.u32 %v3527, 16
  %v4126 = vrot.slane %v4124, 5
  %v4127 = vsel %vm132, %v4122, %v4126
  %v4129 = vshrl.u32 %v3528, 16
  %v4131 = vrot.slane %v4129, 4
  %v4132 = vshll.u32 %v3528, 16
  %v4134 = vrot.slane %v4132, 5
  %v4135 = vor.u32 %v4131, %v4134
  %v4136 = vrot.slane %v4135, 4
  %v4138 = vshll.u32 %v3529, 16
  %v4140 = vrot.slane %v4138, 5
  %v4141 = vsel %vm132, %v4136, %v4140
  %v4142 = vshrl.u32 %v3529, 16
  %v4144 = vrot.slane %v4142, 4
  %v4145 = vor.u32 %v4144, %v4140
  %v4146 = vrot.slane %v4145, 4
  %v4148 = vshll.u32 %v3530, 16
  %v4150 = vrot.slane %v4148, 5
  %v4151 = vsel %vm132, %v4146, %v4150
  %v4153 = vshrl.u32 %v3531, 16
  %v4155 = vrot.slane %v4153, 4
  %v4156 = vshll.u32 %v3531, 16
  %v4158 = vrot.slane %v4156, 5
  %v4159 = vor.u32 %v4155, %v4158
  %v4160 = vrot.slane %v4159, 4
  %v4162 = vshll.u32 %v3532, 16
  %v4164 = vrot.slane %v4162, 5
  %v4165 = vsel %vm132, %v4160, %v4164
  %v4166 = vshrl.u32 %v3532, 16
  %v4168 = vrot.slane %v4166, 4
  %v4169 = vor.u32 %v4168, %v4164
  %v4170 = vrot.slane %v4169, 4
  %v4172 = vshll.u32 %v3533, 16
  %v4174 = vrot.slane %v4172, 5
  %v4175 = vsel %vm132, %v4170, %v4174
  %v4177 = vshrl.u32 %v3534, 16
  %v4179 = vrot.slane %v4177, 4
  %v4180 = vshll.u32 %v3534, 16
  %v4182 = vrot.slane %v4180, 5
  %v4183 = vor.u32 %v4179, %v4182
  %v4184 = vrot.slane %v4183, 4
  %v4186 = vshll.u32 %v3535, 16
  %v4188 = vrot.slane %v4186, 5
  %v4189 = vsel %vm132, %v4184, %v4188
  %v4190 = vshrl.u32 %v3535, 16
  %v4192 = vrot.slane %v4190, 4
  %v4193 = vor.u32 %v4192, %v4188
  %v4194 = vrot.slane %v4193, 4
  %v4196 = vshll.u32 %v3536, 16
  %v4198 = vrot.slane %v4196, 5
  %v4199 = vsel %vm132, %v4194, %v4198
  %v4201 = vshrl.u32 %v3537, 16
  %v4203 = vrot.slane %v4201, 4
  %v4204 = vshll.u32 %v3537, 16
  %v4206 = vrot.slane %v4204, 5
  %v4207 = vor.u32 %v4203, %v4206
  %v4208 = vrot.slane %v4207, 4
  %v4210 = vshll.u32 %v3538, 16
  %v4212 = vrot.slane %v4210, 5
  %v4213 = vsel %vm132, %v4208, %v4212
  %v4214 = vshrl.u32 %v3538, 16
  %v4216 = vrot.slane %v4214, 4
  %v4217 = vor.u32 %v4216, %v4212
  %v4218 = vrot.slane %v4217, 4
  %v4220 = vshll.u32 %v3539, 16
  %v4222 = vrot.slane %v4220, 5
  %v4223 = vsel %vm132, %v4218, %v4222
  %v4225 = vshrl.u32 %v3540, 16
  %v4227 = vrot.slane %v4225, 4
  %v4228 = vshll.u32 %v3540, 16
  %v4230 = vrot.slane %v4228, 5
  %v4231 = vor.u32 %v4227, %v4230
  %v4232 = vrot.slane %v4231, 4
  %v4234 = vshll.u32 %v3541, 16
  %v4236 = vrot.slane %v4234, 5
  %v4237 = vsel %vm132, %v4232, %v4236
  %v4238 = vshrl.u32 %v3541, 16
  %v4240 = vrot.slane %v4238, 4
  %v4241 = vor.u32 %v4240, %v4236
  %v4242 = vrot.slane %v4241, 4
  %v4244 = vshll.u32 %v3542, 16
  %v4246 = vrot.slane %v4244, 5
  %v4247 = vsel %vm132, %v4242, %v4246
  %v4249 = vshrl.u32 %v3543, 16
  %v4251 = vrot.slane %v4249, 4
  %v4252 = vshll.u32 %v3543, 16
  %v4254 = vrot.slane %v4252, 5
  %v4255 = vor.u32 %v4251, %v4254
  %v4256 = vrot.slane %v4255, 4
  %v4258 = vshll.u32 %v3544, 16
  %v4260 = vrot.slane %v4258, 5
  %v4261 = vsel %vm132, %v4256, %v4260
  %v4262 = vshrl.u32 %v3544, 16
  %v4264 = vrot.slane %v4262, 4
  %v4265 = vor.u32 %v4264, %v4260
  %v4266 = vrot.slane %v4265, 4
  %v4268 = vshll.u32 %v3545, 16
  %v4270 = vrot.slane %v4268, 5
  %v4271 = vsel %vm132, %v4266, %v4270
  %v4273 = vshrl.u32 %v3546, 16
  %v4275 = vrot.slane %v4273, 4
  %v4276 = vshll.u32 %v3546, 16
  %v4278 = vrot.slane %v4276, 5
  %v4279 = vor.u32 %v4275, %v4278
  %v4280 = vrot.slane %v4279, 4
  %v4282 = vshll.u32 %v3547, 16
  %v4284 = vrot.slane %v4282, 5
  %v4285 = vsel %vm132, %v4280, %v4284
  %v4286 = vshrl.u32 %v3547, 16
  %v4288 = vrot.slane %v4286, 4
  %v4289 = vor.u32 %v4288, %v4284
  %v4290 = vrot.slane %v4289, 4
  %v4292 = vshll.u32 %v3548, 16
  %v4294 = vrot.slane %v4292, 5
  %v4295 = vsel %vm132, %v4290, %v4294
  %v4297 = vshrl.u32 %v3549, 16
  %v4299 = vrot.slane %v4297, 4
  %v4300 = vshll.u32 %v3549, 16
  %v4302 = vrot.slane %v4300, 5
  %v4303 = vor.u32 %v4299, %v4302
  %v4304 = vrot.slane %v4303, 4
  %v4306 = vshll.u32 %v3550, 16
  %v4308 = vrot.slane %v4306, 5
  %v4309 = vsel %vm132, %v4304, %v4308
  %v4310 = vshrl.u32 %v3550, 16
  %v4312 = vrot.slane %v4310, 4
  %v4313 = vor.u32 %v4312, %v4308
  %v4314 = vrot.slane %v4313, 4
  %v4316 = vshll.u32 %v3551, 16
  %v4318 = vrot.slane %v4316, 5
  %v4319 = vsel %vm132, %v4314, %v4318
  %s4320 = scalar_lea.vmem %s1, 256
  %v4321 = vld [vmem:[%s4320] sm:$0xf]
  %v4322 = vld [vmem:[%s4320 + $0x4] sm:$0xf]
  %v4323 = vld [vmem:[%s4320 + $0x8] sm:$0xf]
  %v4324 = vld [vmem:[%s4320 + $0xc] sm:$0xf]
  %v4325 = vld [vmem:[%s4320 + $0x10] sm:$0xf]
  %v4326 = vld [vmem:[%s4320 + $0x14] sm:$0xf]
  %v4327 = vld [vmem:[%s4320 + $0x18] sm:$0xf]
  %v4328 = vld [vmem:[%s4320 + $0x1c] sm:$0xf]
  %v4329 = vld [vmem:[%s4320 + $0x20] sm:$0xf]
  %v4330 = vld [vmem:[%s4320 + $0x24] sm:$0xf]
  %v4331 = vld [vmem:[%s4320 + $0x28] sm:$0xf]
  %v4332 = vld [vmem:[%s4320 + $0x2c] sm:$0xf]
  %v4333 = vld [vmem:[%s4320 + $0x30] sm:$0xf]
  %v4334 = vld [vmem:[%s4320 + $0x34] sm:$0xf]
  %v4335 = vld [vmem:[%s4320 + $0x38] sm:$0xf]
  %v4336 = vld [vmem:[%s4320 + $0x3c] sm:$0xf]
  %v4337 = vunpack.c.l.b16 %v3565
  %v4338 = vunpack.c.l.b16 %v3575
  %v4339 = vunpack.c.l.b16 %v3589
  %v4340 = vunpack.c.l.b16 %v3599
  %v4341 = vunpack.c.l.b16 %v3613
  %v4342 = vunpack.c.l.b16 %v3623
  %v4343 = vunpack.c.l.b16 %v3637
  %v4344 = vunpack.c.l.b16 %v3647
  %v4345 = vunpack.c.l.b16 %v3661
  %v4346 = vunpack.c.l.b16 %v3671
  %v4347 = vunpack.c.l.b16 %v3685
  %v4348 = vunpack.c.l.b16 %v3695
  %v4349 = vunpack.c.l.b16 %v3709
  %v4350 = vunpack.c.l.b16 %v3719
  %v4351 = vunpack.c.l.b16 %v3733
  %v4352 = vunpack.c.l.b16 %v3743
  %v4353 = vunpack.c.l.b16 %v3757
  %v4354 = vunpack.c.l.b16 %v3767
  %v4355 = vunpack.c.l.b16 %v3781
  %v4356 = vunpack.c.l.b16 %v3791
  %v4357 = vunpack.c.l.b16 %v3805
  %v4358 = vunpack.c.l.b16 %v3815
  %v4359 = vunpack.c.l.b16 %v3829
  %v4360 = vunpack.c.l.b16 %v3839
  %v4361 = vunpack.c.l.b16 %v3853
  %v4362 = vunpack.c.l.b16 %v3863
  %v4363 = vunpack.c.l.b16 %v3877
  %v4364 = vunpack.c.l.b16 %v3887
  %v4365 = vunpack.c.l.b16 %v3901
  %v4366 = vunpack.c.l.b16 %v3911
  %v4367 = vunpack.c.l.b16 %v3925
  %v4368 = vunpack.c.l.b16 %v3935
  %v4369 = vunpack.c.l.b16 %v3949
  %v4370 = vunpack.c.l.b16 %v3959
  %v4371 = vunpack.c.l.b16 %v3973
  %v4372 = vunpack.c.l.b16 %v3983
  %v4373 = vunpack.c.l.b16 %v3997
  %v4374 = vunpack.c.l.b16 %v4007
  %v4375 = vunpack.c.l.b16 %v4021
  %v4376 = vunpack.c.l.b16 %v4031
  %v4377 = vunpack.c.l.b16 %v4045
  %v4378 = vunpack.c.l.b16 %v4055
  %v4379 = vunpack.c.l.b16 %v4069
  %v4380 = vunpack.c.l.b16 %v4079
  %v4381 = vunpack.c.l.b16 %v4093
  %v4382 = vunpack.c.l.b16 %v4103
  %v4383 = vunpack.c.l.b16 %v4117
  %v4384 = vunpack.c.l.b16 %v4127
  %v4385 = vunpack.c.l.b16 %v4141
  %v4386 = vunpack.c.l.b16 %v4151
  %v4387 = vunpack.c.l.b16 %v4165
  %v4388 = vunpack.c.l.b16 %v4175
  %v4389 = vunpack.c.l.b16 %v4189
  %v4390 = vunpack.c.l.b16 %v4199
  %v4391 = vunpack.c.l.b16 %v4213
  %v4392 = vunpack.c.l.b16 %v4223
  %v4393 = vunpack.c.l.b16 %v4237
  %v4394 = vunpack.c.l.b16 %v4247
  %v4395 = vunpack.c.l.b16 %v4261
  %v4396 = vunpack.c.l.b16 %v4271
  %v4397 = vunpack.c.l.b16 %v4285
  %v4398 = vunpack.c.l.b16 %v4295
  %v4399 = vunpack.c.l.b16 %v4309
  %v4400 = vunpack.c.l.b16 %v4319
  %v4401 = vpack.c.b16 %v4338, %v4337
  %v4402 = vpack.c.b16 %v4340, %v4339
  %v4403 = vpack.c.b16 %v4342, %v4341
  %v4404 = vpack.c.b16 %v4344, %v4343
  %v4405 = vpack.c.b16 %v4346, %v4345
  %v4406 = vpack.c.b16 %v4348, %v4347
  %v4407 = vpack.c.b16 %v4350, %v4349
  %v4408 = vpack.c.b16 %v4352, %v4351
  %v4409 = vpack.c.b16 %v4354, %v4353
  %v4410 = vpack.c.b16 %v4356, %v4355
  %v4411 = vpack.c.b16 %v4358, %v4357
  %v4412 = vpack.c.b16 %v4360, %v4359
  %v4413 = vpack.c.b16 %v4362, %v4361
  %v4414 = vpack.c.b16 %v4364, %v4363
  %v4415 = vpack.c.b16 %v4366, %v4365
  %v4416 = vpack.c.b16 %v4368, %v4367
  %v4417 = vpack.c.b16 %v4370, %v4369
  %v4418 = vpack.c.b16 %v4372, %v4371
  %v4419 = vpack.c.b16 %v4374, %v4373
  %v4420 = vpack.c.b16 %v4376, %v4375
  %v4421 = vpack.c.b16 %v4378, %v4377
  %v4422 = vpack.c.b16 %v4380, %v4379
  %v4423 = vpack.c.b16 %v4382, %v4381
  %v4424 = vpack.c.b16 %v4384, %v4383
  %v4425 = vpack.c.b16 %v4386, %v4385
  %v4426 = vpack.c.b16 %v4388, %v4387
  %v4427 = vpack.c.b16 %v4390, %v4389
  %v4428 = vpack.c.b16 %v4392, %v4391
  %v4429 = vpack.c.b16 %v4394, %v4393
  %v4430 = vpack.c.b16 %v4396, %v4395
  %v4431 = vpack.c.b16 %v4398, %v4397
  %v4432 = vpack.c.b16 %v4400, %v4399
  %v4481 = vunpack.c.l.b16 %v4321
  %v4482 = vunpack.c.l.b16 %v4322
  %v4483 = vunpack.c.l.b16 %v4323
  %v4484 = vunpack.c.l.b16 %v4324
  %v4485 = vunpack.c.l.b16 %v4325
  %v4486 = vunpack.c.l.b16 %v4326
  %v4487 = vunpack.c.l.b16 %v4327
  %v4488 = vunpack.c.l.b16 %v4328
  %v4489 = vunpack.c.l.b16 %v4329
  %v4490 = vunpack.c.l.b16 %v4330
  %v4491 = vunpack.c.l.b16 %v4331
  %v4492 = vunpack.c.l.b16 %v4332
  %v4493 = vunpack.c.l.b16 %v4333
  %v4494 = vunpack.c.l.b16 %v4334
  %v4495 = vunpack.c.l.b16 %v4335
  %v4496 = vunpack.c.l.b16 %v4336
  %v4497 = vpack.c.b16 %v4482, %v4481
  %v4498 = vpack.c.b16 %v4484, %v4483
  %v4499 = vpack.c.b16 %v4486, %v4485
  %v4500 = vpack.c.b16 %v4488, %v4487
  %v4501 = vpack.c.b16 %v4490, %v4489
  %v4502 = vpack.c.b16 %v4492, %v4491
  %v4503 = vpack.c.b16 %v4494, %v4493
  %v4504 = vpack.c.b16 %v4496, %v4495
  %4513 = vmatprep.subr.bf16.mxu0 0
  %4514 = vmatpush1.bf16.msra.mxu0 %v4504
  %4515 = vmatprep.subr.bf16.mxu0 0
  %4516 = vmatpush1.bf16.msra.mxu0 %v4503
  %4517 = vmatprep.subr.bf16.mxu0 0
  %4518 = vmatpush1.bf16.msra.mxu0 %v4502
  %4519 = vmatprep.subr.bf16.mxu0 0
  %4520 = vmatpush1.bf16.msra.mxu0 %v4501
  %4521 = vmatprep.subr.bf16.mxu0 0
  %4522 = vmatpush1.bf16.msra.mxu0 %v4500
  %4523 = vmatprep.subr.bf16.mxu0 0
  %4524 = vmatpush1.bf16.msra.mxu0 %v4499
  %4525 = vmatprep.subr.bf16.mxu0 0
  %4526 = vmatpush1.bf16.msra.mxu0 %v4498
  %4527 = vmatprep.subr.bf16.mxu0 0
  %4528 = vmatpush1.bf16.msra.mxu0 %v4497
  %4529 = vmatprep.subr.bf16.mxu0 0
  %4530 = vmatpush2.bf16.msra.mxu0 0
  %4531 = vmatprep.subr.bf16.mxu0 0
  %4532 = vmatpush2.bf16.msra.mxu0 0
  %4533 = vmatprep.subr.bf16.mxu0 0
  %4534 = vmatpush2.bf16.msra.mxu0 0
  %4535 = vmatprep.subr.bf16.mxu0 0
  %4536 = vmatpush2.bf16.msra.mxu0 0
  %4537 = vmatprep.subr.bf16.mxu0 0
  %4538 = vmatpush2.bf16.msra.mxu0 0
  %4539 = vmatprep.subr.bf16.mxu0 0
  %4540 = vmatpush2.bf16.msra.mxu0 0
  %4541 = vmatprep.subr.bf16.mxu0 0
  %4542 = vmatpush2.bf16.msra.mxu0 0
  %4543 = vmatprep.subr.bf16.mxu0 0
  %4544 = vmatpush2.bf16.msra.mxu0 0
  %4545 = vmatprep.mubr.bf16.mxu0 0
  %4546 = vmatmul.mubr.bf16.gmra.mxu0 %v4401
  %v4547 = vpop.f32.mrf.mxu0
  %v4548 = vadd.f32 0.0, %v4547
  %v4549 = vpop.f32.mrf.mxu0
  %v4550 = vpop.f32.mrf.mxu0
  %v4551 = vadd.f32 0.0, %v4550
  %v4552 = vpop.f32.mrf.mxu0
  %4553 = vmatprep.mubr.bf16.mxu0 0
  %4554 = vmatmul.mubr.bf16.gmra.mxu0 %v4402
  %v4555 = vpop.f32.mrf.mxu0
  %v4556 = vadd.f32 0.0, %v4555
  %v4557 = vpop.f32.mrf.mxu0
  %v4558 = vpop.f32.mrf.mxu0
  %v4559 = vadd.f32 0.0, %v4558
  %v4560 = vpop.f32.mrf.mxu0
  %4561 = vmatprep.mubr.bf16.mxu0 0
  %4562 = vmatmul.mubr.bf16.gmra.mxu0 %v4403
  %v4563 = vpop.f32.mrf.mxu0
  %v4564 = vadd.f32 0.0, %v4563
  %v4565 = vpop.f32.mrf.mxu0
  %v4566 = vpop.f32.mrf.mxu0
  %v4567 = vadd.f32 0.0, %v4566
  %v4568 = vpop.f32.mrf.mxu0
  %4569 = vmatprep.mubr.bf16.mxu0 0
  %4570 = vmatmul.mubr.bf16.gmra.mxu0 %v4404
  %v4571 = vpop.f32.mrf.mxu0
  %v4572 = vadd.f32 0.0, %v4571
  %v4573 = vpop.f32.mrf.mxu0
  %v4574 = vpop.f32.mrf.mxu0
  %v4575 = vadd.f32 0.0, %v4574
  %v4576 = vpop.f32.mrf.mxu0
  %4577 = vmatprep.mubr.bf16.mxu0 0
  %4578 = vmatmul.mubr.bf16.gmra.mxu0 %v4405
  %v4579 = vpop.f32.mrf.mxu0
  %v4580 = vadd.f32 0.0, %v4579
  %v4581 = vpop.f32.mrf.mxu0
  %v4582 = vpop.f32.mrf.mxu0
  %v4583 = vadd.f32 0.0, %v4582
  %v4584 = vpop.f32.mrf.mxu0
  %4585 = vmatprep.mubr.bf16.mxu0 0
  %4586 = vmatmul.mubr.bf16.gmra.mxu0 %v4406
  %v4587 = vpop.f32.mrf.mxu0
  %v4588 = vadd.f32 0.0, %v4587
  %v4589 = vpop.f32.mrf.mxu0
  %v4590 = vpop.f32.mrf.mxu0
  %v4591 = vadd.f32 0.0, %v4590
  %v4592 = vpop.f32.mrf.mxu0
  %4593 = vmatprep.mubr.bf16.mxu0 0
  %4594 = vmatmul.mubr.bf16.gmra.mxu0 %v4407
  %v4595 = vpop.f32.mrf.mxu0
  %v4596 = vadd.f32 0.0, %v4595
  %v4597 = vpop.f32.mrf.mxu0
  %v4598 = vpop.f32.mrf.mxu0
  %v4599 = vadd.f32 0.0, %v4598
  %v4600 = vpop.f32.mrf.mxu0
  %4601 = vmatprep.mubr.bf16.mxu0 0
  %4602 = vmatmul.mubr.bf16.gmra.mxu0 %v4408
  %v4603 = vpop.f32.mrf.mxu0
  %v4604 = vadd.f32 0.0, %v4603
  %v4605 = vpop.f32.mrf.mxu0
  %v4606 = vpop.f32.mrf.mxu0
  %v4607 = vadd.f32 0.0, %v4606
  %v4608 = vpop.f32.mrf.mxu0
  %4609 = vmatprep.mubr.bf16.mxu0 0
  %4610 = vmatmul.mubr.bf16.gmra.mxu0 %v4409
  %v4611 = vpop.f32.mrf.mxu0
  %v4612 = vadd.f32 0.0, %v4611
  %v4613 = vpop.f32.mrf.mxu0
  %v4614 = vpop.f32.mrf.mxu0
  %v4615 = vadd.f32 0.0, %v4614
  %v4616 = vpop.f32.mrf.mxu0
  %4617 = vmatprep.mubr.bf16.mxu0 0
  %4618 = vmatmul.mubr.bf16.gmra.mxu0 %v4410
  %v4619 = vpop.f32.mrf.mxu0
  %v4620 = vadd.f32 0.0, %v4619
  %v4621 = vpop.f32.mrf.mxu0
  %v4622 = vpop.f32.mrf.mxu0
  %v4623 = vadd.f32 0.0, %v4622
  %v4624 = vpop.f32.mrf.mxu0
  %4625 = vmatprep.mubr.bf16.mxu0 0
  %4626 = vmatmul.mubr.bf16.gmra.mxu0 %v4411
  %v4627 = vpop.f32.mrf.mxu0
  %v4628 = vadd.f32 0.0, %v4627
  %v4629 = vpop.f32.mrf.mxu0
  %v4630 = vpop.f32.mrf.mxu0
  %v4631 = vadd.f32 0.0, %v4630
  %v4632 = vpop.f32.mrf.mxu0
  %4633 = vmatprep.mubr.bf16.mxu0 0
  %4634 = vmatmul.mubr.bf16.gmra.mxu0 %v4412
  %v4635 = vpop.f32.mrf.mxu0
  %v4636 = vadd.f32 0.0, %v4635
  %v4637 = vpop.f32.mrf.mxu0
  %v4638 = vpop.f32.mrf.mxu0
  %v4639 = vadd.f32 0.0, %v4638
  %v4640 = vpop.f32.mrf.mxu0
  %4641 = vmatprep.mubr.bf16.mxu0 0
  %4642 = vmatmul.mubr.bf16.gmra.mxu0 %v4413
  %v4643 = vpop.f32.mrf.mxu0
  %v4644 = vadd.f32 0.0, %v4643
  %v4645 = vpop.f32.mrf.mxu0
  %v4646 = vpop.f32.mrf.mxu0
  %v4647 = vadd.f32 0.0, %v4646
  %v4648 = vpop.f32.mrf.mxu0
  %4649 = vmatprep.mubr.bf16.mxu0 0
  %4650 = vmatmul.mubr.bf16.gmra.mxu0 %v4414
  %v4651 = vpop.f32.mrf.mxu0
  %v4652 = vadd.f32 0.0, %v4651
  %v4653 = vpop.f32.mrf.mxu0
  %v4654 = vpop.f32.mrf.mxu0
  %v4655 = vadd.f32 0.0, %v4654
  %v4656 = vpop.f32.mrf.mxu0
  %4657 = vmatprep.mubr.bf16.mxu0 0
  %4658 = vmatmul.mubr.bf16.gmra.mxu0 %v4415
  %v4659 = vpop.f32.mrf.mxu0
  %v4660 = vadd.f32 0.0, %v4659
  %v4661 = vpop.f32.mrf.mxu0
  %v4662 = vpop.f32.mrf.mxu0
  %v4663 = vadd.f32 0.0, %v4662
  %v4664 = vpop.f32.mrf.mxu0
  %4665 = vmatprep.mubr.bf16.mxu0 0
  %4666 = vmatmul.mubr.bf16.gmra.mxu0 %v4416
  %v4667 = vpop.f32.mrf.mxu0
  %v4668 = vadd.f32 0.0, %v4667
  %v4669 = vpop.f32.mrf.mxu0
  %v4670 = vpop.f32.mrf.mxu0
  %v4671 = vadd.f32 0.0, %v4670
  %v4672 = vpop.f32.mrf.mxu0
  %4673 = vmatprep.mubr.bf16.mxu0 0
  %4674 = vmatmul.mubr.bf16.gmra.mxu0 %v4417
  %v4675 = vpop.f32.mrf.mxu0
  %v4676 = vadd.f32 0.0, %v4675
  %v4677 = vpop.f32.mrf.mxu0
  %v4678 = vpop.f32.mrf.mxu0
  %v4679 = vadd.f32 0.0, %v4678
  %v4680 = vpop.f32.mrf.mxu0
  %4681 = vmatprep.mubr.bf16.mxu0 0
  %4682 = vmatmul.mubr.bf16.gmra.mxu0 %v4418
  %v4683 = vpop.f32.mrf.mxu0
  %v4684 = vadd.f32 0.0, %v4683
  %v4685 = vpop.f32.mrf.mxu0
  %v4686 = vpop.f32.mrf.mxu0
  %v4687 = vadd.f32 0.0, %v4686
  %v4688 = vpop.f32.mrf.mxu0
  %4689 = vmatprep.mubr.bf16.mxu0 0
  %4690 = vmatmul.mubr.bf16.gmra.mxu0 %v4419
  %v4691 = vpop.f32.mrf.mxu0
  %v4692 = vadd.f32 0.0, %v4691
  %v4693 = vpop.f32.mrf.mxu0
  %v4694 = vpop.f32.mrf.mxu0
  %v4695 = vadd.f32 0.0, %v4694
  %v4696 = vpop.f32.mrf.mxu0
  %4697 = vmatprep.mubr.bf16.mxu0 0
  %4698 = vmatmul.mubr.bf16.gmra.mxu0 %v4420
  %v4699 = vpop.f32.mrf.mxu0
  %v4700 = vadd.f32 0.0, %v4699
  %v4701 = vpop.f32.mrf.mxu0
  %v4702 = vpop.f32.mrf.mxu0
  %v4703 = vadd.f32 0.0, %v4702
  %v4704 = vpop.f32.mrf.mxu0
  %4705 = vmatprep.mubr.bf16.mxu0 0
  %4706 = vmatmul.mubr.bf16.gmra.mxu0 %v4421
  %v4707 = vpop.f32.mrf.mxu0
  %v4708 = vadd.f32 0.0, %v4707
  %v4709 = vpop.f32.mrf.mxu0
  %v4710 = vpop.f32.mrf.mxu0
  %v4711 = vadd.f32 0.0, %v4710
  %v4712 = vpop.f32.mrf.mxu0
  %4713 = vmatprep.mubr.bf16.mxu0 0
  %4714 = vmatmul.mubr.bf16.gmra.mxu0 %v4422
  %v4715 = vpop.f32.mrf.mxu0
  %v4716 = vadd.f32 0.0, %v4715
  %v4717 = vpop.f32.mrf.mxu0
  %v4718 = vpop.f32.mrf.mxu0
  %v4719 = vadd.f32 0.0, %v4718
  %v4720 = vpop.f32.mrf.mxu0
  %4721 = vmatprep.mubr.bf16.mxu0 0
  %4722 = vmatmul.mubr.bf16.gmra.mxu0 %v4423
  %v4723 = vpop.f32.mrf.mxu0
  %v4724 = vadd.f32 0.0, %v4723
  %v4725 = vpop.f32.mrf.mxu0
  %v4726 = vpop.f32.mrf.mxu0
  %v4727 = vadd.f32 0.0, %v4726
  %v4728 = vpop.f32.mrf.mxu0
  %4729 = vmatprep.mubr.bf16.mxu0 0
  %4730 = vmatmul.mubr.bf16.gmra.mxu0 %v4424
  %v4731 = vpop.f32.mrf.mxu0
  %v4732 = vadd.f32 0.0, %v4731
  %v4733 = vpop.f32.mrf.mxu0
  %v4734 = vpop.f32.mrf.mxu0
  %v4735 = vadd.f32 0.0, %v4734
  %v4736 = vpop.f32.mrf.mxu0
  %4737 = vmatprep.mubr.bf16.mxu0 0
  %4738 = vmatmul.mubr.bf16.gmra.mxu0 %v4425
  %v4739 = vpop.f32.mrf.mxu0
  %v4740 = vadd.f32 0.0, %v4739
  %v4741 = vpop.f32.mrf.mxu0
  %v4742 = vpop.f32.mrf.mxu0
  %v4743 = vadd.f32 0.0, %v4742
  %v4744 = vpop.f32.mrf.mxu0
  %4745 = vmatprep.mubr.bf16.mxu0 0
  %4746 = vmatmul.mubr.bf16.gmra.mxu0 %v4426
  %v4747 = vpop.f32.mrf.mxu0
  %v4748 = vadd.f32 0.0, %v4747
  %v4749 = vpop.f32.mrf.mxu0
  %v4750 = vpop.f32.mrf.mxu0
  %v4751 = vadd.f32 0.0, %v4750
  %v4752 = vpop.f32.mrf.mxu0
  %4753 = vmatprep.mubr.bf16.mxu0 0
  %4754 = vmatmul.mubr.bf16.gmra.mxu0 %v4427
  %v4755 = vpop.f32.mrf.mxu0
  %v4756 = vadd.f32 0.0, %v4755
  %v4757 = vpop.f32.mrf.mxu0
  %v4758 = vpop.f32.mrf.mxu0
  %v4759 = vadd.f32 0.0, %v4758
  %v4760 = vpop.f32.mrf.mxu0
  %4761 = vmatprep.mubr.bf16.mxu0 0
  %4762 = vmatmul.mubr.bf16.gmra.mxu0 %v4428
  %v4763 = vpop.f32.mrf.mxu0
  %v4764 = vadd.f32 0.0, %v4763
  %v4765 = vpop.f32.mrf.mxu0
  %v4766 = vpop.f32.mrf.mxu0
  %v4767 = vadd.f32 0.0, %v4766
  %v4768 = vpop.f32.mrf.mxu0
  %4769 = vmatprep.mubr.bf16.mxu0 0
  %4770 = vmatmul.mubr.bf16.gmra.mxu0 %v4429
  %v4771 = vpop.f32.mrf.mxu0
  %v4772 = vadd.f32 0.0, %v4771
  %v4773 = vpop.f32.mrf.mxu0
  %v4774 = vpop.f32.mrf.mxu0
  %v4775 = vadd.f32 0.0, %v4774
  %v4776 = vpop.f32.mrf.mxu0
  %4777 = vmatprep.mubr.bf16.mxu0 0
  %4778 = vmatmul.mubr.bf16.gmra.mxu0 %v4430
  %v4779 = vpop.f32.mrf.mxu0
  %v4780 = vadd.f32 0.0, %v4779
  %v4781 = vpop.f32.mrf.mxu0
  %v4782 = vpop.f32.mrf.mxu0
  %v4783 = vadd.f32 0.0, %v4782
  %v4784 = vpop.f32.mrf.mxu0
  %4785 = vmatprep.mubr.bf16.mxu0 0
  %4786 = vmatmul.mubr.bf16.gmra.mxu0 %v4431
  %v4787 = vpop.f32.mrf.mxu0
  %v4788 = vadd.f32 0.0, %v4787
  %v4789 = vpop.f32.mrf.mxu0
  %v4790 = vpop.f32.mrf.mxu0
  %v4791 = vadd.f32 0.0, %v4790
  %v4792 = vpop.f32.mrf.mxu0
  %4793 = vmatprep.mubr.bf16.mxu0 0
  %4794 = vmatmul.mubr.bf16.gmra.mxu0 %v4432
  %v4795 = vpop.f32.mrf.mxu0
  %v4796 = vadd.f32 0.0, %v4795
  %v4797 = vpop.f32.mrf.mxu0
  %v4798 = vpop.f32.mrf.mxu0
  %v4799 = vadd.f32 0.0, %v4798
  %v4800 = vpop.f32.mrf.mxu0
  %4801 = vdwg.mxu0
  %v4802 = vadd.f32 %v3392, %v4548
  %v4803 = vadd.f32 %v3393, %v4551
  %v4804 = vadd.f32 %v3394, %v4556
  %v4805 = vadd.f32 %v3395, %v4559
  %v4806 = vadd.f32 %v3396, %v4564
  %v4807 = vadd.f32 %v3397, %v4567
  %v4808 = vadd.f32 %v3398, %v4572
  %v4809 = vadd.f32 %v3399, %v4575
  %v4810 = vadd.f32 %v3400, %v4580
  %v4811 = vadd.f32 %v3401, %v4583
  %v4812 = vadd.f32 %v3402, %v4588
  %v4813 = vadd.f32 %v3403, %v4591
  %v4814 = vadd.f32 %v3404, %v4596
  %v4815 = vadd.f32 %v3405, %v4599
  %v4816 = vadd.f32 %v3406, %v4604
  %v4817 = vadd.f32 %v3407, %v4607
  %v4818 = vadd.f32 %v3408, %v4612
  %v4819 = vadd.f32 %v3409, %v4615
  %v4820 = vadd.f32 %v3410, %v4620
  %v4821 = vadd.f32 %v3411, %v4623
  %v4822 = vadd.f32 %v3412, %v4628
  %v4823 = vadd.f32 %v3413, %v4631
  %v4824 = vadd.f32 %v3414, %v4636
  %v4825 = vadd.f32 %v3415, %v4639
  %v4826 = vadd.f32 %v3416, %v4644
  %v4827 = vadd.f32 %v3417, %v4647
  %v4828 = vadd.f32 %v3418, %v4652
  %v4829 = vadd.f32 %v3419, %v4655
  %v4830 = vadd.f32 %v3420, %v4660
  %v4831 = vadd.f32 %v3421, %v4663
  %v4832 = vadd.f32 %v3422, %v4668
  %v4833 = vadd.f32 %v3423, %v4671
  %v4834 = vadd.f32 %v3424, %v4676
  %v4835 = vadd.f32 %v3425, %v4679
  %v4836 = vadd.f32 %v3426, %v4684
  %v4837 = vadd.f32 %v3427, %v4687
  %v4838 = vadd.f32 %v3428, %v4692
  %v4839 = vadd.f32 %v3429, %v4695
  %v4840 = vadd.f32 %v3430, %v4700
  %v4841 = vadd.f32 %v3431, %v4703
  %v4842 = vadd.f32 %v3432, %v4708
  %v4843 = vadd.f32 %v3433, %v4711
  %v4844 = vadd.f32 %v3434, %v4716
  %v4845 = vadd.f32 %v3435, %v4719
  %v4846 = vadd.f32 %v3436, %v4724
  %v4847 = vadd.f32 %v3437, %v4727
  %v4848 = vadd.f32 %v3438, %v4732
  %v4849 = vadd.f32 %v3439, %v4735
  %v4850 = vadd.f32 %v3440, %v4740
  %v4851 = vadd.f32 %v3441, %v4743
  %v4852 = vadd.f32 %v3442, %v4748
  %v4853 = vadd.f32 %v3443, %v4751
  %v4854 = vadd.f32 %v3444, %v4756
  %v4855 = vadd.f32 %v3445, %v4759
  %v4856 = vadd.f32 %v3446, %v4764
  %v4857 = vadd.f32 %v3447, %v4767
  %v4858 = vadd.f32 %v3448, %v4772
  %v4859 = vadd.f32 %v3449, %v4775
  %v4860 = vadd.f32 %v3450, %v4780
  %v4861 = vadd.f32 %v3451, %v4783
  %v4862 = vadd.f32 %v3452, %v4788
  %v4863 = vadd.f32 %v3453, %v4791
  %v4864 = vadd.f32 %v3454, %v4796
  %v4865 = vadd.f32 %v3455, %v4799
  %v4866 = vld [vmem:[%s2781] sm:$0xe]
  %v4867 = vld [vmem:[%s2781 + $0xc] sm:$0xe]
  %v4868 = vld [vmem:[%s2781 + $0x18] sm:$0xe]
  %v4869 = vld [vmem:[%s2781 + $0x24] sm:$0xe]
  %v4870 = vld [vmem:[%s2781 + $0x30] sm:$0xe]
  %v4871 = vld [vmem:[%s2781 + $0x3c] sm:$0xe]
  %v4872 = vld [vmem:[%s2781 + $0x48] sm:$0xe]
  %v4873 = vld [vmem:[%s2781 + $0x54] sm:$0xe]
  %v4874 = vld [vmem:[%s2781 + $0x60] sm:$0xe]
  %v4875 = vld [vmem:[%s2781 + $0x6c] sm:$0xe]
  %v4876 = vld [vmem:[%s2781 + $0x78] sm:$0xe]
  %v4877 = vld [vmem:[%s2781 + $0x84] sm:$0xe]
  %v4878 = vld [vmem:[%s2781 + $0x90] sm:$0xe]
  %v4879 = vld [vmem:[%s2781 + $0x9c] sm:$0xe]
  %v4880 = vld [vmem:[%s2781 + $0xa8] sm:$0xe]
  %v4881 = vld [vmem:[%s2781 + $0xb4] sm:$0xe]
  %v4882 = vld [vmem:[%s2781 + $0xd8] sm:$0xe]
  %v4883 = vld [vmem:[%s2781 + $0xe4] sm:$0xe]
  %v4884 = vld [vmem:[%s2781 + $0xf0] sm:$0xe]
  %v4885 = vld [vmem:[%s2781 + $0xfc] sm:$0xe]
  %v4886 = vld [vmem:[%s2781 + $0x108] sm:$0xe]
  %v4887 = vld [vmem:[%s2781 + $0x114] sm:$0xe]
  %v4888 = vld [vmem:[%s2781 + $0x120] sm:$0xe]
  %v4889 = vld [vmem:[%s2781 + $0x12c] sm:$0xe]
  %v4890 = vld [vmem:[%s2781 + $0x138] sm:$0xe]
  %v4891 = vld [vmem:[%s2781 + $0x144] sm:$0xe]
  %v4892 = vld [vmem:[%s2781 + $0x150] sm:$0xe]
  %v4893 = vld [vmem:[%s2781 + $0x15c] sm:$0xe]
  %v4894 = vld [vmem:[%s2781 + $0x168] sm:$0xe]
  %v4895 = vld [vmem:[%s2781 + $0x174] sm:$0xe]
  %v4896 = vld [vmem:[%s2781 + $0x180] sm:$0xe]
  %v4897 = vld [vmem:[%s2781 + $0x18c] sm:$0xe]
  %v4994 = vrot.slane %v4866, 5
  %v4995 = vrot.slane %v4994, 4
  %v4996 = vrot.slane %v3457, 5
  %v4997 = vsel %vm2010, %v4995, %v4996
  %v4998 = vrot.slane %v4996, 4
  %v4999 = vrot.slane %v3458, 5
  %v5000 = vsel %vm2010, %v4998, %v4999
  %v5001 = vrot.slane %v4867, 5
  %v5002 = vrot.slane %v5001, 4
  %v5003 = vrot.slane %v3460, 5
  %v5004 = vsel %vm2010, %v5002, %v5003
  %v5005 = vrot.slane %v5003, 4
  %v5006 = vrot.slane %v3461, 5
  %v5007 = vsel %vm2010, %v5005, %v5006
  %v5008 = vrot.slane %v4868, 5
  %v5009 = vrot.slane %v5008, 4
  %v5010 = vrot.slane %v3463, 5
  %v5011 = vsel %vm2010, %v5009, %v5010
  %v5012 = vrot.slane %v5010, 4
  %v5013 = vrot.slane %v3464, 5
  %v5014 = vsel %vm2010, %v5012, %v5013
  %v5015 = vrot.slane %v4869, 5
  %v5016 = vrot.slane %v5015, 4
  %v5017 = vrot.slane %v3466, 5
  %v5018 = vsel %vm2010, %v5016, %v5017
  %v5019 = vrot.slane %v5017, 4
  %v5020 = vrot.slane %v3467, 5
  %v5021 = vsel %vm2010, %v5019, %v5020
  %v5022 = vrot.slane %v4870, 5
  %v5023 = vrot.slane %v5022, 4
  %v5024 = vrot.slane %v3469, 5
  %v5025 = vsel %vm2010, %v5023, %v5024
  %v5026 = vrot.slane %v5024, 4
  %v5027 = vrot.slane %v3470, 5
  %v5028 = vsel %vm2010, %v5026, %v5027
  %v5029 = vrot.slane %v4871, 5
  %v5030 = vrot.slane %v5029, 4
  %v5031 = vrot.slane %v3472, 5
  %v5032 = vsel %vm2010, %v5030, %v5031
  %v5033 = vrot.slane %v5031, 4
  %v5034 = vrot.slane %v3473, 5
  %v5035 = vsel %vm2010, %v5033, %v5034
  %v5036 = vrot.slane %v4872, 5
  %v5037 = vrot.slane %v5036, 4
  %v5038 = vrot.slane %v3475, 5
  %v5039 = vsel %vm2010, %v5037, %v5038
  %v5040 = vrot.slane %v5038, 4
  %v5041 = vrot.slane %v3476, 5
  %v5042 = vsel %vm2010, %v5040, %v5041
  %v5043 = vrot.slane %v4873, 5
  %v5044 = vrot.slane %v5043, 4
  %v5045 = vrot.slane %v3478, 5
  %v5046 = vsel %vm2010, %v5044, %v5045
  %v5047 = vrot.slane %v5045, 4
  %v5048 = vrot.slane %v3479, 5
  %v5049 = vsel %vm2010, %v5047, %v5048
  %v5050 = vrot.slane %v4874, 5
  %v5051 = vrot.slane %v5050, 4
  %v5052 = vrot.slane %v3481, 5
  %v5053 = vsel %vm2010, %v5051, %v5052
  %v5054 = vrot.slane %v5052, 4
  %v5055 = vrot.slane %v3482, 5
  %v5056 = vsel %vm2010, %v5054, %v5055
  %v5057 = vrot.slane %v4875, 5
  %v5058 = vrot.slane %v5057, 4
  %v5059 = vrot.slane %v3484, 5
  %v5060 = vsel %vm2010, %v5058, %v5059
  %v5061 = vrot.slane %v5059, 4
  %v5062 = vrot.slane %v3485, 5
  %v5063 = vsel %vm2010, %v5061, %v5062
  %v5064 = vrot.slane %v4876, 5
  %v5065 = vrot.slane %v5064, 4
  %v5066 = vrot.slane %v3487, 5
  %v5067 = vsel %vm2010, %v5065, %v5066
  %v5068 = vrot.slane %v5066, 4
  %v5069 = vrot.slane %v3488, 5
  %v5070 = vsel %vm2010, %v5068, %v5069
  %v5071 = vrot.slane %v4877, 5
  %v5072 = vrot.slane %v5071, 4
  %v5073 = vrot.slane %v3490, 5
  %v5074 = vsel %vm2010, %v5072, %v5073
  %v5075 = vrot.slane %v5073, 4
  %v5076 = vrot.slane %v3491, 5
  %v5077 = vsel %vm2010, %v5075, %v5076
  %v5078 = vrot.slane %v4878, 5
  %v5079 = vrot.slane %v5078, 4
  %v5080 = vrot.slane %v3493, 5
  %v5081 = vsel %vm2010, %v5079, %v5080
  %v5082 = vrot.slane %v5080, 4
  %v5083 = vrot.slane %v3494, 5
  %v5084 = vsel %vm2010, %v5082, %v5083
  %v5085 = vrot.slane %v4879, 5
  %v5086 = vrot.slane %v5085, 4
  %v5087 = vrot.slane %v3496, 5
  %v5088 = vsel %vm2010, %v5086, %v5087
  %v5089 = vrot.slane %v5087, 4
  %v5090 = vrot.slane %v3497, 5
  %v5091 = vsel %vm2010, %v5089, %v5090
  %v5092 = vrot.slane %v4880, 5
  %v5093 = vrot.slane %v5092, 4
  %v5094 = vrot.slane %v3499, 5
  %v5095 = vsel %vm2010, %v5093, %v5094
  %v5096 = vrot.slane %v5094, 4
  %v5097 = vrot.slane %v3500, 5
  %v5098 = vsel %vm2010, %v5096, %v5097
  %v5099 = vrot.slane %v4881, 5
  %v5100 = vrot.slane %v5099, 4
  %v5101 = vrot.slane %v3502, 5
  %v5102 = vsel %vm2010, %v5100, %v5101
  %v5103 = vrot.slane %v5101, 4
  %v5104 = vrot.slane %v3503, 5
  %v5105 = vsel %vm2010, %v5103, %v5104
  %v5106 = vrot.slane %v4882, 5
  %v5107 = vrot.slane %v5106, 4
  %v5108 = vrot.slane %v3505, 5
  %v5109 = vsel %vm2010, %v5107, %v5108
  %v5110 = vrot.slane %v5108, 4
  %v5111 = vrot.slane %v3506, 5
  %v5112 = vsel %vm2010, %v5110, %v5111
  %v5113 = vrot.slane %v4883, 5
  %v5114 = vrot.slane %v5113, 4
  %v5115 = vrot.slane %v3508, 5
  %v5116 = vsel %vm2010, %v5114, %v5115
  %v5117 = vrot.slane %v5115, 4
  %v5118 = vrot.slane %v3509, 5
  %v5119 = vsel %vm2010, %v5117, %v5118
  %v5120 = vrot.slane %v4884, 5
  %v5121 = vrot.slane %v5120, 4
  %v5122 = vrot.slane %v3511, 5
  %v5123 = vsel %vm2010, %v5121, %v5122
  %v5124 = vrot.slane %v5122, 4
  %v5125 = vrot.slane %v3512, 5
  %v5126 = vsel %vm2010, %v5124, %v5125
  %v5127 = vrot.slane %v4885, 5
  %v5128 = vrot.slane %v5127, 4
  %v5129 = vrot.slane %v3514, 5
  %v5130 = vsel %vm2010, %v5128, %v5129
  %v5131 = vrot.slane %v5129, 4
  %v5132 = vrot.slane %v3515, 5
  %v5133 = vsel %vm2010, %v5131, %v5132
  %v5134 = vrot.slane %v4886, 5
  %v5135 = vrot.slane %v5134, 4
  %v5136 = vrot.slane %v3517, 5
  %v5137 = vsel %vm2010, %v5135, %v5136
  %v5138 = vrot.slane %v5136, 4
  %v5139 = vrot.slane %v3518, 5
  %v5140 = vsel %vm2010, %v5138, %v5139
  %v5141 = vrot.slane %v4887, 5
  %v5142 = vrot.slane %v5141, 4
  %v5143 = vrot.slane %v3520, 5
  %v5144 = vsel %vm2010, %v5142, %v5143
  %v5145 = vrot.slane %v5143, 4
  %v5146 = vrot.slane %v3521, 5
  %v5147 = vsel %vm2010, %v5145, %v5146
  %v5148 = vrot.slane %v4888, 5
  %v5149 = vrot.slane %v5148, 4
  %v5150 = vrot.slane %v3523, 5
  %v5151 = vsel %vm2010, %v5149, %v5150
  %v5152 = vrot.slane %v5150, 4
  %v5153 = vrot.slane %v3524, 5
  %v5154 = vsel %vm2010, %v5152, %v5153
  %v5155 = vrot.slane %v4889, 5
  %v5156 = vrot.slane %v5155, 4
  %v5157 = vrot.slane %v3526, 5
  %v5158 = vsel %vm2010, %v5156, %v5157
  %v5159 = vrot.slane %v5157, 4
  %v5160 = vrot.slane %v3527, 5
  %v5161 = vsel %vm2010, %v5159, %v5160
  %v5162 = vrot.slane %v4890, 5
  %v5163 = vrot.slane %v5162, 4
  %v5164 = vrot.slane %v3529, 5
  %v5165 = vsel %vm2010, %v5163, %v5164
  %v5166 = vrot.slane %v5164, 4
  %v5167 = vrot.slane %v3530, 5
  %v5168 = vsel %vm2010, %v5166, %v5167
  %v5169 = vrot.slane %v4891, 5
  %v5170 = vrot.slane %v5169, 4
  %v5171 = vrot.slane %v3532, 5
  %v5172 = vsel %vm2010, %v5170, %v5171
  %v5173 = vrot.slane %v5171, 4
  %v5174 = vrot.slane %v3533, 5
  %v5175 = vsel %vm2010, %v5173, %v5174
  %v5176 = vrot.slane %v4892, 5
  %v5177 = vrot.slane %v5176, 4
  %v5178 = vrot.slane %v3535, 5
  %v5179 = vsel %vm2010, %v5177, %v5178
  %v5180 = vrot.slane %v5178, 4
  %v5181 = vrot.slane %v3536, 5
  %v5182 = vsel %vm2010, %v5180, %v5181
  %v5183 = vrot.slane %v4893, 5
  %v5184 = vrot.slane %v5183, 4
  %v5185 = vrot.slane %v3538, 5
  %v5186 = vsel %vm2010, %v5184, %v5185
  %v5187 = vrot.slane %v5185, 4
  %v5188 = vrot.slane %v3539, 5
  %v5189 = vsel %vm2010, %v5187, %v5188
  %v5190 = vrot.slane %v4894, 5
  %v5191 = vrot.slane %v5190, 4
  %v5192 = vrot.slane %v3541, 5
  %v5193 = vsel %vm2010, %v5191, %v5192
  %v5194 = vrot.slane %v5192, 4
  %v5195 = vrot.slane %v3542, 5
  %v5196 = vsel %vm2010, %v5194, %v5195
  %v5197 = vrot.slane %v4895, 5
  %v5198 = vrot.slane %v5197, 4
  %v5199 = vrot.slane %v3544, 5
  %v5200 = vsel %vm2010, %v5198, %v5199
  %v5201 = vrot.slane %v5199, 4
  %v5202 = vrot.slane %v3545, 5
  %v5203 = vsel %vm2010, %v5201, %v5202
  %v5204 = vrot.slane %v4896, 5
  %v5205 = vrot.slane %v5204, 4
  %v5206 = vrot.slane %v3547, 5
  %v5207 = vsel %vm2010, %v5205, %v5206
  %v5208 = vrot.slane %v5206, 4
  %v5209 = vrot.slane %v3548, 5
  %v5210 = vsel %vm2010, %v5208, %v5209
  %v5211 = vrot.slane %v4897, 5
  %v5212 = vrot.slane %v5211, 4
  %v5213 = vrot.slane %v3550, 5
  %v5214 = vsel %vm2010, %v5212, %v5213
  %v5215 = vrot.slane %v5213, 4
  %v5216 = vrot.slane %v3551, 5
  %v5217 = vsel %vm2010, %v5215, %v5216
  %s5218 = scalar_lea.vmem %s1, 320
  %v5219 = vld [vmem:[%s5218] sm:$0xf]
  %v5220 = vld [vmem:[%s5218 + $0x4] sm:$0xf]
  %v5221 = vld [vmem:[%s5218 + $0x8] sm:$0xf]
  %v5222 = vld [vmem:[%s5218 + $0xc] sm:$0xf]
  %v5223 = vld [vmem:[%s5218 + $0x10] sm:$0xf]
  %v5224 = vld [vmem:[%s5218 + $0x14] sm:$0xf]
  %v5225 = vld [vmem:[%s5218 + $0x18] sm:$0xf]
  %v5226 = vld [vmem:[%s5218 + $0x1c] sm:$0xf]
  %v5227 = vld [vmem:[%s5218 + $0x20] sm:$0xf]
  %v5228 = vld [vmem:[%s5218 + $0x24] sm:$0xf]
  %v5229 = vld [vmem:[%s5218 + $0x28] sm:$0xf]
  %v5230 = vld [vmem:[%s5218 + $0x2c] sm:$0xf]
  %v5231 = vld [vmem:[%s5218 + $0x30] sm:$0xf]
  %v5232 = vld [vmem:[%s5218 + $0x34] sm:$0xf]
  %v5233 = vld [vmem:[%s5218 + $0x38] sm:$0xf]
  %v5234 = vld [vmem:[%s5218 + $0x3c] sm:$0xf]
  %v5235 = vunpack.c.l.b16 %v4997
  %v5236 = vunpack.c.l.b16 %v5000
  %v5237 = vunpack.c.l.b16 %v5004
  %v5238 = vunpack.c.l.b16 %v5007
  %v5239 = vunpack.c.l.b16 %v5011
  %v5240 = vunpack.c.l.b16 %v5014
  %v5241 = vunpack.c.l.b16 %v5018
  %v5242 = vunpack.c.l.b16 %v5021
  %v5243 = vunpack.c.l.b16 %v5025
  %v5244 = vunpack.c.l.b16 %v5028
  %v5245 = vunpack.c.l.b16 %v5032
  %v5246 = vunpack.c.l.b16 %v5035
  %v5247 = vunpack.c.l.b16 %v5039
  %v5248 = vunpack.c.l.b16 %v5042
  %v5249 = vunpack.c.l.b16 %v5046
  %v5250 = vunpack.c.l.b16 %v5049
  %v5251 = vunpack.c.l.b16 %v5053
  %v5252 = vunpack.c.l.b16 %v5056
  %v5253 = vunpack.c.l.b16 %v5060
  %v5254 = vunpack.c.l.b16 %v5063
  %v5255 = vunpack.c.l.b16 %v5067
  %v5256 = vunpack.c.l.b16 %v5070
  %v5257 = vunpack.c.l.b16 %v5074
  %v5258 = vunpack.c.l.b16 %v5077
  %v5259 = vunpack.c.l.b16 %v5081
  %v5260 = vunpack.c.l.b16 %v5084
  %v5261 = vunpack.c.l.b16 %v5088
  %v5262 = vunpack.c.l.b16 %v5091
  %v5263 = vunpack.c.l.b16 %v5095
  %v5264 = vunpack.c.l.b16 %v5098
  %v5265 = vunpack.c.l.b16 %v5102
  %v5266 = vunpack.c.l.b16 %v5105
  %v5267 = vunpack.c.l.b16 %v5109
  %v5268 = vunpack.c.l.b16 %v5112
  %v5269 = vunpack.c.l.b16 %v5116
  %v5270 = vunpack.c.l.b16 %v5119
  %v5271 = vunpack.c.l.b16 %v5123
  %v5272 = vunpack.c.l.b16 %v5126
  %v5273 = vunpack.c.l.b16 %v5130
  %v5274 = vunpack.c.l.b16 %v5133
  %v5275 = vunpack.c.l.b16 %v5137
  %v5276 = vunpack.c.l.b16 %v5140
  %v5277 = vunpack.c.l.b16 %v5144
  %v5278 = vunpack.c.l.b16 %v5147
  %v5279 = vunpack.c.l.b16 %v5151
  %v5280 = vunpack.c.l.b16 %v5154
  %v5281 = vunpack.c.l.b16 %v5158
  %v5282 = vunpack.c.l.b16 %v5161
  %v5283 = vunpack.c.l.b16 %v5165
  %v5284 = vunpack.c.l.b16 %v5168
  %v5285 = vunpack.c.l.b16 %v5172
  %v5286 = vunpack.c.l.b16 %v5175
  %v5287 = vunpack.c.l.b16 %v5179
  %v5288 = vunpack.c.l.b16 %v5182
  %v5289 = vunpack.c.l.b16 %v5186
  %v5290 = vunpack.c.l.b16 %v5189
  %v5291 = vunpack.c.l.b16 %v5193
  %v5292 = vunpack.c.l.b16 %v5196
  %v5293 = vunpack.c.l.b16 %v5200
  %v5294 = vunpack.c.l.b16 %v5203
  %v5295 = vunpack.c.l.b16 %v5207
  %v5296 = vunpack.c.l.b16 %v5210
  %v5297 = vunpack.c.l.b16 %v5214
  %v5298 = vunpack.c.l.b16 %v5217
  %v5299 = vpack.c.b16 %v5236, %v5235
  %v5300 = vpack.c.b16 %v5238, %v5237
  %v5301 = vpack.c.b16 %v5240, %v5239
  %v5302 = vpack.c.b16 %v5242, %v5241
  %v5303 = vpack.c.b16 %v5244, %v5243
  %v5304 = vpack.c.b16 %v5246, %v5245
  %v5305 = vpack.c.b16 %v5248, %v5247
  %v5306 = vpack.c.b16 %v5250, %v5249
  %v5307 = vpack.c.b16 %v5252, %v5251
  %v5308 = vpack.c.b16 %v5254, %v5253
  %v5309 = vpack.c.b16 %v5256, %v5255
  %v5310 = vpack.c.b16 %v5258, %v5257
  %v5311 = vpack.c.b16 %v5260, %v5259
  %v5312 = vpack.c.b16 %v5262, %v5261
  %v5313 = vpack.c.b16 %v5264, %v5263
  %v5314 = vpack.c.b16 %v5266, %v5265
  %v5315 = vpack.c.b16 %v5268, %v5267
  %v5316 = vpack.c.b16 %v5270, %v5269
  %v5317 = vpack.c.b16 %v5272, %v5271
  %v5318 = vpack.c.b16 %v5274, %v5273
  %v5319 = vpack.c.b16 %v5276, %v5275
  %v5320 = vpack.c.b16 %v5278, %v5277
  %v5321 = vpack.c.b16 %v5280, %v5279
  %v5322 = vpack.c.b16 %v5282, %v5281
  %v5323 = vpack.c.b16 %v5284, %v5283
  %v5324 = vpack.c.b16 %v5286, %v5285
  %v5325 = vpack.c.b16 %v5288, %v5287
  %v5326 = vpack.c.b16 %v5290, %v5289
  %v5327 = vpack.c.b16 %v5292, %v5291
  %v5328 = vpack.c.b16 %v5294, %v5293
  %v5329 = vpack.c.b16 %v5296, %v5295
  %v5330 = vpack.c.b16 %v5298, %v5297
  %v5379 = vunpack.c.l.b16 %v5219
  %v5380 = vunpack.c.l.b16 %v5220
  %v5381 = vunpack.c.l.b16 %v5221
  %v5382 = vunpack.c.l.b16 %v5222
  %v5383 = vunpack.c.l.b16 %v5223
  %v5384 = vunpack.c.l.b16 %v5224
  %v5385 = vunpack.c.l.b16 %v5225
  %v5386 = vunpack.c.l.b16 %v5226
  %v5387 = vunpack.c.l.b16 %v5227
  %v5388 = vunpack.c.l.b16 %v5228
  %v5389 = vunpack.c.l.b16 %v5229
  %v5390 = vunpack.c.l.b16 %v5230
  %v5391 = vunpack.c.l.b16 %v5231
  %v5392 = vunpack.c.l.b16 %v5232
  %v5393 = vunpack.c.l.b16 %v5233
  %v5394 = vunpack.c.l.b16 %v5234
  %v5395 = vpack.c.b16 %v5380, %v5379
  %v5396 = vpack.c.b16 %v5382, %v5381
  %v5397 = vpack.c.b16 %v5384, %v5383
  %v5398 = vpack.c.b16 %v5386, %v5385
  %v5399 = vpack.c.b16 %v5388, %v5387
  %v5400 = vpack.c.b16 %v5390, %v5389
  %v5401 = vpack.c.b16 %v5392, %v5391
  %v5402 = vpack.c.b16 %v5394, %v5393
  %5411 = vmatprep.subr.bf16.mxu0 0
  %5412 = vmatpush1.bf16.msra.mxu0 %v5402
  %5413 = vmatprep.subr.bf16.mxu0 0
  %5414 = vmatpush1.bf16.msra.mxu0 %v5401
  %5415 = vmatprep.subr.bf16.mxu0 0
  %5416 = vmatpush1.bf16.msra.mxu0 %v5400
  %5417 = vmatprep.subr.bf16.mxu0 0
  %5418 = vmatpush1.bf16.msra.mxu0 %v5399
  %5419 = vmatprep.subr.bf16.mxu0 0
  %5420 = vmatpush1.bf16.msra.mxu0 %v5398
  %5421 = vmatprep.subr.bf16.mxu0 0
  %5422 = vmatpush1.bf16.msra.mxu0 %v5397
  %5423 = vmatprep.subr.bf16.mxu0 0
  %5424 = vmatpush1.bf16.msra.mxu0 %v5396
  %5425 = vmatprep.subr.bf16.mxu0 0
  %5426 = vmatpush1.bf16.msra.mxu0 %v5395
  %5427 = vmatprep.subr.bf16.mxu0 0
  %5428 = vmatpush2.bf16.msra.mxu0 0
  %5429 = vmatprep.subr.bf16.mxu0 0
  %5430 = vmatpush2.bf16.msra.mxu0 0
  %5431 = vmatprep.subr.bf16.mxu0 0
  %5432 = vmatpush2.bf16.msra.mxu0 0
  %5433 = vmatprep.subr.bf16.mxu0 0
  %5434 = vmatpush2.bf16.msra.mxu0 0
  %5435 = vmatprep.subr.bf16.mxu0 0
  %5436 = vmatpush2.bf16.msra.mxu0 0
  %5437 = vmatprep.subr.bf16.mxu0 0
  %5438 = vmatpush2.bf16.msra.mxu0 0
  %5439 = vmatprep.subr.bf16.mxu0 0
  %5440 = vmatpush2.bf16.msra.mxu0 0
  %5441 = vmatprep.subr.bf16.mxu0 0
  %5442 = vmatpush2.bf16.msra.mxu0 0
  %5443 = vmatprep.mubr.bf16.mxu0 0
  %5444 = vmatmul.mubr.bf16.gmra.mxu0 %v5299
  %v5445 = vpop.f32.mrf.mxu0
  %v5446 = vadd.f32 0.0, %v5445
  %v5447 = vpop.f32.mrf.mxu0
  %v5448 = vpop.f32.mrf.mxu0
  %v5449 = vadd.f32 0.0, %v5448
  %v5450 = vpop.f32.mrf.mxu0
  %5451 = vmatprep.mubr.bf16.mxu0 0
  %5452 = vmatmul.mubr.bf16.gmra.mxu0 %v5300
  %v5453 = vpop.f32.mrf.mxu0
  %v5454 = vadd.f32 0.0, %v5453
  %v5455 = vpop.f32.mrf.mxu0
  %v5456 = vpop.f32.mrf.mxu0
  %v5457 = vadd.f32 0.0, %v5456
  %v5458 = vpop.f32.mrf.mxu0
  %5459 = vmatprep.mubr.bf16.mxu0 0
  %5460 = vmatmul.mubr.bf16.gmra.mxu0 %v5301
  %v5461 = vpop.f32.mrf.mxu0
  %v5462 = vadd.f32 0.0, %v5461
  %v5463 = vpop.f32.mrf.mxu0
  %v5464 = vpop.f32.mrf.mxu0
  %v5465 = vadd.f32 0.0, %v5464
  %v5466 = vpop.f32.mrf.mxu0
  %5467 = vmatprep.mubr.bf16.mxu0 0
  %5468 = vmatmul.mubr.bf16.gmra.mxu0 %v5302
  %v5469 = vpop.f32.mrf.mxu0
  %v5470 = vadd.f32 0.0, %v5469
  %v5471 = vpop.f32.mrf.mxu0
  %v5472 = vpop.f32.mrf.mxu0
  %v5473 = vadd.f32 0.0, %v5472
  %v5474 = vpop.f32.mrf.mxu0
  %5475 = vmatprep.mubr.bf16.mxu0 0
  %5476 = vmatmul.mubr.bf16.gmra.mxu0 %v5303
  %v5477 = vpop.f32.mrf.mxu0
  %v5478 = vadd.f32 0.0, %v5477
  %v5479 = vpop.f32.mrf.mxu0
  %v5480 = vpop.f32.mrf.mxu0
  %v5481 = vadd.f32 0.0, %v5480
  %v5482 = vpop.f32.mrf.mxu0
  %5483 = vmatprep.mubr.bf16.mxu0 0
  %5484 = vmatmul.mubr.bf16.gmra.mxu0 %v5304
  %v5485 = vpop.f32.mrf.mxu0
  %v5486 = vadd.f32 0.0, %v5485
  %v5487 = vpop.f32.mrf.mxu0
  %v5488 = vpop.f32.mrf.mxu0
  %v5489 = vadd.f32 0.0, %v5488
  %v5490 = vpop.f32.mrf.mxu0
  %5491 = vmatprep.mubr.bf16.mxu0 0
  %5492 = vmatmul.mubr.bf16.gmra.mxu0 %v5305
  %v5493 = vpop.f32.mrf.mxu0
  %v5494 = vadd.f32 0.0, %v5493
  %v5495 = vpop.f32.mrf.mxu0
  %v5496 = vpop.f32.mrf.mxu0
  %v5497 = vadd.f32 0.0, %v5496
  %v5498 = vpop.f32.mrf.mxu0
  %5499 = vmatprep.mubr.bf16.mxu0 0
  %5500 = vmatmul.mubr.bf16.gmra.mxu0 %v5306
  %v5501 = vpop.f32.mrf.mxu0
  %v5502 = vadd.f32 0.0, %v5501
  %v5503 = vpop.f32.mrf.mxu0
  %v5504 = vpop.f32.mrf.mxu0
  %v5505 = vadd.f32 0.0, %v5504
  %v5506 = vpop.f32.mrf.mxu0
  %5507 = vmatprep.mubr.bf16.mxu0 0
  %5508 = vmatmul.mubr.bf16.gmra.mxu0 %v5307
  %v5509 = vpop.f32.mrf.mxu0
  %v5510 = vadd.f32 0.0, %v5509
  %v5511 = vpop.f32.mrf.mxu0
  %v5512 = vpop.f32.mrf.mxu0
  %v5513 = vadd.f32 0.0, %v5512
  %v5514 = vpop.f32.mrf.mxu0
  %5515 = vmatprep.mubr.bf16.mxu0 0
  %5516 = vmatmul.mubr.bf16.gmra.mxu0 %v5308
  %v5517 = vpop.f32.mrf.mxu0
  %v5518 = vadd.f32 0.0, %v5517
  %v5519 = vpop.f32.mrf.mxu0
  %v5520 = vpop.f32.mrf.mxu0
  %v5521 = vadd.f32 0.0, %v5520
  %v5522 = vpop.f32.mrf.mxu0
  %5523 = vmatprep.mubr.bf16.mxu0 0
  %5524 = vmatmul.mubr.bf16.gmra.mxu0 %v5309
  %v5525 = vpop.f32.mrf.mxu0
  %v5526 = vadd.f32 0.0, %v5525
  %v5527 = vpop.f32.mrf.mxu0
  %v5528 = vpop.f32.mrf.mxu0
  %v5529 = vadd.f32 0.0, %v5528
  %v5530 = vpop.f32.mrf.mxu0
  %5531 = vmatprep.mubr.bf16.mxu0 0
  %5532 = vmatmul.mubr.bf16.gmra.mxu0 %v5310
  %v5533 = vpop.f32.mrf.mxu0
  %v5534 = vadd.f32 0.0, %v5533
  %v5535 = vpop.f32.mrf.mxu0
  %v5536 = vpop.f32.mrf.mxu0
  %v5537 = vadd.f32 0.0, %v5536
  %v5538 = vpop.f32.mrf.mxu0
  %5539 = vmatprep.mubr.bf16.mxu0 0
  %5540 = vmatmul.mubr.bf16.gmra.mxu0 %v5311
  %v5541 = vpop.f32.mrf.mxu0
  %v5542 = vadd.f32 0.0, %v5541
  %v5543 = vpop.f32.mrf.mxu0
  %v5544 = vpop.f32.mrf.mxu0
  %v5545 = vadd.f32 0.0, %v5544
  %v5546 = vpop.f32.mrf.mxu0
  %5547 = vmatprep.mubr.bf16.mxu0 0
  %5548 = vmatmul.mubr.bf16.gmra.mxu0 %v5312
  %v5549 = vpop.f32.mrf.mxu0
  %v5550 = vadd.f32 0.0, %v5549
  %v5551 = vpop.f32.mrf.mxu0
  %v5552 = vpop.f32.mrf.mxu0
  %v5553 = vadd.f32 0.0, %v5552
  %v5554 = vpop.f32.mrf.mxu0
  %5555 = vmatprep.mubr.bf16.mxu0 0
  %5556 = vmatmul.mubr.bf16.gmra.mxu0 %v5313
  %v5557 = vpop.f32.mrf.mxu0
  %v5558 = vadd.f32 0.0, %v5557
  %v5559 = vpop.f32.mrf.mxu0
  %v5560 = vpop.f32.mrf.mxu0
  %v5561 = vadd.f32 0.0, %v5560
  %v5562 = vpop.f32.mrf.mxu0
  %5563 = vmatprep.mubr.bf16.mxu0 0
  %5564 = vmatmul.mubr.bf16.gmra.mxu0 %v5314
  %v5565 = vpop.f32.mrf.mxu0
  %v5566 = vadd.f32 0.0, %v5565
  %v5567 = vpop.f32.mrf.mxu0
  %v5568 = vpop.f32.mrf.mxu0
  %v5569 = vadd.f32 0.0, %v5568
  %v5570 = vpop.f32.mrf.mxu0
  %5571 = vmatprep.mubr.bf16.mxu0 0
  %5572 = vmatmul.mubr.bf16.gmra.mxu0 %v5315
  %v5573 = vpop.f32.mrf.mxu0
  %v5574 = vadd.f32 0.0, %v5573
  %v5575 = vpop.f32.mrf.mxu0
  %v5576 = vpop.f32.mrf.mxu0
  %v5577 = vadd.f32 0.0, %v5576
  %v5578 = vpop.f32.mrf.mxu0
  %5579 = vmatprep.mubr.bf16.mxu0 0
  %5580 = vmatmul.mubr.bf16.gmra.mxu0 %v5316
  %v5581 = vpop.f32.mrf.mxu0
  %v5582 = vadd.f32 0.0, %v5581
  %v5583 = vpop.f32.mrf.mxu0
  %v5584 = vpop.f32.mrf.mxu0
  %v5585 = vadd.f32 0.0, %v5584
  %v5586 = vpop.f32.mrf.mxu0
  %5587 = vmatprep.mubr.bf16.mxu0 0
  %5588 = vmatmul.mubr.bf16.gmra.mxu0 %v5317
  %v5589 = vpop.f32.mrf.mxu0
  %v5590 = vadd.f32 0.0, %v5589
  %v5591 = vpop.f32.mrf.mxu0
  %v5592 = vpop.f32.mrf.mxu0
  %v5593 = vadd.f32 0.0, %v5592
  %v5594 = vpop.f32.mrf.mxu0
  %5595 = vmatprep.mubr.bf16.mxu0 0
  %5596 = vmatmul.mubr.bf16.gmra.mxu0 %v5318
  %v5597 = vpop.f32.mrf.mxu0
  %v5598 = vadd.f32 0.0, %v5597
  %v5599 = vpop.f32.mrf.mxu0
  %v5600 = vpop.f32.mrf.mxu0
  %v5601 = vadd.f32 0.0, %v5600
  %v5602 = vpop.f32.mrf.mxu0
  %5603 = vmatprep.mubr.bf16.mxu0 0
  %5604 = vmatmul.mubr.bf16.gmra.mxu0 %v5319
  %v5605 = vpop.f32.mrf.mxu0
  %v5606 = vadd.f32 0.0, %v5605
  %v5607 = vpop.f32.mrf.mxu0
  %v5608 = vpop.f32.mrf.mxu0
  %v5609 = vadd.f32 0.0, %v5608
  %v5610 = vpop.f32.mrf.mxu0
  %5611 = vmatprep.mubr.bf16.mxu0 0
  %5612 = vmatmul.mubr.bf16.gmra.mxu0 %v5320
  %v5613 = vpop.f32.mrf.mxu0
  %v5614 = vadd.f32 0.0, %v5613
  %v5615 = vpop.f32.mrf.mxu0
  %v5616 = vpop.f32.mrf.mxu0
  %v5617 = vadd.f32 0.0, %v5616
  %v5618 = vpop.f32.mrf.mxu0
  %5619 = vmatprep.mubr.bf16.mxu0 0
  %5620 = vmatmul.mubr.bf16.gmra.mxu0 %v5321
  %v5621 = vpop.f32.mrf.mxu0
  %v5622 = vadd.f32 0.0, %v5621
  %v5623 = vpop.f32.mrf.mxu0
  %v5624 = vpop.f32.mrf.mxu0
  %v5625 = vadd.f32 0.0, %v5624
  %v5626 = vpop.f32.mrf.mxu0
  %5627 = vmatprep.mubr.bf16.mxu0 0
  %5628 = vmatmul.mubr.bf16.gmra.mxu0 %v5322
  %v5629 = vpop.f32.mrf.mxu0
  %v5630 = vadd.f32 0.0, %v5629
  %v5631 = vpop.f32.mrf.mxu0
  %v5632 = vpop.f32.mrf.mxu0
  %v5633 = vadd.f32 0.0, %v5632
  %v5634 = vpop.f32.mrf.mxu0
  %5635 = vmatprep.mubr.bf16.mxu0 0
  %5636 = vmatmul.mubr.bf16.gmra.mxu0 %v5323
  %v5637 = vpop.f32.mrf.mxu0
  %v5638 = vadd.f32 0.0, %v5637
  %v5639 = vpop.f32.mrf.mxu0
  %v5640 = vpop.f32.mrf.mxu0
  %v5641 = vadd.f32 0.0, %v5640
  %v5642 = vpop.f32.mrf.mxu0
  %5643 = vmatprep.mubr.bf16.mxu0 0
  %5644 = vmatmul.mubr.bf16.gmra.mxu0 %v5324
  %v5645 = vpop.f32.mrf.mxu0
  %v5646 = vadd.f32 0.0, %v5645
  %v5647 = vpop.f32.mrf.mxu0
  %v5648 = vpop.f32.mrf.mxu0
  %v5649 = vadd.f32 0.0, %v5648
  %v5650 = vpop.f32.mrf.mxu0
  %5651 = vmatprep.mubr.bf16.mxu0 0
  %5652 = vmatmul.mubr.bf16.gmra.mxu0 %v5325
  %v5653 = vpop.f32.mrf.mxu0
  %v5654 = vadd.f32 0.0, %v5653
  %v5655 = vpop.f32.mrf.mxu0
  %v5656 = vpop.f32.mrf.mxu0
  %v5657 = vadd.f32 0.0, %v5656
  %v5658 = vpop.f32.mrf.mxu0
  %5659 = vmatprep.mubr.bf16.mxu0 0
  %5660 = vmatmul.mubr.bf16.gmra.mxu0 %v5326
  %v5661 = vpop.f32.mrf.mxu0
  %v5662 = vadd.f32 0.0, %v5661
  %v5663 = vpop.f32.mrf.mxu0
  %v5664 = vpop.f32.mrf.mxu0
  %v5665 = vadd.f32 0.0, %v5664
  %v5666 = vpop.f32.mrf.mxu0
  %5667 = vmatprep.mubr.bf16.mxu0 0
  %5668 = vmatmul.mubr.bf16.gmra.mxu0 %v5327
  %v5669 = vpop.f32.mrf.mxu0
  %v5670 = vadd.f32 0.0, %v5669
  %v5671 = vpop.f32.mrf.mxu0
  %v5672 = vpop.f32.mrf.mxu0
  %v5673 = vadd.f32 0.0, %v5672
  %v5674 = vpop.f32.mrf.mxu0
  %5675 = vmatprep.mubr.bf16.mxu0 0
  %5676 = vmatmul.mubr.bf16.gmra.mxu0 %v5328
  %v5677 = vpop.f32.mrf.mxu0
  %v5678 = vadd.f32 0.0, %v5677
  %v5679 = vpop.f32.mrf.mxu0
  %v5680 = vpop.f32.mrf.mxu0
  %v5681 = vadd.f32 0.0, %v5680
  %v5682 = vpop.f32.mrf.mxu0
  %5683 = vmatprep.mubr.bf16.mxu0 0
  %5684 = vmatmul.mubr.bf16.gmra.mxu0 %v5329
  %v5685 = vpop.f32.mrf.mxu0
  %v5686 = vadd.f32 0.0, %v5685
  %v5687 = vpop.f32.mrf.mxu0
  %v5688 = vpop.f32.mrf.mxu0
  %v5689 = vadd.f32 0.0, %v5688
  %v5690 = vpop.f32.mrf.mxu0
  %5691 = vmatprep.mubr.bf16.mxu0 0
  %5692 = vmatmul.mubr.bf16.gmra.mxu0 %v5330
  %v5693 = vpop.f32.mrf.mxu0
  %v5694 = vadd.f32 0.0, %v5693
  %v5695 = vpop.f32.mrf.mxu0
  %v5696 = vpop.f32.mrf.mxu0
  %v5697 = vadd.f32 0.0, %v5696
  %v5698 = vpop.f32.mrf.mxu0
  %5699 = vdwg.mxu0
  %v5700 = vadd.f32 %v4802, %v5446
  %v5701 = vadd.f32 %v4803, %v5449
  %v5702 = vadd.f32 %v4804, %v5454
  %v5703 = vadd.f32 %v4805, %v5457
  %v5704 = vadd.f32 %v4806, %v5462
  %v5705 = vadd.f32 %v4807, %v5465
  %v5706 = vadd.f32 %v4808, %v5470
  %v5707 = vadd.f32 %v4809, %v5473
  %v5708 = vadd.f32 %v4810, %v5478
  %v5709 = vadd.f32 %v4811, %v5481
  %v5710 = vadd.f32 %v4812, %v5486
  %v5711 = vadd.f32 %v4813, %v5489
  %v5712 = vadd.f32 %v4814, %v5494
  %v5713 = vadd.f32 %v4815, %v5497
  %v5714 = vadd.f32 %v4816, %v5502
  %v5715 = vadd.f32 %v4817, %v5505
  %v5716 = vadd.f32 %v4818, %v5510
  %v5717 = vadd.f32 %v4819, %v5513
  %v5718 = vadd.f32 %v4820, %v5518
  %v5719 = vadd.f32 %v4821, %v5521
  %v5720 = vadd.f32 %v4822, %v5526
  %v5721 = vadd.f32 %v4823, %v5529
  %v5722 = vadd.f32 %v4824, %v5534
  %v5723 = vadd.f32 %v4825, %v5537
  %v5724 = vadd.f32 %v4826, %v5542
  %v5725 = vadd.f32 %v4827, %v5545
  %v5726 = vadd.f32 %v4828, %v5550
  %v5727 = vadd.f32 %v4829, %v5553
  %v5728 = vadd.f32 %v4830, %v5558
  %v5729 = vadd.f32 %v4831, %v5561
  %v5730 = vadd.f32 %v4832, %v5566
  %v5731 = vadd.f32 %v4833, %v5569
  %v5732 = vadd.f32 %v4834, %v5574
  %v5733 = vadd.f32 %v4835, %v5577
  %v5734 = vadd.f32 %v4836, %v5582
  %v5735 = vadd.f32 %v4837, %v5585
  %v5736 = vadd.f32 %v4838, %v5590
  %v5737 = vadd.f32 %v4839, %v5593
  %v5738 = vadd.f32 %v4840, %v5598
  %v5739 = vadd.f32 %v4841, %v5601
  %v5740 = vadd.f32 %v4842, %v5606
  %v5741 = vadd.f32 %v4843, %v5609
  %v5742 = vadd.f32 %v4844, %v5614
  %v5743 = vadd.f32 %v4845, %v5617
  %v5744 = vadd.f32 %v4846, %v5622
  %v5745 = vadd.f32 %v4847, %v5625
  %v5746 = vadd.f32 %v4848, %v5630
  %v5747 = vadd.f32 %v4849, %v5633
  %v5748 = vadd.f32 %v4850, %v5638
  %v5749 = vadd.f32 %v4851, %v5641
  %v5750 = vadd.f32 %v4852, %v5646
  %v5751 = vadd.f32 %v4853, %v5649
  %v5752 = vadd.f32 %v4854, %v5654
  %v5753 = vadd.f32 %v4855, %v5657
  %v5754 = vadd.f32 %v4856, %v5662
  %v5755 = vadd.f32 %v4857, %v5665
  %v5756 = vadd.f32 %v4858, %v5670
  %v5757 = vadd.f32 %v4859, %v5673
  %v5758 = vadd.f32 %v4860, %v5678
  %v5759 = vadd.f32 %v4861, %v5681
  %v5760 = vadd.f32 %v4862, %v5686
  %v5761 = vadd.f32 %v4863, %v5689
  %v5762 = vadd.f32 %v4864, %v5694
  %v5763 = vadd.f32 %v4865, %v5697
  %s5764 = scalar_lea.vmem %s0, 24
  %v5765 = vld [vmem:[%s5764] sm:$0xf]
  %v5766 = vld [vmem:[%s5764 + $0x4] sm:$0xf]
  %v5767 = vld [vmem:[%s5764 + $0xc] sm:$0xf]
  %v5768 = vld [vmem:[%s5764 + $0x10] sm:$0xf]
  %v5769 = vld [vmem:[%s5764 + $0x18] sm:$0xf]
  %v5770 = vld [vmem:[%s5764 + $0x1c] sm:$0xf]
  %v5771 = vld [vmem:[%s5764 + $0x24] sm:$0xf]
  %v5772 = vld [vmem:[%s5764 + $0x28] sm:$0xf]
  %v5773 = vld [vmem:[%s5764 + $0x30] sm:$0xf]
  %v5774 = vld [vmem:[%s5764 + $0x34] sm:$0xf]
  %v5775 = vld [vmem:[%s5764 + $0x3c] sm:$0xf]
  %v5776 = vld [vmem:[%s5764 + $0x40] sm:$0xf]
  %v5777 = vld [vmem:[%s5764 + $0x48] sm:$0xf]
  %v5778 = vld [vmem:[%s5764 + $0x4c] sm:$0xf]
  %v5779 = vld [vmem:[%s5764 + $0x54] sm:$0xf]
  %v5780 = vld [vmem:[%s5764 + $0x58] sm:$0xf]
  %v5781 = vld [vmem:[%s5764 + $0x60] sm:$0xf]
  %v5782 = vld [vmem:[%s5764 + $0x64] sm:$0xf]
  %v5783 = vld [vmem:[%s5764 + $0x6c] sm:$0xf]
  %v5784 = vld [vmem:[%s5764 + $0x70] sm:$0xf]
  %v5785 = vld [vmem:[%s5764 + $0x78] sm:$0xf]
  %v5786 = vld [vmem:[%s5764 + $0x7c] sm:$0xf]
  %v5787 = vld [vmem:[%s5764 + $0x84] sm:$0xf]
  %v5788 = vld [vmem:[%s5764 + $0x88] sm:$0xf]
  %v5789 = vld [vmem:[%s5764 + $0x90] sm:$0xf]
  %v5790 = vld [vmem:[%s5764 + $0x94] sm:$0xf]
  %v5791 = vld [vmem:[%s5764 + $0x9c] sm:$0xf]
  %v5792 = vld [vmem:[%s5764 + $0xa0] sm:$0xf]
  %v5793 = vld [vmem:[%s5764 + $0xa8] sm:$0xf]
  %v5794 = vld [vmem:[%s5764 + $0xac] sm:$0xf]
  %v5795 = vld [vmem:[%s5764 + $0xb4] sm:$0xf]
  %v5796 = vld [vmem:[%s5764 + $0xb8] sm:$0xf]
  %v5797 = vld [vmem:[%s5764 + $0xd8] sm:$0xf]
  %v5798 = vld [vmem:[%s5764 + $0xdc] sm:$0xf]
  %v5799 = vld [vmem:[%s5764 + $0xe4] sm:$0xf]
  %v5800 = vld [vmem:[%s5764 + $0xe8] sm:$0xf]
  %v5801 = vld [vmem:[%s5764 + $0xf0] sm:$0xf]
  %v5802 = vld [vmem:[%s5764 + $0xf4] sm:$0xf]
  %v5803 = vld [vmem:[%s5764 + $0xfc] sm:$0xf]
  %v5804 = vld [vmem:[%s5764 + $0x100] sm:$0xf]
  %v5805 = vld [vmem:[%s5764 + $0x108] sm:$0xf]
  %v5806 = vld [vmem:[%s5764 + $0x10c] sm:$0xf]
  %v5807 = vld [vmem:[%s5764 + $0x114] sm:$0xf]
  %v5808 = vld [vmem:[%s5764 + $0x118] sm:$0xf]
  %v5809 = vld [vmem:[%s5764 + $0x120] sm:$0xf]
  %v5810 = vld [vmem:[%s5764 + $0x124] sm:$0xf]
  %v5811 = vld [vmem:[%s5764 + $0x12c] sm:$0xf]
  %v5812 = vld [vmem:[%s5764 + $0x130] sm:$0xf]
  %v5813 = vld [vmem:[%s5764 + $0x138] sm:$0xf]
  %v5814 = vld [vmem:[%s5764 + $0x13c] sm:$0xf]
  %v5815 = vld [vmem:[%s5764 + $0x144] sm:$0xf]
  %v5816 = vld [vmem:[%s5764 + $0x148] sm:$0xf]
  %v5817 = vld [vmem:[%s5764 + $0x150] sm:$0xf]
  %v5818 = vld [vmem:[%s5764 + $0x154] sm:$0xf]
  %v5819 = vld [vmem:[%s5764 + $0x15c] sm:$0xf]
  %v5820 = vld [vmem:[%s5764 + $0x160] sm:$0xf]
  %v5821 = vld [vmem:[%s5764 + $0x168] sm:$0xf]
  %v5822 = vld [vmem:[%s5764 + $0x16c] sm:$0xf]
  %v5823 = vld [vmem:[%s5764 + $0x174] sm:$0xf]
  %v5824 = vld [vmem:[%s5764 + $0x178] sm:$0xf]
  %v5825 = vld [vmem:[%s5764 + $0x180] sm:$0xf]
  %v5826 = vld [vmem:[%s5764 + $0x184] sm:$0xf]
  %v5827 = vld [vmem:[%s5764 + $0x18c] sm:$0xf]
  %v5828 = vld [vmem:[%s5764 + $0x190] sm:$0xf]
  %s5829 = scalar_lea.vmem %s1, 384
  %v5830 = vld [vmem:[%s5829] sm:$0xf]
  %v5831 = vld [vmem:[%s5829 + $0x4] sm:$0xf]
  %v5832 = vld [vmem:[%s5829 + $0x8] sm:$0xf]
  %v5833 = vld [vmem:[%s5829 + $0xc] sm:$0xf]
  %v5834 = vld [vmem:[%s5829 + $0x10] sm:$0xf]
  %v5835 = vld [vmem:[%s5829 + $0x14] sm:$0xf]
  %v5836 = vld [vmem:[%s5829 + $0x18] sm:$0xf]
  %v5837 = vld [vmem:[%s5829 + $0x1c] sm:$0xf]
  %v5838 = vld [vmem:[%s5829 + $0x20] sm:$0xf]
  %v5839 = vld [vmem:[%s5829 + $0x24] sm:$0xf]
  %v5840 = vld [vmem:[%s5829 + $0x28] sm:$0xf]
  %v5841 = vld [vmem:[%s5829 + $0x2c] sm:$0xf]
  %v5842 = vld [vmem:[%s5829 + $0x30] sm:$0xf]
  %v5843 = vld [vmem:[%s5829 + $0x34] sm:$0xf]
  %v5844 = vld [vmem:[%s5829 + $0x38] sm:$0xf]
  %v5845 = vld [vmem:[%s5829 + $0x3c] sm:$0xf]
  %v5910 = vunpack.c.l.b16 %v5765
  %v5911 = vunpack.c.l.b16 %v5766
  %v5912 = vunpack.c.l.b16 %v5767
  %v5913 = vunpack.c.l.b16 %v5768
  %v5914 = vunpack.c.l.b16 %v5769
  %v5915 = vunpack.c.l.b16 %v5770
  %v5916 = vunpack.c.l.b16 %v5771
  %v5917 = vunpack.c.l.b16 %v5772
  %v5918 = vunpack.c.l.b16 %v5773
  %v5919 = vunpack.c.l.b16 %v5774
  %v5920 = vunpack.c.l.b16 %v5775
  %v5921 = vunpack.c.l.b16 %v5776
  %v5922 = vunpack.c.l.b16 %v5777
  %v5923 = vunpack.c.l.b16 %v5778
  %v5924 = vunpack.c.l.b16 %v5779
  %v5925 = vunpack.c.l.b16 %v5780
  %v5926 = vunpack.c.l.b16 %v5781
  %v5927 = vunpack.c.l.b16 %v5782
  %v5928 = vunpack.c.l.b16 %v5783
  %v5929 = vunpack.c.l.b16 %v5784
  %v5930 = vunpack.c.l.b16 %v5785
  %v5931 = vunpack.c.l.b16 %v5786
  %v5932 = vunpack.c.l.b16 %v5787
  %v5933 = vunpack.c.l.b16 %v5788
  %v5934 = vunpack.c.l.b16 %v5789
  %v5935 = vunpack.c.l.b16 %v5790
  %v5936 = vunpack.c.l.b16 %v5791
  %v5937 = vunpack.c.l.b16 %v5792
  %v5938 = vunpack.c.l.b16 %v5793
  %v5939 = vunpack.c.l.b16 %v5794
  %v5940 = vunpack.c.l.b16 %v5795
  %v5941 = vunpack.c.l.b16 %v5796
  %v5942 = vunpack.c.l.b16 %v5797
  %v5943 = vunpack.c.l.b16 %v5798
  %v5944 = vunpack.c.l.b16 %v5799
  %v5945 = vunpack.c.l.b16 %v5800
  %v5946 = vunpack.c.l.b16 %v5801
  %v5947 = vunpack.c.l.b16 %v5802
  %v5948 = vunpack.c.l.b16 %v5803
  %v5949 = vunpack.c.l.b16 %v5804
  %v5950 = vunpack.c.l.b16 %v5805
  %v5951 = vunpack.c.l.b16 %v5806
  %v5952 = vunpack.c.l.b16 %v5807
  %v5953 = vunpack.c.l.b16 %v5808
  %v5954 = vunpack.c.l.b16 %v5809
  %v5955 = vunpack.c.l.b16 %v5810
  %v5956 = vunpack.c.l.b16 %v5811
  %v5957 = vunpack.c.l.b16 %v5812
  %v5958 = vunpack.c.l.b16 %v5813
  %v5959 = vunpack.c.l.b16 %v5814
  %v5960 = vunpack.c.l.b16 %v5815
  %v5961 = vunpack.c.l.b16 %v5816
  %v5962 = vunpack.c.l.b16 %v5817
  %v5963 = vunpack.c.l.b16 %v5818
  %v5964 = vunpack.c.l.b16 %v5819
  %v5965 = vunpack.c.l.b16 %v5820
  %v5966 = vunpack.c.l.b16 %v5821
  %v5967 = vunpack.c.l.b16 %v5822
  %v5968 = vunpack.c.l.b16 %v5823
  %v5969 = vunpack.c.l.b16 %v5824
  %v5970 = vunpack.c.l.b16 %v5825
  %v5971 = vunpack.c.l.b16 %v5826
  %v5972 = vunpack.c.l.b16 %v5827
  %v5973 = vunpack.c.l.b16 %v5828
  %v5974 = vpack.c.b16 %v5911, %v5910
  %v5975 = vpack.c.b16 %v5913, %v5912
  %v5976 = vpack.c.b16 %v5915, %v5914
  %v5977 = vpack.c.b16 %v5917, %v5916
  %v5978 = vpack.c.b16 %v5919, %v5918
  %v5979 = vpack.c.b16 %v5921, %v5920
  %v5980 = vpack.c.b16 %v5923, %v5922
  %v5981 = vpack.c.b16 %v5925, %v5924
  %v5982 = vpack.c.b16 %v5927, %v5926
  %v5983 = vpack.c.b16 %v5929, %v5928
  %v5984 = vpack.c.b16 %v5931, %v5930
  %v5985 = vpack.c.b16 %v5933, %v5932
  %v5986 = vpack.c.b16 %v5935, %v5934
  %v5987 = vpack.c.b16 %v5937, %v5936
  %v5988 = vpack.c.b16 %v5939, %v5938
  %v5989 = vpack.c.b16 %v5941, %v5940
  %v5990 = vpack.c.b16 %v5943, %v5942
  %v5991 = vpack.c.b16 %v5945, %v5944
  %v5992 = vpack.c.b16 %v5947, %v5946
  %v5993 = vpack.c.b16 %v5949, %v5948
  %v5994 = vpack.c.b16 %v5951, %v5950
  %v5995 = vpack.c.b16 %v5953, %v5952
  %v5996 = vpack.c.b16 %v5955, %v5954
  %v5997 = vpack.c.b16 %v5957, %v5956
  %v5998 = vpack.c.b16 %v5959, %v5958
  %v5999 = vpack.c.b16 %v5961, %v5960
  %v6000 = vpack.c.b16 %v5963, %v5962
  %v6001 = vpack.c.b16 %v5965, %v5964
  %v6002 = vpack.c.b16 %v5967, %v5966
  %v6003 = vpack.c.b16 %v5969, %v5968
  %v6004 = vpack.c.b16 %v5971, %v5970
  %v6005 = vpack.c.b16 %v5973, %v5972
  %v6054 = vunpack.c.l.b16 %v5830
  %v6055 = vunpack.c.l.b16 %v5831
  %v6056 = vunpack.c.l.b16 %v5832
  %v6057 = vunpack.c.l.b16 %v5833
  %v6058 = vunpack.c.l.b16 %v5834
  %v6059 = vunpack.c.l.b16 %v5835
  %v6060 = vunpack.c.l.b16 %v5836
  %v6061 = vunpack.c.l.b16 %v5837
  %v6062 = vunpack.c.l.b16 %v5838
  %v6063 = vunpack.c.l.b16 %v5839
  %v6064 = vunpack.c.l.b16 %v5840
  %v6065 = vunpack.c.l.b16 %v5841
  %v6066 = vunpack.c.l.b16 %v5842
  %v6067 = vunpack.c.l.b16 %v5843
  %v6068 = vunpack.c.l.b16 %v5844
  %v6069 = vunpack.c.l.b16 %v5845
  %v6070 = vpack.c.b16 %v6055, %v6054
  %v6071 = vpack.c.b16 %v6057, %v6056
  %v6072 = vpack.c.b16 %v6059, %v6058
  %v6073 = vpack.c.b16 %v6061, %v6060
  %v6074 = vpack.c.b16 %v6063, %v6062
  %v6075 = vpack.c.b16 %v6065, %v6064
  %v6076 = vpack.c.b16 %v6067, %v6066
  %v6077 = vpack.c.b16 %v6069, %v6068
  %6086 = vmatprep.subr.bf16.mxu0 0
  %6087 = vmatpush1.bf16.msra.mxu0 %v6077
  %6088 = vmatprep.subr.bf16.mxu0 0
  %6089 = vmatpush1.bf16.msra.mxu0 %v6076
  %6090 = vmatprep.subr.bf16.mxu0 0
  %6091 = vmatpush1.bf16.msra.mxu0 %v6075
  %6092 = vmatprep.subr.bf16.mxu0 0
  %6093 = vmatpush1.bf16.msra.mxu0 %v6074
  %6094 = vmatprep.subr.bf16.mxu0 0
  %6095 = vmatpush1.bf16.msra.mxu0 %v6073
  %6096 = vmatprep.subr.bf16.mxu0 0
  %6097 = vmatpush1.bf16.msra.mxu0 %v6072
  %6098 = vmatprep.subr.bf16.mxu0 0
  %6099 = vmatpush1.bf16.msra.mxu0 %v6071
  %6100 = vmatprep.subr.bf16.mxu0 0
  %6101 = vmatpush1.bf16.msra.mxu0 %v6070
  %6102 = vmatprep.subr.bf16.mxu0 0
  %6103 = vmatpush2.bf16.msra.mxu0 0
  %6104 = vmatprep.subr.bf16.mxu0 0
  %6105 = vmatpush2.bf16.msra.mxu0 0
  %6106 = vmatprep.subr.bf16.mxu0 0
  %6107 = vmatpush2.bf16.msra.mxu0 0
  %6108 = vmatprep.subr.bf16.mxu0 0
  %6109 = vmatpush2.bf16.msra.mxu0 0
  %6110 = vmatprep.subr.bf16.mxu0 0
  %6111 = vmatpush2.bf16.msra.mxu0 0
  %6112 = vmatprep.subr.bf16.mxu0 0
  %6113 = vmatpush2.bf16.msra.mxu0 0
  %6114 = vmatprep.subr.bf16.mxu0 0
  %6115 = vmatpush2.bf16.msra.mxu0 0
  %6116 = vmatprep.subr.bf16.mxu0 0
  %6117 = vmatpush2.bf16.msra.mxu0 0
  %6118 = vmatprep.mubr.bf16.mxu0 0
  %6119 = vmatmul.mubr.bf16.gmra.mxu0 %v5974
  %v6120 = vpop.f32.mrf.mxu0
  %v6121 = vadd.f32 0.0, %v6120
  %v6122 = vpop.f32.mrf.mxu0
  %v6123 = vpop.f32.mrf.mxu0
  %v6124 = vadd.f32 0.0, %v6123
  %v6125 = vpop.f32.mrf.mxu0
  %6126 = vmatprep.mubr.bf16.mxu0 0
  %6127 = vmatmul.mubr.bf16.gmra.mxu0 %v5975
  %v6128 = vpop.f32.mrf.mxu0
  %v6129 = vadd.f32 0.0, %v6128
  %v6130 = vpop.f32.mrf.mxu0
  %v6131 = vpop.f32.mrf.mxu0
  %v6132 = vadd.f32 0.0, %v6131
  %v6133 = vpop.f32.mrf.mxu0
  %6134 = vmatprep.mubr.bf16.mxu0 0
  %6135 = vmatmul.mubr.bf16.gmra.mxu0 %v5976
  %v6136 = vpop.f32.mrf.mxu0
  %v6137 = vadd.f32 0.0, %v6136
  %v6138 = vpop.f32.mrf.mxu0
  %v6139 = vpop.f32.mrf.mxu0
  %v6140 = vadd.f32 0.0, %v6139
  %v6141 = vpop.f32.mrf.mxu0
  %6142 = vmatprep.mubr.bf16.mxu0 0
  %6143 = vmatmul.mubr.bf16.gmra.mxu0 %v5977
  %v6144 = vpop.f32.mrf.mxu0
  %v6145 = vadd.f32 0.0, %v6144
  %v6146 = vpop.f32.mrf.mxu0
  %v6147 = vpop.f32.mrf.mxu0
  %v6148 = vadd.f32 0.0, %v6147
  %v6149 = vpop.f32.mrf.mxu0
  %6150 = vmatprep.mubr.bf16.mxu0 0
  %6151 = vmatmul.mubr.bf16.gmra.mxu0 %v5978
  %v6152 = vpop.f32.mrf.mxu0
  %v6153 = vadd.f32 0.0, %v6152
  %v6154 = vpop.f32.mrf.mxu0
  %v6155 = vpop.f32.mrf.mxu0
  %v6156 = vadd.f32 0.0, %v6155
  %v6157 = vpop.f32.mrf.mxu0
  %6158 = vmatprep.mubr.bf16.mxu0 0
  %6159 = vmatmul.mubr.bf16.gmra.mxu0 %v5979
  %v6160 = vpop.f32.mrf.mxu0
  %v6161 = vadd.f32 0.0, %v6160
  %v6162 = vpop.f32.mrf.mxu0
  %v6163 = vpop.f32.mrf.mxu0
  %v6164 = vadd.f32 0.0, %v6163
  %v6165 = vpop.f32.mrf.mxu0
  %6166 = vmatprep.mubr.bf16.mxu0 0
  %6167 = vmatmul.mubr.bf16.gmra.mxu0 %v5980
  %v6168 = vpop.f32.mrf.mxu0
  %v6169 = vadd.f32 0.0, %v6168
  %v6170 = vpop.f32.mrf.mxu0
  %v6171 = vpop.f32.mrf.mxu0
  %v6172 = vadd.f32 0.0, %v6171
  %v6173 = vpop.f32.mrf.mxu0
  %6174 = vmatprep.mubr.bf16.mxu0 0
  %6175 = vmatmul.mubr.bf16.gmra.mxu0 %v5981
  %v6176 = vpop.f32.mrf.mxu0
  %v6177 = vadd.f32 0.0, %v6176
  %v6178 = vpop.f32.mrf.mxu0
  %v6179 = vpop.f32.mrf.mxu0
  %v6180 = vadd.f32 0.0, %v6179
  %v6181 = vpop.f32.mrf.mxu0
  %6182 = vmatprep.mubr.bf16.mxu0 0
  %6183 = vmatmul.mubr.bf16.gmra.mxu0 %v5982
  %v6184 = vpop.f32.mrf.mxu0
  %v6185 = vadd.f32 0.0, %v6184
  %v6186 = vpop.f32.mrf.mxu0
  %v6187 = vpop.f32.mrf.mxu0
  %v6188 = vadd.f32 0.0, %v6187
  %v6189 = vpop.f32.mrf.mxu0
  %6190 = vmatprep.mubr.bf16.mxu0 0
  %6191 = vmatmul.mubr.bf16.gmra.mxu0 %v5983
  %v6192 = vpop.f32.mrf.mxu0
  %v6193 = vadd.f32 0.0, %v6192
  %v6194 = vpop.f32.mrf.mxu0
  %v6195 = vpop.f32.mrf.mxu0
  %v6196 = vadd.f32 0.0, %v6195
  %v6197 = vpop.f32.mrf.mxu0
  %6198 = vmatprep.mubr.bf16.mxu0 0
  %6199 = vmatmul.mubr.bf16.gmra.mxu0 %v5984
  %v6200 = vpop.f32.mrf.mxu0
  %v6201 = vadd.f32 0.0, %v6200
  %v6202 = vpop.f32.mrf.mxu0
  %v6203 = vpop.f32.mrf.mxu0
  %v6204 = vadd.f32 0.0, %v6203
  %v6205 = vpop.f32.mrf.mxu0
  %6206 = vmatprep.mubr.bf16.mxu0 0
  %6207 = vmatmul.mubr.bf16.gmra.mxu0 %v5985
  %v6208 = vpop.f32.mrf.mxu0
  %v6209 = vadd.f32 0.0, %v6208
  %v6210 = vpop.f32.mrf.mxu0
  %v6211 = vpop.f32.mrf.mxu0
  %v6212 = vadd.f32 0.0, %v6211
  %v6213 = vpop.f32.mrf.mxu0
  %6214 = vmatprep.mubr.bf16.mxu0 0
  %6215 = vmatmul.mubr.bf16.gmra.mxu0 %v5986
  %v6216 = vpop.f32.mrf.mxu0
  %v6217 = vadd.f32 0.0, %v6216
  %v6218 = vpop.f32.mrf.mxu0
  %v6219 = vpop.f32.mrf.mxu0
  %v6220 = vadd.f32 0.0, %v6219
  %v6221 = vpop.f32.mrf.mxu0
  %6222 = vmatprep.mubr.bf16.mxu0 0
  %6223 = vmatmul.mubr.bf16.gmra.mxu0 %v5987
  %v6224 = vpop.f32.mrf.mxu0
  %v6225 = vadd.f32 0.0, %v6224
  %v6226 = vpop.f32.mrf.mxu0
  %v6227 = vpop.f32.mrf.mxu0
  %v6228 = vadd.f32 0.0, %v6227
  %v6229 = vpop.f32.mrf.mxu0
  %6230 = vmatprep.mubr.bf16.mxu0 0
  %6231 = vmatmul.mubr.bf16.gmra.mxu0 %v5988
  %v6232 = vpop.f32.mrf.mxu0
  %v6233 = vadd.f32 0.0, %v6232
  %v6234 = vpop.f32.mrf.mxu0
  %v6235 = vpop.f32.mrf.mxu0
  %v6236 = vadd.f32 0.0, %v6235
  %v6237 = vpop.f32.mrf.mxu0
  %6238 = vmatprep.mubr.bf16.mxu0 0
  %6239 = vmatmul.mubr.bf16.gmra.mxu0 %v5989
  %v6240 = vpop.f32.mrf.mxu0
  %v6241 = vadd.f32 0.0, %v6240
  %v6242 = vpop.f32.mrf.mxu0
  %v6243 = vpop.f32.mrf.mxu0
  %v6244 = vadd.f32 0.0, %v6243
  %v6245 = vpop.f32.mrf.mxu0
  %6246 = vmatprep.mubr.bf16.mxu0 0
  %6247 = vmatmul.mubr.bf16.gmra.mxu0 %v5990
  %v6248 = vpop.f32.mrf.mxu0
  %v6249 = vadd.f32 0.0, %v6248
  %v6250 = vpop.f32.mrf.mxu0
  %v6251 = vpop.f32.mrf.mxu0
  %v6252 = vadd.f32 0.0, %v6251
  %v6253 = vpop.f32.mrf.mxu0
  %6254 = vmatprep.mubr.bf16.mxu0 0
  %6255 = vmatmul.mubr.bf16.gmra.mxu0 %v5991
  %v6256 = vpop.f32.mrf.mxu0
  %v6257 = vadd.f32 0.0, %v6256
  %v6258 = vpop.f32.mrf.mxu0
  %v6259 = vpop.f32.mrf.mxu0
  %v6260 = vadd.f32 0.0, %v6259
  %v6261 = vpop.f32.mrf.mxu0
  %6262 = vmatprep.mubr.bf16.mxu0 0
  %6263 = vmatmul.mubr.bf16.gmra.mxu0 %v5992
  %v6264 = vpop.f32.mrf.mxu0
  %v6265 = vadd.f32 0.0, %v6264
  %v6266 = vpop.f32.mrf.mxu0
  %v6267 = vpop.f32.mrf.mxu0
  %v6268 = vadd.f32 0.0, %v6267
  %v6269 = vpop.f32.mrf.mxu0
  %6270 = vmatprep.mubr.bf16.mxu0 0
  %6271 = vmatmul.mubr.bf16.gmra.mxu0 %v5993
  %v6272 = vpop.f32.mrf.mxu0
  %v6273 = vadd.f32 0.0, %v6272
  %v6274 = vpop.f32.mrf.mxu0
  %v6275 = vpop.f32.mrf.mxu0
  %v6276 = vadd.f32 0.0, %v6275
  %v6277 = vpop.f32.mrf.mxu0
  %6278 = vmatprep.mubr.bf16.mxu0 0
  %6279 = vmatmul.mubr.bf16.gmra.mxu0 %v5994
  %v6280 = vpop.f32.mrf.mxu0
  %v6281 = vadd.f32 0.0, %v6280
  %v6282 = vpop.f32.mrf.mxu0
  %v6283 = vpop.f32.mrf.mxu0
  %v6284 = vadd.f32 0.0, %v6283
  %v6285 = vpop.f32.mrf.mxu0
  %6286 = vmatprep.mubr.bf16.mxu0 0
  %6287 = vmatmul.mubr.bf16.gmra.mxu0 %v5995
  %v6288 = vpop.f32.mrf.mxu0
  %v6289 = vadd.f32 0.0, %v6288
  %v6290 = vpop.f32.mrf.mxu0
  %v6291 = vpop.f32.mrf.mxu0
  %v6292 = vadd.f32 0.0, %v6291
  %v6293 = vpop.f32.mrf.mxu0
  %6294 = vmatprep.mubr.bf16.mxu0 0
  %6295 = vmatmul.mubr.bf16.gmra.mxu0 %v5996
  %v6296 = vpop.f32.mrf.mxu0
  %v6297 = vadd.f32 0.0, %v6296
  %v6298 = vpop.f32.mrf.mxu0
  %v6299 = vpop.f32.mrf.mxu0
  %v6300 = vadd.f32 0.0, %v6299
  %v6301 = vpop.f32.mrf.mxu0
  %6302 = vmatprep.mubr.bf16.mxu0 0
  %6303 = vmatmul.mubr.bf16.gmra.mxu0 %v5997
  %v6304 = vpop.f32.mrf.mxu0
  %v6305 = vadd.f32 0.0, %v6304
  %v6306 = vpop.f32.mrf.mxu0
  %v6307 = vpop.f32.mrf.mxu0
  %v6308 = vadd.f32 0.0, %v6307
  %v6309 = vpop.f32.mrf.mxu0
  %6310 = vmatprep.mubr.bf16.mxu0 0
  %6311 = vmatmul.mubr.bf16.gmra.mxu0 %v5998
  %v6312 = vpop.f32.mrf.mxu0
  %v6313 = vadd.f32 0.0, %v6312
  %v6314 = vpop.f32.mrf.mxu0
  %v6315 = vpop.f32.mrf.mxu0
  %v6316 = vadd.f32 0.0, %v6315
  %v6317 = vpop.f32.mrf.mxu0
  %6318 = vmatprep.mubr.bf16.mxu0 0
  %6319 = vmatmul.mubr.bf16.gmra.mxu0 %v5999
  %v6320 = vpop.f32.mrf.mxu0
  %v6321 = vadd.f32 0.0, %v6320
  %v6322 = vpop.f32.mrf.mxu0
  %v6323 = vpop.f32.mrf.mxu0
  %v6324 = vadd.f32 0.0, %v6323
  %v6325 = vpop.f32.mrf.mxu0
  %6326 = vmatprep.mubr.bf16.mxu0 0
  %6327 = vmatmul.mubr.bf16.gmra.mxu0 %v6000
  %v6328 = vpop.f32.mrf.mxu0
  %v6329 = vadd.f32 0.0, %v6328
  %v6330 = vpop.f32.mrf.mxu0
  %v6331 = vpop.f32.mrf.mxu0
  %v6332 = vadd.f32 0.0, %v6331
  %v6333 = vpop.f32.mrf.mxu0
  %6334 = vmatprep.mubr.bf16.mxu0 0
  %6335 = vmatmul.mubr.bf16.gmra.mxu0 %v6001
  %v6336 = vpop.f32.mrf.mxu0
  %v6337 = vadd.f32 0.0, %v6336
  %v6338 = vpop.f32.mrf.mxu0
  %v6339 = vpop.f32.mrf.mxu0
  %v6340 = vadd.f32 0.0, %v6339
  %v6341 = vpop.f32.mrf.mxu0
  %6342 = vmatprep.mubr.bf16.mxu0 0
  %6343 = vmatmul.mubr.bf16.gmra.mxu0 %v6002
  %v6344 = vpop.f32.mrf.mxu0
  %v6345 = vadd.f32 0.0, %v6344
  %v6346 = vpop.f32.mrf.mxu0
  %v6347 = vpop.f32.mrf.mxu0
  %v6348 = vadd.f32 0.0, %v6347
  %v6349 = vpop.f32.mrf.mxu0
  %6350 = vmatprep.mubr.bf16.mxu0 0
  %6351 = vmatmul.mubr.bf16.gmra.mxu0 %v6003
  %v6352 = vpop.f32.mrf.mxu0
  %v6353 = vadd.f32 0.0, %v6352
  %v6354 = vpop.f32.mrf.mxu0
  %v6355 = vpop.f32.mrf.mxu0
  %v6356 = vadd.f32 0.0, %v6355
  %v6357 = vpop.f32.mrf.mxu0
  %6358 = vmatprep.mubr.bf16.mxu0 0
  %6359 = vmatmul.mubr.bf16.gmra.mxu0 %v6004
  %v6360 = vpop.f32.mrf.mxu0
  %v6361 = vadd.f32 0.0, %v6360
  %v6362 = vpop.f32.mrf.mxu0
  %v6363 = vpop.f32.mrf.mxu0
  %v6364 = vadd.f32 0.0, %v6363
  %v6365 = vpop.f32.mrf.mxu0
  %6366 = vmatprep.mubr.bf16.mxu0 0
  %6367 = vmatmul.mubr.bf16.gmra.mxu0 %v6005
  %v6368 = vpop.f32.mrf.mxu0
  %v6369 = vadd.f32 0.0, %v6368
  %v6370 = vpop.f32.mrf.mxu0
  %v6371 = vpop.f32.mrf.mxu0
  %v6372 = vadd.f32 0.0, %v6371
  %v6373 = vpop.f32.mrf.mxu0
  %6374 = vdwg.mxu0
  %v6375 = vadd.f32 %v5700, %v6121
  %v6376 = vadd.f32 %v5701, %v6124
  %v6377 = vadd.f32 %v5702, %v6129
  %v6378 = vadd.f32 %v5703, %v6132
  %v6379 = vadd.f32 %v5704, %v6137
  %v6380 = vadd.f32 %v5705, %v6140
  %v6381 = vadd.f32 %v5706, %v6145
  %v6382 = vadd.f32 %v5707, %v6148
  %v6383 = vadd.f32 %v5708, %v6153
  %v6384 = vadd.f32 %v5709, %v6156
  %v6385 = vadd.f32 %v5710, %v6161
  %v6386 = vadd.f32 %v5711, %v6164
  %v6387 = vadd.f32 %v5712, %v6169
  %v6388 = vadd.f32 %v5713, %v6172
  %v6389 = vadd.f32 %v5714, %v6177
  %v6390 = vadd.f32 %v5715, %v6180
  %v6391 = vadd.f32 %v5716, %v6185
  %v6392 = vadd.f32 %v5717, %v6188
  %v6393 = vadd.f32 %v5718, %v6193
  %v6394 = vadd.f32 %v5719, %v6196
  %v6395 = vadd.f32 %v5720, %v6201
  %v6396 = vadd.f32 %v5721, %v6204
  %v6397 = vadd.f32 %v5722, %v6209
  %v6398 = vadd.f32 %v5723, %v6212
  %v6399 = vadd.f32 %v5724, %v6217
  %v6400 = vadd.f32 %v5725, %v6220
  %v6401 = vadd.f32 %v5726, %v6225
  %v6402 = vadd.f32 %v5727, %v6228
  %v6403 = vadd.f32 %v5728, %v6233
  %v6404 = vadd.f32 %v5729, %v6236
  %v6405 = vadd.f32 %v5730, %v6241
  %v6406 = vadd.f32 %v5731, %v6244
  %v6407 = vadd.f32 %v5732, %v6249
  %v6408 = vadd.f32 %v5733, %v6252
  %v6409 = vadd.f32 %v5734, %v6257
  %v6410 = vadd.f32 %v5735, %v6260
  %v6411 = vadd.f32 %v5736, %v6265
  %v6412 = vadd.f32 %v5737, %v6268
  %v6413 = vadd.f32 %v5738, %v6273
  %v6414 = vadd.f32 %v5739, %v6276
  %v6415 = vadd.f32 %v5740, %v6281
  %v6416 = vadd.f32 %v5741, %v6284
  %v6417 = vadd.f32 %v5742, %v6289
  %v6418 = vadd.f32 %v5743, %v6292
  %v6419 = vadd.f32 %v5744, %v6297
  %v6420 = vadd.f32 %v5745, %v6300
  %v6421 = vadd.f32 %v5746, %v6305
  %v6422 = vadd.f32 %v5747, %v6308
  %v6423 = vadd.f32 %v5748, %v6313
  %v6424 = vadd.f32 %v5749, %v6316
  %v6425 = vadd.f32 %v5750, %v6321
  %v6426 = vadd.f32 %v5751, %v6324
  %v6427 = vadd.f32 %v5752, %v6329
  %v6428 = vadd.f32 %v5753, %v6332
  %v6429 = vadd.f32 %v5754, %v6337
  %v6430 = vadd.f32 %v5755, %v6340
  %v6431 = vadd.f32 %v5756, %v6345
  %v6432 = vadd.f32 %v5757, %v6348
  %v6433 = vadd.f32 %v5758, %v6353
  %v6434 = vadd.f32 %v5759, %v6356
  %v6435 = vadd.f32 %v5760, %v6361
  %v6436 = vadd.f32 %v5761, %v6364
  %v6437 = vadd.f32 %v5762, %v6369
  %v6438 = vadd.f32 %v5763, %v6372
  %v6439 = vld [vmem:[%s5764] sm:$0xf]
  %v6440 = vld [vmem:[%s5764 + $0x4] sm:$0xf]
  %v6441 = vld [vmem:[%s5764 + $0x8] sm:$0x1]
  %v6442 = vld [vmem:[%s5764 + $0xc] sm:$0xf]
  %v6443 = vld [vmem:[%s5764 + $0x10] sm:$0xf]
  %v6444 = vld [vmem:[%s5764 + $0x14] sm:$0x1]
  %v6445 = vld [vmem:[%s5764 + $0x18] sm:$0xf]
  %v6446 = vld [vmem:[%s5764 + $0x1c] sm:$0xf]
  %v6447 = vld [vmem:[%s5764 + $0x20] sm:$0x1]
  %v6448 = vld [vmem:[%s5764 + $0x24] sm:$0xf]
  %v6449 = vld [vmem:[%s5764 + $0x28] sm:$0xf]
  %v6450 = vld [vmem:[%s5764 + $0x2c] sm:$0x1]
  %v6451 = vld [vmem:[%s5764 + $0x30] sm:$0xf]
  %v6452 = vld [vmem:[%s5764 + $0x34] sm:$0xf]
  %v6453 = vld [vmem:[%s5764 + $0x38] sm:$0x1]
  %v6454 = vld [vmem:[%s5764 + $0x3c] sm:$0xf]
  %v6455 = vld [vmem:[%s5764 + $0x40] sm:$0xf]
  %v6456 = vld [vmem:[%s5764 + $0x44] sm:$0x1]
  %v6457 = vld [vmem:[%s5764 + $0x48] sm:$0xf]
  %v6458 = vld [vmem:[%s5764 + $0x4c] sm:$0xf]
  %v6459 = vld [vmem:[%s5764 + $0x50] sm:$0x1]
  %v6460 = vld [vmem:[%s5764 + $0x54] sm:$0xf]
  %v6461 = vld [vmem:[%s5764 + $0x58] sm:$0xf]
  %v6462 = vld [vmem:[%s5764 + $0x5c] sm:$0x1]
  %v6463 = vld [vmem:[%s5764 + $0x60] sm:$0xf]
  %v6464 = vld [vmem:[%s5764 + $0x64] sm:$0xf]
  %v6465 = vld [vmem:[%s5764 + $0x68] sm:$0x1]
  %v6466 = vld [vmem:[%s5764 + $0x6c] sm:$0xf]
  %v6467 = vld [vmem:[%s5764 + $0x70] sm:$0xf]
  %v6468 = vld [vmem:[%s5764 + $0x74] sm:$0x1]
  %v6469 = vld [vmem:[%s5764 + $0x78] sm:$0xf]
  %v6470 = vld [vmem:[%s5764 + $0x7c] sm:$0xf]
  %v6471 = vld [vmem:[%s5764 + $0x80] sm:$0x1]
  %v6472 = vld [vmem:[%s5764 + $0x84] sm:$0xf]
  %v6473 = vld [vmem:[%s5764 + $0x88] sm:$0xf]
  %v6474 = vld [vmem:[%s5764 + $0x8c] sm:$0x1]
  %v6475 = vld [vmem:[%s5764 + $0x90] sm:$0xf]
  %v6476 = vld [vmem:[%s5764 + $0x94] sm:$0xf]
  %v6477 = vld [vmem:[%s5764 + $0x98] sm:$0x1]
  %v6478 = vld [vmem:[%s5764 + $0x9c] sm:$0xf]
  %v6479 = vld [vmem:[%s5764 + $0xa0] sm:$0xf]
  %v6480 = vld [vmem:[%s5764 + $0xa4] sm:$0x1]
  %v6481 = vld [vmem:[%s5764 + $0xa8] sm:$0xf]
  %v6482 = vld [vmem:[%s5764 + $0xac] sm:$0xf]
  %v6483 = vld [vmem:[%s5764 + $0xb0] sm:$0x1]
  %v6484 = vld [vmem:[%s5764 + $0xb4] sm:$0xf]
  %v6485 = vld [vmem:[%s5764 + $0xb8] sm:$0xf]
  %v6486 = vld [vmem:[%s5764 + $0xbc] sm:$0x1]
  %v6487 = vld [vmem:[%s5764 + $0xd8] sm:$0xf]
  %v6488 = vld [vmem:[%s5764 + $0xdc] sm:$0xf]
  %v6489 = vld [vmem:[%s5764 + $0xe0] sm:$0x1]
  %v6490 = vld [vmem:[%s5764 + $0xe4] sm:$0xf]
  %v6491 = vld [vmem:[%s5764 + $0xe8] sm:$0xf]
  %v6492 = vld [vmem:[%s5764 + $0xec] sm:$0x1]
  %v6493 = vld [vmem:[%s5764 + $0xf0] sm:$0xf]
  %v6494 = vld [vmem:[%s5764 + $0xf4] sm:$0xf]
  %v6495 = vld [vmem:[%s5764 + $0xf8] sm:$0x1]
  %v6496 = vld [vmem:[%s5764 + $0xfc] sm:$0xf]
  %v6497 = vld [vmem:[%s5764 + $0x100] sm:$0xf]
  %v6498 = vld [vmem:[%s5764 + $0x104] sm:$0x1]
  %v6499 = vld [vmem:[%s5764 + $0x108] sm:$0xf]
  %v6500 = vld [vmem:[%s5764 + $0x10c] sm:$0xf]
  %v6501 = vld [vmem:[%s5764 + $0x110] sm:$0x1]
  %v6502 = vld [vmem:[%s5764 + $0x114] sm:$0xf]
  %v6503 = vld [vmem:[%s5764 + $0x118] sm:$0xf]
  %v6504 = vld [vmem:[%s5764 + $0x11c] sm:$0x1]
  %v6505 = vld [vmem:[%s5764 + $0x120] sm:$0xf]
  %v6506 = vld [vmem:[%s5764 + $0x124] sm:$0xf]
  %v6507 = vld [vmem:[%s5764 + $0x128] sm:$0x1]
  %v6508 = vld [vmem:[%s5764 + $0x12c] sm:$0xf]
  %v6509 = vld [vmem:[%s5764 + $0x130] sm:$0xf]
  %v6510 = vld [vmem:[%s5764 + $0x134] sm:$0x1]
  %v6511 = vld [vmem:[%s5764 + $0x138] sm:$0xf]
  %v6512 = vld [vmem:[%s5764 + $0x13c] sm:$0xf]
  %v6513 = vld [vmem:[%s5764 + $0x140] sm:$0x1]
  %v6514 = vld [vmem:[%s5764 + $0x144] sm:$0xf]
  %v6515 = vld [vmem:[%s5764 + $0x148] sm:$0xf]
  %v6516 = vld [vmem:[%s5764 + $0x14c] sm:$0x1]
  %v6517 = vld [vmem:[%s5764 + $0x150] sm:$0xf]
  %v6518 = vld [vmem:[%s5764 + $0x154] sm:$0xf]
  %v6519 = vld [vmem:[%s5764 + $0x158] sm:$0x1]
  %v6520 = vld [vmem:[%s5764 + $0x15c] sm:$0xf]
  %v6521 = vld [vmem:[%s5764 + $0x160] sm:$0xf]
  %v6522 = vld [vmem:[%s5764 + $0x164] sm:$0x1]
  %v6523 = vld [vmem:[%s5764 + $0x168] sm:$0xf]
  %v6524 = vld [vmem:[%s5764 + $0x16c] sm:$0xf]
  %v6525 = vld [vmem:[%s5764 + $0x170] sm:$0x1]
  %v6526 = vld [vmem:[%s5764 + $0x174] sm:$0xf]
  %v6527 = vld [vmem:[%s5764 + $0x178] sm:$0xf]
  %v6528 = vld [vmem:[%s5764 + $0x17c] sm:$0x1]
  %v6529 = vld [vmem:[%s5764 + $0x180] sm:$0xf]
  %v6530 = vld [vmem:[%s5764 + $0x184] sm:$0xf]
  %v6531 = vld [vmem:[%s5764 + $0x188] sm:$0x1]
  %v6532 = vld [vmem:[%s5764 + $0x18c] sm:$0xf]
  %v6533 = vld [vmem:[%s5764 + $0x190] sm:$0xf]
  %v6534 = vld [vmem:[%s5764 + $0x194] sm:$0x1]
  %v6536 = vshrl.u32 %v6439, 16
  %v6538 = vrot.slane %v6536, 4
  %v6539 = vshll.u32 %v6439, 16
  %v6541 = vrot.slane %v6539, 5
  %v6542 = vor.u32 %v6538, %v6541
  %v6543 = vrot.slane %v6542, 4
  %v6545 = vshll.u32 %v6440, 16
  %v6547 = vrot.slane %v6545, 5
  %v6548 = vsel %vm132, %v6543, %v6547
  %v6549 = vshrl.u32 %v6440, 16
  %v6551 = vrot.slane %v6549, 4
  %v6552 = vor.u32 %v6551, %v6547
  %v6553 = vrot.slane %v6552, 4
  %v6555 = vshll.u32 %v6441, 16
  %v6557 = vrot.slane %v6555, 5
  %v6558 = vsel %vm132, %v6553, %v6557
  %v6560 = vshrl.u32 %v6442, 16
  %v6562 = vrot.slane %v6560, 4
  %v6563 = vshll.u32 %v6442, 16
  %v6565 = vrot.slane %v6563, 5
  %v6566 = vor.u32 %v6562, %v6565
  %v6567 = vrot.slane %v6566, 4
  %v6569 = vshll.u32 %v6443, 16
  %v6571 = vrot.slane %v6569, 5
  %v6572 = vsel %vm132, %v6567, %v6571
  %v6573 = vshrl.u32 %v6443, 16
  %v6575 = vrot.slane %v6573, 4
  %v6576 = vor.u32 %v6575, %v6571
  %v6577 = vrot.slane %v6576, 4
  %v6579 = vshll.u32 %v6444, 16
  %v6581 = vrot.slane %v6579, 5
  %v6582 = vsel %vm132, %v6577, %v6581
  %v6584 = vshrl.u32 %v6445, 16
  %v6586 = vrot.slane %v6584, 4
  %v6587 = vshll.u32 %v6445, 16
  %v6589 = vrot.slane %v6587, 5
  %v6590 = vor.u32 %v6586, %v6589
  %v6591 = vrot.slane %v6590, 4
  %v6593 = vshll.u32 %v6446, 16
  %v6595 = vrot.slane %v6593, 5
  %v6596 = vsel %vm132, %v6591, %v6595
  %v6597 = vshrl.u32 %v6446, 16
  %v6599 = vrot.slane %v6597, 4
  %v6600 = vor.u32 %v6599, %v6595
  %v6601 = vrot.slane %v6600, 4
  %v6603 = vshll.u32 %v6447, 16
  %v6605 = vrot.slane %v6603, 5
  %v6606 = vsel %vm132, %v6601, %v6605
  %v6608 = vshrl.u32 %v6448, 16
  %v6610 = vrot.slane %v6608, 4
  %v6611 = vshll.u32 %v6448, 16
  %v6613 = vrot.slane %v6611, 5
  %v6614 = vor.u32 %v6610, %v6613
  %v6615 = vrot.slane %v6614, 4
  %v6617 = vshll.u32 %v6449, 16
  %v6619 = vrot.slane %v6617, 5
  %v6620 = vsel %vm132, %v6615, %v6619
  %v6621 = vshrl.u32 %v6449, 16
  %v6623 = vrot.slane %v6621, 4
  %v6624 = vor.u32 %v6623, %v6619
  %v6625 = vrot.slane %v6624, 4
  %v6627 = vshll.u32 %v6450, 16
  %v6629 = vrot.slane %v6627, 5
  %v6630 = vsel %vm132, %v6625, %v6629
  %v6632 = vshrl.u32 %v6451, 16
  %v6634 = vrot.slane %v6632, 4
  %v6635 = vshll.u32 %v6451, 16
  %v6637 = vrot.slane %v6635, 5
  %v6638 = vor.u32 %v6634, %v6637
  %v6639 = vrot.slane %v6638, 4
  %v6641 = vshll.u32 %v6452, 16
  %v6643 = vrot.slane %v6641, 5
  %v6644 = vsel %vm132, %v6639, %v6643
  %v6645 = vshrl.u32 %v6452, 16
  %v6647 = vrot.slane %v6645, 4
  %v6648 = vor.u32 %v6647, %v6643
  %v6649 = vrot.slane %v6648, 4
  %v6651 = vshll.u32 %v6453, 16
  %v6653 = vrot.slane %v6651, 5
  %v6654 = vsel %vm132, %v6649, %v6653
  %v6656 = vshrl.u32 %v6454, 16
  %v6658 = vrot.slane %v6656, 4
  %v6659 = vshll.u32 %v6454, 16
  %v6661 = vrot.slane %v6659, 5
  %v6662 = vor.u32 %v6658, %v6661
  %v6663 = vrot.slane %v6662, 4
  %v6665 = vshll.u32 %v6455, 16
  %v6667 = vrot.slane %v6665, 5
  %v6668 = vsel %vm132, %v6663, %v6667
  %v6669 = vshrl.u32 %v6455, 16
  %v6671 = vrot.slane %v6669, 4
  %v6672 = vor.u32 %v6671, %v6667
  %v6673 = vrot.slane %v6672, 4
  %v6675 = vshll.u32 %v6456, 16
  %v6677 = vrot.slane %v6675, 5
  %v6678 = vsel %vm132, %v6673, %v6677
  %v6680 = vshrl.u32 %v6457, 16
  %v6682 = vrot.slane %v6680, 4
  %v6683 = vshll.u32 %v6457, 16
  %v6685 = vrot.slane %v6683, 5
  %v6686 = vor.u32 %v6682, %v6685
  %v6687 = vrot.slane %v6686, 4
  %v6689 = vshll.u32 %v6458, 16
  %v6691 = vrot.slane %v6689, 5
  %v6692 = vsel %vm132, %v6687, %v6691
  %v6693 = vshrl.u32 %v6458, 16
  %v6695 = vrot.slane %v6693, 4
  %v6696 = vor.u32 %v6695, %v6691
  %v6697 = vrot.slane %v6696, 4
  %v6699 = vshll.u32 %v6459, 16
  %v6701 = vrot.slane %v6699, 5
  %v6702 = vsel %vm132, %v6697, %v6701
  %v6704 = vshrl.u32 %v6460, 16
  %v6706 = vrot.slane %v6704, 4
  %v6707 = vshll.u32 %v6460, 16
  %v6709 = vrot.slane %v6707, 5
  %v6710 = vor.u32 %v6706, %v6709
  %v6711 = vrot.slane %v6710, 4
  %v6713 = vshll.u32 %v6461, 16
  %v6715 = vrot.slane %v6713, 5
  %v6716 = vsel %vm132, %v6711, %v6715
  %v6717 = vshrl.u32 %v6461, 16
  %v6719 = vrot.slane %v6717, 4
  %v6720 = vor.u32 %v6719, %v6715
  %v6721 = vrot.slane %v6720, 4
  %v6723 = vshll.u32 %v6462, 16
  %v6725 = vrot.slane %v6723, 5
  %v6726 = vsel %vm132, %v6721, %v6725
  %v6728 = vshrl.u32 %v6463, 16
  %v6730 = vrot.slane %v6728, 4
  %v6731 = vshll.u32 %v6463, 16
  %v6733 = vrot.slane %v6731, 5
  %v6734 = vor.u32 %v6730, %v6733
  %v6735 = vrot.slane %v6734, 4
  %v6737 = vshll.u32 %v6464, 16
  %v6739 = vrot.slane %v6737, 5
  %v6740 = vsel %vm132, %v6735, %v6739
  %v6741 = vshrl.u32 %v6464, 16
  %v6743 = vrot.slane %v6741, 4
  %v6744 = vor.u32 %v6743, %v6739
  %v6745 = vrot.slane %v6744, 4
  %v6747 = vshll.u32 %v6465, 16
  %v6749 = vrot.slane %v6747, 5
  %v6750 = vsel %vm132, %v6745, %v6749
  %v6752 = vshrl.u32 %v6466, 16
  %v6754 = vrot.slane %v6752, 4
  %v6755 = vshll.u32 %v6466, 16
  %v6757 = vrot.slane %v6755, 5
  %v6758 = vor.u32 %v6754, %v6757
  %v6759 = vrot.slane %v6758, 4
  %v6761 = vshll.u32 %v6467, 16
  %v6763 = vrot.slane %v6761, 5
  %v6764 = vsel %vm132, %v6759, %v6763
  %v6765 = vshrl.u32 %v6467, 16
  %v6767 = vrot.slane %v6765, 4
  %v6768 = vor.u32 %v6767, %v6763
  %v6769 = vrot.slane %v6768, 4
  %v6771 = vshll.u32 %v6468, 16
  %v6773 = vrot.slane %v6771, 5
  %v6774 = vsel %vm132, %v6769, %v6773
  %v6776 = vshrl.u32 %v6469, 16
  %v6778 = vrot.slane %v6776, 4
  %v6779 = vshll.u32 %v6469, 16
  %v6781 = vrot.slane %v6779, 5
  %v6782 = vor.u32 %v6778, %v6781
  %v6783 = vrot.slane %v6782, 4
  %v6785 = vshll.u32 %v6470, 16
  %v6787 = vrot.slane %v6785, 5
  %v6788 = vsel %vm132, %v6783, %v6787
  %v6789 = vshrl.u32 %v6470, 16
  %v6791 = vrot.slane %v6789, 4
  %v6792 = vor.u32 %v6791, %v6787
  %v6793 = vrot.slane %v6792, 4
  %v6795 = vshll.u32 %v6471, 16
  %v6797 = vrot.slane %v6795, 5
  %v6798 = vsel %vm132, %v6793, %v6797
  %v6800 = vshrl.u32 %v6472, 16
  %v6802 = vrot.slane %v6800, 4
  %v6803 = vshll.u32 %v6472, 16
  %v6805 = vrot.slane %v6803, 5
  %v6806 = vor.u32 %v6802, %v6805
  %v6807 = vrot.slane %v6806, 4
  %v6809 = vshll.u32 %v6473, 16
  %v6811 = vrot.slane %v6809, 5
  %v6812 = vsel %vm132, %v6807, %v6811
  %v6813 = vshrl.u32 %v6473, 16
  %v6815 = vrot.slane %v6813, 4
  %v6816 = vor.u32 %v6815, %v6811
  %v6817 = vrot.slane %v6816, 4
  %v6819 = vshll.u32 %v6474, 16
  %v6821 = vrot.slane %v6819, 5
  %v6822 = vsel %vm132, %v6817, %v6821
  %v6824 = vshrl.u32 %v6475, 16
  %v6826 = vrot.slane %v6824, 4
  %v6827 = vshll.u32 %v6475, 16
  %v6829 = vrot.slane %v6827, 5
  %v6830 = vor.u32 %v6826, %v6829
  %v6831 = vrot.slane %v6830, 4
  %v6833 = vshll.u32 %v6476, 16
  %v6835 = vrot.slane %v6833, 5
  %v6836 = vsel %vm132, %v6831, %v6835
  %v6837 = vshrl.u32 %v6476, 16
  %v6839 = vrot.slane %v6837, 4
  %v6840 = vor.u32 %v6839, %v6835
  %v6841 = vrot.slane %v6840, 4
  %v6843 = vshll.u32 %v6477, 16
  %v6845 = vrot.slane %v6843, 5
  %v6846 = vsel %vm132, %v6841, %v6845
  %v6848 = vshrl.u32 %v6478, 16
  %v6850 = vrot.slane %v6848, 4
  %v6851 = vshll.u32 %v6478, 16
  %v6853 = vrot.slane %v6851, 5
  %v6854 = vor.u32 %v6850, %v6853
  %v6855 = vrot.slane %v6854, 4
  %v6857 = vshll.u32 %v6479, 16
  %v6859 = vrot.slane %v6857, 5
  %v6860 = vsel %vm132, %v6855, %v6859
  %v6861 = vshrl.u32 %v6479, 16
  %v6863 = vrot.slane %v6861, 4
  %v6864 = vor.u32 %v6863, %v6859
  %v6865 = vrot.slane %v6864, 4
  %v6867 = vshll.u32 %v6480, 16
  %v6869 = vrot.slane %v6867, 5
  %v6870 = vsel %vm132, %v6865, %v6869
  %v6872 = vshrl.u32 %v6481, 16
  %v6874 = vrot.slane %v6872, 4
  %v6875 = vshll.u32 %v6481, 16
  %v6877 = vrot.slane %v6875, 5
  %v6878 = vor.u32 %v6874, %v6877
  %v6879 = vrot.slane %v6878, 4
  %v6881 = vshll.u32 %v6482, 16
  %v6883 = vrot.slane %v6881, 5
  %v6884 = vsel %vm132, %v6879, %v6883
  %v6885 = vshrl.u32 %v6482, 16
  %v6887 = vrot.slane %v6885, 4
  %v6888 = vor.u32 %v6887, %v6883
  %v6889 = vrot.slane %v6888, 4
  %v6891 = vshll.u32 %v6483, 16
  %v6893 = vrot.slane %v6891, 5
  %v6894 = vsel %vm132, %v6889, %v6893
  %v6896 = vshrl.u32 %v6484, 16
  %v6898 = vrot.slane %v6896, 4
  %v6899 = vshll.u32 %v6484, 16
  %v6901 = vrot.slane %v6899, 5
  %v6902 = vor.u32 %v6898, %v6901
  %v6903 = vrot.slane %v6902, 4
  %v6905 = vshll.u32 %v6485, 16
  %v6907 = vrot.slane %v6905, 5
  %v6908 = vsel %vm132, %v6903, %v6907
  %v6909 = vshrl.u32 %v6485, 16
  %v6911 = vrot.slane %v6909, 4
  %v6912 = vor.u32 %v6911, %v6907
  %v6913 = vrot.slane %v6912, 4
  %v6915 = vshll.u32 %v6486, 16
  %v6917 = vrot.slane %v6915, 5
  %v6918 = vsel %vm132, %v6913, %v6917
  %v6920 = vshrl.u32 %v6487, 16
  %v6922 = vrot.slane %v6920, 4
  %v6923 = vshll.u32 %v6487, 16
  %v6925 = vrot.slane %v6923, 5
  %v6926 = vor.u32 %v6922, %v6925
  %v6927 = vrot.slane %v6926, 4
  %v6929 = vshll.u32 %v6488, 16
  %v6931 = vrot.slane %v6929, 5
  %v6932 = vsel %vm132, %v6927, %v6931
  %v6933 = vshrl.u32 %v6488, 16
  %v6935 = vrot.slane %v6933, 4
  %v6936 = vor.u32 %v6935, %v6931
  %v6937 = vrot.slane %v6936, 4
  %v6939 = vshll.u32 %v6489, 16
  %v6941 = vrot.slane %v6939, 5
  %v6942 = vsel %vm132, %v6937, %v6941
  %v6944 = vshrl.u32 %v6490, 16
  %v6946 = vrot.slane %v6944, 4
  %v6947 = vshll.u32 %v6490, 16
  %v6949 = vrot.slane %v6947, 5
  %v6950 = vor.u32 %v6946, %v6949
  %v6951 = vrot.slane %v6950, 4
  %v6953 = vshll.u32 %v6491, 16
  %v6955 = vrot.slane %v6953, 5
  %v6956 = vsel %vm132, %v6951, %v6955
  %v6957 = vshrl.u32 %v6491, 16
  %v6959 = vrot.slane %v6957, 4
  %v6960 = vor.u32 %v6959, %v6955
  %v6961 = vrot.slane %v6960, 4
  %v6963 = vshll.u32 %v6492, 16
  %v6965 = vrot.slane %v6963, 5
  %v6966 = vsel %vm132, %v6961, %v6965
  %v6968 = vshrl.u32 %v6493, 16
  %v6970 = vrot.slane %v6968, 4
  %v6971 = vshll.u32 %v6493, 16
  %v6973 = vrot.slane %v6971, 5
  %v6974 = vor.u32 %v6970, %v6973
  %v6975 = vrot.slane %v6974, 4
  %v6977 = vshll.u32 %v6494, 16
  %v6979 = vrot.slane %v6977, 5
  %v6980 = vsel %vm132, %v6975, %v6979
  %v6981 = vshrl.u32 %v6494, 16
  %v6983 = vrot.slane %v6981, 4
  %v6984 = vor.u32 %v6983, %v6979
  %v6985 = vrot.slane %v6984, 4
  %v6987 = vshll.u32 %v6495, 16
  %v6989 = vrot.slane %v6987, 5
  %v6990 = vsel %vm132, %v6985, %v6989
  %v6992 = vshrl.u32 %v6496, 16
  %v6994 = vrot.slane %v6992, 4
  %v6995 = vshll.u32 %v6496, 16
  %v6997 = vrot.slane %v6995, 5
  %v6998 = vor.u32 %v6994, %v6997
  %v6999 = vrot.slane %v6998, 4
  %v7001 = vshll.u32 %v6497, 16
  %v7003 = vrot.slane %v7001, 5
  %v7004 = vsel %vm132, %v6999, %v7003
  %v7005 = vshrl.u32 %v6497, 16
  %v7007 = vrot.slane %v7005, 4
  %v7008 = vor.u32 %v7007, %v7003
  %v7009 = vrot.slane %v7008, 4
  %v7011 = vshll.u32 %v6498, 16
  %v7013 = vrot.slane %v7011, 5
  %v7014 = vsel %vm132, %v7009, %v7013
  %v7016 = vshrl.u32 %v6499, 16
  %v7018 = vrot.slane %v7016, 4
  %v7019 = vshll.u32 %v6499, 16
  %v7021 = vrot.slane %v7019, 5
  %v7022 = vor.u32 %v7018, %v7021
  %v7023 = vrot.slane %v7022, 4
  %v7025 = vshll.u32 %v6500, 16
  %v7027 = vrot.slane %v7025, 5
  %v7028 = vsel %vm132, %v7023, %v7027
  %v7029 = vshrl.u32 %v6500, 16
  %v7031 = vrot.slane %v7029, 4
  %v7032 = vor.u32 %v7031, %v7027
  %v7033 = vrot.slane %v7032, 4
  %v7035 = vshll.u32 %v6501, 16
  %v7037 = vrot.slane %v7035, 5
  %v7038 = vsel %vm132, %v7033, %v7037
  %v7040 = vshrl.u32 %v6502, 16
  %v7042 = vrot.slane %v7040, 4
  %v7043 = vshll.u32 %v6502, 16
  %v7045 = vrot.slane %v7043, 5
  %v7046 = vor.u32 %v7042, %v7045
  %v7047 = vrot.slane %v7046, 4
  %v7049 = vshll.u32 %v6503, 16
  %v7051 = vrot.slane %v7049, 5
  %v7052 = vsel %vm132, %v7047, %v7051
  %v7053 = vshrl.u32 %v6503, 16
  %v7055 = vrot.slane %v7053, 4
  %v7056 = vor.u32 %v7055, %v7051
  %v7057 = vrot.slane %v7056, 4
  %v7059 = vshll.u32 %v6504, 16
  %v7061 = vrot.slane %v7059, 5
  %v7062 = vsel %vm132, %v7057, %v7061
  %v7064 = vshrl.u32 %v6505, 16
  %v7066 = vrot.slane %v7064, 4
  %v7067 = vshll.u32 %v6505, 16
  %v7069 = vrot.slane %v7067, 5
  %v7070 = vor.u32 %v7066, %v7069
  %v7071 = vrot.slane %v7070, 4
  %v7073 = vshll.u32 %v6506, 16
  %v7075 = vrot.slane %v7073, 5
  %v7076 = vsel %vm132, %v7071, %v7075
  %v7077 = vshrl.u32 %v6506, 16
  %v7079 = vrot.slane %v7077, 4
  %v7080 = vor.u32 %v7079, %v7075
  %v7081 = vrot.slane %v7080, 4
  %v7083 = vshll.u32 %v6507, 16
  %v7085 = vrot.slane %v7083, 5
  %v7086 = vsel %vm132, %v7081, %v7085
  %v7088 = vshrl.u32 %v6508, 16
  %v7090 = vrot.slane %v7088, 4
  %v7091 = vshll.u32 %v6508, 16
  %v7093 = vrot.slane %v7091, 5
  %v7094 = vor.u32 %v7090, %v7093
  %v7095 = vrot.slane %v7094, 4
  %v7097 = vshll.u32 %v6509, 16
  %v7099 = vrot.slane %v7097, 5
  %v7100 = vsel %vm132, %v7095, %v7099
  %v7101 = vshrl.u32 %v6509, 16
  %v7103 = vrot.slane %v7101, 4
  %v7104 = vor.u32 %v7103, %v7099
  %v7105 = vrot.slane %v7104, 4
  %v7107 = vshll.u32 %v6510, 16
  %v7109 = vrot.slane %v7107, 5
  %v7110 = vsel %vm132, %v7105, %v7109
  %v7112 = vshrl.u32 %v6511, 16
  %v7114 = vrot.slane %v7112, 4
  %v7115 = vshll.u32 %v6511, 16
  %v7117 = vrot.slane %v7115, 5
  %v7118 = vor.u32 %v7114, %v7117
  %v7119 = vrot.slane %v7118, 4
  %v7121 = vshll.u32 %v6512, 16
  %v7123 = vrot.slane %v7121, 5
  %v7124 = vsel %vm132, %v7119, %v7123
  %v7125 = vshrl.u32 %v6512, 16
  %v7127 = vrot.slane %v7125, 4
  %v7128 = vor.u32 %v7127, %v7123
  %v7129 = vrot.slane %v7128, 4
  %v7131 = vshll.u32 %v6513, 16
  %v7133 = vrot.slane %v7131, 5
  %v7134 = vsel %vm132, %v7129, %v7133
  %v7136 = vshrl.u32 %v6514, 16
  %v7138 = vrot.slane %v7136, 4
  %v7139 = vshll.u32 %v6514, 16
  %v7141 = vrot.slane %v7139, 5
  %v7142 = vor.u32 %v7138, %v7141
  %v7143 = vrot.slane %v7142, 4
  %v7145 = vshll.u32 %v6515, 16
  %v7147 = vrot.slane %v7145, 5
  %v7148 = vsel %vm132, %v7143, %v7147
  %v7149 = vshrl.u32 %v6515, 16
  %v7151 = vrot.slane %v7149, 4
  %v7152 = vor.u32 %v7151, %v7147
  %v7153 = vrot.slane %v7152, 4
  %v7155 = vshll.u32 %v6516, 16
  %v7157 = vrot.slane %v7155, 5
  %v7158 = vsel %vm132, %v7153, %v7157
  %v7160 = vshrl.u32 %v6517, 16
  %v7162 = vrot.slane %v7160, 4
  %v7163 = vshll.u32 %v6517, 16
  %v7165 = vrot.slane %v7163, 5
  %v7166 = vor.u32 %v7162, %v7165
  %v7167 = vrot.slane %v7166, 4
  %v7169 = vshll.u32 %v6518, 16
  %v7171 = vrot.slane %v7169, 5
  %v7172 = vsel %vm132, %v7167, %v7171
  %v7173 = vshrl.u32 %v6518, 16
  %v7175 = vrot.slane %v7173, 4
  %v7176 = vor.u32 %v7175, %v7171
  %v7177 = vrot.slane %v7176, 4
  %v7179 = vshll.u32 %v6519, 16
  %v7181 = vrot.slane %v7179, 5
  %v7182 = vsel %vm132, %v7177, %v7181
  %v7184 = vshrl.u32 %v6520, 16
  %v7186 = vrot.slane %v7184, 4
  %v7187 = vshll.u32 %v6520, 16
  %v7189 = vrot.slane %v7187, 5
  %v7190 = vor.u32 %v7186, %v7189
  %v7191 = vrot.slane %v7190, 4
  %v7193 = vshll.u32 %v6521, 16
  %v7195 = vrot.slane %v7193, 5
  %v7196 = vsel %vm132, %v7191, %v7195
  %v7197 = vshrl.u32 %v6521, 16
  %v7199 = vrot.slane %v7197, 4
  %v7200 = vor.u32 %v7199, %v7195
  %v7201 = vrot.slane %v7200, 4
  %v7203 = vshll.u32 %v6522, 16
  %v7205 = vrot.slane %v7203, 5
  %v7206 = vsel %vm132, %v7201, %v7205
  %v7208 = vshrl.u32 %v6523, 16
  %v7210 = vrot.slane %v7208, 4
  %v7211 = vshll.u32 %v6523, 16
  %v7213 = vrot.slane %v7211, 5
  %v7214 = vor.u32 %v7210, %v7213
  %v7215 = vrot.slane %v7214, 4
  %v7217 = vshll.u32 %v6524, 16
  %v7219 = vrot.slane %v7217, 5
  %v7220 = vsel %vm132, %v7215, %v7219
  %v7221 = vshrl.u32 %v6524, 16
  %v7223 = vrot.slane %v7221, 4
  %v7224 = vor.u32 %v7223, %v7219
  %v7225 = vrot.slane %v7224, 4
  %v7227 = vshll.u32 %v6525, 16
  %v7229 = vrot.slane %v7227, 5
  %v7230 = vsel %vm132, %v7225, %v7229
  %v7232 = vshrl.u32 %v6526, 16
  %v7234 = vrot.slane %v7232, 4
  %v7235 = vshll.u32 %v6526, 16
  %v7237 = vrot.slane %v7235, 5
  %v7238 = vor.u32 %v7234, %v7237
  %v7239 = vrot.slane %v7238, 4
  %v7241 = vshll.u32 %v6527, 16
  %v7243 = vrot.slane %v7241, 5
  %v7244 = vsel %vm132, %v7239, %v7243
  %v7245 = vshrl.u32 %v6527, 16
  %v7247 = vrot.slane %v7245, 4
  %v7248 = vor.u32 %v7247, %v7243
  %v7249 = vrot.slane %v7248, 4
  %v7251 = vshll.u32 %v6528, 16
  %v7253 = vrot.slane %v7251, 5
  %v7254 = vsel %vm132, %v7249, %v7253
  %v7256 = vshrl.u32 %v6529, 16
  %v7258 = vrot.slane %v7256, 4
  %v7259 = vshll.u32 %v6529, 16
  %v7261 = vrot.slane %v7259, 5
  %v7262 = vor.u32 %v7258, %v7261
  %v7263 = vrot.slane %v7262, 4
  %v7265 = vshll.u32 %v6530, 16
  %v7267 = vrot.slane %v7265, 5
  %v7268 = vsel %vm132, %v7263, %v7267
  %v7269 = vshrl.u32 %v6530, 16
  %v7271 = vrot.slane %v7269, 4
  %v7272 = vor.u32 %v7271, %v7267
  %v7273 = vrot.slane %v7272, 4
  %v7275 = vshll.u32 %v6531, 16
  %v7277 = vrot.slane %v7275, 5
  %v7278 = vsel %vm132, %v7273, %v7277
  %v7280 = vshrl.u32 %v6532, 16
  %v7282 = vrot.slane %v7280, 4
  %v7283 = vshll.u32 %v6532, 16
  %v7285 = vrot.slane %v7283, 5
  %v7286 = vor.u32 %v7282, %v7285
  %v7287 = vrot.slane %v7286, 4
  %v7289 = vshll.u32 %v6533, 16
  %v7291 = vrot.slane %v7289, 5
  %v7292 = vsel %vm132, %v7287, %v7291
  %v7293 = vshrl.u32 %v6533, 16
  %v7295 = vrot.slane %v7293, 4
  %v7296 = vor.u32 %v7295, %v7291
  %v7297 = vrot.slane %v7296, 4
  %v7299 = vshll.u32 %v6534, 16
  %v7301 = vrot.slane %v7299, 5
  %v7302 = vsel %vm132, %v7297, %v7301
  %s7303 = scalar_lea.vmem %s1, 448
  %v7304 = vld [vmem:[%s7303] sm:$0xf]
  %v7305 = vld [vmem:[%s7303 + $0x4] sm:$0xf]
  %v7306 = vld [vmem:[%s7303 + $0x8] sm:$0xf]
  %v7307 = vld [vmem:[%s7303 + $0xc] sm:$0xf]
  %v7308 = vld [vmem:[%s7303 + $0x10] sm:$0xf]
  %v7309 = vld [vmem:[%s7303 + $0x14] sm:$0xf]
  %v7310 = vld [vmem:[%s7303 + $0x18] sm:$0xf]
  %v7311 = vld [vmem:[%s7303 + $0x1c] sm:$0xf]
  %v7312 = vld [vmem:[%s7303 + $0x20] sm:$0xf]
  %v7313 = vld [vmem:[%s7303 + $0x24] sm:$0xf]
  %v7314 = vld [vmem:[%s7303 + $0x28] sm:$0xf]
  %v7315 = vld [vmem:[%s7303 + $0x2c] sm:$0xf]
  %v7316 = vld [vmem:[%s7303 + $0x30] sm:$0xf]
  %v7317 = vld [vmem:[%s7303 + $0x34] sm:$0xf]
  %v7318 = vld [vmem:[%s7303 + $0x38] sm:$0xf]
  %v7319 = vld [vmem:[%s7303 + $0x3c] sm:$0xf]
  %v7320 = vunpack.c.l.b16 %v6548
  %v7321 = vunpack.c.l.b16 %v6558
  %v7322 = vunpack.c.l.b16 %v6572
  %v7323 = vunpack.c.l.b16 %v6582
  %v7324 = vunpack.c.l.b16 %v6596
  %v7325 = vunpack.c.l.b16 %v6606
  %v7326 = vunpack.c.l.b16 %v6620
  %v7327 = vunpack.c.l.b16 %v6630
  %v7328 = vunpack.c.l.b16 %v6644
  %v7329 = vunpack.c.l.b16 %v6654
  %v7330 = vunpack.c.l.b16 %v6668
  %v7331 = vunpack.c.l.b16 %v6678
  %v7332 = vunpack.c.l.b16 %v6692
  %v7333 = vunpack.c.l.b16 %v6702
  %v7334 = vunpack.c.l.b16 %v6716
  %v7335 = vunpack.c.l.b16 %v6726
  %v7336 = vunpack.c.l.b16 %v6740
  %v7337 = vunpack.c.l.b16 %v6750
  %v7338 = vunpack.c.l.b16 %v6764
  %v7339 = vunpack.c.l.b16 %v6774
  %v7340 = vunpack.c.l.b16 %v6788
  %v7341 = vunpack.c.l.b16 %v6798
  %v7342 = vunpack.c.l.b16 %v6812
  %v7343 = vunpack.c.l.b16 %v6822
  %v7344 = vunpack.c.l.b16 %v6836
  %v7345 = vunpack.c.l.b16 %v6846
  %v7346 = vunpack.c.l.b16 %v6860
  %v7347 = vunpack.c.l.b16 %v6870
  %v7348 = vunpack.c.l.b16 %v6884
  %v7349 = vunpack.c.l.b16 %v6894
  %v7350 = vunpack.c.l.b16 %v6908
  %v7351 = vunpack.c.l.b16 %v6918
  %v7352 = vunpack.c.l.b16 %v6932
  %v7353 = vunpack.c.l.b16 %v6942
  %v7354 = vunpack.c.l.b16 %v6956
  %v7355 = vunpack.c.l.b16 %v6966
  %v7356 = vunpack.c.l.b16 %v6980
  %v7357 = vunpack.c.l.b16 %v6990
  %v7358 = vunpack.c.l.b16 %v7004
  %v7359 = vunpack.c.l.b16 %v7014
  %v7360 = vunpack.c.l.b16 %v7028
  %v7361 = vunpack.c.l.b16 %v7038
  %v7362 = vunpack.c.l.b16 %v7052
  %v7363 = vunpack.c.l.b16 %v7062
  %v7364 = vunpack.c.l.b16 %v7076
  %v7365 = vunpack.c.l.b16 %v7086
  %v7366 = vunpack.c.l.b16 %v7100
  %v7367 = vunpack.c.l.b16 %v7110
  %v7368 = vunpack.c.l.b16 %v7124
  %v7369 = vunpack.c.l.b16 %v7134
  %v7370 = vunpack.c.l.b16 %v7148
  %v7371 = vunpack.c.l.b16 %v7158
  %v7372 = vunpack.c.l.b16 %v7172
  %v7373 = vunpack.c.l.b16 %v7182
  %v7374 = vunpack.c.l.b16 %v7196
  %v7375 = vunpack.c.l.b16 %v7206
  %v7376 = vunpack.c.l.b16 %v7220
  %v7377 = vunpack.c.l.b16 %v7230
  %v7378 = vunpack.c.l.b16 %v7244
  %v7379 = vunpack.c.l.b16 %v7254
  %v7380 = vunpack.c.l.b16 %v7268
  %v7381 = vunpack.c.l.b16 %v7278
  %v7382 = vunpack.c.l.b16 %v7292
  %v7383 = vunpack.c.l.b16 %v7302
  %v7384 = vpack.c.b16 %v7321, %v7320
  %v7385 = vpack.c.b16 %v7323, %v7322
  %v7386 = vpack.c.b16 %v7325, %v7324
  %v7387 = vpack.c.b16 %v7327, %v7326
  %v7388 = vpack.c.b16 %v7329, %v7328
  %v7389 = vpack.c.b16 %v7331, %v7330
  %v7390 = vpack.c.b16 %v7333, %v7332
  %v7391 = vpack.c.b16 %v7335, %v7334
  %v7392 = vpack.c.b16 %v7337, %v7336
  %v7393 = vpack.c.b16 %v7339, %v7338
  %v7394 = vpack.c.b16 %v7341, %v7340
  %v7395 = vpack.c.b16 %v7343, %v7342
  %v7396 = vpack.c.b16 %v7345, %v7344
  %v7397 = vpack.c.b16 %v7347, %v7346
  %v7398 = vpack.c.b16 %v7349, %v7348
  %v7399 = vpack.c.b16 %v7351, %v7350
  %v7400 = vpack.c.b16 %v7353, %v7352
  %v7401 = vpack.c.b16 %v7355, %v7354
  %v7402 = vpack.c.b16 %v7357, %v7356
  %v7403 = vpack.c.b16 %v7359, %v7358
  %v7404 = vpack.c.b16 %v7361, %v7360
  %v7405 = vpack.c.b16 %v7363, %v7362
  %v7406 = vpack.c.b16 %v7365, %v7364
  %v7407 = vpack.c.b16 %v7367, %v7366
  %v7408 = vpack.c.b16 %v7369, %v7368
  %v7409 = vpack.c.b16 %v7371, %v7370
  %v7410 = vpack.c.b16 %v7373, %v7372
  %v7411 = vpack.c.b16 %v7375, %v7374
  %v7412 = vpack.c.b16 %v7377, %v7376
  %v7413 = vpack.c.b16 %v7379, %v7378
  %v7414 = vpack.c.b16 %v7381, %v7380
  %v7415 = vpack.c.b16 %v7383, %v7382
  %v7464 = vunpack.c.l.b16 %v7304
  %v7465 = vunpack.c.l.b16 %v7305
  %v7466 = vunpack.c.l.b16 %v7306
  %v7467 = vunpack.c.l.b16 %v7307
  %v7468 = vunpack.c.l.b16 %v7308
  %v7469 = vunpack.c.l.b16 %v7309
  %v7470 = vunpack.c.l.b16 %v7310
  %v7471 = vunpack.c.l.b16 %v7311
  %v7472 = vunpack.c.l.b16 %v7312
  %v7473 = vunpack.c.l.b16 %v7313
  %v7474 = vunpack.c.l.b16 %v7314
  %v7475 = vunpack.c.l.b16 %v7315
  %v7476 = vunpack.c.l.b16 %v7316
  %v7477 = vunpack.c.l.b16 %v7317
  %v7478 = vunpack.c.l.b16 %v7318
  %v7479 = vunpack.c.l.b16 %v7319
  %v7480 = vpack.c.b16 %v7465, %v7464
  %v7481 = vpack.c.b16 %v7467, %v7466
  %v7482 = vpack.c.b16 %v7469, %v7468
  %v7483 = vpack.c.b16 %v7471, %v7470
  %v7484 = vpack.c.b16 %v7473, %v7472
  %v7485 = vpack.c.b16 %v7475, %v7474
  %v7486 = vpack.c.b16 %v7477, %v7476
  %v7487 = vpack.c.b16 %v7479, %v7478
  %7496 = vmatprep.subr.bf16.mxu0 0
  %7497 = vmatpush1.bf16.msra.mxu0 %v7487
  %7498 = vmatprep.subr.bf16.mxu0 0
  %7499 = vmatpush1.bf16.msra.mxu0 %v7486
  %7500 = vmatprep.subr.bf16.mxu0 0
  %7501 = vmatpush1.bf16.msra.mxu0 %v7485
  %7502 = vmatprep.subr.bf16.mxu0 0
  %7503 = vmatpush1.bf16.msra.mxu0 %v7484
  %7504 = vmatprep.subr.bf16.mxu0 0
  %7505 = vmatpush1.bf16.msra.mxu0 %v7483
  %7506 = vmatprep.subr.bf16.mxu0 0
  %7507 = vmatpush1.bf16.msra.mxu0 %v7482
  %7508 = vmatprep.subr.bf16.mxu0 0
  %7509 = vmatpush1.bf16.msra.mxu0 %v7481
  %7510 = vmatprep.subr.bf16.mxu0 0
  %7511 = vmatpush1.bf16.msra.mxu0 %v7480
  %7512 = vmatprep.subr.bf16.mxu0 0
  %7513 = vmatpush2.bf16.msra.mxu0 0
  %7514 = vmatprep.subr.bf16.mxu0 0
  %7515 = vmatpush2.bf16.msra.mxu0 0
  %7516 = vmatprep.subr.bf16.mxu0 0
  %7517 = vmatpush2.bf16.msra.mxu0 0
  %7518 = vmatprep.subr.bf16.mxu0 0
  %7519 = vmatpush2.bf16.msra.mxu0 0
  %7520 = vmatprep.subr.bf16.mxu0 0
  %7521 = vmatpush2.bf16.msra.mxu0 0
  %7522 = vmatprep.subr.bf16.mxu0 0
  %7523 = vmatpush2.bf16.msra.mxu0 0
  %7524 = vmatprep.subr.bf16.mxu0 0
  %7525 = vmatpush2.bf16.msra.mxu0 0
  %7526 = vmatprep.subr.bf16.mxu0 0
  %7527 = vmatpush2.bf16.msra.mxu0 0
  %7528 = vmatprep.mubr.bf16.mxu0 0
  %7529 = vmatmul.mubr.bf16.gmra.mxu0 %v7384
  %v7530 = vpop.f32.mrf.mxu0
  %v7531 = vadd.f32 0.0, %v7530
  %v7532 = vpop.f32.mrf.mxu0
  %v7533 = vpop.f32.mrf.mxu0
  %v7534 = vadd.f32 0.0, %v7533
  %v7535 = vpop.f32.mrf.mxu0
  %7536 = vmatprep.mubr.bf16.mxu0 0
  %7537 = vmatmul.mubr.bf16.gmra.mxu0 %v7385
  %v7538 = vpop.f32.mrf.mxu0
  %v7539 = vadd.f32 0.0, %v7538
  %v7540 = vpop.f32.mrf.mxu0
  %v7541 = vpop.f32.mrf.mxu0
  %v7542 = vadd.f32 0.0, %v7541
  %v7543 = vpop.f32.mrf.mxu0
  %7544 = vmatprep.mubr.bf16.mxu0 0
  %7545 = vmatmul.mubr.bf16.gmra.mxu0 %v7386
  %v7546 = vpop.f32.mrf.mxu0
  %v7547 = vadd.f32 0.0, %v7546
  %v7548 = vpop.f32.mrf.mxu0
  %v7549 = vpop.f32.mrf.mxu0
  %v7550 = vadd.f32 0.0, %v7549
  %v7551 = vpop.f32.mrf.mxu0
  %7552 = vmatprep.mubr.bf16.mxu0 0
  %7553 = vmatmul.mubr.bf16.gmra.mxu0 %v7387
  %v7554 = vpop.f32.mrf.mxu0
  %v7555 = vadd.f32 0.0, %v7554
  %v7556 = vpop.f32.mrf.mxu0
  %v7557 = vpop.f32.mrf.mxu0
  %v7558 = vadd.f32 0.0, %v7557
  %v7559 = vpop.f32.mrf.mxu0
  %7560 = vmatprep.mubr.bf16.mxu0 0
  %7561 = vmatmul.mubr.bf16.gmra.mxu0 %v7388
  %v7562 = vpop.f32.mrf.mxu0
  %v7563 = vadd.f32 0.0, %v7562
  %v7564 = vpop.f32.mrf.mxu0
  %v7565 = vpop.f32.mrf.mxu0
  %v7566 = vadd.f32 0.0, %v7565
  %v7567 = vpop.f32.mrf.mxu0
  %7568 = vmatprep.mubr.bf16.mxu0 0
  %7569 = vmatmul.mubr.bf16.gmra.mxu0 %v7389
  %v7570 = vpop.f32.mrf.mxu0
  %v7571 = vadd.f32 0.0, %v7570
  %v7572 = vpop.f32.mrf.mxu0
  %v7573 = vpop.f32.mrf.mxu0
  %v7574 = vadd.f32 0.0, %v7573
  %v7575 = vpop.f32.mrf.mxu0
  %7576 = vmatprep.mubr.bf16.mxu0 0
  %7577 = vmatmul.mubr.bf16.gmra.mxu0 %v7390
  %v7578 = vpop.f32.mrf.mxu0
  %v7579 = vadd.f32 0.0, %v7578
  %v7580 = vpop.f32.mrf.mxu0
  %v7581 = vpop.f32.mrf.mxu0
  %v7582 = vadd.f32 0.0, %v7581
  %v7583 = vpop.f32.mrf.mxu0
  %7584 = vmatprep.mubr.bf16.mxu0 0
  %7585 = vmatmul.mubr.bf16.gmra.mxu0 %v7391
  %v7586 = vpop.f32.mrf.mxu0
  %v7587 = vadd.f32 0.0, %v7586
  %v7588 = vpop.f32.mrf.mxu0
  %v7589 = vpop.f32.mrf.mxu0
  %v7590 = vadd.f32 0.0, %v7589
  %v7591 = vpop.f32.mrf.mxu0
  %7592 = vmatprep.mubr.bf16.mxu0 0
  %7593 = vmatmul.mubr.bf16.gmra.mxu0 %v7392
  %v7594 = vpop.f32.mrf.mxu0
  %v7595 = vadd.f32 0.0, %v7594
  %v7596 = vpop.f32.mrf.mxu0
  %v7597 = vpop.f32.mrf.mxu0
  %v7598 = vadd.f32 0.0, %v7597
  %v7599 = vpop.f32.mrf.mxu0
  %7600 = vmatprep.mubr.bf16.mxu0 0
  %7601 = vmatmul.mubr.bf16.gmra.mxu0 %v7393
  %v7602 = vpop.f32.mrf.mxu0
  %v7603 = vadd.f32 0.0, %v7602
  %v7604 = vpop.f32.mrf.mxu0
  %v7605 = vpop.f32.mrf.mxu0
  %v7606 = vadd.f32 0.0, %v7605
  %v7607 = vpop.f32.mrf.mxu0
  %7608 = vmatprep.mubr.bf16.mxu0 0
  %7609 = vmatmul.mubr.bf16.gmra.mxu0 %v7394
  %v7610 = vpop.f32.mrf.mxu0
  %v7611 = vadd.f32 0.0, %v7610
  %v7612 = vpop.f32.mrf.mxu0
  %v7613 = vpop.f32.mrf.mxu0
  %v7614 = vadd.f32 0.0, %v7613
  %v7615 = vpop.f32.mrf.mxu0
  %7616 = vmatprep.mubr.bf16.mxu0 0
  %7617 = vmatmul.mubr.bf16.gmra.mxu0 %v7395
  %v7618 = vpop.f32.mrf.mxu0
  %v7619 = vadd.f32 0.0, %v7618
  %v7620 = vpop.f32.mrf.mxu0
  %v7621 = vpop.f32.mrf.mxu0
  %v7622 = vadd.f32 0.0, %v7621
  %v7623 = vpop.f32.mrf.mxu0
  %7624 = vmatprep.mubr.bf16.mxu0 0
  %7625 = vmatmul.mubr.bf16.gmra.mxu0 %v7396
  %v7626 = vpop.f32.mrf.mxu0
  %v7627 = vadd.f32 0.0, %v7626
  %v7628 = vpop.f32.mrf.mxu0
  %v7629 = vpop.f32.mrf.mxu0
  %v7630 = vadd.f32 0.0, %v7629
  %v7631 = vpop.f32.mrf.mxu0
  %7632 = vmatprep.mubr.bf16.mxu0 0
  %7633 = vmatmul.mubr.bf16.gmra.mxu0 %v7397
  %v7634 = vpop.f32.mrf.mxu0
  %v7635 = vadd.f32 0.0, %v7634
  %v7636 = vpop.f32.mrf.mxu0
  %v7637 = vpop.f32.mrf.mxu0
  %v7638 = vadd.f32 0.0, %v7637
  %v7639 = vpop.f32.mrf.mxu0
  %7640 = vmatprep.mubr.bf16.mxu0 0
  %7641 = vmatmul.mubr.bf16.gmra.mxu0 %v7398
  %v7642 = vpop.f32.mrf.mxu0
  %v7643 = vadd.f32 0.0, %v7642
  %v7644 = vpop.f32.mrf.mxu0
  %v7645 = vpop.f32.mrf.mxu0
  %v7646 = vadd.f32 0.0, %v7645
  %v7647 = vpop.f32.mrf.mxu0
  %7648 = vmatprep.mubr.bf16.mxu0 0
  %7649 = vmatmul.mubr.bf16.gmra.mxu0 %v7399
  %v7650 = vpop.f32.mrf.mxu0
  %v7651 = vadd.f32 0.0, %v7650
  %v7652 = vpop.f32.mrf.mxu0
  %v7653 = vpop.f32.mrf.mxu0
  %v7654 = vadd.f32 0.0, %v7653
  %v7655 = vpop.f32.mrf.mxu0
  %7656 = vmatprep.mubr.bf16.mxu0 0
  %7657 = vmatmul.mubr.bf16.gmra.mxu0 %v7400
  %v7658 = vpop.f32.mrf.mxu0
  %v7659 = vadd.f32 0.0, %v7658
  %v7660 = vpop.f32.mrf.mxu0
  %v7661 = vpop.f32.mrf.mxu0
  %v7662 = vadd.f32 0.0, %v7661
  %v7663 = vpop.f32.mrf.mxu0
  %7664 = vmatprep.mubr.bf16.mxu0 0
  %7665 = vmatmul.mubr.bf16.gmra.mxu0 %v7401
  %v7666 = vpop.f32.mrf.mxu0
  %v7667 = vadd.f32 0.0, %v7666
  %v7668 = vpop.f32.mrf.mxu0
  %v7669 = vpop.f32.mrf.mxu0
  %v7670 = vadd.f32 0.0, %v7669
  %v7671 = vpop.f32.mrf.mxu0
  %7672 = vmatprep.mubr.bf16.mxu0 0
  %7673 = vmatmul.mubr.bf16.gmra.mxu0 %v7402
  %v7674 = vpop.f32.mrf.mxu0
  %v7675 = vadd.f32 0.0, %v7674
  %v7676 = vpop.f32.mrf.mxu0
  %v7677 = vpop.f32.mrf.mxu0
  %v7678 = vadd.f32 0.0, %v7677
  %v7679 = vpop.f32.mrf.mxu0
  %7680 = vmatprep.mubr.bf16.mxu0 0
  %7681 = vmatmul.mubr.bf16.gmra.mxu0 %v7403
  %v7682 = vpop.f32.mrf.mxu0
  %v7683 = vadd.f32 0.0, %v7682
  %v7684 = vpop.f32.mrf.mxu0
  %v7685 = vpop.f32.mrf.mxu0
  %v7686 = vadd.f32 0.0, %v7685
  %v7687 = vpop.f32.mrf.mxu0
  %7688 = vmatprep.mubr.bf16.mxu0 0
  %7689 = vmatmul.mubr.bf16.gmra.mxu0 %v7404
  %v7690 = vpop.f32.mrf.mxu0
  %v7691 = vadd.f32 0.0, %v7690
  %v7692 = vpop.f32.mrf.mxu0
  %v7693 = vpop.f32.mrf.mxu0
  %v7694 = vadd.f32 0.0, %v7693
  %v7695 = vpop.f32.mrf.mxu0
  %7696 = vmatprep.mubr.bf16.mxu0 0
  %7697 = vmatmul.mubr.bf16.gmra.mxu0 %v7405
  %v7698 = vpop.f32.mrf.mxu0
  %v7699 = vadd.f32 0.0, %v7698
  %v7700 = vpop.f32.mrf.mxu0
  %v7701 = vpop.f32.mrf.mxu0
  %v7702 = vadd.f32 0.0, %v7701
  %v7703 = vpop.f32.mrf.mxu0
  %7704 = vmatprep.mubr.bf16.mxu0 0
  %7705 = vmatmul.mubr.bf16.gmra.mxu0 %v7406
  %v7706 = vpop.f32.mrf.mxu0
  %v7707 = vadd.f32 0.0, %v7706
  %v7708 = vpop.f32.mrf.mxu0
  %v7709 = vpop.f32.mrf.mxu0
  %v7710 = vadd.f32 0.0, %v7709
  %v7711 = vpop.f32.mrf.mxu0
  %7712 = vmatprep.mubr.bf16.mxu0 0
  %7713 = vmatmul.mubr.bf16.gmra.mxu0 %v7407
  %v7714 = vpop.f32.mrf.mxu0
  %v7715 = vadd.f32 0.0, %v7714
  %v7716 = vpop.f32.mrf.mxu0
  %v7717 = vpop.f32.mrf.mxu0
  %v7718 = vadd.f32 0.0, %v7717
  %v7719 = vpop.f32.mrf.mxu0
  %7720 = vmatprep.mubr.bf16.mxu0 0
  %7721 = vmatmul.mubr.bf16.gmra.mxu0 %v7408
  %v7722 = vpop.f32.mrf.mxu0
  %v7723 = vadd.f32 0.0, %v7722
  %v7724 = vpop.f32.mrf.mxu0
  %v7725 = vpop.f32.mrf.mxu0
  %v7726 = vadd.f32 0.0, %v7725
  %v7727 = vpop.f32.mrf.mxu0
  %7728 = vmatprep.mubr.bf16.mxu0 0
  %7729 = vmatmul.mubr.bf16.gmra.mxu0 %v7409
  %v7730 = vpop.f32.mrf.mxu0
  %v7731 = vadd.f32 0.0, %v7730
  %v7732 = vpop.f32.mrf.mxu0
  %v7733 = vpop.f32.mrf.mxu0
  %v7734 = vadd.f32 0.0, %v7733
  %v7735 = vpop.f32.mrf.mxu0
  %7736 = vmatprep.mubr.bf16.mxu0 0
  %7737 = vmatmul.mubr.bf16.gmra.mxu0 %v7410
  %v7738 = vpop.f32.mrf.mxu0
  %v7739 = vadd.f32 0.0, %v7738
  %v7740 = vpop.f32.mrf.mxu0
  %v7741 = vpop.f32.mrf.mxu0
  %v7742 = vadd.f32 0.0, %v7741
  %v7743 = vpop.f32.mrf.mxu0
  %7744 = vmatprep.mubr.bf16.mxu0 0
  %7745 = vmatmul.mubr.bf16.gmra.mxu0 %v7411
  %v7746 = vpop.f32.mrf.mxu0
  %v7747 = vadd.f32 0.0, %v7746
  %v7748 = vpop.f32.mrf.mxu0
  %v7749 = vpop.f32.mrf.mxu0
  %v7750 = vadd.f32 0.0, %v7749
  %v7751 = vpop.f32.mrf.mxu0
  %7752 = vmatprep.mubr.bf16.mxu0 0
  %7753 = vmatmul.mubr.bf16.gmra.mxu0 %v7412
  %v7754 = vpop.f32.mrf.mxu0
  %v7755 = vadd.f32 0.0, %v7754
  %v7756 = vpop.f32.mrf.mxu0
  %v7757 = vpop.f32.mrf.mxu0
  %v7758 = vadd.f32 0.0, %v7757
  %v7759 = vpop.f32.mrf.mxu0
  %7760 = vmatprep.mubr.bf16.mxu0 0
  %7761 = vmatmul.mubr.bf16.gmra.mxu0 %v7413
  %v7762 = vpop.f32.mrf.mxu0
  %v7763 = vadd.f32 0.0, %v7762
  %v7764 = vpop.f32.mrf.mxu0
  %v7765 = vpop.f32.mrf.mxu0
  %v7766 = vadd.f32 0.0, %v7765
  %v7767 = vpop.f32.mrf.mxu0
  %7768 = vmatprep.mubr.bf16.mxu0 0
  %7769 = vmatmul.mubr.bf16.gmra.mxu0 %v7414
  %v7770 = vpop.f32.mrf.mxu0
  %v7771 = vadd.f32 0.0, %v7770
  %v7772 = vpop.f32.mrf.mxu0
  %v7773 = vpop.f32.mrf.mxu0
  %v7774 = vadd.f32 0.0, %v7773
  %v7775 = vpop.f32.mrf.mxu0
  %7776 = vmatprep.mubr.bf16.mxu0 0
  %7777 = vmatmul.mubr.bf16.gmra.mxu0 %v7415
  %v7778 = vpop.f32.mrf.mxu0
  %v7779 = vadd.f32 0.0, %v7778
  %v7780 = vpop.f32.mrf.mxu0
  %v7781 = vpop.f32.mrf.mxu0
  %v7782 = vadd.f32 0.0, %v7781
  %v7783 = vpop.f32.mrf.mxu0
  %7784 = vdwg.mxu0
  %v7785 = vadd.f32 %v6375, %v7531
  %v7786 = vadd.f32 %v6376, %v7534
  %v7787 = vadd.f32 %v6377, %v7539
  %v7788 = vadd.f32 %v6378, %v7542
  %v7789 = vadd.f32 %v6379, %v7547
  %v7790 = vadd.f32 %v6380, %v7550
  %v7791 = vadd.f32 %v6381, %v7555
  %v7792 = vadd.f32 %v6382, %v7558
  %v7793 = vadd.f32 %v6383, %v7563
  %v7794 = vadd.f32 %v6384, %v7566
  %v7795 = vadd.f32 %v6385, %v7571
  %v7796 = vadd.f32 %v6386, %v7574
  %v7797 = vadd.f32 %v6387, %v7579
  %v7798 = vadd.f32 %v6388, %v7582
  %v7799 = vadd.f32 %v6389, %v7587
  %v7800 = vadd.f32 %v6390, %v7590
  %v7801 = vadd.f32 %v6391, %v7595
  %v7802 = vadd.f32 %v6392, %v7598
  %v7803 = vadd.f32 %v6393, %v7603
  %v7804 = vadd.f32 %v6394, %v7606
  %v7805 = vadd.f32 %v6395, %v7611
  %v7806 = vadd.f32 %v6396, %v7614
  %v7807 = vadd.f32 %v6397, %v7619
  %v7808 = vadd.f32 %v6398, %v7622
  %v7809 = vadd.f32 %v6399, %v7627
  %v7810 = vadd.f32 %v6400, %v7630
  %v7811 = vadd.f32 %v6401, %v7635
  %v7812 = vadd.f32 %v6402, %v7638
  %v7813 = vadd.f32 %v6403, %v7643
  %v7814 = vadd.f32 %v6404, %v7646
  %v7815 = vadd.f32 %v6405, %v7651
  %v7816 = vadd.f32 %v6406, %v7654
  %v7817 = vadd.f32 %v6407, %v7659
  %v7818 = vadd.f32 %v6408, %v7662
  %v7819 = vadd.f32 %v6409, %v7667
  %v7820 = vadd.f32 %v6410, %v7670
  %v7821 = vadd.f32 %v6411, %v7675
  %v7822 = vadd.f32 %v6412, %v7678
  %v7823 = vadd.f32 %v6413, %v7683
  %v7824 = vadd.f32 %v6414, %v7686
  %v7825 = vadd.f32 %v6415, %v7691
  %v7826 = vadd.f32 %v6416, %v7694
  %v7827 = vadd.f32 %v6417, %v7699
  %v7828 = vadd.f32 %v6418, %v7702
  %v7829 = vadd.f32 %v6419, %v7707
  %v7830 = vadd.f32 %v6420, %v7710
  %v7831 = vadd.f32 %v6421, %v7715
  %v7832 = vadd.f32 %v6422, %v7718
  %v7833 = vadd.f32 %v6423, %v7723
  %v7834 = vadd.f32 %v6424, %v7726
  %v7835 = vadd.f32 %v6425, %v7731
  %v7836 = vadd.f32 %v6426, %v7734
  %v7837 = vadd.f32 %v6427, %v7739
  %v7838 = vadd.f32 %v6428, %v7742
  %v7839 = vadd.f32 %v6429, %v7747
  %v7840 = vadd.f32 %v6430, %v7750
  %v7841 = vadd.f32 %v6431, %v7755
  %v7842 = vadd.f32 %v6432, %v7758
  %v7843 = vadd.f32 %v6433, %v7763
  %v7844 = vadd.f32 %v6434, %v7766
  %v7845 = vadd.f32 %v6435, %v7771
  %v7846 = vadd.f32 %v6436, %v7774
  %v7847 = vadd.f32 %v6437, %v7779
  %v7848 = vadd.f32 %v6438, %v7782
  %v7849 = vld [vmem:[%s5764] sm:$0xe]
  %v7850 = vld [vmem:[%s5764 + $0xc] sm:$0xe]
  %v7851 = vld [vmem:[%s5764 + $0x18] sm:$0xe]
  %v7852 = vld [vmem:[%s5764 + $0x24] sm:$0xe]
  %v7853 = vld [vmem:[%s5764 + $0x30] sm:$0xe]
  %v7854 = vld [vmem:[%s5764 + $0x3c] sm:$0xe]
  %v7855 = vld [vmem:[%s5764 + $0x48] sm:$0xe]
  %v7856 = vld [vmem:[%s5764 + $0x54] sm:$0xe]
  %v7857 = vld [vmem:[%s5764 + $0x60] sm:$0xe]
  %v7858 = vld [vmem:[%s5764 + $0x6c] sm:$0xe]
  %v7859 = vld [vmem:[%s5764 + $0x78] sm:$0xe]
  %v7860 = vld [vmem:[%s5764 + $0x84] sm:$0xe]
  %v7861 = vld [vmem:[%s5764 + $0x90] sm:$0xe]
  %v7862 = vld [vmem:[%s5764 + $0x9c] sm:$0xe]
  %v7863 = vld [vmem:[%s5764 + $0xa8] sm:$0xe]
  %v7864 = vld [vmem:[%s5764 + $0xb4] sm:$0xe]
  %v7865 = vld [vmem:[%s5764 + $0xd8] sm:$0xe]
  %v7866 = vld [vmem:[%s5764 + $0xe4] sm:$0xe]
  %v7867 = vld [vmem:[%s5764 + $0xf0] sm:$0xe]
  %v7868 = vld [vmem:[%s5764 + $0xfc] sm:$0xe]
  %v7869 = vld [vmem:[%s5764 + $0x108] sm:$0xe]
  %v7870 = vld [vmem:[%s5764 + $0x114] sm:$0xe]
  %v7871 = vld [vmem:[%s5764 + $0x120] sm:$0xe]
  %v7872 = vld [vmem:[%s5764 + $0x12c] sm:$0xe]
  %v7873 = vld [vmem:[%s5764 + $0x138] sm:$0xe]
  %v7874 = vld [vmem:[%s5764 + $0x144] sm:$0xe]
  %v7875 = vld [vmem:[%s5764 + $0x150] sm:$0xe]
  %v7876 = vld [vmem:[%s5764 + $0x15c] sm:$0xe]
  %v7877 = vld [vmem:[%s5764 + $0x168] sm:$0xe]
  %v7878 = vld [vmem:[%s5764 + $0x174] sm:$0xe]
  %v7879 = vld [vmem:[%s5764 + $0x180] sm:$0xe]
  %v7880 = vld [vmem:[%s5764 + $0x18c] sm:$0xe]
  %v7977 = vrot.slane %v7849, 5
  %v7978 = vrot.slane %v7977, 4
  %v7979 = vrot.slane %v6440, 5
  %v7980 = vsel %vm2010, %v7978, %v7979
  %v7981 = vrot.slane %v7979, 4
  %v7982 = vrot.slane %v6441, 5
  %v7983 = vsel %vm2010, %v7981, %v7982
  %v7984 = vrot.slane %v7850, 5
  %v7985 = vrot.slane %v7984, 4
  %v7986 = vrot.slane %v6443, 5
  %v7987 = vsel %vm2010, %v7985, %v7986
  %v7988 = vrot.slane %v7986, 4
  %v7989 = vrot.slane %v6444, 5
  %v7990 = vsel %vm2010, %v7988, %v7989
  %v7991 = vrot.slane %v7851, 5
  %v7992 = vrot.slane %v7991, 4
  %v7993 = vrot.slane %v6446, 5
  %v7994 = vsel %vm2010, %v7992, %v7993
  %v7995 = vrot.slane %v7993, 4
  %v7996 = vrot.slane %v6447, 5
  %v7997 = vsel %vm2010, %v7995, %v7996
  %v7998 = vrot.slane %v7852, 5
  %v7999 = vrot.slane %v7998, 4
  %v8000 = vrot.slane %v6449, 5
  %v8001 = vsel %vm2010, %v7999, %v8000
  %v8002 = vrot.slane %v8000, 4
  %v8003 = vrot.slane %v6450, 5
  %v8004 = vsel %vm2010, %v8002, %v8003
  %v8005 = vrot.slane %v7853, 5
  %v8006 = vrot.slane %v8005, 4
  %v8007 = vrot.slane %v6452, 5
  %v8008 = vsel %vm2010, %v8006, %v8007
  %v8009 = vrot.slane %v8007, 4
  %v8010 = vrot.slane %v6453, 5
  %v8011 = vsel %vm2010, %v8009, %v8010
  %v8012 = vrot.slane %v7854, 5
  %v8013 = vrot.slane %v8012, 4
  %v8014 = vrot.slane %v6455, 5
  %v8015 = vsel %vm2010, %v8013, %v8014
  %v8016 = vrot.slane %v8014, 4
  %v8017 = vrot.slane %v6456, 5
  %v8018 = vsel %vm2010, %v8016, %v8017
  %v8019 = vrot.slane %v7855, 5
  %v8020 = vrot.slane %v8019, 4
  %v8021 = vrot.slane %v6458, 5
  %v8022 = vsel %vm2010, %v8020, %v8021
  %v8023 = vrot.slane %v8021, 4
  %v8024 = vrot.slane %v6459, 5
  %v8025 = vsel %vm2010, %v8023, %v8024
  %v8026 = vrot.slane %v7856, 5
  %v8027 = vrot.slane %v8026, 4
  %v8028 = vrot.slane %v6461, 5
  %v8029 = vsel %vm2010, %v8027, %v8028
  %v8030 = vrot.slane %v8028, 4
  %v8031 = vrot.slane %v6462, 5
  %v8032 = vsel %vm2010, %v8030, %v8031
  %v8033 = vrot.slane %v7857, 5
  %v8034 = vrot.slane %v8033, 4
  %v8035 = vrot.slane %v6464, 5
  %v8036 = vsel %vm2010, %v8034, %v8035
  %v8037 = vrot.slane %v8035, 4
  %v8038 = vrot.slane %v6465, 5
  %v8039 = vsel %vm2010, %v8037, %v8038
  %v8040 = vrot.slane %v7858, 5
  %v8041 = vrot.slane %v8040, 4
  %v8042 = vrot.slane %v6467, 5
  %v8043 = vsel %vm2010, %v8041, %v8042
  %v8044 = vrot.slane %v8042, 4
  %v8045 = vrot.slane %v6468, 5
  %v8046 = vsel %vm2010, %v8044, %v8045
  %v8047 = vrot.slane %v7859, 5
  %v8048 = vrot.slane %v8047, 4
  %v8049 = vrot.slane %v6470, 5
  %v8050 = vsel %vm2010, %v8048, %v8049
  %v8051 = vrot.slane %v8049, 4
  %v8052 = vrot.slane %v6471, 5
  %v8053 = vsel %vm2010, %v8051, %v8052
  %v8054 = vrot.slane %v7860, 5
  %v8055 = vrot.slane %v8054, 4
  %v8056 = vrot.slane %v6473, 5
  %v8057 = vsel %vm2010, %v8055, %v8056
  %v8058 = vrot.slane %v8056, 4
  %v8059 = vrot.slane %v6474, 5
  %v8060 = vsel %vm2010, %v8058, %v8059
  %v8061 = vrot.slane %v7861, 5
  %v8062 = vrot.slane %v8061, 4
  %v8063 = vrot.slane %v6476, 5
  %v8064 = vsel %vm2010, %v8062, %v8063
  %v8065 = vrot.slane %v8063, 4
  %v8066 = vrot.slane %v6477, 5
  %v8067 = vsel %vm2010, %v8065, %v8066
  %v8068 = vrot.slane %v7862, 5
  %v8069 = vrot.slane %v8068, 4
  %v8070 = vrot.slane %v6479, 5
  %v8071 = vsel %vm2010, %v8069, %v8070
  %v8072 = vrot.slane %v8070, 4
  %v8073 = vrot.slane %v6480, 5
  %v8074 = vsel %vm2010, %v8072, %v8073
  %v8075 = vrot.slane %v7863, 5
  %v8076 = vrot.slane %v8075, 4
  %v8077 = vrot.slane %v6482, 5
  %v8078 = vsel %vm2010, %v8076, %v8077
  %v8079 = vrot.slane %v8077, 4
  %v8080 = vrot.slane %v6483, 5
  %v8081 = vsel %vm2010, %v8079, %v8080
  %v8082 = vrot.slane %v7864, 5
  %v8083 = vrot.slane %v8082, 4
  %v8084 = vrot.slane %v6485, 5
  %v8085 = vsel %vm2010, %v8083, %v8084
  %v8086 = vrot.slane %v8084, 4
  %v8087 = vrot.slane %v6486, 5
  %v8088 = vsel %vm2010, %v8086, %v8087
  %v8089 = vrot.slane %v7865, 5
  %v8090 = vrot.slane %v8089, 4
  %v8091 = vrot.slane %v6488, 5
  %v8092 = vsel %vm2010, %v8090, %v8091
  %v8093 = vrot.slane %v8091, 4
  %v8094 = vrot.slane %v6489, 5
  %v8095 = vsel %vm2010, %v8093, %v8094
  %v8096 = vrot.slane %v7866, 5
  %v8097 = vrot.slane %v8096, 4
  %v8098 = vrot.slane %v6491, 5
  %v8099 = vsel %vm2010, %v8097, %v8098
  %v8100 = vrot.slane %v8098, 4
  %v8101 = vrot.slane %v6492, 5
  %v8102 = vsel %vm2010, %v8100, %v8101
  %v8103 = vrot.slane %v7867, 5
  %v8104 = vrot.slane %v8103, 4
  %v8105 = vrot.slane %v6494, 5
  %v8106 = vsel %vm2010, %v8104, %v8105
  %v8107 = vrot.slane %v8105, 4
  %v8108 = vrot.slane %v6495, 5
  %v8109 = vsel %vm2010, %v8107, %v8108
  %v8110 = vrot.slane %v7868, 5
  %v8111 = vrot.slane %v8110, 4
  %v8112 = vrot.slane %v6497, 5
  %v8113 = vsel %vm2010, %v8111, %v8112
  %v8114 = vrot.slane %v8112, 4
  %v8115 = vrot.slane %v6498, 5
  %v8116 = vsel %vm2010, %v8114, %v8115
  %v8117 = vrot.slane %v7869, 5
  %v8118 = vrot.slane %v8117, 4
  %v8119 = vrot.slane %v6500, 5
  %v8120 = vsel %vm2010, %v8118, %v8119
  %v8121 = vrot.slane %v8119, 4
  %v8122 = vrot.slane %v6501, 5
  %v8123 = vsel %vm2010, %v8121, %v8122
  %v8124 = vrot.slane %v7870, 5
  %v8125 = vrot.slane %v8124, 4
  %v8126 = vrot.slane %v6503, 5
  %v8127 = vsel %vm2010, %v8125, %v8126
  %v8128 = vrot.slane %v8126, 4
  %v8129 = vrot.slane %v6504, 5
  %v8130 = vsel %vm2010, %v8128, %v8129
  %v8131 = vrot.slane %v7871, 5
  %v8132 = vrot.slane %v8131, 4
  %v8133 = vrot.slane %v6506, 5
  %v8134 = vsel %vm2010, %v8132, %v8133
  %v8135 = vrot.slane %v8133, 4
  %v8136 = vrot.slane %v6507, 5
  %v8137 = vsel %vm2010, %v8135, %v8136
  %v8138 = vrot.slane %v7872, 5
  %v8139 = vrot.slane %v8138, 4
  %v8140 = vrot.slane %v6509, 5
  %v8141 = vsel %vm2010, %v8139, %v8140
  %v8142 = vrot.slane %v8140, 4
  %v8143 = vrot.slane %v6510, 5
  %v8144 = vsel %vm2010, %v8142, %v8143
  %v8145 = vrot.slane %v7873, 5
  %v8146 = vrot.slane %v8145, 4
  %v8147 = vrot.slane %v6512, 5
  %v8148 = vsel %vm2010, %v8146, %v8147
  %v8149 = vrot.slane %v8147, 4
  %v8150 = vrot.slane %v6513, 5
  %v8151 = vsel %vm2010, %v8149, %v8150
  %v8152 = vrot.slane %v7874, 5
  %v8153 = vrot.slane %v8152, 4
  %v8154 = vrot.slane %v6515, 5
  %v8155 = vsel %vm2010, %v8153, %v8154
  %v8156 = vrot.slane %v8154, 4
  %v8157 = vrot.slane %v6516, 5
  %v8158 = vsel %vm2010, %v8156, %v8157
  %v8159 = vrot.slane %v7875, 5
  %v8160 = vrot.slane %v8159, 4
  %v8161 = vrot.slane %v6518, 5
  %v8162 = vsel %vm2010, %v8160, %v8161
  %v8163 = vrot.slane %v8161, 4
  %v8164 = vrot.slane %v6519, 5
  %v8165 = vsel %vm2010, %v8163, %v8164
  %v8166 = vrot.slane %v7876, 5
  %v8167 = vrot.slane %v8166, 4
  %v8168 = vrot.slane %v6521, 5
  %v8169 = vsel %vm2010, %v8167, %v8168
  %v8170 = vrot.slane %v8168, 4
  %v8171 = vrot.slane %v6522, 5
  %v8172 = vsel %vm2010, %v8170, %v8171
  %v8173 = vrot.slane %v7877, 5
  %v8174 = vrot.slane %v8173, 4
  %v8175 = vrot.slane %v6524, 5
  %v8176 = vsel %vm2010, %v8174, %v8175
  %v8177 = vrot.slane %v8175, 4
  %v8178 = vrot.slane %v6525, 5
  %v8179 = vsel %vm2010, %v8177, %v8178
  %v8180 = vrot.slane %v7878, 5
  %v8181 = vrot.slane %v8180, 4
  %v8182 = vrot.slane %v6527, 5
  %v8183 = vsel %vm2010, %v8181, %v8182
  %v8184 = vrot.slane %v8182, 4
  %v8185 = vrot.slane %v6528, 5
  %v8186 = vsel %vm2010, %v8184, %v8185
  %v8187 = vrot.slane %v7879, 5
  %v8188 = vrot.slane %v8187, 4
  %v8189 = vrot.slane %v6530, 5
  %v8190 = vsel %vm2010, %v8188, %v8189
  %v8191 = vrot.slane %v8189, 4
  %v8192 = vrot.slane %v6531, 5
  %v8193 = vsel %vm2010, %v8191, %v8192
  %v8194 = vrot.slane %v7880, 5
  %v8195 = vrot.slane %v8194, 4
  %v8196 = vrot.slane %v6533, 5
  %v8197 = vsel %vm2010, %v8195, %v8196
  %v8198 = vrot.slane %v8196, 4
  %v8199 = vrot.slane %v6534, 5
  %v8200 = vsel %vm2010, %v8198, %v8199
  %s8201 = scalar_lea.vmem %s1, 512
  %v8202 = vld [vmem:[%s8201] sm:$0xf]
  %v8203 = vld [vmem:[%s8201 + $0x4] sm:$0xf]
  %v8204 = vld [vmem:[%s8201 + $0x8] sm:$0xf]
  %v8205 = vld [vmem:[%s8201 + $0xc] sm:$0xf]
  %v8206 = vld [vmem:[%s8201 + $0x10] sm:$0xf]
  %v8207 = vld [vmem:[%s8201 + $0x14] sm:$0xf]
  %v8208 = vld [vmem:[%s8201 + $0x18] sm:$0xf]
  %v8209 = vld [vmem:[%s8201 + $0x1c] sm:$0xf]
  %v8210 = vld [vmem:[%s8201 + $0x20] sm:$0xf]
  %v8211 = vld [vmem:[%s8201 + $0x24] sm:$0xf]
  %v8212 = vld [vmem:[%s8201 + $0x28] sm:$0xf]
  %v8213 = vld [vmem:[%s8201 + $0x2c] sm:$0xf]
  %v8214 = vld [vmem:[%s8201 + $0x30] sm:$0xf]
  %v8215 = vld [vmem:[%s8201 + $0x34] sm:$0xf]
  %v8216 = vld [vmem:[%s8201 + $0x38] sm:$0xf]
  %v8217 = vld [vmem:[%s8201 + $0x3c] sm:$0xf]
  %v8218 = vunpack.c.l.b16 %v7980
  %v8219 = vunpack.c.l.b16 %v7983
  %v8220 = vunpack.c.l.b16 %v7987
  %v8221 = vunpack.c.l.b16 %v7990
  %v8222 = vunpack.c.l.b16 %v7994
  %v8223 = vunpack.c.l.b16 %v7997
  %v8224 = vunpack.c.l.b16 %v8001
  %v8225 = vunpack.c.l.b16 %v8004
  %v8226 = vunpack.c.l.b16 %v8008
  %v8227 = vunpack.c.l.b16 %v8011
  %v8228 = vunpack.c.l.b16 %v8015
  %v8229 = vunpack.c.l.b16 %v8018
  %v8230 = vunpack.c.l.b16 %v8022
  %v8231 = vunpack.c.l.b16 %v8025
  %v8232 = vunpack.c.l.b16 %v8029
  %v8233 = vunpack.c.l.b16 %v8032
  %v8234 = vunpack.c.l.b16 %v8036
  %v8235 = vunpack.c.l.b16 %v8039
  %v8236 = vunpack.c.l.b16 %v8043
  %v8237 = vunpack.c.l.b16 %v8046
  %v8238 = vunpack.c.l.b16 %v8050
  %v8239 = vunpack.c.l.b16 %v8053
  %v8240 = vunpack.c.l.b16 %v8057
  %v8241 = vunpack.c.l.b16 %v8060
  %v8242 = vunpack.c.l.b16 %v8064
  %v8243 = vunpack.c.l.b16 %v8067
  %v8244 = vunpack.c.l.b16 %v8071
  %v8245 = vunpack.c.l.b16 %v8074
  %v8246 = vunpack.c.l.b16 %v8078
  %v8247 = vunpack.c.l.b16 %v8081
  %v8248 = vunpack.c.l.b16 %v8085
  %v8249 = vunpack.c.l.b16 %v8088
  %v8250 = vunpack.c.l.b16 %v8092
  %v8251 = vunpack.c.l.b16 %v8095
  %v8252 = vunpack.c.l.b16 %v8099
  %v8253 = vunpack.c.l.b16 %v8102
  %v8254 = vunpack.c.l.b16 %v8106
  %v8255 = vunpack.c.l.b16 %v8109
  %v8256 = vunpack.c.l.b16 %v8113
  %v8257 = vunpack.c.l.b16 %v8116
  %v8258 = vunpack.c.l.b16 %v8120
  %v8259 = vunpack.c.l.b16 %v8123
  %v8260 = vunpack.c.l.b16 %v8127
  %v8261 = vunpack.c.l.b16 %v8130
  %v8262 = vunpack.c.l.b16 %v8134
  %v8263 = vunpack.c.l.b16 %v8137
  %v8264 = vunpack.c.l.b16 %v8141
  %v8265 = vunpack.c.l.b16 %v8144
  %v8266 = vunpack.c.l.b16 %v8148
  %v8267 = vunpack.c.l.b16 %v8151
  %v8268 = vunpack.c.l.b16 %v8155
  %v8269 = vunpack.c.l.b16 %v8158
  %v8270 = vunpack.c.l.b16 %v8162
  %v8271 = vunpack.c.l.b16 %v8165
  %v8272 = vunpack.c.l.b16 %v8169
  %v8273 = vunpack.c.l.b16 %v8172
  %v8274 = vunpack.c.l.b16 %v8176
  %v8275 = vunpack.c.l.b16 %v8179
  %v8276 = vunpack.c.l.b16 %v8183
  %v8277 = vunpack.c.l.b16 %v8186
  %v8278 = vunpack.c.l.b16 %v8190
  %v8279 = vunpack.c.l.b16 %v8193
  %v8280 = vunpack.c.l.b16 %v8197
  %v8281 = vunpack.c.l.b16 %v8200
  %v8282 = vpack.c.b16 %v8219, %v8218
  %v8283 = vpack.c.b16 %v8221, %v8220
  %v8284 = vpack.c.b16 %v8223, %v8222
  %v8285 = vpack.c.b16 %v8225, %v8224
  %v8286 = vpack.c.b16 %v8227, %v8226
  %v8287 = vpack.c.b16 %v8229, %v8228
  %v8288 = vpack.c.b16 %v8231, %v8230
  %v8289 = vpack.c.b16 %v8233, %v8232
  %v8290 = vpack.c.b16 %v8235, %v8234
  %v8291 = vpack.c.b16 %v8237, %v8236
  %v8292 = vpack.c.b16 %v8239, %v8238
  %v8293 = vpack.c.b16 %v8241, %v8240
  %v8294 = vpack.c.b16 %v8243, %v8242
  %v8295 = vpack.c.b16 %v8245, %v8244
  %v8296 = vpack.c.b16 %v8247, %v8246
  %v8297 = vpack.c.b16 %v8249, %v8248
  %v8298 = vpack.c.b16 %v8251, %v8250
  %v8299 = vpack.c.b16 %v8253, %v8252
  %v8300 = vpack.c.b16 %v8255, %v8254
  %v8301 = vpack.c.b16 %v8257, %v8256
  %v8302 = vpack.c.b16 %v8259, %v8258
  %v8303 = vpack.c.b16 %v8261, %v8260
  %v8304 = vpack.c.b16 %v8263, %v8262
  %v8305 = vpack.c.b16 %v8265, %v8264
  %v8306 = vpack.c.b16 %v8267, %v8266
  %v8307 = vpack.c.b16 %v8269, %v8268
  %v8308 = vpack.c.b16 %v8271, %v8270
  %v8309 = vpack.c.b16 %v8273, %v8272
  %v8310 = vpack.c.b16 %v8275, %v8274
  %v8311 = vpack.c.b16 %v8277, %v8276
  %v8312 = vpack.c.b16 %v8279, %v8278
  %v8313 = vpack.c.b16 %v8281, %v8280
  %v8362 = vunpack.c.l.b16 %v8202
  %v8363 = vunpack.c.l.b16 %v8203
  %v8364 = vunpack.c.l.b16 %v8204
  %v8365 = vunpack.c.l.b16 %v8205
  %v8366 = vunpack.c.l.b16 %v8206
  %v8367 = vunpack.c.l.b16 %v8207
  %v8368 = vunpack.c.l.b16 %v8208
  %v8369 = vunpack.c.l.b16 %v8209
  %v8370 = vunpack.c.l.b16 %v8210
  %v8371 = vunpack.c.l.b16 %v8211
  %v8372 = vunpack.c.l.b16 %v8212
  %v8373 = vunpack.c.l.b16 %v8213
  %v8374 = vunpack.c.l.b16 %v8214
  %v8375 = vunpack.c.l.b16 %v8215
  %v8376 = vunpack.c.l.b16 %v8216
  %v8377 = vunpack.c.l.b16 %v8217
  %v8378 = vpack.c.b16 %v8363, %v8362
  %v8379 = vpack.c.b16 %v8365, %v8364
  %v8380 = vpack.c.b16 %v8367, %v8366
  %v8381 = vpack.c.b16 %v8369, %v8368
  %v8382 = vpack.c.b16 %v8371, %v8370
  %v8383 = vpack.c.b16 %v8373, %v8372
  %v8384 = vpack.c.b16 %v8375, %v8374
  %v8385 = vpack.c.b16 %v8377, %v8376
  %8394 = vmatprep.subr.bf16.mxu0 0
  %8395 = vmatpush1.bf16.msra.mxu0 %v8385
  %8396 = vmatprep.subr.bf16.mxu0 0
  %8397 = vmatpush1.bf16.msra.mxu0 %v8384
  %8398 = vmatprep.subr.bf16.mxu0 0
  %8399 = vmatpush1.bf16.msra.mxu0 %v8383
  %8400 = vmatprep.subr.bf16.mxu0 0
  %8401 = vmatpush1.bf16.msra.mxu0 %v8382
  %8402 = vmatprep.subr.bf16.mxu0 0
  %8403 = vmatpush1.bf16.msra.mxu0 %v8381
  %8404 = vmatprep.subr.bf16.mxu0 0
  %8405 = vmatpush1.bf16.msra.mxu0 %v8380
  %8406 = vmatprep.subr.bf16.mxu0 0
  %8407 = vmatpush1.bf16.msra.mxu0 %v8379
  %8408 = vmatprep.subr.bf16.mxu0 0
  %8409 = vmatpush1.bf16.msra.mxu0 %v8378
  %8410 = vmatprep.subr.bf16.mxu0 0
  %8411 = vmatpush2.bf16.msra.mxu0 0
  %8412 = vmatprep.subr.bf16.mxu0 0
  %8413 = vmatpush2.bf16.msra.mxu0 0
  %8414 = vmatprep.subr.bf16.mxu0 0
  %8415 = vmatpush2.bf16.msra.mxu0 0
  %8416 = vmatprep.subr.bf16.mxu0 0
  %8417 = vmatpush2.bf16.msra.mxu0 0
  %8418 = vmatprep.subr.bf16.mxu0 0
  %8419 = vmatpush2.bf16.msra.mxu0 0
  %8420 = vmatprep.subr.bf16.mxu0 0
  %8421 = vmatpush2.bf16.msra.mxu0 0
  %8422 = vmatprep.subr.bf16.mxu0 0
  %8423 = vmatpush2.bf16.msra.mxu0 0
  %8424 = vmatprep.subr.bf16.mxu0 0
  %8425 = vmatpush2.bf16.msra.mxu0 0
  %8426 = vmatprep.mubr.bf16.mxu0 0
  %8427 = vmatmul.mubr.bf16.gmra.mxu0 %v8282
  %v8428 = vpop.f32.mrf.mxu0
  %v8429 = vadd.f32 0.0, %v8428
  %v8430 = vpop.f32.mrf.mxu0
  %v8431 = vpop.f32.mrf.mxu0
  %v8432 = vadd.f32 0.0, %v8431
  %v8433 = vpop.f32.mrf.mxu0
  %8434 = vmatprep.mubr.bf16.mxu0 0
  %8435 = vmatmul.mubr.bf16.gmra.mxu0 %v8283
  %v8436 = vpop.f32.mrf.mxu0
  %v8437 = vadd.f32 0.0, %v8436
  %v8438 = vpop.f32.mrf.mxu0
  %v8439 = vpop.f32.mrf.mxu0
  %v8440 = vadd.f32 0.0, %v8439
  %v8441 = vpop.f32.mrf.mxu0
  %8442 = vmatprep.mubr.bf16.mxu0 0
  %8443 = vmatmul.mubr.bf16.gmra.mxu0 %v8284
  %v8444 = vpop.f32.mrf.mxu0
  %v8445 = vadd.f32 0.0, %v8444
  %v8446 = vpop.f32.mrf.mxu0
  %v8447 = vpop.f32.mrf.mxu0
  %v8448 = vadd.f32 0.0, %v8447
  %v8449 = vpop.f32.mrf.mxu0
  %8450 = vmatprep.mubr.bf16.mxu0 0
  %8451 = vmatmul.mubr.bf16.gmra.mxu0 %v8285
  %v8452 = vpop.f32.mrf.mxu0
  %v8453 = vadd.f32 0.0, %v8452
  %v8454 = vpop.f32.mrf.mxu0
  %v8455 = vpop.f32.mrf.mxu0
  %v8456 = vadd.f32 0.0, %v8455
  %v8457 = vpop.f32.mrf.mxu0
  %8458 = vmatprep.mubr.bf16.mxu0 0
  %8459 = vmatmul.mubr.bf16.gmra.mxu0 %v8286
  %v8460 = vpop.f32.mrf.mxu0
  %v8461 = vadd.f32 0.0, %v8460
  %v8462 = vpop.f32.mrf.mxu0
  %v8463 = vpop.f32.mrf.mxu0
  %v8464 = vadd.f32 0.0, %v8463
  %v8465 = vpop.f32.mrf.mxu0
  %8466 = vmatprep.mubr.bf16.mxu0 0
  %8467 = vmatmul.mubr.bf16.gmra.mxu0 %v8287
  %v8468 = vpop.f32.mrf.mxu0
  %v8469 = vadd.f32 0.0, %v8468
  %v8470 = vpop.f32.mrf.mxu0
  %v8471 = vpop.f32.mrf.mxu0
  %v8472 = vadd.f32 0.0, %v8471
  %v8473 = vpop.f32.mrf.mxu0
  %8474 = vmatprep.mubr.bf16.mxu0 0
  %8475 = vmatmul.mubr.bf16.gmra.mxu0 %v8288
  %v8476 = vpop.f32.mrf.mxu0
  %v8477 = vadd.f32 0.0, %v8476
  %v8478 = vpop.f32.mrf.mxu0
  %v8479 = vpop.f32.mrf.mxu0
  %v8480 = vadd.f32 0.0, %v8479
  %v8481 = vpop.f32.mrf.mxu0
  %8482 = vmatprep.mubr.bf16.mxu0 0
  %8483 = vmatmul.mubr.bf16.gmra.mxu0 %v8289
  %v8484 = vpop.f32.mrf.mxu0
  %v8485 = vadd.f32 0.0, %v8484
  %v8486 = vpop.f32.mrf.mxu0
  %v8487 = vpop.f32.mrf.mxu0
  %v8488 = vadd.f32 0.0, %v8487
  %v8489 = vpop.f32.mrf.mxu0
  %8490 = vmatprep.mubr.bf16.mxu0 0
  %8491 = vmatmul.mubr.bf16.gmra.mxu0 %v8290
  %v8492 = vpop.f32.mrf.mxu0
  %v8493 = vadd.f32 0.0, %v8492
  %v8494 = vpop.f32.mrf.mxu0
  %v8495 = vpop.f32.mrf.mxu0
  %v8496 = vadd.f32 0.0, %v8495
  %v8497 = vpop.f32.mrf.mxu0
  %8498 = vmatprep.mubr.bf16.mxu0 0
  %8499 = vmatmul.mubr.bf16.gmra.mxu0 %v8291
  %v8500 = vpop.f32.mrf.mxu0
  %v8501 = vadd.f32 0.0, %v8500
  %v8502 = vpop.f32.mrf.mxu0
  %v8503 = vpop.f32.mrf.mxu0
  %v8504 = vadd.f32 0.0, %v8503
  %v8505 = vpop.f32.mrf.mxu0
  %8506 = vmatprep.mubr.bf16.mxu0 0
  %8507 = vmatmul.mubr.bf16.gmra.mxu0 %v8292
  %v8508 = vpop.f32.mrf.mxu0
  %v8509 = vadd.f32 0.0, %v8508
  %v8510 = vpop.f32.mrf.mxu0
  %v8511 = vpop.f32.mrf.mxu0
  %v8512 = vadd.f32 0.0, %v8511
  %v8513 = vpop.f32.mrf.mxu0
  %8514 = vmatprep.mubr.bf16.mxu0 0
  %8515 = vmatmul.mubr.bf16.gmra.mxu0 %v8293
  %v8516 = vpop.f32.mrf.mxu0
  %v8517 = vadd.f32 0.0, %v8516
  %v8518 = vpop.f32.mrf.mxu0
  %v8519 = vpop.f32.mrf.mxu0
  %v8520 = vadd.f32 0.0, %v8519
  %v8521 = vpop.f32.mrf.mxu0
  %8522 = vmatprep.mubr.bf16.mxu0 0
  %8523 = vmatmul.mubr.bf16.gmra.mxu0 %v8294
  %v8524 = vpop.f32.mrf.mxu0
  %v8525 = vadd.f32 0.0, %v8524
  %v8526 = vpop.f32.mrf.mxu0
  %v8527 = vpop.f32.mrf.mxu0
  %v8528 = vadd.f32 0.0, %v8527
  %v8529 = vpop.f32.mrf.mxu0
  %8530 = vmatprep.mubr.bf16.mxu0 0
  %8531 = vmatmul.mubr.bf16.gmra.mxu0 %v8295
  %v8532 = vpop.f32.mrf.mxu0
  %v8533 = vadd.f32 0.0, %v8532
  %v8534 = vpop.f32.mrf.mxu0
  %v8535 = vpop.f32.mrf.mxu0
  %v8536 = vadd.f32 0.0, %v8535
  %v8537 = vpop.f32.mrf.mxu0
  %8538 = vmatprep.mubr.bf16.mxu0 0
  %8539 = vmatmul.mubr.bf16.gmra.mxu0 %v8296
  %v8540 = vpop.f32.mrf.mxu0
  %v8541 = vadd.f32 0.0, %v8540
  %v8542 = vpop.f32.mrf.mxu0
  %v8543 = vpop.f32.mrf.mxu0
  %v8544 = vadd.f32 0.0, %v8543
  %v8545 = vpop.f32.mrf.mxu0
  %8546 = vmatprep.mubr.bf16.mxu0 0
  %8547 = vmatmul.mubr.bf16.gmra.mxu0 %v8297
  %v8548 = vpop.f32.mrf.mxu0
  %v8549 = vadd.f32 0.0, %v8548
  %v8550 = vpop.f32.mrf.mxu0
  %v8551 = vpop.f32.mrf.mxu0
  %v8552 = vadd.f32 0.0, %v8551
  %v8553 = vpop.f32.mrf.mxu0
  %8554 = vmatprep.mubr.bf16.mxu0 0
  %8555 = vmatmul.mubr.bf16.gmra.mxu0 %v8298
  %v8556 = vpop.f32.mrf.mxu0
  %v8557 = vadd.f32 0.0, %v8556
  %v8558 = vpop.f32.mrf.mxu0
  %v8559 = vpop.f32.mrf.mxu0
  %v8560 = vadd.f32 0.0, %v8559
  %v8561 = vpop.f32.mrf.mxu0
  %8562 = vmatprep.mubr.bf16.mxu0 0
  %8563 = vmatmul.mubr.bf16.gmra.mxu0 %v8299
  %v8564 = vpop.f32.mrf.mxu0
  %v8565 = vadd.f32 0.0, %v8564
  %v8566 = vpop.f32.mrf.mxu0
  %v8567 = vpop.f32.mrf.mxu0
  %v8568 = vadd.f32 0.0, %v8567
  %v8569 = vpop.f32.mrf.mxu0
  %8570 = vmatprep.mubr.bf16.mxu0 0
  %8571 = vmatmul.mubr.bf16.gmra.mxu0 %v8300
  %v8572 = vpop.f32.mrf.mxu0
  %v8573 = vadd.f32 0.0, %v8572
  %v8574 = vpop.f32.mrf.mxu0
  %v8575 = vpop.f32.mrf.mxu0
  %v8576 = vadd.f32 0.0, %v8575
  %v8577 = vpop.f32.mrf.mxu0
  %8578 = vmatprep.mubr.bf16.mxu0 0
  %8579 = vmatmul.mubr.bf16.gmra.mxu0 %v8301
  %v8580 = vpop.f32.mrf.mxu0
  %v8581 = vadd.f32 0.0, %v8580
  %v8582 = vpop.f32.mrf.mxu0
  %v8583 = vpop.f32.mrf.mxu0
  %v8584 = vadd.f32 0.0, %v8583
  %v8585 = vpop.f32.mrf.mxu0
  %8586 = vmatprep.mubr.bf16.mxu0 0
  %8587 = vmatmul.mubr.bf16.gmra.mxu0 %v8302
  %v8588 = vpop.f32.mrf.mxu0
  %v8589 = vadd.f32 0.0, %v8588
  %v8590 = vpop.f32.mrf.mxu0
  %v8591 = vpop.f32.mrf.mxu0
  %v8592 = vadd.f32 0.0, %v8591
  %v8593 = vpop.f32.mrf.mxu0
  %8594 = vmatprep.mubr.bf16.mxu0 0
  %8595 = vmatmul.mubr.bf16.gmra.mxu0 %v8303
  %v8596 = vpop.f32.mrf.mxu0
  %v8597 = vadd.f32 0.0, %v8596
  %v8598 = vpop.f32.mrf.mxu0
  %v8599 = vpop.f32.mrf.mxu0
  %v8600 = vadd.f32 0.0, %v8599
  %v8601 = vpop.f32.mrf.mxu0
  %8602 = vmatprep.mubr.bf16.mxu0 0
  %8603 = vmatmul.mubr.bf16.gmra.mxu0 %v8304
  %v8604 = vpop.f32.mrf.mxu0
  %v8605 = vadd.f32 0.0, %v8604
  %v8606 = vpop.f32.mrf.mxu0
  %v8607 = vpop.f32.mrf.mxu0
  %v8608 = vadd.f32 0.0, %v8607
  %v8609 = vpop.f32.mrf.mxu0
  %8610 = vmatprep.mubr.bf16.mxu0 0
  %8611 = vmatmul.mubr.bf16.gmra.mxu0 %v8305
  %v8612 = vpop.f32.mrf.mxu0
  %v8613 = vadd.f32 0.0, %v8612
  %v8614 = vpop.f32.mrf.mxu0
  %v8615 = vpop.f32.mrf.mxu0
  %v8616 = vadd.f32 0.0, %v8615
  %v8617 = vpop.f32.mrf.mxu0
  %8618 = vmatprep.mubr.bf16.mxu0 0
  %8619 = vmatmul.mubr.bf16.gmra.mxu0 %v8306
  %v8620 = vpop.f32.mrf.mxu0
  %v8621 = vadd.f32 0.0, %v8620
  %v8622 = vpop.f32.mrf.mxu0
  %v8623 = vpop.f32.mrf.mxu0
  %v8624 = vadd.f32 0.0, %v8623
  %v8625 = vpop.f32.mrf.mxu0
  %8626 = vmatprep.mubr.bf16.mxu0 0
  %8627 = vmatmul.mubr.bf16.gmra.mxu0 %v8307
  %v8628 = vpop.f32.mrf.mxu0
  %v8629 = vadd.f32 0.0, %v8628
  %v8630 = vpop.f32.mrf.mxu0
  %v8631 = vpop.f32.mrf.mxu0
  %v8632 = vadd.f32 0.0, %v8631
  %v8633 = vpop.f32.mrf.mxu0
  %8634 = vmatprep.mubr.bf16.mxu0 0
  %8635 = vmatmul.mubr.bf16.gmra.mxu0 %v8308
  %v8636 = vpop.f32.mrf.mxu0
  %v8637 = vadd.f32 0.0, %v8636
  %v8638 = vpop.f32.mrf.mxu0
  %v8639 = vpop.f32.mrf.mxu0
  %v8640 = vadd.f32 0.0, %v8639
  %v8641 = vpop.f32.mrf.mxu0
  %8642 = vmatprep.mubr.bf16.mxu0 0
  %8643 = vmatmul.mubr.bf16.gmra.mxu0 %v8309
  %v8644 = vpop.f32.mrf.mxu0
  %v8645 = vadd.f32 0.0, %v8644
  %v8646 = vpop.f32.mrf.mxu0
  %v8647 = vpop.f32.mrf.mxu0
  %v8648 = vadd.f32 0.0, %v8647
  %v8649 = vpop.f32.mrf.mxu0
  %8650 = vmatprep.mubr.bf16.mxu0 0
  %8651 = vmatmul.mubr.bf16.gmra.mxu0 %v8310
  %v8652 = vpop.f32.mrf.mxu0
  %v8653 = vadd.f32 0.0, %v8652
  %v8654 = vpop.f32.mrf.mxu0
  %v8655 = vpop.f32.mrf.mxu0
  %v8656 = vadd.f32 0.0, %v8655
  %v8657 = vpop.f32.mrf.mxu0
  %8658 = vmatprep.mubr.bf16.mxu0 0
  %8659 = vmatmul.mubr.bf16.gmra.mxu0 %v8311
  %v8660 = vpop.f32.mrf.mxu0
  %v8661 = vadd.f32 0.0, %v8660
  %v8662 = vpop.f32.mrf.mxu0
  %v8663 = vpop.f32.mrf.mxu0
  %v8664 = vadd.f32 0.0, %v8663
  %v8665 = vpop.f32.mrf.mxu0
  %8666 = vmatprep.mubr.bf16.mxu0 0
  %8667 = vmatmul.mubr.bf16.gmra.mxu0 %v8312
  %v8668 = vpop.f32.mrf.mxu0
  %v8669 = vadd.f32 0.0, %v8668
  %v8670 = vpop.f32.mrf.mxu0
  %v8671 = vpop.f32.mrf.mxu0
  %v8672 = vadd.f32 0.0, %v8671
  %v8673 = vpop.f32.mrf.mxu0
  %8674 = vmatprep.mubr.bf16.mxu0 0
  %8675 = vmatmul.mubr.bf16.gmra.mxu0 %v8313
  %v8676 = vpop.f32.mrf.mxu0
  %v8677 = vadd.f32 0.0, %v8676
  %v8678 = vpop.f32.mrf.mxu0
  %v8679 = vpop.f32.mrf.mxu0
  %v8680 = vadd.f32 0.0, %v8679
  %v8681 = vpop.f32.mrf.mxu0
  %8682 = vdwg.mxu0
  %v8683 = vadd.f32 %v7785, %v8429
  %v8684 = vadd.f32 %v7786, %v8432
  %v8685 = vadd.f32 %v7787, %v8437
  %v8686 = vadd.f32 %v7788, %v8440
  %v8687 = vadd.f32 %v7789, %v8445
  %v8688 = vadd.f32 %v7790, %v8448
  %v8689 = vadd.f32 %v7791, %v8453
  %v8690 = vadd.f32 %v7792, %v8456
  %v8691 = vadd.f32 %v7793, %v8461
  %v8692 = vadd.f32 %v7794, %v8464
  %v8693 = vadd.f32 %v7795, %v8469
  %v8694 = vadd.f32 %v7796, %v8472
  %v8695 = vadd.f32 %v7797, %v8477
  %v8696 = vadd.f32 %v7798, %v8480
  %v8697 = vadd.f32 %v7799, %v8485
  %v8698 = vadd.f32 %v7800, %v8488
  %v8699 = vadd.f32 %v7801, %v8493
  %v8700 = vadd.f32 %v7802, %v8496
  %v8701 = vadd.f32 %v7803, %v8501
  %v8702 = vadd.f32 %v7804, %v8504
  %v8703 = vadd.f32 %v7805, %v8509
  %v8704 = vadd.f32 %v7806, %v8512
  %v8705 = vadd.f32 %v7807, %v8517
  %v8706 = vadd.f32 %v7808, %v8520
  %v8707 = vadd.f32 %v7809, %v8525
  %v8708 = vadd.f32 %v7810, %v8528
  %v8709 = vadd.f32 %v7811, %v8533
  %v8710 = vadd.f32 %v7812, %v8536
  %v8711 = vadd.f32 %v7813, %v8541
  %v8712 = vadd.f32 %v7814, %v8544
  %v8713 = vadd.f32 %v7815, %v8549
  %v8714 = vadd.f32 %v7816, %v8552
  %v8715 = vadd.f32 %v7817, %v8557
  %v8716 = vadd.f32 %v7818, %v8560
  %v8717 = vadd.f32 %v7819, %v8565
  %v8718 = vadd.f32 %v7820, %v8568
  %v8719 = vadd.f32 %v7821, %v8573
  %v8720 = vadd.f32 %v7822, %v8576
  %v8721 = vadd.f32 %v7823, %v8581
  %v8722 = vadd.f32 %v7824, %v8584
  %v8723 = vadd.f32 %v7825, %v8589
  %v8724 = vadd.f32 %v7826, %v8592
  %v8725 = vadd.f32 %v7827, %v8597
  %v8726 = vadd.f32 %v7828, %v8600
  %v8727 = vadd.f32 %v7829, %v8605
  %v8728 = vadd.f32 %v7830, %v8608
  %v8729 = vadd.f32 %v7831, %v8613
  %v8730 = vadd.f32 %v7832, %v8616
  %v8731 = vadd.f32 %v7833, %v8621
  %v8732 = vadd.f32 %v7834, %v8624
  %v8733 = vadd.f32 %v7835, %v8629
  %v8734 = vadd.f32 %v7836, %v8632
  %v8735 = vadd.f32 %v7837, %v8637
  %v8736 = vadd.f32 %v7838, %v8640
  %v8737 = vadd.f32 %v7839, %v8645
  %v8738 = vadd.f32 %v7840, %v8648
  %v8739 = vadd.f32 %v7841, %v8653
  %v8740 = vadd.f32 %v7842, %v8656
  %v8741 = vadd.f32 %v7843, %v8661
  %v8742 = vadd.f32 %v7844, %v8664
  %v8743 = vadd.f32 %v7845, %v8669
  %v8744 = vadd.f32 %v7846, %v8672
  %v8745 = vadd.f32 %v7847, %v8677
  %v8746 = vadd.f32 %v7848, %v8680
  %v8747 = vld [vmem:[%s2] sm:$0x1]
  %v8749 = vlaneseq
  %v8750 = vshrl.u32 %v8749, 7
  %v8751 = vsub.s32 0, %v8750
  %v8752 = vrot.slane %v8747, %v8751
  %v8754 = vmul.f32 %v8683, %v8752
  %v8755 = vmul.f32 %v8684, %v8752
  %v8756 = vmul.f32 %v8685, %v8752
  %v8757 = vmul.f32 %v8686, %v8752
  %v8758 = vmul.f32 %v8687, %v8752
  %v8759 = vmul.f32 %v8688, %v8752
  %v8760 = vmul.f32 %v8689, %v8752
  %v8761 = vmul.f32 %v8690, %v8752
  %v8762 = vmul.f32 %v8691, %v8752
  %v8763 = vmul.f32 %v8692, %v8752
  %v8764 = vmul.f32 %v8693, %v8752
  %v8765 = vmul.f32 %v8694, %v8752
  %v8766 = vmul.f32 %v8695, %v8752
  %v8767 = vmul.f32 %v8696, %v8752
  %v8768 = vmul.f32 %v8697, %v8752
  %v8769 = vmul.f32 %v8698, %v8752
  %v8770 = vmul.f32 %v8699, %v8752
  %v8771 = vmul.f32 %v8700, %v8752
  %v8772 = vmul.f32 %v8701, %v8752
  %v8773 = vmul.f32 %v8702, %v8752
  %v8774 = vmul.f32 %v8703, %v8752
  %v8775 = vmul.f32 %v8704, %v8752
  %v8776 = vmul.f32 %v8705, %v8752
  %v8777 = vmul.f32 %v8706, %v8752
  %v8778 = vmul.f32 %v8707, %v8752
  %v8779 = vmul.f32 %v8708, %v8752
  %v8780 = vmul.f32 %v8709, %v8752
  %v8781 = vmul.f32 %v8710, %v8752
  %v8782 = vmul.f32 %v8711, %v8752
  %v8783 = vmul.f32 %v8712, %v8752
  %v8784 = vmul.f32 %v8713, %v8752
  %v8785 = vmul.f32 %v8714, %v8752
  %v8786 = vmul.f32 %v8715, %v8752
  %v8787 = vmul.f32 %v8716, %v8752
  %v8788 = vmul.f32 %v8717, %v8752
  %v8789 = vmul.f32 %v8718, %v8752
  %v8790 = vmul.f32 %v8719, %v8752
  %v8791 = vmul.f32 %v8720, %v8752
  %v8792 = vmul.f32 %v8721, %v8752
  %v8793 = vmul.f32 %v8722, %v8752
  %v8794 = vmul.f32 %v8723, %v8752
  %v8795 = vmul.f32 %v8724, %v8752
  %v8796 = vmul.f32 %v8725, %v8752
  %v8797 = vmul.f32 %v8726, %v8752
  %v8798 = vmul.f32 %v8727, %v8752
  %v8799 = vmul.f32 %v8728, %v8752
  %v8800 = vmul.f32 %v8729, %v8752
  %v8801 = vmul.f32 %v8730, %v8752
  %v8802 = vmul.f32 %v8731, %v8752
  %v8803 = vmul.f32 %v8732, %v8752
  %v8804 = vmul.f32 %v8733, %v8752
  %v8805 = vmul.f32 %v8734, %v8752
  %v8806 = vmul.f32 %v8735, %v8752
  %v8807 = vmul.f32 %v8736, %v8752
  %v8808 = vmul.f32 %v8737, %v8752
  %v8809 = vmul.f32 %v8738, %v8752
  %v8810 = vmul.f32 %v8739, %v8752
  %v8811 = vmul.f32 %v8740, %v8752
  %v8812 = vmul.f32 %v8741, %v8752
  %v8813 = vmul.f32 %v8742, %v8752
  %v8814 = vmul.f32 %v8743, %v8752
  %v8815 = vmul.f32 %v8744, %v8752
  %v8816 = vmul.f32 %v8745, %v8752
  %v8817 = vmul.f32 %v8746, %v8752
  %v8818 = vld [vmem:[%s3] sm:$0x1]
  %v8820 = vlaneseq
  %v8821 = vshrl.u32 %v8820, 7
  %v8822 = vsub.s32 0, %v8821
  %v8823 = vrot.slane %v8818, %v8822
  %v8825 = vadd.f32 %v8754, %v8823
  %v8826 = vadd.f32 %v8755, %v8823
  %v8827 = vadd.f32 %v8756, %v8823
  %v8828 = vadd.f32 %v8757, %v8823
  %v8829 = vadd.f32 %v8758, %v8823
  %v8830 = vadd.f32 %v8759, %v8823
  %v8831 = vadd.f32 %v8760, %v8823
  %v8832 = vadd.f32 %v8761, %v8823
  %v8833 = vadd.f32 %v8762, %v8823
  %v8834 = vadd.f32 %v8763, %v8823
  %v8835 = vadd.f32 %v8764, %v8823
  %v8836 = vadd.f32 %v8765, %v8823
  %v8837 = vadd.f32 %v8766, %v8823
  %v8838 = vadd.f32 %v8767, %v8823
  %v8839 = vadd.f32 %v8768, %v8823
  %v8840 = vadd.f32 %v8769, %v8823
  %v8841 = vadd.f32 %v8770, %v8823
  %v8842 = vadd.f32 %v8771, %v8823
  %v8843 = vadd.f32 %v8772, %v8823
  %v8844 = vadd.f32 %v8773, %v8823
  %v8845 = vadd.f32 %v8774, %v8823
  %v8846 = vadd.f32 %v8775, %v8823
  %v8847 = vadd.f32 %v8776, %v8823
  %v8848 = vadd.f32 %v8777, %v8823
  %v8849 = vadd.f32 %v8778, %v8823
  %v8850 = vadd.f32 %v8779, %v8823
  %v8851 = vadd.f32 %v8780, %v8823
  %v8852 = vadd.f32 %v8781, %v8823
  %v8853 = vadd.f32 %v8782, %v8823
  %v8854 = vadd.f32 %v8783, %v8823
  %v8855 = vadd.f32 %v8784, %v8823
  %v8856 = vadd.f32 %v8785, %v8823
  %v8857 = vadd.f32 %v8786, %v8823
  %v8858 = vadd.f32 %v8787, %v8823
  %v8859 = vadd.f32 %v8788, %v8823
  %v8860 = vadd.f32 %v8789, %v8823
  %v8861 = vadd.f32 %v8790, %v8823
  %v8862 = vadd.f32 %v8791, %v8823
  %v8863 = vadd.f32 %v8792, %v8823
  %v8864 = vadd.f32 %v8793, %v8823
  %v8865 = vadd.f32 %v8794, %v8823
  %v8866 = vadd.f32 %v8795, %v8823
  %v8867 = vadd.f32 %v8796, %v8823
  %v8868 = vadd.f32 %v8797, %v8823
  %v8869 = vadd.f32 %v8798, %v8823
  %v8870 = vadd.f32 %v8799, %v8823
  %v8871 = vadd.f32 %v8800, %v8823
  %v8872 = vadd.f32 %v8801, %v8823
  %v8873 = vadd.f32 %v8802, %v8823
  %v8874 = vadd.f32 %v8803, %v8823
  %v8875 = vadd.f32 %v8804, %v8823
  %v8876 = vadd.f32 %v8805, %v8823
  %v8877 = vadd.f32 %v8806, %v8823
  %v8878 = vadd.f32 %v8807, %v8823
  %v8879 = vadd.f32 %v8808, %v8823
  %v8880 = vadd.f32 %v8809, %v8823
  %v8881 = vadd.f32 %v8810, %v8823
  %v8882 = vadd.f32 %v8811, %v8823
  %v8883 = vadd.f32 %v8812, %v8823
  %v8884 = vadd.f32 %v8813, %v8823
  %v8885 = vadd.f32 %v8814, %v8823
  %v8886 = vadd.f32 %v8815, %v8823
  %v8887 = vadd.f32 %v8816, %v8823
  %v8888 = vadd.f32 %v8817, %v8823
  %v8889 = vmax.f32 %v8825, 0.0
  %v8890 = vmax.f32 %v8826, 0.0
  %v8891 = vmax.f32 %v8827, 0.0
  %v8892 = vmax.f32 %v8828, 0.0
  %v8893 = vmax.f32 %v8829, 0.0
  %v8894 = vmax.f32 %v8830, 0.0
  %v8895 = vmax.f32 %v8831, 0.0
  %v8896 = vmax.f32 %v8832, 0.0
  %v8897 = vmax.f32 %v8833, 0.0
  %v8898 = vmax.f32 %v8834, 0.0
  %v8899 = vmax.f32 %v8835, 0.0
  %v8900 = vmax.f32 %v8836, 0.0
  %v8901 = vmax.f32 %v8837, 0.0
  %v8902 = vmax.f32 %v8838, 0.0
  %v8903 = vmax.f32 %v8839, 0.0
  %v8904 = vmax.f32 %v8840, 0.0
  %v8905 = vmax.f32 %v8841, 0.0
  %v8906 = vmax.f32 %v8842, 0.0
  %v8907 = vmax.f32 %v8843, 0.0
  %v8908 = vmax.f32 %v8844, 0.0
  %v8909 = vmax.f32 %v8845, 0.0
  %v8910 = vmax.f32 %v8846, 0.0
  %v8911 = vmax.f32 %v8847, 0.0
  %v8912 = vmax.f32 %v8848, 0.0
  %v8913 = vmax.f32 %v8849, 0.0
  %v8914 = vmax.f32 %v8850, 0.0
  %v8915 = vmax.f32 %v8851, 0.0
  %v8916 = vmax.f32 %v8852, 0.0
  %v8917 = vmax.f32 %v8853, 0.0
  %v8918 = vmax.f32 %v8854, 0.0
  %v8919 = vmax.f32 %v8855, 0.0
  %v8920 = vmax.f32 %v8856, 0.0
  %v8921 = vmax.f32 %v8857, 0.0
  %v8922 = vmax.f32 %v8858, 0.0
  %v8923 = vmax.f32 %v8859, 0.0
  %v8924 = vmax.f32 %v8860, 0.0
  %v8925 = vmax.f32 %v8861, 0.0
  %v8926 = vmax.f32 %v8862, 0.0
  %v8927 = vmax.f32 %v8863, 0.0
  %v8928 = vmax.f32 %v8864, 0.0
  %v8929 = vmax.f32 %v8865, 0.0
  %v8930 = vmax.f32 %v8866, 0.0
  %v8931 = vmax.f32 %v8867, 0.0
  %v8932 = vmax.f32 %v8868, 0.0
  %v8933 = vmax.f32 %v8869, 0.0
  %v8934 = vmax.f32 %v8870, 0.0
  %v8935 = vmax.f32 %v8871, 0.0
  %v8936 = vmax.f32 %v8872, 0.0
  %v8937 = vmax.f32 %v8873, 0.0
  %v8938 = vmax.f32 %v8874, 0.0
  %v8939 = vmax.f32 %v8875, 0.0
  %v8940 = vmax.f32 %v8876, 0.0
  %v8941 = vmax.f32 %v8877, 0.0
  %v8942 = vmax.f32 %v8878, 0.0
  %v8943 = vmax.f32 %v8879, 0.0
  %v8944 = vmax.f32 %v8880, 0.0
  %v8945 = vmax.f32 %v8881, 0.0
  %v8946 = vmax.f32 %v8882, 0.0
  %v8947 = vmax.f32 %v8883, 0.0
  %v8948 = vmax.f32 %v8884, 0.0
  %v8949 = vmax.f32 %v8885, 0.0
  %v8950 = vmax.f32 %v8886, 0.0
  %v8951 = vmax.f32 %v8887, 0.0
  %v8952 = vmax.f32 %v8888, 0.0
  %8953 = vst [vmem:[%s4] sm:$0xff] %v8889
  %8954 = vst [vmem:[%s4 + $0x8] sm:$0xff] %v8890
  %8955 = vst [vmem:[%s4 + $0x10] sm:$0xff] %v8891
  %8956 = vst [vmem:[%s4 + $0x18] sm:$0xff] %v8892
  %8957 = vst [vmem:[%s4 + $0x20] sm:$0xff] %v8893
  %8958 = vst [vmem:[%s4 + $0x28] sm:$0xff] %v8894
  %8959 = vst [vmem:[%s4 + $0x30] sm:$0xff] %v8895
  %8960 = vst [vmem:[%s4 + $0x38] sm:$0xff] %v8896
  %8961 = vst [vmem:[%s4 + $0x40] sm:$0xff] %v8897
  %8962 = vst [vmem:[%s4 + $0x48] sm:$0xff] %v8898
  %8963 = vst [vmem:[%s4 + $0x50] sm:$0xff] %v8899
  %8964 = vst [vmem:[%s4 + $0x58] sm:$0xff] %v8900
  %8965 = vst [vmem:[%s4 + $0x60] sm:$0xff] %v8901
  %8966 = vst [vmem:[%s4 + $0x68] sm:$0xff] %v8902
  %8967 = vst [vmem:[%s4 + $0x70] sm:$0xff] %v8903
  %8968 = vst [vmem:[%s4 + $0x78] sm:$0xff] %v8904
  %8969 = vst [vmem:[%s4 + $0x80] sm:$0xff] %v8905
  %8970 = vst [vmem:[%s4 + $0x88] sm:$0xff] %v8906
  %8971 = vst [vmem:[%s4 + $0x90] sm:$0xff] %v8907
  %8972 = vst [vmem:[%s4 + $0x98] sm:$0xff] %v8908
  %8973 = vst [vmem:[%s4 + $0xa0] sm:$0xff] %v8909
  %8974 = vst [vmem:[%s4 + $0xa8] sm:$0xff] %v8910
  %8975 = vst [vmem:[%s4 + $0xb0] sm:$0xff] %v8911
  %8976 = vst [vmem:[%s4 + $0xb8] sm:$0xff] %v8912
  %8977 = vst [vmem:[%s4 + $0xc0] sm:$0xff] %v8913
  %8978 = vst [vmem:[%s4 + $0xc8] sm:$0xff] %v8914
  %8979 = vst [vmem:[%s4 + $0xd0] sm:$0xff] %v8915
  %8980 = vst [vmem:[%s4 + $0xd8] sm:$0xff] %v8916
  %8981 = vst [vmem:[%s4 + $0xe0] sm:$0xff] %v8917
  %8982 = vst [vmem:[%s4 + $0xe8] sm:$0xff] %v8918
  %8983 = vst [vmem:[%s4 + $0xf0] sm:$0xff] %v8919
  %8984 = vst [vmem:[%s4 + $0xf8] sm:$0xff] %v8920
  %8985 = vst [vmem:[%s4 + $0x100] sm:$0xff] %v8921
  %8986 = vst [vmem:[%s4 + $0x108] sm:$0xff] %v8922
  %8987 = vst [vmem:[%s4 + $0x110] sm:$0xff] %v8923
  %8988 = vst [vmem:[%s4 + $0x118] sm:$0xff] %v8924
  %8989 = vst [vmem:[%s4 + $0x120] sm:$0xff] %v8925
  %8990 = vst [vmem:[%s4 + $0x128] sm:$0xff] %v8926
  %8991 = vst [vmem:[%s4 + $0x130] sm:$0xff] %v8927
  %8992 = vst [vmem:[%s4 + $0x138] sm:$0xff] %v8928
  %8993 = vst [vmem:[%s4 + $0x140] sm:$0xff] %v8929
  %8994 = vst [vmem:[%s4 + $0x148] sm:$0xff] %v8930
  %8995 = vst [vmem:[%s4 + $0x150] sm:$0xff] %v8931
  %8996 = vst [vmem:[%s4 + $0x158] sm:$0xff] %v8932
  %8997 = vst [vmem:[%s4 + $0x160] sm:$0xff] %v8933
  %8998 = vst [vmem:[%s4 + $0x168] sm:$0xff] %v8934
  %8999 = vst [vmem:[%s4 + $0x170] sm:$0xff] %v8935
  %9000 = vst [vmem:[%s4 + $0x178] sm:$0xff] %v8936
  %9001 = vst [vmem:[%s4 + $0x180] sm:$0xff] %v8937
  %9002 = vst [vmem:[%s4 + $0x188] sm:$0xff] %v8938
  %9003 = vst [vmem:[%s4 + $0x190] sm:$0xff] %v8939
  %9004 = vst [vmem:[%s4 + $0x198] sm:$0xff] %v8940
  %9005 = vst [vmem:[%s4 + $0x1a0] sm:$0xff] %v8941
  %9006 = vst [vmem:[%s4 + $0x1a8] sm:$0xff] %v8942
  %9007 = vst [vmem:[%s4 + $0x1b0] sm:$0xff] %v8943
  %9008 = vst [vmem:[%s4 + $0x1b8] sm:$0xff] %v8944
  %9009 = vst [vmem:[%s4 + $0x1c0] sm:$0xff] %v8945
  %9010 = vst [vmem:[%s4 + $0x1c8] sm:$0xff] %v8946
  %9011 = vst [vmem:[%s4 + $0x1d0] sm:$0xff] %v8947
  %9012 = vst [vmem:[%s4 + $0x1d8] sm:$0xff] %v8948
  %9013 = vst [vmem:[%s4 + $0x1e0] sm:$0xff] %v8949
  %9014 = vst [vmem:[%s4 + $0x1e8] sm:$0xff] %v8950
  %9015 = vst [vmem:[%s4 + $0x1f0] sm:$0xff] %v8951
  %9016 = vst [vmem:[%s4 + $0x1f8] sm:$0xff] %v8952
  // Predicated region
  $region18: #{convlayer_forward.1} parent=0 // pred_check
    _
  $region19: #{convlayer_forward.1} parent=0 // pred_check_branch
    %9018 = sbr.rel (0) target = $region21
  $region20: #{convlayer_forward.1} parent=0 // pred_region
    _
  $region21: #{convlayer_forward.1} parent=0 // pred_fallthru
    _
  // Predicated region
  $region22: #{convlayer_forward.1} parent=0 // pred_check
    _
  $region23: #{convlayer_forward.1} parent=0 // pred_check_branch
    %9020 = sbr.rel (0) target = $region25
  $region24: #{convlayer_forward.1} parent=0 // pred_region
    _
  $region25: #{convlayer_forward.1} parent=0 // pred_fallthru
    _

</llo_original>
